<compile_context>
chip_gen: v7x
topology: tpu7x:2x2x1
jax: 0.10.0
libtpu: 0.0.40
codegen_flags: <defaults>
</compile_context>

<pallas_src>
import math
import numpy as np
import jax
import jax.numpy as jnp
from jax.experimental import pallas as pl
from jax.experimental.pallas import tpu as pltpu


# ---------------------------------------------------------------------------
# ALiBi slopes (exact port of the torch helper)
# ---------------------------------------------------------------------------
def _get_alibi_head_slopes(n_heads):
    def get_slopes_power_of_2(n):
        start = 2 ** (-2 ** (-(math.log2(n) - 3)))
        ratio = start
        return [start * ratio ** i for i in range(n)]

    if math.log2(n_heads).is_integer():
        return get_slopes_power_of_2(n_heads)
    closest = 2 ** math.floor(math.log2(n_heads))
    a = get_slopes_power_of_2(closest)
    b = _get_alibi_head_slopes(2 * closest)[0::2][: n_heads - closest]
    return a + b


# ---------------------------------------------------------------------------
# Per-generation tuning (VMEM limit + query-tile size)
# ---------------------------------------------------------------------------
def _chip_config():
    vmem_limit = 48 * 1024 * 1024              # safe fallback on every generation
    try:
        cap = int(pltpu.get_tpu_info().vmem_capacity_bytes)
        # leave headroom for compiler scratch / pipeline buffers:
        #   v7x (64 MiB)  -> ~51 MiB,  v5e/v6e (128 MiB) -> ~102 MiB
        vmem_limit = min(int(cap * 0.8), cap - (8 << 20))
    except Exception:
        pass
    desired_tq = 128                           # v5e/v4 MXU is 128-wide -> 128 rows already fill it
    try:
        kind = jax.devices()[0].device_kind.lower()
        if ("v6" in kind) or ("v7" in kind):   # 256-wide MXU -> bigger M tile
            desired_tq = 256
    except Exception:
        pass
    return vmem_limit, desired_tq


# ---------------------------------------------------------------------------
# Fused core kernel: ALiBi-biased MHSA + GELU FFN + 2 LayerNorms
# ---------------------------------------------------------------------------
def _core_kernel_factory(T, H, nH, dh, tq, slopes):
    def _ln(x, g, b, eps=1e-12):
        mu = jnp.mean(x, axis=-1, keepdims=True)
        xc = x - mu
        var = jnp.mean(xc * xc, axis=-1, keepdims=True)
        return xc * jax.lax.rsqrt(var + eps) * g + b

    def kernel(mask_ref, h_ref,
               wq_ref, bq_ref, wkv_ref, bkv_ref, wo_ref, bo_ref,
               ln1g_ref, ln1b_ref, w1_ref, b1_ref, w2_ref, b2_ref,
               ln2g_ref, ln2b_ref,
               out_ref, k_scr, v_scr, ctx_ref):
        qi = pl.program_id(1)
        q0 = pl.multiple_of(qi * tq, tq)

        # ---- K/V for the full (padded) row: computed once per batch row (qi == 0),
        # ---- cached in persistent bf16 VMEM scratch and reused by every query tile.
        @pl.when(qi == 0)
        def _():
            x_bf = h_ref[0]                                     # (T, H) bf16
            kv = jnp.dot(x_bf, wkv_ref[...],
                         preferred_element_type=jnp.float32) + bkv_ref[...]   # (T, 2H) f32
            k_scr[...] = kv[:, :H].astype(jnp.bfloat16)
            v_scr[...] = kv[:, H:].astype(jnp.bfloat16)

        xq_bf = h_ref[0, pl.ds(q0, tq), :]                      # (tq, H) bf16
        x_tile = xq_bf.astype(jnp.float32)                      # residual / LN path in f32

        # Q only for this query tile (1/sqrt(dh) pre-folded into wq/bq).
        q = jnp.dot(xq_bf, wq_ref[...],
                    preferred_element_type=jnp.float32) + bq_ref[...]          # (tq, H)

        # Fused ALiBi bias -- never touches HBM. Padded keys are removed by
        # multiplying the exp'd scores with the (1, T) key mask (cheaper than a
        # -1e4 additive bias per head).
        mask_row = mask_ref[0]                                  # (1, T) f32, bcast over rows
        row = jax.lax.broadcasted_iota(jnp.int32, (tq, T), 0) + q0
        col = jax.lax.broadcasted_iota(jnp.int32, (tq, T), 1)
        rel = -(jnp.abs(col - row).astype(jnp.float32))         # (tq, T)

        for hh in range(nH):                                    # small static head loop
            c0 = hh * dh
            qh = q[:, c0:c0 + dh].astype(jnp.bfloat16)
            kh = k_scr[:, c0:c0 + dh]                           # (T, dh) bf16, cached
            vh = v_scr[:, c0:c0 + dh]
            s = jax.lax.dot_general(qh, kh, (((1,), (1,)), ((), ())),
                                    preferred_element_type=jnp.float32)        # (tq, T)
            s = s + slopes[hh] * rel
            s = s - jnp.max(s, axis=-1, keepdims=True)
            e = jnp.exp(s) * mask_row                           # zero out padded keys
            p = e * pl.reciprocal(jnp.sum(e, axis=-1, keepdims=True), approx=True)
            ctx_ref[:, c0:c0 + dh] = jnp.dot(p.astype(jnp.bfloat16), vh,
                                             preferred_element_type=jnp.float32)

        ctx = ctx_ref[...]                                      # (tq, H) f32
        attn = jnp.dot(ctx.astype(jnp.bfloat16), wo_ref[...],
                       preferred_element_type=jnp.float32) + bo_ref[...]
        x1 = _ln(x_tile + attn, ln1g_ref[...], ln1b_ref[...])
        ff = jax.nn.gelu(jnp.dot(x1.astype(jnp.bfloat16), w1_ref[...],
                                 preferred_element_type=jnp.float32) + b1_ref[...])
        ff = jnp.dot(ff.astype(jnp.bfloat16), w2_ref[...],
                     preferred_element_type=jnp.float32) + b2_ref[...]
        out_ref[0] = _ln(x1 + ff, ln2g_ref[...], ln2b_ref[...])

    return kernel


def run_core(hidden_bf16, mask3, plist, slopes, tq, vmem_limit):
    bs, T, H = hidden_bf16.shape
    nH = len(slopes)
    dh = H // nH
    F = plist[8].shape[1]                                       # w1: (H, F)
    assert T % tq == 0
    n_qt = T // tq

    kernel = _core_kernel_factory(T, H, nH, dh, tq, tuple(float(s) for s in slopes))

    # Cost estimate (KV GEMM amortized once per batch row thanks to the cache).
    flops = bs * (4 * T * H * H
                  + n_qt * (2 * tq * H * H + 4 * tq * T * H + 2 * tq * H * H + 4 * tq * H * F))
    transcend = bs * n_qt * (nH * tq * T + tq * F)
    bytes_accessed = (hidden_bf16.size * 2 + mask3.size * 4 + bs * T * H * 4
                      + sum(int(np.prod(p.shape)) * p.dtype.itemsize for p in plist))

    def _build_call(single_buffer_weights):
        wkw = {"pipeline_mode": pl.Buffered(1)} if single_buffer_weights else {}
        in_specs = [
            pl.BlockSpec((1, 1, T), lambda b, qi: (b, 0, 0)),   # key-padding mask
            pl.BlockSpec((1, T, H), lambda b, qi: (b, 0, 0)),   # hidden (full row, reused over qi)
        ]
        for p in plist:                                          # weights: constant block index
            in_specs.append(pl.BlockSpec(p.shape, lambda b, qi: (0, 0), **wkw))
        return pl.pallas_call(
            kernel,
            out_shape=jax.ShapeDtypeStruct((bs, T, H), jnp.float32),
            grid=(bs, n_qt),
            in_specs=in_specs,
            out_specs=pl.BlockSpec((1, tq, H), lambda b, qi: (b, qi, 0)),
            scratch_shapes=[
                pltpu.VMEM((T, H), jnp.bfloat16),               # K cache (per batch row)
                pltpu.VMEM((T, H), jnp.bfloat16),               # V cache (per batch row)
                pltpu.VMEM((tq, H), jnp.float32),               # per-tile context slab
            ],
            compiler_params=pltpu.CompilerParams(
                # batch rows parallel (megacore); q tiles sequential so the qi==0
                # K/V-cache fill is guaranteed to precede qi>0 of the same row.
                dimension_semantics=("parallel", "arbitrary"),
                vmem_limit_bytes=int(vmem_limit)),
            cost_estimate=pl.CostEstimate(flops=int(flops),
                                          transcendentals=int(transcend),
                                          bytes_accessed=int(bytes_accessed)),
        )(mask3, hidden_bf16, *plist)

    try:
        out = _build_call(True)                                  # single-buffered weights
        return jax.block_until_ready(out)
    except Exception:
        return _build_call(False)                                # fallback: default buffering


# ---------------------------------------------------------------------------
# Wrapper mirroring _MosaicLayerWrapper.forward
# ---------------------------------------------------------------------------
def mosaic_layer_wrapper_forward(hidden, attention_mask, params, n_heads, tq=None):
    hidden = jnp.asarray(hidden, jnp.float32)
    bs, L, H = hidden.shape
    if attention_mask is None:
        attention_mask = np.ones((bs, L), dtype=np.int32)
    mask_np = np.asarray(attention_mask)

    lengths = mask_np.sum(1).astype(np.int32)
    cu_seqlens = np.concatenate([np.zeros(1, np.int32),
                                 np.cumsum(lengths).astype(np.int32)])  # parity w/ torch; unused here
    max_len = int(lengths.max())
    mask_slice = mask_np[:, :max_len]
    flat_idx = np.nonzero(mask_slice.reshape(-1))[0]             # scatter indices (torch parity)

    vmem_limit, desired_tq = _chip_config()
    if tq is None:
        tq = desired_tq

    # Host-side bucketing: pad seq to a multiple of 128 for lane-dense tiles and a stable
    # compile cache; masked keys are neutralized in-kernel.
    T_pad = max(128, ((max_len + 127) // 128) * 128)
    if tq > T_pad or T_pad % tq != 0:
        tq = 128

    mask_pad = np.zeros((bs, T_pad), np.float32)
    mask_pad[:, :max_len] = mask_slice
    flat_idx_pad = np.nonzero(mask_pad.reshape(-1))[0]           # gather indices in padded coords

    # hidden enters the kernel as bf16 (halves activation DMA / VMEM footprint).
    hidden_pad = jnp.zeros((bs, T_pad, H), jnp.bfloat16).at[:, :max_len, :].set(
        hidden[:, :max_len, :].astype(jnp.bfloat16))

    # Weight prep: split wqkv -> wq (scaled) + wkv, bf16 matmul weights.
    dh = H // n_heads
    inv_sqrt_dh = 1.0 / math.sqrt(dh)
    wq = (params["wqkv"][:, :H] * inv_sqrt_dh).astype(jnp.bfloat16)
    bq = (params["bqkv"][:, :H] * inv_sqrt_dh).astype(jnp.float32)
    wkv = params["wqkv"][:, H:].astype(jnp.bfloat16)
    bkv = params["bqkv"][:, H:].astype(jnp.float32)
    plist = [wq, bq, wkv, bkv,
             params["wo"].astype(jnp.bfloat16), params["bo"],
             params["ln1_g"], params["ln1_b"],
             params["w1"].astype(jnp.bfloat16), params["b1"],
             params["w2"].astype(jnp.bfloat16), params["b2"],
             params["ln2_g"], params["ln2_b"]]

    slopes = _get_alibi_head_slopes(n_heads)
    mask3 = jnp.asarray(mask_pad).reshape(bs, 1, T_pad)
    core_out = run_core(hidden_pad, mask3, plist, slopes, tq, vmem_limit)

    out_unpadded = core_out.reshape(bs * T_pad, H)[flat_idx_pad]     # (n_valid, H)
    padded = hidden.reshape(bs * L, H).at[flat_idx].set(out_unpadded).reshape(bs, L, H)
    return padded, None


# ---------------------------------------------------------------------------
# Deterministic synthetic parameters
# ---------------------------------------------------------------------------
def init_params(key, H, F):
    ks = jax.random.split(key, 4)
    s = 0.02
    return {
        "wqkv": s * jax.random.normal(ks[0], (H, 3 * H), jnp.float32),
        "bqkv": jnp.zeros((1, 3 * H), jnp.float32),
        "wo":   s * jax.random.normal(ks[1], (H, H), jnp.float32),
        "bo":   jnp.zeros((1, H), jnp.float32),
        "ln1_g": jnp.ones((1, H), jnp.float32),
        "ln1_b": jnp.zeros((1, H), jnp.float32),
        "w1":   s * jax.random.normal(ks[2], (H, F), jnp.float32),
        "b1":   jnp.zeros((1, F), jnp.float32),
        "w2":   s * jax.random.normal(ks[3], (F, H), jnp.float32),
        "b2":   jnp.zeros((1, H), jnp.float32),
        "ln2_g": jnp.ones((1, H), jnp.float32),
        "ln2_b": jnp.zeros((1, H), jnp.float32),
    }


# ---------------------------------------------------------------------------
# Pure-JAX reference (for correctness check)
# ---------------------------------------------------------------------------
def _reference_bias(mask_slice, slopes):
    bs, T = mask_slice.shape
    nH = slopes.shape[0]
    rel = np.abs(np.arange(T)[None, :] - np.arange(T)[:, None]).astype(np.float32)
    alibi = slopes[:, None, None] * (-rel)
    alibi = np.broadcast_to(alibi[None], (bs, nH, T, T))
    pad = -10000.0 * (1.0 - mask_slice.astype(np.float32))[:, None, None, :]
    return alibi + pad


def _reference_core(x, bias, p, nH):
    bs, T, H = x.shape
    dh = H // nH
    hp = jax.lax.Precision.HIGHEST

    def ln(y, g, b, eps=1e-12):
        mu = jnp.mean(y, -1, keepdims=True)
        var = jnp.mean((y - mu) ** 2, -1, keepdims=True)
        return (y - mu) * jax.lax.rsqrt(var + eps) * g + b

    qkv = jnp.einsum("bth,hf->btf", x, p["wqkv"], precision=hp) + p["bqkv"][0]
    q, k, v = qkv[..., :H], qkv[..., H:2 * H], qkv[..., 2 * H:]
    q = q.reshape(bs, T, nH, dh).transpose(0, 2, 1, 3)
    k = k.reshape(bs, T, nH, dh).transpose(0, 2, 1, 3)
    v = v.reshape(bs, T, nH, dh).transpose(0, 2, 1, 3)
    s = jnp.einsum("bhqd,bhkd->bhqk", q, k, precision=hp) / math.sqrt(dh) + bias
    s = s - jnp.max(s, axis=-1, keepdims=True)
    e = jnp.exp(s)
    pr = e / jnp.sum(e, axis=-1, keepdims=True)
    ctx = jnp.einsum("bhqk,bhkd->bhqd", pr, v, precision=hp)
    ctx = ctx.transpose(0, 2, 1, 3).reshape(bs, T, H)
    attn = jnp.einsum("bth,hf->btf", ctx, p["wo"], precision=hp) + p["bo"][0]
    x1 = ln(x + attn, p["ln1_g"][0], p["ln1_b"][0])
    ff = jax.nn.gelu(jnp.einsum("bth,hf->btf", x1, p["w1"], precision=hp) + p["b1"][0])
    ff = jnp.einsum("btf,fh->bth", ff, p["w2"], precision=hp) + p["b2"][0]
    return ln(x1 + ff, p["ln2_g"][0], p["ln2_b"][0])


def _reference_forward(hidden, attention_mask, params, nH):
    bs, L, H = hidden.shape
    lengths = attention_mask.sum(1)
    max_len = int(lengths.max())
    mask_slice = attention_mask[:, :max_len]
    flat_idx = np.nonzero(mask_slice.reshape(-1))[0]
    slopes = np.asarray(_get_alibi_head_slopes(nH), np.float32)
    bias_ref = jnp.asarray(_reference_bias(mask_slice, slopes))
    core_ref = _reference_core(hidden[:, :max_len, :], bias_ref, params, nH)
    return hidden.reshape(bs * L, H).at[flat_idx].set(
        core_ref.reshape(bs * max_len, H)[flat_idx]).reshape(bs, L, H)


# ---------------------------------------------------------------------------
if __name__ == "__main__":
    bs, L, H, nH = 2, 16, 32, 4
    F = 4 * H

    key = jax.random.PRNGKey(0)
    k_h, k_p = jax.random.split(key)
    hidden = jax.random.normal(k_h, (bs, L, H), jnp.float32)
    attention_mask = np.ones((bs, L), dtype=np.int32)
    attention_mask[1, 12:] = 0          # lengths = [16, 12]; right-padded
    params = init_params(k_p, H, F)

    out, attn_probs = mosaic_layer_wrapper_forward(hidden, attention_mask, params, nH)
    out = jax.block_until_ready(out)
    out_ref = _reference_forward(hidden, attention_mask, params, nH)
    np.testing.assert_allclose(np.asarray(out), np.asarray(out_ref), rtol=2e-2, atol=2e-2)
    assert attn_probs is None

    # Second check: multiple query tiles in one batch row -> exercises the persistent
    # per-row K/V VMEM cache (qi > 0 reuses scratch filled at qi == 0) and T_pad > max_len.
    bs2, L2 = 1, 200
    hidden2 = jax.random.normal(jax.random.PRNGKey(1), (bs2, L2, H), jnp.float32)
    mask2 = np.ones((bs2, L2), dtype=np.int32)
    mask2[0, 190:] = 0                  # max_len = 190 -> T_pad = 256, n_qt = 2 with tq = 128
    out2, _ = mosaic_layer_wrapper_forward(hidden2, mask2, params, nH, tq=128)
    out2 = jax.block_until_ready(out2)
    out2_ref = _reference_forward(hidden2, mask2, params, nH)
    np.testing.assert_allclose(np.asarray(out2), np.asarray(out2_ref), rtol=2e-2, atol=2e-2)

    print("KERNEL_OK")
</pallas_src>

<mosaic_0001>
module attributes {stable_mosaic.version = 11 : i64} {
  func.func @kernel(%arg0: i32, %arg1: i32, %arg2: memref<1x1x128xf32, #tpu.memory_space<vmem>>, %arg3: memref<1x128x32xbf16, #tpu.memory_space<vmem>>, %arg4: memref<32x32xbf16, #tpu.memory_space<vmem>>, %arg5: memref<1x32xf32, #tpu.memory_space<vmem>>, %arg6: memref<32x64xbf16, #tpu.memory_space<vmem>>, %arg7: memref<1x64xf32, #tpu.memory_space<vmem>>, %arg8: memref<32x32xbf16, #tpu.memory_space<vmem>>, %arg9: memref<1x32xf32, #tpu.memory_space<vmem>>, %arg10: memref<1x32xf32, #tpu.memory_space<vmem>>, %arg11: memref<1x32xf32, #tpu.memory_space<vmem>>, %arg12: memref<32x128xbf16, #tpu.memory_space<vmem>>, %arg13: memref<1x128xf32, #tpu.memory_space<vmem>>, %arg14: memref<128x32xbf16, #tpu.memory_space<vmem>>, %arg15: memref<1x32xf32, #tpu.memory_space<vmem>>, %arg16: memref<1x32xf32, #tpu.memory_space<vmem>>, %arg17: memref<1x32xf32, #tpu.memory_space<vmem>>, %arg18: memref<1x128x32xf32, #tpu.memory_space<vmem>>, %arg19: memref<128x32xbf16, #tpu.memory_space<vmem>>, %arg20: memref<128x32xbf16, #tpu.memory_space<vmem>>, %arg21: memref<128x32xf32, #tpu.memory_space<vmem>>) attributes {dimension_semantics = [#tpu.dimension_semantics<parallel>, #tpu.dimension_semantics<arbitrary>], iteration_bounds = array<i64: 2, 1>, scalar_prefetch = 0 : i64, scratch_operands = 3 : i64, tpu.core_type = #tpu.core_type<tc>, window_params = [{transform_indices = @transform_0, window_bounds = array<i64: 1, 1, 128>}, {transform_indices = @transform_1, window_bounds = array<i64: 1, 128, 32>}, {pipeline_mode = #tpu.pipeline_mode<synchronous>, transform_indices = @transform_2, window_bounds = array<i64: 32, 32>}, {pipeline_mode = #tpu.pipeline_mode<synchronous>, transform_indices = @transform_3, window_bounds = array<i64: 1, 32>}, {pipeline_mode = #tpu.pipeline_mode<synchronous>, transform_indices = @transform_4, window_bounds = array<i64: 32, 64>}, {pipeline_mode = #tpu.pipeline_mode<synchronous>, transform_indices = @transform_5, window_bounds = array<i64: 1, 64>}, {pipeline_mode = #tpu.pipeline_mode<synchronous>, transform_indices = @transform_6, window_bounds = array<i64: 32, 32>}, {pipeline_mode = #tpu.pipeline_mode<synchronous>, transform_indices = @transform_7, window_bounds = array<i64: 1, 32>}, {pipeline_mode = #tpu.pipeline_mode<synchronous>, transform_indices = @transform_8, window_bounds = array<i64: 1, 32>}, {pipeline_mode = #tpu.pipeline_mode<synchronous>, transform_indices = @transform_9, window_bounds = array<i64: 1, 32>}, {pipeline_mode = #tpu.pipeline_mode<synchronous>, transform_indices = @transform_10, window_bounds = array<i64: 32, 128>}, {pipeline_mode = #tpu.pipeline_mode<synchronous>, transform_indices = @transform_11, window_bounds = array<i64: 1, 128>}, {pipeline_mode = #tpu.pipeline_mode<synchronous>, transform_indices = @transform_12, window_bounds = array<i64: 128, 32>}, {pipeline_mode = #tpu.pipeline_mode<synchronous>, transform_indices = @transform_13, window_bounds = array<i64: 1, 32>}, {pipeline_mode = #tpu.pipeline_mode<synchronous>, transform_indices = @transform_14, window_bounds = array<i64: 1, 32>}, {pipeline_mode = #tpu.pipeline_mode<synchronous>, transform_indices = @transform_15, window_bounds = array<i64: 1, 32>}, {transform_indices = @transform_16, window_bounds = array<i64: 1, 128, 32>}]} {
    %c128_i32 = arith.constant 128 : i32
    %0 = arith.muli %arg1, %c128_i32 : i32
    %1 = tpu.assume_multiple %0, 128 : i32
    %c0_i32 = arith.constant 0 : i32
    %2 = arith.cmpi eq, %arg1, %c0_i32 : i32
    %3 = arith.extui %2 : i1 to i32
    %c0_i32_0 = arith.constant 0 : i32
    %4 = arith.cmpi ne, %3, %c0_i32_0 : i32
    scf.if %4 {
      %c0_93 = arith.constant 0 : index
      %c0_94 = arith.constant 0 : index
      %c0_95 = arith.constant 0 : index
      %198 = vector.load %arg3[%c0_93, %c0_94, %c0_95] : memref<1x128x32xbf16, #tpu.memory_space<vmem>>, vector<1x128x32xbf16>
      %199 = vector.shape_cast %198 : vector<1x128x32xbf16> to vector<128x32xbf16>
      %c0_96 = arith.constant 0 : index
      %c0_97 = arith.constant 0 : index
      %200 = vector.load %arg6[%c0_96, %c0_97] : memref<32x64xbf16, #tpu.memory_space<vmem>>, vector<32x64xbf16>
      %cst_98 = arith.constant dense<0.000000e+00> : vector<128x64xf32>
      %201 = tpu.matmul %199, %200, %cst_98 {dimension_numbers = #tpu.dot_dimension_numbers<[1], [0], [0], [1], [0, 0, 1, 1], [], []>} : vector<128x32xbf16>, vector<32x64xbf16>, vector<128x64xf32> -> vector<128x64xf32>
      %c0_99 = arith.constant 0 : index
      %c0_100 = arith.constant 0 : index
      %202 = vector.load %arg7[%c0_99, %c0_100] : memref<1x64xf32, #tpu.memory_space<vmem>>, vector<1x64xf32>
      %203 = vector.broadcast %202 : vector<1x64xf32> to vector<128x64xf32>
      %204 = arith.addf %201, %203 : vector<128x64xf32>
      %205 = vector.extract_strided_slice %204 {offsets = [0, 0], sizes = [128, 32], strides = [1, 1]} : vector<128x64xf32> to vector<128x32xf32>
      %206 = arith.truncf %205 : vector<128x32xf32> to vector<128x32xbf16>
      %c0_101 = arith.constant 0 : index
      %c0_102 = arith.constant 0 : index
      %207 = vector.load %arg19[%c0_101, %c0_102] : memref<128x32xbf16, #tpu.memory_space<vmem>>, vector<128x32xbf16>
      tpu.vector_store %arg19[%c0_101, %c0_102], %206 {strides = array<i32>} : memref<128x32xbf16, #tpu.memory_space<vmem>>, vector<128x32xbf16>,
      %208 = vector.extract_strided_slice %204 {offsets = [0, 32], sizes = [128, 32], strides = [1, 1]} : vector<128x64xf32> to vector<128x32xf32>
      %209 = arith.truncf %208 : vector<128x32xf32> to vector<128x32xbf16>
      %c0_103 = arith.constant 0 : index
      %c0_104 = arith.constant 0 : index
      %210 = vector.load %arg20[%c0_103, %c0_104] : memref<128x32xbf16, #tpu.memory_space<vmem>>, vector<128x32xbf16>
      tpu.vector_store %arg20[%c0_103, %c0_104], %209 {strides = array<i32>} : memref<128x32xbf16, #tpu.memory_space<vmem>>, vector<128x32xbf16>,
    } else {
    }
    %c0 = arith.constant 0 : index
    %5 = arith.index_cast %1 : i32 to index
    %c0_1 = arith.constant 0 : index
    %6 = vector.load %arg3[%c0, %5, %c0_1] : memref<1x128x32xbf16, #tpu.memory_space<vmem>>, vector<1x128x32xbf16>
    %7 = vector.shape_cast %6 : vector<1x128x32xbf16> to vector<128x32xbf16>
    %8 = arith.extf %7 : vector<128x32xbf16> to vector<128x32xf32>
    %c0_2 = arith.constant 0 : index
    %c0_3 = arith.constant 0 : index
    %9 = vector.load %arg4[%c0_2, %c0_3] : memref<32x32xbf16, #tpu.memory_space<vmem>>, vector<32x32xbf16>
    %cst = arith.constant dense<0.000000e+00> : vector<128x32xf32>
    %10 = tpu.matmul %7, %9, %cst {dimension_numbers = #tpu.dot_dimension_numbers<[1], [0], [0], [1], [0, 0, 1, 1], [], []>} : vector<128x32xbf16>, vector<32x32xbf16>, vector<128x32xf32> -> vector<128x32xf32>
    %c0_4 = arith.constant 0 : index
    %c0_5 = arith.constant 0 : index
    %11 = vector.load %arg5[%c0_4, %c0_5] : memref<1x32xf32, #tpu.memory_space<vmem>>, vector<1x32xf32>
    %12 = vector.broadcast %11 : vector<1x32xf32> to vector<128x32xf32>
    %13 = arith.addf %10, %12 : vector<128x32xf32>
    %c0_6 = arith.constant 0 : index
    %c0_7 = arith.constant 0 : index
    %c0_8 = arith.constant 0 : index
    %14 = vector.load %arg2[%c0_6, %c0_7, %c0_8] : memref<1x1x128xf32, #tpu.memory_space<vmem>>, vector<1x1x128xf32>
    %15 = vector.shape_cast %14 : vector<1x1x128xf32> to vector<1x128xf32>
    %16 = tpu.iota {dimensions = array<i32: 0>} : vector<128x128xi32>
    %17 = vector.broadcast %1 : i32 to vector<128x128xi32>
    %18 = arith.addi %16, %17 : vector<128x128xi32>
    %19 = tpu.iota {dimensions = array<i32: 1>} : vector<128x128xi32>
    %20 = arith.subi %19, %18 : vector<128x128xi32>
    %21 = math.absi %20 : vector<128x128xi32>
    %22 = arith.sitofp %21 : vector<128x128xi32> to vector<128x128xf32>
    %cst_9 = arith.constant 0.000000e+00 : f32
    %23 = vector.broadcast %cst_9 : f32 to vector<128x128xf32>
    %24 = arith.subf %23, %22 : vector<128x128xf32>
    %25 = vector.extract_strided_slice %13 {offsets = [0, 0], sizes = [128, 8], strides = [1, 1]} : vector<128x32xf32> to vector<128x8xf32>
    %26 = arith.truncf %25 : vector<128x8xf32> to vector<128x8xbf16>
    %c0_10 = arith.constant 0 : index
    %c0_11 = arith.constant 0 : index
    %27 = vector.load %arg19[%c0_10, %c0_11] : memref<128x32xbf16, #tpu.memory_space<vmem>>, vector<128x8xbf16>
    %c0_12 = arith.constant 0 : index
    %c0_13 = arith.constant 0 : index
    %28 = vector.load %arg20[%c0_12, %c0_13] : memref<128x32xbf16, #tpu.memory_space<vmem>>, vector<128x8xbf16>
    %cst_14 = arith.constant dense<0.000000e+00> : vector<128x128xf32>
    %29 = tpu.matmul %26, %27, %cst_14 {dimension_numbers = #tpu.dot_dimension_numbers<[1], [1], [0], [0], [0, 0, 1, 0], [], []>} : vector<128x8xbf16>, vector<128x8xbf16>, vector<128x128xf32> -> vector<128x128xf32>
    %cst_15 = arith.constant 2.500000e-01 : f32
    %30 = vector.broadcast %cst_15 : f32 to vector<128x128xf32>
    %31 = arith.mulf %30, %24 : vector<128x128xf32>
    %32 = arith.addf %29, %31 : vector<128x128xf32>
    %cst_16 = arith.constant dense<0xFF800000> : vector<128xf32>
    %33 = vector.multi_reduction <maximumf>, %32, %cst_16 [1] : vector<128x128xf32> to vector<128xf32>
    %34 = vector.shape_cast %33 : vector<128xf32> to vector<128x1xf32>
    %35 = vector.broadcast %34 : vector<128x1xf32> to vector<128x128xf32>
    %36 = arith.subf %32, %35 : vector<128x128xf32>
    %37 = math.exp %36 : vector<128x128xf32>
    %38 = vector.broadcast %15 : vector<1x128xf32> to vector<128x128xf32>
    %39 = arith.mulf %37, %38 : vector<128x128xf32>
    %cst_17 = arith.constant dense<0.000000e+00> : vector<128xf32>
    %40 = vector.multi_reduction <add>, %39, %cst_17 [1] : vector<128x128xf32> to vector<128xf32>
    %41 = vector.shape_cast %40 : vector<128xf32> to vector<128x1xf32>
    %42 = tpu.reciprocal %41 {approx = true} : vector<128x1xf32> -> vector<128x1xf32>
    %43 = vector.broadcast %42 : vector<128x1xf32> to vector<128x128xf32>
    %44 = arith.mulf %39, %43 : vector<128x128xf32>
    %45 = arith.truncf %44 : vector<128x128xf32> to vector<128x128xbf16>
    %cst_18 = arith.constant dense<0.000000e+00> : vector<128x8xf32>
    %46 = tpu.matmul %45, %28, %cst_18 {dimension_numbers = #tpu.dot_dimension_numbers<[1], [0], [0], [1], [0, 0, 1, 1], [], []>} : vector<128x128xbf16>, vector<128x8xbf16>, vector<128x8xf32> -> vector<128x8xf32>
    %c0_19 = arith.constant 0 : index
    %c0_20 = arith.constant 0 : index
    %47 = vector.load %arg21[%c0_19, %c0_20] : memref<128x32xf32, #tpu.memory_space<vmem>>, vector<128x8xf32>
    tpu.vector_store %arg21[%c0_19, %c0_20], %46 {strides = array<i32>} : memref<128x32xf32, #tpu.memory_space<vmem>>, vector<128x8xf32>,
    %48 = vector.extract_strided_slice %13 {offsets = [0, 8], sizes = [128, 8], strides = [1, 1]} : vector<128x32xf32> to vector<128x8xf32>
    %49 = arith.truncf %48 : vector<128x8xf32> to vector<128x8xbf16>
    %c0_21 = arith.constant 0 : index
    %c8 = arith.constant 8 : index
    %50 = vector.load %arg19[%c0_21, %c8] : memref<128x32xbf16, #tpu.memory_space<vmem>>, vector<128x8xbf16>
    %c0_22 = arith.constant 0 : index
    %c8_23 = arith.constant 8 : index
    %51 = vector.load %arg20[%c0_22, %c8_23] : memref<128x32xbf16, #tpu.memory_space<vmem>>, vector<128x8xbf16>
    %cst_24 = arith.constant dense<0.000000e+00> : vector<128x128xf32>
    %52 = tpu.matmul %49, %50, %cst_24 {dimension_numbers = #tpu.dot_dimension_numbers<[1], [1], [0], [0], [0, 0, 1, 0], [], []>} : vector<128x8xbf16>, vector<128x8xbf16>, vector<128x128xf32> -> vector<128x128xf32>
    %cst_25 = arith.constant 6.250000e-02 : f32
    %53 = vector.broadcast %cst_25 : f32 to vector<128x128xf32>
    %54 = arith.mulf %53, %24 : vector<128x128xf32>
    %55 = arith.addf %52, %54 : vector<128x128xf32>
    %cst_26 = arith.constant dense<0xFF800000> : vector<128xf32>
    %56 = vector.multi_reduction <maximumf>, %55, %cst_26 [1] : vector<128x128xf32> to vector<128xf32>
    %57 = vector.shape_cast %56 : vector<128xf32> to vector<128x1xf32>
    %58 = vector.broadcast %57 : vector<128x1xf32> to vector<128x128xf32>
    %59 = arith.subf %55, %58 : vector<128x128xf32>
    %60 = math.exp %59 : vector<128x128xf32>
    %61 = vector.broadcast %15 : vector<1x128xf32> to vector<128x128xf32>
    %62 = arith.mulf %60, %61 : vector<128x128xf32>
    %cst_27 = arith.constant dense<0.000000e+00> : vector<128xf32>
    %63 = vector.multi_reduction <add>, %62, %cst_27 [1] : vector<128x128xf32> to vector<128xf32>
    %64 = vector.shape_cast %63 : vector<128xf32> to vector<128x1xf32>
    %65 = tpu.reciprocal %64 {approx = true} : vector<128x1xf32> -> vector<128x1xf32>
    %66 = vector.broadcast %65 : vector<128x1xf32> to vector<128x128xf32>
    %67 = arith.mulf %62, %66 : vector<128x128xf32>
    %68 = arith.truncf %67 : vector<128x128xf32> to vector<128x128xbf16>
    %cst_28 = arith.constant dense<0.000000e+00> : vector<128x8xf32>
    %69 = tpu.matmul %68, %51, %cst_28 {dimension_numbers = #tpu.dot_dimension_numbers<[1], [0], [0], [1], [0, 0, 1, 1], [], []>} : vector<128x128xbf16>, vector<128x8xbf16>, vector<128x8xf32> -> vector<128x8xf32>
    %c0_29 = arith.constant 0 : index
    %c8_30 = arith.constant 8 : index
    %70 = vector.load %arg21[%c0_29, %c8_30] : memref<128x32xf32, #tpu.memory_space<vmem>>, vector<128x8xf32>
    tpu.vector_store %arg21[%c0_29, %c8_30], %69 {strides = array<i32>} : memref<128x32xf32, #tpu.memory_space<vmem>>, vector<128x8xf32>,
    %71 = vector.extract_strided_slice %13 {offsets = [0, 16], sizes = [128, 8], strides = [1, 1]} : vector<128x32xf32> to vector<128x8xf32>
    %72 = arith.truncf %71 : vector<128x8xf32> to vector<128x8xbf16>
    %c0_31 = arith.constant 0 : index
    %c16 = arith.constant 16 : index
    %73 = vector.load %arg19[%c0_31, %c16] : memref<128x32xbf16, #tpu.memory_space<vmem>>, vector<128x8xbf16>
    %c0_32 = arith.constant 0 : index
    %c16_33 = arith.constant 16 : index
    %74 = vector.load %arg20[%c0_32, %c16_33] : memref<128x32xbf16, #tpu.memory_space<vmem>>, vector<128x8xbf16>
    %cst_34 = arith.constant dense<0.000000e+00> : vector<128x128xf32>
    %75 = tpu.matmul %72, %73, %cst_34 {dimension_numbers = #tpu.dot_dimension_numbers<[1], [1], [0], [0], [0, 0, 1, 0], [], []>} : vector<128x8xbf16>, vector<128x8xbf16>, vector<128x128xf32> -> vector<128x128xf32>
    %cst_35 = arith.constant 1.562500e-02 : f32
    %76 = vector.broadcast %cst_35 : f32 to vector<128x128xf32>
    %77 = arith.mulf %76, %24 : vector<128x128xf32>
    %78 = arith.addf %75, %77 : vector<128x128xf32>
    %cst_36 = arith.constant dense<0xFF800000> : vector<128xf32>
    %79 = vector.multi_reduction <maximumf>, %78, %cst_36 [1] : vector<128x128xf32> to vector<128xf32>
    %80 = vector.shape_cast %79 : vector<128xf32> to vector<128x1xf32>
    %81 = vector.broadcast %80 : vector<128x1xf32> to vector<128x128xf32>
    %82 = arith.subf %78, %81 : vector<128x128xf32>
    %83 = math.exp %82 : vector<128x128xf32>
    %84 = vector.broadcast %15 : vector<1x128xf32> to vector<128x128xf32>
    %85 = arith.mulf %83, %84 : vector<128x128xf32>
    %cst_37 = arith.constant dense<0.000000e+00> : vector<128xf32>
    %86 = vector.multi_reduction <add>, %85, %cst_37 [1] : vector<128x128xf32> to vector<128xf32>
    %87 = vector.shape_cast %86 : vector<128xf32> to vector<128x1xf32>
    %88 = tpu.reciprocal %87 {approx = true} : vector<128x1xf32> -> vector<128x1xf32>
    %89 = vector.broadcast %88 : vector<128x1xf32> to vector<128x128xf32>
    %90 = arith.mulf %85, %89 : vector<128x128xf32>
    %91 = arith.truncf %90 : vector<128x128xf32> to vector<128x128xbf16>
    %cst_38 = arith.constant dense<0.000000e+00> : vector<128x8xf32>
    %92 = tpu.matmul %91, %74, %cst_38 {dimension_numbers = #tpu.dot_dimension_numbers<[1], [0], [0], [1], [0, 0, 1, 1], [], []>} : vector<128x128xbf16>, vector<128x8xbf16>, vector<128x8xf32> -> vector<128x8xf32>
    %c0_39 = arith.constant 0 : index
    %c16_40 = arith.constant 16 : index
    %93 = vector.load %arg21[%c0_39, %c16_40] : memref<128x32xf32, #tpu.memory_space<vmem>>, vector<128x8xf32>
    tpu.vector_store %arg21[%c0_39, %c16_40], %92 {strides = array<i32>} : memref<128x32xf32, #tpu.memory_space<vmem>>, vector<128x8xf32>,
    %94 = vector.extract_strided_slice %13 {offsets = [0, 24], sizes = [128, 8], strides = [1, 1]} : vector<128x32xf32> to vector<128x8xf32>
    %95 = arith.truncf %94 : vector<128x8xf32> to vector<128x8xbf16>
    %c0_41 = arith.constant 0 : index
    %c24 = arith.constant 24 : index
    %96 = vector.load %arg19[%c0_41, %c24] : memref<128x32xbf16, #tpu.memory_space<vmem>>, vector<128x8xbf16>
    %c0_42 = arith.constant 0 : index
    %c24_43 = arith.constant 24 : index
    %97 = vector.load %arg20[%c0_42, %c24_43] : memref<128x32xbf16, #tpu.memory_space<vmem>>, vector<128x8xbf16>
    %cst_44 = arith.constant dense<0.000000e+00> : vector<128x128xf32>
    %98 = tpu.matmul %95, %96, %cst_44 {dimension_numbers = #tpu.dot_dimension_numbers<[1], [1], [0], [0], [0, 0, 1, 0], [], []>} : vector<128x8xbf16>, vector<128x8xbf16>, vector<128x128xf32> -> vector<128x128xf32>
    %cst_45 = arith.constant 3.906250e-03 : f32
    %99 = vector.broadcast %cst_45 : f32 to vector<128x128xf32>
    %100 = arith.mulf %99, %24 : vector<128x128xf32>
    %101 = arith.addf %98, %100 : vector<128x128xf32>
    %cst_46 = arith.constant dense<0xFF800000> : vector<128xf32>
    %102 = vector.multi_reduction <maximumf>, %101, %cst_46 [1] : vector<128x128xf32> to vector<128xf32>
    %103 = vector.shape_cast %102 : vector<128xf32> to vector<128x1xf32>
    %104 = vector.broadcast %103 : vector<128x1xf32> to vector<128x128xf32>
    %105 = arith.subf %101, %104 : vector<128x128xf32>
    %106 = math.exp %105 : vector<128x128xf32>
    %107 = vector.broadcast %15 : vector<1x128xf32> to vector<128x128xf32>
    %108 = arith.mulf %106, %107 : vector<128x128xf32>
    %cst_47 = arith.constant dense<0.000000e+00> : vector<128xf32>
    %109 = vector.multi_reduction <add>, %108, %cst_47 [1] : vector<128x128xf32> to vector<128xf32>
    %110 = vector.shape_cast %109 : vector<128xf32> to vector<128x1xf32>
    %111 = tpu.reciprocal %110 {approx = true} : vector<128x1xf32> -> vector<128x1xf32>
    %112 = vector.broadcast %111 : vector<128x1xf32> to vector<128x128xf32>
    %113 = arith.mulf %108, %112 : vector<128x128xf32>
    %114 = arith.truncf %113 : vector<128x128xf32> to vector<128x128xbf16>
    %cst_48 = arith.constant dense<0.000000e+00> : vector<128x8xf32>
    %115 = tpu.matmul %114, %97, %cst_48 {dimension_numbers = #tpu.dot_dimension_numbers<[1], [0], [0], [1], [0, 0, 1, 1], [], []>} : vector<128x128xbf16>, vector<128x8xbf16>, vector<128x8xf32> -> vector<128x8xf32>
    %c0_49 = arith.constant 0 : index
    %c24_50 = arith.constant 24 : index
    %116 = vector.load %arg21[%c0_49, %c24_50] : memref<128x32xf32, #tpu.memory_space<vmem>>, vector<128x8xf32>
    tpu.vector_store %arg21[%c0_49, %c24_50], %115 {strides = array<i32>} : memref<128x32xf32, #tpu.memory_space<vmem>>, vector<128x8xf32>,
    %c0_51 = arith.constant 0 : index
    %c0_52 = arith.constant 0 : index
    %117 = vector.load %arg21[%c0_51, %c0_52] : memref<128x32xf32, #tpu.memory_space<vmem>>, vector<128x32xf32>
    %118 = arith.truncf %117 : vector<128x32xf32> to vector<128x32xbf16>
    %c0_53 = arith.constant 0 : index
    %c0_54 = arith.constant 0 : index
    %119 = vector.load %arg8[%c0_53, %c0_54] : memref<32x32xbf16, #tpu.memory_space<vmem>>, vector<32x32xbf16>
    %cst_55 = arith.constant dense<0.000000e+00> : vector<128x32xf32>
    %120 = tpu.matmul %118, %119, %cst_55 {dimension_numbers = #tpu.dot_dimension_numbers<[1], [0], [0], [1], [0, 0, 1, 1], [], []>} : vector<128x32xbf16>, vector<32x32xbf16>, vector<128x32xf32> -> vector<128x32xf32>
    %c0_56 = arith.constant 0 : index
    %c0_57 = arith.constant 0 : index
    %121 = vector.load %arg9[%c0_56, %c0_57] : memref<1x32xf32, #tpu.memory_space<vmem>>, vector<1x32xf32>
    %122 = vector.broadcast %121 : vector<1x32xf32> to vector<128x32xf32>
    %123 = arith.addf %120, %122 : vector<128x32xf32>
    %124 = arith.addf %8, %123 : vector<128x32xf32>
    %c0_58 = arith.constant 0 : index
    %c0_59 = arith.constant 0 : index
    %125 = vector.load %arg10[%c0_58, %c0_59] : memref<1x32xf32, #tpu.memory_space<vmem>>, vector<1x32xf32>
    %c0_60 = arith.constant 0 : index
    %c0_61 = arith.constant 0 : index
    %126 = vector.load %arg11[%c0_60, %c0_61] : memref<1x32xf32, #tpu.memory_space<vmem>>, vector<1x32xf32>
    %cst_62 = arith.constant dense<0.000000e+00> : vector<128xf32>
    %127 = vector.multi_reduction <add>, %124, %cst_62 [1] : vector<128x32xf32> to vector<128xf32>
    %128 = vector.shape_cast %127 : vector<128xf32> to vector<128x1xf32>
    %cst_63 = arith.constant 3.200000e+01 : f32
    %129 = vector.broadcast %cst_63 : f32 to vector<128x1xf32>
    %130 = arith.divf %128, %129 : vector<128x1xf32>
    %131 = vector.broadcast %130 : vector<128x1xf32> to vector<128x32xf32>
    %132 = arith.subf %124, %131 : vector<128x32xf32>
    %133 = arith.mulf %132, %132 : vector<128x32xf32>
    %cst_64 = arith.constant dense<0.000000e+00> : vector<128xf32>
    %134 = vector.multi_reduction <add>, %133, %cst_64 [1] : vector<128x32xf32> to vector<128xf32>
    %135 = vector.shape_cast %134 : vector<128xf32> to vector<128x1xf32>
    %cst_65 = arith.constant 3.200000e+01 : f32
    %136 = vector.broadcast %cst_65 : f32 to vector<128x1xf32>
    %137 = arith.divf %135, %136 : vector<128x1xf32>
    %cst_66 = arith.constant 9.99999996E-13 : f32
    %138 = vector.broadcast %cst_66 : f32 to vector<128x1xf32>
    %139 = arith.addf %137, %138 : vector<128x1xf32>
    %140 = math.rsqrt %139 : vector<128x1xf32>
    %141 = vector.broadcast %140 : vector<128x1xf32> to vector<128x32xf32>
    %142 = arith.mulf %132, %141 : vector<128x32xf32>
    %143 = vector.broadcast %125 : vector<1x32xf32> to vector<128x32xf32>
    %144 = arith.mulf %142, %143 : vector<128x32xf32>
    %145 = vector.broadcast %126 : vector<1x32xf32> to vector<128x32xf32>
    %146 = arith.addf %144, %145 : vector<128x32xf32>
    %147 = arith.truncf %146 : vector<128x32xf32> to vector<128x32xbf16>
    %c0_67 = arith.constant 0 : index
    %c0_68 = arith.constant 0 : index
    %148 = vector.load %arg12[%c0_67, %c0_68] : memref<32x128xbf16, #tpu.memory_space<vmem>>, vector<32x128xbf16>
    %cst_69 = arith.constant dense<0.000000e+00> : vector<128x128xf32>
    %149 = tpu.matmul %147, %148, %cst_69 {dimension_numbers = #tpu.dot_dimension_numbers<[1], [0], [0], [1], [0, 0, 1, 1], [], []>} : vector<128x32xbf16>, vector<32x128xbf16>, vector<128x128xf32> -> vector<128x128xf32>
    %c0_70 = arith.constant 0 : index
    %c0_71 = arith.constant 0 : index
    %150 = vector.load %arg13[%c0_70, %c0_71] : memref<1x128xf32, #tpu.memory_space<vmem>>, vector<1x128xf32>
    %151 = vector.broadcast %150 : vector<1x128xf32> to vector<128x128xf32>
    %152 = arith.addf %149, %151 : vector<128x128xf32>
    %153 = arith.mulf %152, %152 : vector<128x128xf32>
    %154 = arith.mulf %152, %153 : vector<128x128xf32>
    %cst_72 = arith.constant 4.471500e-02 : f32
    %155 = vector.broadcast %cst_72 : f32 to vector<128x128xf32>
    %156 = arith.mulf %155, %154 : vector<128x128xf32>
    %157 = arith.addf %152, %156 : vector<128x128xf32>
    %cst_73 = arith.constant 0.797884583 : f32
    %158 = vector.broadcast %cst_73 : f32 to vector<128x128xf32>
    %159 = arith.mulf %158, %157 : vector<128x128xf32>
    %160 = math.tanh %159 : vector<128x128xf32>
    %cst_74 = arith.constant 1.000000e+00 : f32
    %161 = vector.broadcast %cst_74 : f32 to vector<128x128xf32>
    %162 = arith.addf %161, %160 : vector<128x128xf32>
    %cst_75 = arith.constant 5.000000e-01 : f32
    %163 = vector.broadcast %cst_75 : f32 to vector<128x128xf32>
    %164 = arith.mulf %163, %162 : vector<128x128xf32>
    %165 = arith.mulf %152, %164 : vector<128x128xf32>
    %166 = arith.truncf %165 : vector<128x128xf32> to vector<128x128xbf16>
    %c0_76 = arith.constant 0 : index
    %c0_77 = arith.constant 0 : index
    %167 = vector.load %arg14[%c0_76, %c0_77] : memref<128x32xbf16, #tpu.memory_space<vmem>>, vector<128x32xbf16>
    %cst_78 = arith.constant dense<0.000000e+00> : vector<128x32xf32>
    %168 = tpu.matmul %166, %167, %cst_78 {dimension_numbers = #tpu.dot_dimension_numbers<[1], [0], [0], [1], [0, 0, 1, 1], [], []>} : vector<128x128xbf16>, vector<128x32xbf16>, vector<128x32xf32> -> vector<128x32xf32>
    %c0_79 = arith.constant 0 : index
    %c0_80 = arith.constant 0 : index
    %169 = vector.load %arg15[%c0_79, %c0_80] : memref<1x32xf32, #tpu.memory_space<vmem>>, vector<1x32xf32>
    %170 = vector.broadcast %169 : vector<1x32xf32> to vector<128x32xf32>
    %171 = arith.addf %168, %170 : vector<128x32xf32>
    %172 = arith.addf %146, %171 : vector<128x32xf32>
    %c0_81 = arith.constant 0 : index
    %c0_82 = arith.constant 0 : index
    %173 = vector.load %arg16[%c0_81, %c0_82] : memref<1x32xf32, #tpu.memory_space<vmem>>, vector<1x32xf32>
    %c0_83 = arith.constant 0 : index
    %c0_84 = arith.constant 0 : index
    %174 = vector.load %arg17[%c0_83, %c0_84] : memref<1x32xf32, #tpu.memory_space<vmem>>, vector<1x32xf32>
    %cst_85 = arith.constant dense<0.000000e+00> : vector<128xf32>
    %175 = vector.multi_reduction <add>, %172, %cst_85 [1] : vector<128x32xf32> to vector<128xf32>
    %176 = vector.shape_cast %175 : vector<128xf32> to vector<128x1xf32>
    %cst_86 = arith.constant 3.200000e+01 : f32
    %177 = vector.broadcast %cst_86 : f32 to vector<128x1xf32>
    %178 = arith.divf %176, %177 : vector<128x1xf32>
    %179 = vector.broadcast %178 : vector<128x1xf32> to vector<128x32xf32>
    %180 = arith.subf %172, %179 : vector<128x32xf32>
    %181 = arith.mulf %180, %180 : vector<128x32xf32>
    %cst_87 = arith.constant dense<0.000000e+00> : vector<128xf32>
    %182 = vector.multi_reduction <add>, %181, %cst_87 [1] : vector<128x32xf32> to vector<128xf32>
    %183 = vector.shape_cast %182 : vector<128xf32> to vector<128x1xf32>
    %cst_88 = arith.constant 3.200000e+01 : f32
    %184 = vector.broadcast %cst_88 : f32 to vector<128x1xf32>
    %185 = arith.divf %183, %184 : vector<128x1xf32>
    %cst_89 = arith.constant 9.99999996E-13 : f32
    %186 = vector.broadcast %cst_89 : f32 to vector<128x1xf32>
    %187 = arith.addf %185, %186 : vector<128x1xf32>
    %188 = math.rsqrt %187 : vector<128x1xf32>
    %189 = vector.broadcast %188 : vector<128x1xf32> to vector<128x32xf32>
    %190 = arith.mulf %180, %189 : vector<128x32xf32>
    %191 = vector.broadcast %173 : vector<1x32xf32> to vector<128x32xf32>
    %192 = arith.mulf %190, %191 : vector<128x32xf32>
    %193 = vector.broadcast %174 : vector<1x32xf32> to vector<128x32xf32>
    %194 = arith.addf %192, %193 : vector<128x32xf32>
    %c0_90 = arith.constant 0 : index
    %c0_91 = arith.constant 0 : index
    %c0_92 = arith.constant 0 : index
    %195 = vector.load %arg18[%c0_90, %c0_91, %c0_92] : memref<1x128x32xf32, #tpu.memory_space<vmem>>, vector<1x128x32xf32>
    %196 = vector.shape_cast %195 : vector<1x128x32xf32> to vector<128x32xf32>
    %197 = vector.shape_cast %194 : vector<128x32xf32> to vector<1x128x32xf32>
    tpu.vector_store %arg18[%c0_90, %c0_91, %c0_92], %197 {strides = array<i32>} : memref<1x128x32xf32, #tpu.memory_space<vmem>>, vector<1x128x32xf32>,
    return
  }
  func.func @transform_0(%arg0: i32, %arg1: i32) -> (i32, i32, i32) {
    %c0_i32 = arith.constant 0 : i32
    %c0_i32_0 = arith.constant 0 : i32
    %c0_i32_1 = arith.constant 0 : i32
    return %arg0, %c0_i32, %c0_i32_0 : i32, i32, i32
  }
  func.func @transform_1(%arg0: i32, %arg1: i32) -> (i32, i32, i32) {
    %c0_i32 = arith.constant 0 : i32
    %c0_i32_0 = arith.constant 0 : i32
    %c0_i32_1 = arith.constant 0 : i32
    return %arg0, %c0_i32, %c0_i32_0 : i32, i32, i32
  }
  func.func @transform_2(%arg0: i32, %arg1: i32) -> (i32, i32) {
    %c0_i32 = arith.constant 0 : i32
    %c0_i32_0 = arith.constant 0 : i32
    %c0_i32_1 = arith.constant 0 : i32
    return %c0_i32, %c0_i32_0 : i32, i32
  }
  func.func @transform_3(%arg0: i32, %arg1: i32) -> (i32, i32) {
    %c0_i32 = arith.constant 0 : i32
    %c0_i32_0 = arith.constant 0 : i32
    %c0_i32_1 = arith.constant 0 : i32
    return %c0_i32, %c0_i32_0 : i32, i32
  }
  func.func @transform_4(%arg0: i32, %arg1: i32) -> (i32, i32) {
    %c0_i32 = arith.constant 0 : i32
    %c0_i32_0 = arith.constant 0 : i32
    %c0_i32_1 = arith.constant 0 : i32
    return %c0_i32, %c0_i32_0 : i32, i32
  }
  func.func @transform_5(%arg0: i32, %arg1: i32) -> (i32, i32) {
    %c0_i32 = arith.constant 0 : i32
    %c0_i32_0 = arith.constant 0 : i32
    %c0_i32_1 = arith.constant 0 : i32
    return %c0_i32, %c0_i32_0 : i32, i32
  }
  func.func @transform_6(%arg0: i32, %arg1: i32) -> (i32, i32) {
    %c0_i32 = arith.constant 0 : i32
    %c0_i32_0 = arith.constant 0 : i32
    %c0_i32_1 = arith.constant 0 : i32
    return %c0_i32, %c0_i32_0 : i32, i32
  }
  func.func @transform_7(%arg0: i32, %arg1: i32) -> (i32, i32) {
    %c0_i32 = arith.constant 0 : i32
    %c0_i32_0 = arith.constant 0 : i32
    %c0_i32_1 = arith.constant 0 : i32
    return %c0_i32, %c0_i32_0 : i32, i32
  }
  func.func @transform_8(%arg0: i32, %arg1: i32) -> (i32, i32) {
    %c0_i32 = arith.constant 0 : i32
    %c0_i32_0 = arith.constant 0 : i32
    %c0_i32_1 = arith.constant 0 : i32
    return %c0_i32, %c0_i32_0 : i32, i32
  }
  func.func @transform_9(%arg0: i32, %arg1: i32) -> (i32, i32) {
    %c0_i32 = arith.constant 0 : i32
    %c0_i32_0 = arith.constant 0 : i32
    %c0_i32_1 = arith.constant 0 : i32
    return %c0_i32, %c0_i32_0 : i32, i32
  }
  func.func @transform_10(%arg0: i32, %arg1: i32) -> (i32, i32) {
    %c0_i32 = arith.constant 0 : i32
    %c0_i32_0 = arith.constant 0 : i32
    %c0_i32_1 = arith.constant 0 : i32
    return %c0_i32, %c0_i32_0 : i32, i32
  }
  func.func @transform_11(%arg0: i32, %arg1: i32) -> (i32, i32) {
    %c0_i32 = arith.constant 0 : i32
    %c0_i32_0 = arith.constant 0 : i32
    %c0_i32_1 = arith.constant 0 : i32
    return %c0_i32, %c0_i32_0 : i32, i32
  }
  func.func @transform_12(%arg0: i32, %arg1: i32) -> (i32, i32) {
    %c0_i32 = arith.constant 0 : i32
    %c0_i32_0 = arith.constant 0 : i32
    %c0_i32_1 = arith.constant 0 : i32
    return %c0_i32, %c0_i32_0 : i32, i32
  }
  func.func @transform_13(%arg0: i32, %arg1: i32) -> (i32, i32) {
    %c0_i32 = arith.constant 0 : i32
    %c0_i32_0 = arith.constant 0 : i32
    %c0_i32_1 = arith.constant 0 : i32
    return %c0_i32, %c0_i32_0 : i32, i32
  }
  func.func @transform_14(%arg0: i32, %arg1: i32) -> (i32, i32) {
    %c0_i32 = arith.constant 0 : i32
    %c0_i32_0 = arith.constant 0 : i32
    %c0_i32_1 = arith.constant 0 : i32
    return %c0_i32, %c0_i32_0 : i32, i32
  }
  func.func @transform_15(%arg0: i32, %arg1: i32) -> (i32, i32) {
    %c0_i32 = arith.constant 0 : i32
    %c0_i32_0 = arith.constant 0 : i32
    %c0_i32_1 = arith.constant 0 : i32
    return %c0_i32, %c0_i32_0 : i32, i32
  }
  func.func @transform_16(%arg0: i32, %arg1: i32) -> (i32, i32, i32) {
    %c0_i32 = arith.constant 0 : i32
    %c0_i32_0 = arith.constant 0 : i32
    return %arg0, %arg1, %c0_i32 : i32, i32, i32
  }
}

module attributes {stable_mosaic.version = 11 : i64} {
  func.func @kernel(%arg0: i32, %arg1: i32, %arg2: memref<1x1x128xf32, #tpu.memory_space<vmem>>, %arg3: memref<1x128x32xbf16, #tpu.memory_space<vmem>>, %arg4: memref<32x32xbf16, #tpu.memory_space<vmem>>, %arg5: memref<1x32xf32, #tpu.memory_space<vmem>>, %arg6: memref<32x64xbf16, #tpu.memory_space<vmem>>, %arg7: memref<1x64xf32, #tpu.memory_space<vmem>>, %arg8: memref<32x32xbf16, #tpu.memory_space<vmem>>, %arg9: memref<1x32xf32, #tpu.memory_space<vmem>>, %arg10: memref<1x32xf32, #tpu.memory_space<vmem>>, %arg11: memref<1x32xf32, #tpu.memory_space<vmem>>, %arg12: memref<32x128xbf16, #tpu.memory_space<vmem>>, %arg13: memref<1x128xf32, #tpu.memory_space<vmem>>, %arg14: memref<128x32xbf16, #tpu.memory_space<vmem>>, %arg15: memref<1x32xf32, #tpu.memory_space<vmem>>, %arg16: memref<1x32xf32, #tpu.memory_space<vmem>>, %arg17: memref<1x32xf32, #tpu.memory_space<vmem>>, %arg18: memref<1x128x32xf32, #tpu.memory_space<vmem>>, %arg19: memref<128x32xbf16, #tpu.memory_space<vmem>>, %arg20: memref<128x32xbf16, #tpu.memory_space<vmem>>, %arg21: memref<128x32xf32, #tpu.memory_space<vmem>>) attributes {dimension_semantics = [#tpu.dimension_semantics<parallel>, #tpu.dimension_semantics<arbitrary>], iteration_bounds = array<i64: 2, 1>, scalar_prefetch = 0 : i64, scratch_operands = 3 : i64, tpu.core_type = #tpu.core_type<tc>, window_params = [{transform_indices = @transform_0, window_bounds = array<i64: 1, 1, 128>}, {transform_indices = @transform_1, window_bounds = array<i64: 1, 128, 32>}, {pipeline_mode = #tpu.pipeline_mode<synchronous>, transform_indices = @transform_2, window_bounds = array<i64: 32, 32>}, {pipeline_mode = #tpu.pipeline_mode<synchronous>, transform_indices = @transform_3, window_bounds = array<i64: 1, 32>}, {pipeline_mode = #tpu.pipeline_mode<synchronous>, transform_indices = @transform_4, window_bounds = array<i64: 32, 64>}, {pipeline_mode = #tpu.pipeline_mode<synchronous>, transform_indices = @transform_5, window_bounds = array<i64: 1, 64>}, {pipeline_mode = #tpu.pipeline_mode<synchronous>, transform_indices = @transform_6, window_bounds = array<i64: 32, 32>}, {pipeline_mode = #tpu.pipeline_mode<synchronous>, transform_indices = @transform_7, window_bounds = array<i64: 1, 32>}, {pipeline_mode = #tpu.pipeline_mode<synchronous>, transform_indices = @transform_8, window_bounds = array<i64: 1, 32>}, {pipeline_mode = #tpu.pipeline_mode<synchronous>, transform_indices = @transform_9, window_bounds = array<i64: 1, 32>}, {pipeline_mode = #tpu.pipeline_mode<synchronous>, transform_indices = @transform_10, window_bounds = array<i64: 32, 128>}, {pipeline_mode = #tpu.pipeline_mode<synchronous>, transform_indices = @transform_11, window_bounds = array<i64: 1, 128>}, {pipeline_mode = #tpu.pipeline_mode<synchronous>, transform_indices = @transform_12, window_bounds = array<i64: 128, 32>}, {pipeline_mode = #tpu.pipeline_mode<synchronous>, transform_indices = @transform_13, window_bounds = array<i64: 1, 32>}, {pipeline_mode = #tpu.pipeline_mode<synchronous>, transform_indices = @transform_14, window_bounds = array<i64: 1, 32>}, {pipeline_mode = #tpu.pipeline_mode<synchronous>, transform_indices = @transform_15, window_bounds = array<i64: 1, 32>}, {transform_indices = @transform_16, window_bounds = array<i64: 1, 128, 32>}]} {
    %c128_i32 = arith.constant 128 : i32
    %0 = arith.muli %arg1, %c128_i32 : i32
    %1 = tpu.assume_multiple %0, 128 : i32
    %c0_i32 = arith.constant 0 : i32
    %2 = arith.cmpi eq, %arg1, %c0_i32 : i32
    %3 = arith.extui %2 : i1 to i32
    %c0_i32_0 = arith.constant 0 : i32
    %4 = arith.cmpi ne, %3, %c0_i32_0 : i32
    scf.if %4 {
      %c0_93 = arith.constant 0 : index
      %c0_94 = arith.constant 0 : index
      %c0_95 = arith.constant 0 : index
      %198 = vector.load %arg3[%c0_93, %c0_94, %c0_95] : memref<1x128x32xbf16, #tpu.memory_space<vmem>>, vector<1x128x32xbf16>
      %199 = vector.shape_cast %198 : vector<1x128x32xbf16> to vector<128x32xbf16>
      %c0_96 = arith.constant 0 : index
      %c0_97 = arith.constant 0 : index
      %200 = vector.load %arg6[%c0_96, %c0_97] : memref<32x64xbf16, #tpu.memory_space<vmem>>, vector<32x64xbf16>
      %cst_98 = arith.constant dense<0.000000e+00> : vector<128x64xf32>
      %201 = tpu.matmul %199, %200, %cst_98 {dimension_numbers = #tpu.dot_dimension_numbers<[1], [0], [0], [1], [0, 0, 1, 1], [], []>} : vector<128x32xbf16>, vector<32x64xbf16>, vector<128x64xf32> -> vector<128x64xf32>
      %c0_99 = arith.constant 0 : index
      %c0_100 = arith.constant 0 : index
      %202 = vector.load %arg7[%c0_99, %c0_100] : memref<1x64xf32, #tpu.memory_space<vmem>>, vector<1x64xf32>
      %203 = vector.broadcast %202 : vector<1x64xf32> to vector<128x64xf32>
      %204 = arith.addf %201, %203 : vector<128x64xf32>
      %205 = vector.extract_strided_slice %204 {offsets = [0, 0], sizes = [128, 32], strides = [1, 1]} : vector<128x64xf32> to vector<128x32xf32>
      %206 = arith.truncf %205 : vector<128x32xf32> to vector<128x32xbf16>
      %c0_101 = arith.constant 0 : index
      %c0_102 = arith.constant 0 : index
      %207 = vector.load %arg19[%c0_101, %c0_102] : memref<128x32xbf16, #tpu.memory_space<vmem>>, vector<128x32xbf16>
      tpu.vector_store %arg19[%c0_101, %c0_102], %206 {strides = array<i32>} : memref<128x32xbf16, #tpu.memory_space<vmem>>, vector<128x32xbf16>,
      %208 = vector.extract_strided_slice %204 {offsets = [0, 32], sizes = [128, 32], strides = [1, 1]} : vector<128x64xf32> to vector<128x32xf32>
      %209 = arith.truncf %208 : vector<128x32xf32> to vector<128x32xbf16>
      %c0_103 = arith.constant 0 : index
      %c0_104 = arith.constant 0 : index
      %210 = vector.load %arg20[%c0_103, %c0_104] : memref<128x32xbf16, #tpu.memory_space<vmem>>, vector<128x32xbf16>
      tpu.vector_store %arg20[%c0_103, %c0_104], %209 {strides = array<i32>} : memref<128x32xbf16, #tpu.memory_space<vmem>>, vector<128x32xbf16>,
    } else {
    }
    %c0 = arith.constant 0 : index
    %5 = arith.index_cast %1 : i32 to index
    %c0_1 = arith.constant 0 : index
    %6 = vector.load %arg3[%c0, %5, %c0_1] : memref<1x128x32xbf16, #tpu.memory_space<vmem>>, vector<1x128x32xbf16>
    %7 = vector.shape_cast %6 : vector<1x128x32xbf16> to vector<128x32xbf16>
    %8 = arith.extf %7 : vector<128x32xbf16> to vector<128x32xf32>
    %c0_2 = arith.constant 0 : index
    %c0_3 = arith.constant 0 : index
    %9 = vector.load %arg4[%c0_2, %c0_3] : memref<32x32xbf16, #tpu.memory_space<vmem>>, vector<32x32xbf16>
    %cst = arith.constant dense<0.000000e+00> : vector<128x32xf32>
    %10 = tpu.matmul %7, %9, %cst {dimension_numbers = #tpu.dot_dimension_numbers<[1], [0], [0], [1], [0, 0, 1, 1], [], []>} : vector<128x32xbf16>, vector<32x32xbf16>, vector<128x32xf32> -> vector<128x32xf32>
    %c0_4 = arith.constant 0 : index
    %c0_5 = arith.constant 0 : index
    %11 = vector.load %arg5[%c0_4, %c0_5] : memref<1x32xf32, #tpu.memory_space<vmem>>, vector<1x32xf32>
    %12 = vector.broadcast %11 : vector<1x32xf32> to vector<128x32xf32>
    %13 = arith.addf %10, %12 : vector<128x32xf32>
    %c0_6 = arith.constant 0 : index
    %c0_7 = arith.constant 0 : index
    %c0_8 = arith.constant 0 : index
    %14 = vector.load %arg2[%c0_6, %c0_7, %c0_8] : memref<1x1x128xf32, #tpu.memory_space<vmem>>, vector<1x1x128xf32>
    %15 = vector.shape_cast %14 : vector<1x1x128xf32> to vector<1x128xf32>
    %16 = tpu.iota {dimensions = array<i32: 0>} : vector<128x128xi32>
    %17 = vector.broadcast %1 : i32 to vector<128x128xi32>
    %18 = arith.addi %16, %17 : vector<128x128xi32>
    %19 = tpu.iota {dimensions = array<i32: 1>} : vector<128x128xi32>
    %20 = arith.subi %19, %18 : vector<128x128xi32>
    %21 = math.absi %20 : vector<128x128xi32>
    %22 = arith.sitofp %21 : vector<128x128xi32> to vector<128x128xf32>
    %cst_9 = arith.constant 0.000000e+00 : f32
    %23 = vector.broadcast %cst_9 : f32 to vector<128x128xf32>
    %24 = arith.subf %23, %22 : vector<128x128xf32>
    %25 = vector.extract_strided_slice %13 {offsets = [0, 0], sizes = [128, 8], strides = [1, 1]} : vector<128x32xf32> to vector<128x8xf32>
    %26 = arith.truncf %25 : vector<128x8xf32> to vector<128x8xbf16>
    %c0_10 = arith.constant 0 : index
    %c0_11 = arith.constant 0 : index
    %27 = vector.load %arg19[%c0_10, %c0_11] : memref<128x32xbf16, #tpu.memory_space<vmem>>, vector<128x8xbf16>
    %c0_12 = arith.constant 0 : index
    %c0_13 = arith.constant 0 : index
    %28 = vector.load %arg20[%c0_12, %c0_13] : memref<128x32xbf16, #tpu.memory_space<vmem>>, vector<128x8xbf16>
    %cst_14 = arith.constant dense<0.000000e+00> : vector<128x128xf32>
    %29 = tpu.matmul %26, %27, %cst_14 {dimension_numbers = #tpu.dot_dimension_numbers<[1], [1], [0], [0], [0, 0, 1, 0], [], []>} : vector<128x8xbf16>, vector<128x8xbf16>, vector<128x128xf32> -> vector<128x128xf32>
    %cst_15 = arith.constant 2.500000e-01 : f32
    %30 = vector.broadcast %cst_15 : f32 to vector<128x128xf32>
    %31 = arith.mulf %30, %24 : vector<128x128xf32>
    %32 = arith.addf %29, %31 : vector<128x128xf32>
    %cst_16 = arith.constant dense<0xFF800000> : vector<128xf32>
    %33 = vector.multi_reduction <maximumf>, %32, %cst_16 [1] : vector<128x128xf32> to vector<128xf32>
    %34 = vector.shape_cast %33 : vector<128xf32> to vector<128x1xf32>
    %35 = vector.broadcast %34 : vector<128x1xf32> to vector<128x128xf32>
    %36 = arith.subf %32, %35 : vector<128x128xf32>
    %37 = math.exp %36 : vector<128x128xf32>
    %38 = vector.broadcast %15 : vector<1x128xf32> to vector<128x128xf32>
    %39 = arith.mulf %37, %38 : vector<128x128xf32>
    %cst_17 = arith.constant dense<0.000000e+00> : vector<128xf32>
    %40 = vector.multi_reduction <add>, %39, %cst_17 [1] : vector<128x128xf32> to vector<128xf32>
    %41 = vector.shape_cast %40 : vector<128xf32> to vector<128x1xf32>
    %42 = tpu.reciprocal %41 {approx = true} : vector<128x1xf32> -> vector<128x1xf32>
    %43 = vector.broadcast %42 : vector<128x1xf32> to vector<128x128xf32>
    %44 = arith.mulf %39, %43 : vector<128x128xf32>
    %45 = arith.truncf %44 : vector<128x128xf32> to vector<128x128xbf16>
    %cst_18 = arith.constant dense<0.000000e+00> : vector<128x8xf32>
    %46 = tpu.matmul %45, %28, %cst_18 {dimension_numbers = #tpu.dot_dimension_numbers<[1], [0], [0], [1], [0, 0, 1, 1], [], []>} : vector<128x128xbf16>, vector<128x8xbf16>, vector<128x8xf32> -> vector<128x8xf32>
    %c0_19 = arith.constant 0 : index
    %c0_20 = arith.constant 0 : index
    %47 = vector.load %arg21[%c0_19, %c0_20] : memref<128x32xf32, #tpu.memory_space<vmem>>, vector<128x8xf32>
    tpu.vector_store %arg21[%c0_19, %c0_20], %46 {strides = array<i32>} : memref<128x32xf32, #tpu.memory_space<vmem>>, vector<128x8xf32>,
    %48 = vector.extract_strided_slice %13 {offsets = [0, 8], sizes = [128, 8], strides = [1, 1]} : vector<128x32xf32> to vector<128x8xf32>
    %49 = arith.truncf %48 : vector<128x8xf32> to vector<128x8xbf16>
    %c0_21 = arith.constant 0 : index
    %c8 = arith.constant 8 : index
    %50 = vector.load %arg19[%c0_21, %c8] : memref<128x32xbf16, #tpu.memory_space<vmem>>, vector<128x8xbf16>
    %c0_22 = arith.constant 0 : index
    %c8_23 = arith.constant 8 : index
    %51 = vector.load %arg20[%c0_22, %c8_23] : memref<128x32xbf16, #tpu.memory_space<vmem>>, vector<128x8xbf16>
    %cst_24 = arith.constant dense<0.000000e+00> : vector<128x128xf32>
    %52 = tpu.matmul %49, %50, %cst_24 {dimension_numbers = #tpu.dot_dimension_numbers<[1], [1], [0], [0], [0, 0, 1, 0], [], []>} : vector<128x8xbf16>, vector<128x8xbf16>, vector<128x128xf32> -> vector<128x128xf32>
    %cst_25 = arith.constant 6.250000e-02 : f32
    %53 = vector.broadcast %cst_25 : f32 to vector<128x128xf32>
    %54 = arith.mulf %53, %24 : vector<128x128xf32>
    %55 = arith.addf %52, %54 : vector<128x128xf32>
    %cst_26 = arith.constant dense<0xFF800000> : vector<128xf32>
    %56 = vector.multi_reduction <maximumf>, %55, %cst_26 [1] : vector<128x128xf32> to vector<128xf32>
    %57 = vector.shape_cast %56 : vector<128xf32> to vector<128x1xf32>
    %58 = vector.broadcast %57 : vector<128x1xf32> to vector<128x128xf32>
    %59 = arith.subf %55, %58 : vector<128x128xf32>
    %60 = math.exp %59 : vector<128x128xf32>
    %61 = vector.broadcast %15 : vector<1x128xf32> to vector<128x128xf32>
    %62 = arith.mulf %60, %61 : vector<128x128xf32>
    %cst_27 = arith.constant dense<0.000000e+00> : vector<128xf32>
    %63 = vector.multi_reduction <add>, %62, %cst_27 [1] : vector<128x128xf32> to vector<128xf32>
    %64 = vector.shape_cast %63 : vector<128xf32> to vector<128x1xf32>
    %65 = tpu.reciprocal %64 {approx = true} : vector<128x1xf32> -> vector<128x1xf32>
    %66 = vector.broadcast %65 : vector<128x1xf32> to vector<128x128xf32>
    %67 = arith.mulf %62, %66 : vector<128x128xf32>
    %68 = arith.truncf %67 : vector<128x128xf32> to vector<128x128xbf16>
    %cst_28 = arith.constant dense<0.000000e+00> : vector<128x8xf32>
    %69 = tpu.matmul %68, %51, %cst_28 {dimension_numbers = #tpu.dot_dimension_numbers<[1], [0], [0], [1], [0, 0, 1, 1], [], []>} : vector<128x128xbf16>, vector<128x8xbf16>, vector<128x8xf32> -> vector<128x8xf32>
    %c0_29 = arith.constant 0 : index
    %c8_30 = arith.constant 8 : index
    %70 = vector.load %arg21[%c0_29, %c8_30] : memref<128x32xf32, #tpu.memory_space<vmem>>, vector<128x8xf32>
    tpu.vector_store %arg21[%c0_29, %c8_30], %69 {strides = array<i32>} : memref<128x32xf32, #tpu.memory_space<vmem>>, vector<128x8xf32>,
    %71 = vector.extract_strided_slice %13 {offsets = [0, 16], sizes = [128, 8], strides = [1, 1]} : vector<128x32xf32> to vector<128x8xf32>
    %72 = arith.truncf %71 : vector<128x8xf32> to vector<128x8xbf16>
    %c0_31 = arith.constant 0 : index
    %c16 = arith.constant 16 : index
    %73 = vector.load %arg19[%c0_31, %c16] : memref<128x32xbf16, #tpu.memory_space<vmem>>, vector<128x8xbf16>
    %c0_32 = arith.constant 0 : index
    %c16_33 = arith.constant 16 : index
    %74 = vector.load %arg20[%c0_32, %c16_33] : memref<128x32xbf16, #tpu.memory_space<vmem>>, vector<128x8xbf16>
    %cst_34 = arith.constant dense<0.000000e+00> : vector<128x128xf32>
    %75 = tpu.matmul %72, %73, %cst_34 {dimension_numbers = #tpu.dot_dimension_numbers<[1], [1], [0], [0], [0, 0, 1, 0], [], []>} : vector<128x8xbf16>, vector<128x8xbf16>, vector<128x128xf32> -> vector<128x128xf32>
    %cst_35 = arith.constant 1.562500e-02 : f32
    %76 = vector.broadcast %cst_35 : f32 to vector<128x128xf32>
    %77 = arith.mulf %76, %24 : vector<128x128xf32>
    %78 = arith.addf %75, %77 : vector<128x128xf32>
    %cst_36 = arith.constant dense<0xFF800000> : vector<128xf32>
    %79 = vector.multi_reduction <maximumf>, %78, %cst_36 [1] : vector<128x128xf32> to vector<128xf32>
    %80 = vector.shape_cast %79 : vector<128xf32> to vector<128x1xf32>
    %81 = vector.broadcast %80 : vector<128x1xf32> to vector<128x128xf32>
    %82 = arith.subf %78, %81 : vector<128x128xf32>
    %83 = math.exp %82 : vector<128x128xf32>
    %84 = vector.broadcast %15 : vector<1x128xf32> to vector<128x128xf32>
    %85 = arith.mulf %83, %84 : vector<128x128xf32>
    %cst_37 = arith.constant dense<0.000000e+00> : vector<128xf32>
    %86 = vector.multi_reduction <add>, %85, %cst_37 [1] : vector<128x128xf32> to vector<128xf32>
    %87 = vector.shape_cast %86 : vector<128xf32> to vector<128x1xf32>
    %88 = tpu.reciprocal %87 {approx = true} : vector<128x1xf32> -> vector<128x1xf32>
    %89 = vector.broadcast %88 : vector<128x1xf32> to vector<128x128xf32>
    %90 = arith.mulf %85, %89 : vector<128x128xf32>
    %91 = arith.truncf %90 : vector<128x128xf32> to vector<128x128xbf16>
    %cst_38 = arith.constant dense<0.000000e+00> : vector<128x8xf32>
    %92 = tpu.matmul %91, %74, %cst_38 {dimension_numbers = #tpu.dot_dimension_numbers<[1], [0], [0], [1], [0, 0, 1, 1], [], []>} : vector<128x128xbf16>, vector<128x8xbf16>, vector<128x8xf32> -> vector<128x8xf32>
    %c0_39 = arith.constant 0 : index
    %c16_40 = arith.constant 16 : index
    %93 = vector.load %arg21[%c0_39, %c16_40] : memref<128x32xf32, #tpu.memory_space<vmem>>, vector<128x8xf32>
    tpu.vector_store %arg21[%c0_39, %c16_40], %92 {strides = array<i32>} : memref<128x32xf32, #tpu.memory_space<vmem>>, vector<128x8xf32>,
    %94 = vector.extract_strided_slice %13 {offsets = [0, 24], sizes = [128, 8], strides = [1, 1]} : vector<128x32xf32> to vector<128x8xf32>
    %95 = arith.truncf %94 : vector<128x8xf32> to vector<128x8xbf16>
    %c0_41 = arith.constant 0 : index
    %c24 = arith.constant 24 : index
    %96 = vector.load %arg19[%c0_41, %c24] : memref<128x32xbf16, #tpu.memory_space<vmem>>, vector<128x8xbf16>
    %c0_42 = arith.constant 0 : index
    %c24_43 = arith.constant 24 : index
    %97 = vector.load %arg20[%c0_42, %c24_43] : memref<128x32xbf16, #tpu.memory_space<vmem>>, vector<128x8xbf16>
    %cst_44 = arith.constant dense<0.000000e+00> : vector<128x128xf32>
    %98 = tpu.matmul %95, %96, %cst_44 {dimension_numbers = #tpu.dot_dimension_numbers<[1], [1], [0], [0], [0, 0, 1, 0], [], []>} : vector<128x8xbf16>, vector<128x8xbf16>, vector<128x128xf32> -> vector<128x128xf32>
    %cst_45 = arith.constant 3.906250e-03 : f32
    %99 = vector.broadcast %cst_45 : f32 to vector<128x128xf32>
    %100 = arith.mulf %99, %24 : vector<128x128xf32>
    %101 = arith.addf %98, %100 : vector<128x128xf32>
    %cst_46 = arith.constant dense<0xFF800000> : vector<128xf32>
    %102 = vector.multi_reduction <maximumf>, %101, %cst_46 [1] : vector<128x128xf32> to vector<128xf32>
    %103 = vector.shape_cast %102 : vector<128xf32> to vector<128x1xf32>
    %104 = vector.broadcast %103 : vector<128x1xf32> to vector<128x128xf32>
    %105 = arith.subf %101, %104 : vector<128x128xf32>
    %106 = math.exp %105 : vector<128x128xf32>
    %107 = vector.broadcast %15 : vector<1x128xf32> to vector<128x128xf32>
    %108 = arith.mulf %106, %107 : vector<128x128xf32>
    %cst_47 = arith.constant dense<0.000000e+00> : vector<128xf32>
    %109 = vector.multi_reduction <add>, %108, %cst_47 [1] : vector<128x128xf32> to vector<128xf32>
    %110 = vector.shape_cast %109 : vector<128xf32> to vector<128x1xf32>
    %111 = tpu.reciprocal %110 {approx = true} : vector<128x1xf32> -> vector<128x1xf32>
    %112 = vector.broadcast %111 : vector<128x1xf32> to vector<128x128xf32>
    %113 = arith.mulf %108, %112 : vector<128x128xf32>
    %114 = arith.truncf %113 : vector<128x128xf32> to vector<128x128xbf16>
    %cst_48 = arith.constant dense<0.000000e+00> : vector<128x8xf32>
    %115 = tpu.matmul %114, %97, %cst_48 {dimension_numbers = #tpu.dot_dimension_numbers<[1], [0], [0], [1], [0, 0, 1, 1], [], []>} : vector<128x128xbf16>, vector<128x8xbf16>, vector<128x8xf32> -> vector<128x8xf32>
    %c0_49 = arith.constant 0 : index
    %c24_50 = arith.constant 24 : index
    %116 = vector.load %arg21[%c0_49, %c24_50] : memref<128x32xf32, #tpu.memory_space<vmem>>, vector<128x8xf32>
    tpu.vector_store %arg21[%c0_49, %c24_50], %115 {strides = array<i32>} : memref<128x32xf32, #tpu.memory_space<vmem>>, vector<128x8xf32>,
    %c0_51 = arith.constant 0 : index
    %c0_52 = arith.constant 0 : index
    %117 = vector.load %arg21[%c0_51, %c0_52] : memref<128x32xf32, #tpu.memory_space<vmem>>, vector<128x32xf32>
    %118 = arith.truncf %117 : vector<128x32xf32> to vector<128x32xbf16>
    %c0_53 = arith.constant 0 : index
    %c0_54 = arith.constant 0 : index
    %119 = vector.load %arg8[%c0_53, %c0_54] : memref<32x32xbf16, #tpu.memory_space<vmem>>, vector<32x32xbf16>
    %cst_55 = arith.constant dense<0.000000e+00> : vector<128x32xf32>
    %120 = tpu.matmul %118, %119, %cst_55 {dimension_numbers = #tpu.dot_dimension_numbers<[1], [0], [0], [1], [0, 0, 1, 1], [], []>} : vector<128x32xbf16>, vector<32x32xbf16>, vector<128x32xf32> -> vector<128x32xf32>
    %c0_56 = arith.constant 0 : index
    %c0_57 = arith.constant 0 : index
    %121 = vector.load %arg9[%c0_56, %c0_57] : memref<1x32xf32, #tpu.memory_space<vmem>>, vector<1x32xf32>
    %122 = vector.broadcast %121 : vector<1x32xf32> to vector<128x32xf32>
    %123 = arith.addf %120, %122 : vector<128x32xf32>
    %124 = arith.addf %8, %123 : vector<128x32xf32>
    %c0_58 = arith.constant 0 : index
    %c0_59 = arith.constant 0 : index
    %125 = vector.load %arg10[%c0_58, %c0_59] : memref<1x32xf32, #tpu.memory_space<vmem>>, vector<1x32xf32>
    %c0_60 = arith.constant 0 : index
    %c0_61 = arith.constant 0 : index
    %126 = vector.load %arg11[%c0_60, %c0_61] : memref<1x32xf32, #tpu.memory_space<vmem>>, vector<1x32xf32>
    %cst_62 = arith.constant dense<0.000000e+00> : vector<128xf32>
    %127 = vector.multi_reduction <add>, %124, %cst_62 [1] : vector<128x32xf32> to vector<128xf32>
    %128 = vector.shape_cast %127 : vector<128xf32> to vector<128x1xf32>
    %cst_63 = arith.constant 3.200000e+01 : f32
    %129 = vector.broadcast %cst_63 : f32 to vector<128x1xf32>
    %130 = arith.divf %128, %129 : vector<128x1xf32>
    %131 = vector.broadcast %130 : vector<128x1xf32> to vector<128x32xf32>
    %132 = arith.subf %124, %131 : vector<128x32xf32>
    %133 = arith.mulf %132, %132 : vector<128x32xf32>
    %cst_64 = arith.constant dense<0.000000e+00> : vector<128xf32>
    %134 = vector.multi_reduction <add>, %133, %cst_64 [1] : vector<128x32xf32> to vector<128xf32>
    %135 = vector.shape_cast %134 : vector<128xf32> to vector<128x1xf32>
    %cst_65 = arith.constant 3.200000e+01 : f32
    %136 = vector.broadcast %cst_65 : f32 to vector<128x1xf32>
    %137 = arith.divf %135, %136 : vector<128x1xf32>
    %cst_66 = arith.constant 9.99999996E-13 : f32
    %138 = vector.broadcast %cst_66 : f32 to vector<128x1xf32>
    %139 = arith.addf %137, %138 : vector<128x1xf32>
    %140 = math.rsqrt %139 : vector<128x1xf32>
    %141 = vector.broadcast %140 : vector<128x1xf32> to vector<128x32xf32>
    %142 = arith.mulf %132, %141 : vector<128x32xf32>
    %143 = vector.broadcast %125 : vector<1x32xf32> to vector<128x32xf32>
    %144 = arith.mulf %142, %143 : vector<128x32xf32>
    %145 = vector.broadcast %126 : vector<1x32xf32> to vector<128x32xf32>
    %146 = arith.addf %144, %145 : vector<128x32xf32>
    %147 = arith.truncf %146 : vector<128x32xf32> to vector<128x32xbf16>
    %c0_67 = arith.constant 0 : index
    %c0_68 = arith.constant 0 : index
    %148 = vector.load %arg12[%c0_67, %c0_68] : memref<32x128xbf16, #tpu.memory_space<vmem>>, vector<32x128xbf16>
    %cst_69 = arith.constant dense<0.000000e+00> : vector<128x128xf32>
    %149 = tpu.matmul %147, %148, %cst_69 {dimension_numbers = #tpu.dot_dimension_numbers<[1], [0], [0], [1], [0, 0, 1, 1], [], []>} : vector<128x32xbf16>, vector<32x128xbf16>, vector<128x128xf32> -> vector<128x128xf32>
    %c0_70 = arith.constant 0 : index
    %c0_71 = arith.constant 0 : index
    %150 = vector.load %arg13[%c0_70, %c0_71] : memref<1x128xf32, #tpu.memory_space<vmem>>, vector<1x128xf32>
    %151 = vector.broadcast %150 : vector<1x128xf32> to vector<128x128xf32>
    %152 = arith.addf %149, %151 : vector<128x128xf32>
    %153 = arith.mulf %152, %152 : vector<128x128xf32>
    %154 = arith.mulf %152, %153 : vector<128x128xf32>
    %cst_72 = arith.constant 4.471500e-02 : f32
    %155 = vector.broadcast %cst_72 : f32 to vector<128x128xf32>
    %156 = arith.mulf %155, %154 : vector<128x128xf32>
    %157 = arith.addf %152, %156 : vector<128x128xf32>
    %cst_73 = arith.constant 0.797884583 : f32
    %158 = vector.broadcast %cst_73 : f32 to vector<128x128xf32>
    %159 = arith.mulf %158, %157 : vector<128x128xf32>
    %160 = math.tanh %159 : vector<128x128xf32>
    %cst_74 = arith.constant 1.000000e+00 : f32
    %161 = vector.broadcast %cst_74 : f32 to vector<128x128xf32>
    %162 = arith.addf %161, %160 : vector<128x128xf32>
    %cst_75 = arith.constant 5.000000e-01 : f32
    %163 = vector.broadcast %cst_75 : f32 to vector<128x128xf32>
    %164 = arith.mulf %163, %162 : vector<128x128xf32>
    %165 = arith.mulf %152, %164 : vector<128x128xf32>
    %166 = arith.truncf %165 : vector<128x128xf32> to vector<128x128xbf16>
    %c0_76 = arith.constant 0 : index
    %c0_77 = arith.constant 0 : index
    %167 = vector.load %arg14[%c0_76, %c0_77] : memref<128x32xbf16, #tpu.memory_space<vmem>>, vector<128x32xbf16>
    %cst_78 = arith.constant dense<0.000000e+00> : vector<128x32xf32>
    %168 = tpu.matmul %166, %167, %cst_78 {dimension_numbers = #tpu.dot_dimension_numbers<[1], [0], [0], [1], [0, 0, 1, 1], [], []>} : vector<128x128xbf16>, vector<128x32xbf16>, vector<128x32xf32> -> vector<128x32xf32>
    %c0_79 = arith.constant 0 : index
    %c0_80 = arith.constant 0 : index
    %169 = vector.load %arg15[%c0_79, %c0_80] : memref<1x32xf32, #tpu.memory_space<vmem>>, vector<1x32xf32>
    %170 = vector.broadcast %169 : vector<1x32xf32> to vector<128x32xf32>
    %171 = arith.addf %168, %170 : vector<128x32xf32>
    %172 = arith.addf %146, %171 : vector<128x32xf32>
    %c0_81 = arith.constant 0 : index
    %c0_82 = arith.constant 0 : index
    %173 = vector.load %arg16[%c0_81, %c0_82] : memref<1x32xf32, #tpu.memory_space<vmem>>, vector<1x32xf32>
    %c0_83 = arith.constant 0 : index
    %c0_84 = arith.constant 0 : index
    %174 = vector.load %arg17[%c0_83, %c0_84] : memref<1x32xf32, #tpu.memory_space<vmem>>, vector<1x32xf32>
    %cst_85 = arith.constant dense<0.000000e+00> : vector<128xf32>
    %175 = vector.multi_reduction <add>, %172, %cst_85 [1] : vector<128x32xf32> to vector<128xf32>
    %176 = vector.shape_cast %175 : vector<128xf32> to vector<128x1xf32>
    %cst_86 = arith.constant 3.200000e+01 : f32
    %177 = vector.broadcast %cst_86 : f32 to vector<128x1xf32>
    %178 = arith.divf %176, %177 : vector<128x1xf32>
    %179 = vector.broadcast %178 : vector<128x1xf32> to vector<128x32xf32>
    %180 = arith.subf %172, %179 : vector<128x32xf32>
    %181 = arith.mulf %180, %180 : vector<128x32xf32>
    %cst_87 = arith.constant dense<0.000000e+00> : vector<128xf32>
    %182 = vector.multi_reduction <add>, %181, %cst_87 [1] : vector<128x32xf32> to vector<128xf32>
    %183 = vector.shape_cast %182 : vector<128xf32> to vector<128x1xf32>
    %cst_88 = arith.constant 3.200000e+01 : f32
    %184 = vector.broadcast %cst_88 : f32 to vector<128x1xf32>
    %185 = arith.divf %183, %184 : vector<128x1xf32>
    %cst_89 = arith.constant 9.99999996E-13 : f32
    %186 = vector.broadcast %cst_89 : f32 to vector<128x1xf32>
    %187 = arith.addf %185, %186 : vector<128x1xf32>
    %188 = math.rsqrt %187 : vector<128x1xf32>
    %189 = vector.broadcast %188 : vector<128x1xf32> to vector<128x32xf32>
    %190 = arith.mulf %180, %189 : vector<128x32xf32>
    %191 = vector.broadcast %173 : vector<1x32xf32> to vector<128x32xf32>
    %192 = arith.mulf %190, %191 : vector<128x32xf32>
    %193 = vector.broadcast %174 : vector<1x32xf32> to vector<128x32xf32>
    %194 = arith.addf %192, %193 : vector<128x32xf32>
    %c0_90 = arith.constant 0 : index
    %c0_91 = arith.constant 0 : index
    %c0_92 = arith.constant 0 : index
    %195 = vector.load %arg18[%c0_90, %c0_91, %c0_92] : memref<1x128x32xf32, #tpu.memory_space<vmem>>, vector<1x128x32xf32>
    %196 = vector.shape_cast %195 : vector<1x128x32xf32> to vector<128x32xf32>
    %197 = vector.shape_cast %194 : vector<128x32xf32> to vector<1x128x32xf32>
    tpu.vector_store %arg18[%c0_90, %c0_91, %c0_92], %197 {strides = array<i32>} : memref<1x128x32xf32, #tpu.memory_space<vmem>>, vector<1x128x32xf32>,
    return
  }
  func.func @transform_0(%arg0: i32, %arg1: i32) -> (i32, i32, i32) {
    %c0_i32 = arith.constant 0 : i32
    %c0_i32_0 = arith.constant 0 : i32
    %c0_i32_1 = arith.constant 0 : i32
    return %arg0, %c0_i32, %c0_i32_0 : i32, i32, i32
  }
  func.func @transform_1(%arg0: i32, %arg1: i32) -> (i32, i32, i32) {
    %c0_i32 = arith.constant 0 : i32
    %c0_i32_0 = arith.constant 0 : i32
    %c0_i32_1 = arith.constant 0 : i32
    return %arg0, %c0_i32, %c0_i32_0 : i32, i32, i32
  }
  func.func @transform_2(%arg0: i32, %arg1: i32) -> (i32, i32) {
    %c0_i32 = arith.constant 0 : i32
    %c0_i32_0 = arith.constant 0 : i32
    %c0_i32_1 = arith.constant 0 : i32
    return %c0_i32, %c0_i32_0 : i32, i32
  }
  func.func @transform_3(%arg0: i32, %arg1: i32) -> (i32, i32) {
    %c0_i32 = arith.constant 0 : i32
    %c0_i32_0 = arith.constant 0 : i32
    %c0_i32_1 = arith.constant 0 : i32
    return %c0_i32, %c0_i32_0 : i32, i32
  }
  func.func @transform_4(%arg0: i32, %arg1: i32) -> (i32, i32) {
    %c0_i32 = arith.constant 0 : i32
    %c0_i32_0 = arith.constant 0 : i32
    %c0_i32_1 = arith.constant 0 : i32
    return %c0_i32, %c0_i32_0 : i32, i32
  }
  func.func @transform_5(%arg0: i32, %arg1: i32) -> (i32, i32) {
    %c0_i32 = arith.constant 0 : i32
    %c0_i32_0 = arith.constant 0 : i32
    %c0_i32_1 = arith.constant 0 : i32
    return %c0_i32, %c0_i32_0 : i32, i32
  }
  func.func @transform_6(%arg0: i32, %arg1: i32) -> (i32, i32) {
    %c0_i32 = arith.constant 0 : i32
    %c0_i32_0 = arith.constant 0 : i32
    %c0_i32_1 = arith.constant 0 : i32
    return %c0_i32, %c0_i32_0 : i32, i32
  }
  func.func @transform_7(%arg0: i32, %arg1: i32) -> (i32, i32) {
    %c0_i32 = arith.constant 0 : i32
    %c0_i32_0 = arith.constant 0 : i32
    %c0_i32_1 = arith.constant 0 : i32
    return %c0_i32, %c0_i32_0 : i32, i32
  }
  func.func @transform_8(%arg0: i32, %arg1: i32) -> (i32, i32) {
    %c0_i32 = arith.constant 0 : i32
    %c0_i32_0 = arith.constant 0 : i32
    %c0_i32_1 = arith.constant 0 : i32
    return %c0_i32, %c0_i32_0 : i32, i32
  }
  func.func @transform_9(%arg0: i32, %arg1: i32) -> (i32, i32) {
    %c0_i32 = arith.constant 0 : i32
    %c0_i32_0 = arith.constant 0 : i32
    %c0_i32_1 = arith.constant 0 : i32
    return %c0_i32, %c0_i32_0 : i32, i32
  }
  func.func @transform_10(%arg0: i32, %arg1: i32) -> (i32, i32) {
    %c0_i32 = arith.constant 0 : i32
    %c0_i32_0 = arith.constant 0 : i32
    %c0_i32_1 = arith.constant 0 : i32
    return %c0_i32, %c0_i32_0 : i32, i32
  }
  func.func @transform_11(%arg0: i32, %arg1: i32) -> (i32, i32) {
    %c0_i32 = arith.constant 0 : i32
    %c0_i32_0 = arith.constant 0 : i32
    %c0_i32_1 = arith.constant 0 : i32
    return %c0_i32, %c0_i32_0 : i32, i32
  }
  func.func @transform_12(%arg0: i32, %arg1: i32) -> (i32, i32) {
    %c0_i32 = arith.constant 0 : i32
    %c0_i32_0 = arith.constant 0 : i32
    %c0_i32_1 = arith.constant 0 : i32
    return %c0_i32, %c0_i32_0 : i32, i32
  }
  func.func @transform_13(%arg0: i32, %arg1: i32) -> (i32, i32) {
    %c0_i32 = arith.constant 0 : i32
    %c0_i32_0 = arith.constant 0 : i32
    %c0_i32_1 = arith.constant 0 : i32
    return %c0_i32, %c0_i32_0 : i32, i32
  }
  func.func @transform_14(%arg0: i32, %arg1: i32) -> (i32, i32) {
    %c0_i32 = arith.constant 0 : i32
    %c0_i32_0 = arith.constant 0 : i32
    %c0_i32_1 = arith.constant 0 : i32
    return %c0_i32, %c0_i32_0 : i32, i32
  }
  func.func @transform_15(%arg0: i32, %arg1: i32) -> (i32, i32) {
    %c0_i32 = arith.constant 0 : i32
    %c0_i32_0 = arith.constant 0 : i32
    %c0_i32_1 = arith.constant 0 : i32
    return %c0_i32, %c0_i32_0 : i32, i32
  }
  func.func @transform_16(%arg0: i32, %arg1: i32) -> (i32, i32, i32) {
    %c0_i32 = arith.constant 0 : i32
    %c0_i32_0 = arith.constant 0 : i32
    return %arg0, %arg1, %c0_i32 : i32, i32, i32
  }
}

</mosaic_0001>

<llo_original>
// kernel: tpu_custom_call.1
$region0: #{tpu_custom_call.1}
  #allocation0 [shape = 'u32[]', space=smem, size = 0x4, offset = 0x4, fixed_abs, tag = 'smem constant byte address 0x4 - core index']
  #allocation1 [shape = 'u32[144,128]{1,0:T(1,128)}', space=vmem, size = 0x12000, scoped, tag = 'internal scratch']
  #allocation2 [shape = 'bf16[128,32]{1,0:T(16,128)(2,1)}', space=vmem, size = 0x8000, scoped, tag = 'scratch operand']
  #allocation3 [shape = 'bf16[128,32]{1,0:T(16,128)(2,1)}', space=vmem, size = 0x8000, scoped, tag = 'scratch operand']
  #allocation4 [shape = 'f32[128,32]{1,0:T(8,128)}', space=vmem, size = 0x10000, scoped, tag = 'scratch operand']
  %s0 = inlined_call_operand.vmem [shape: f32[2,1,128], index: 0, kind: input, shape index: {}]
  %s1 = inlined_call_operand.vmem [shape: bf16[2,128,32], index: 1, kind: input, shape index: {}]
  %s2 = inlined_call_operand.vmem [shape: bf16[32,32], index: 2, kind: input, shape index: {}]
  %s3 = inlined_call_operand.vmem [shape: f32[1,32], index: 3, kind: input, shape index: {}]
  %s4 = inlined_call_operand.vmem [shape: bf16[32,64], index: 4, kind: input, shape index: {}]
  %s5 = inlined_call_operand.vmem [shape: f32[1,64], index: 5, kind: input, shape index: {}]
  %s6 = inlined_call_operand.vmem [shape: bf16[32,32], index: 6, kind: input, shape index: {}]
  %s7 = inlined_call_operand.vmem [shape: f32[1,32], index: 7, kind: input, shape index: {}]
  %s8 = inlined_call_operand.vmem [shape: f32[1,32], index: 8, kind: input, shape index: {}]
  %s9 = inlined_call_operand.vmem [shape: f32[1,32], index: 9, kind: input, shape index: {}]
  %s10 = inlined_call_operand.vmem [shape: bf16[32,128], index: 10, kind: input, shape index: {}]
  %s11 = inlined_call_operand.vmem [shape: f32[1,128], index: 11, kind: input, shape index: {}]
  %s12 = inlined_call_operand.vmem [shape: bf16[128,32], index: 12, kind: input, shape index: {}]
  %s13 = inlined_call_operand.vmem [shape: f32[1,32], index: 13, kind: input, shape index: {}]
  %s14 = inlined_call_operand.vmem [shape: f32[1,32], index: 14, kind: input, shape index: {}]
  %s15 = inlined_call_operand.vmem [shape: f32[1,32], index: 15, kind: input, shape index: {}]
  %s16 = inlined_call_operand.vmem [shape: f32[2,128,32], index: 16, kind: output, shape index: {}]
  %s17 = sld [smem:[#allocation0]]
  $region101: #{tpu_custom_call.1} parent=0
    _
  %s19 = ssub.s32 1, %s17
  %s20 = scalar_select 0, %s19, %s17
  loop: start=0, step=1, limit=4
  $region2: #{tpu_custom_call.1} parent=0 // loop_pre_header
    _
  $region3: #{tpu_custom_call.1} parent=0 // loop_header
    %s22 = sphi 0, %s26
    %p23 = scmp.ge.s32.totalorder %s22, 4
    %s29 = sphi 0, %s41
    %s30 = sphi 0, %s37
    %s31 = sphi 0, %s29
    %s32 = sphi 0, %s30
    %s33 = sphi 0, %s31
    %s34 = sphi 0, %s32
    %s44 = sphi 0, %s46
    %s47 = sphi 0, %s44
    %s48 = sphi 0, %s47
    %s64 = sphi 0, %s48
    %s70 = sphi 0, %s72
    %s73 = sphi 0, %s70
    %s74 = sphi 0, %s73
    %s90 = sphi 0, %s74
    %s94 = sphi 0, %s94
    %s96 = sphi 0, %s94
    %s97 = sphi 0, %s96
    %s111 = sphi 0, %s97
    %s115 = sphi 0, %s115
    %s117 = sphi 0, %s115
    %s118 = sphi 0, %s117
    %s132 = sphi 0, %s118
    %s136 = sphi 0, %s136
    %s138 = sphi 0, %s136
    %s139 = sphi 0, %s138
    %s153 = sphi 0, %s139
    %s157 = sphi 0, %s157
    %s159 = sphi 0, %s157
    %s160 = sphi 0, %s159
    %s174 = sphi 0, %s160
    %s178 = sphi 0, %s178
    %s180 = sphi 0, %s178
    %s181 = sphi 0, %s180
    %s195 = sphi 0, %s181
    %s199 = sphi 0, %s199
    %s201 = sphi 0, %s199
    %s202 = sphi 0, %s201
    %s216 = sphi 0, %s202
    %s220 = sphi 0, %s220
    %s222 = sphi 0, %s220
    %s223 = sphi 0, %s222
    %s237 = sphi 0, %s223
    %s241 = sphi 0, %s241
    %s243 = sphi 0, %s241
    %s244 = sphi 0, %s243
    %s258 = sphi 0, %s244
    %s262 = sphi 0, %s262
    %s264 = sphi 0, %s262
    %s265 = sphi 0, %s264
    %s279 = sphi 0, %s265
    %s283 = sphi 0, %s283
    %s285 = sphi 0, %s283
    %s286 = sphi 0, %s285
    %s300 = sphi 0, %s286
    %s304 = sphi 0, %s304
    %s306 = sphi 0, %s304
    %s307 = sphi 0, %s306
    %s321 = sphi 0, %s307
    %s325 = sphi 0, %s325
    %s327 = sphi 0, %s325
    %s328 = sphi 0, %s327
    %s342 = sphi 0, %s328
    %s346 = sphi 0, %s346
    %s348 = sphi 0, %s346
    %s349 = sphi 0, %s348
    %s363 = sphi 0, %s349
    %s367 = sphi 0, %s367
    %s369 = sphi 0, %s367
    %s370 = sphi 0, %s369
    %s384 = sphi 0, %s370
    %s392 = sphi 0, %s394
    %s395 = sphi 0, %s392
    %s396 = sphi 0, %s395
    %s412 = sphi 0, %s396
  $region4: #{tpu_custom_call.1} parent=0 // loop_header_branch
    %25 = sbr.rel (%p23) target = $region8
  $region5: #{tpu_custom_call.1} parent=0 // loop_body
    %s27 = ssub.s32 %s22, 1
    %s28 = ssub.s32 %s22, 2
    %s35 = sadd.s32 1, %s30
    %p36 = scmp.ge.s32.totalorder %s35, 1
    %s37 = scalar_select %p36, 0, %s35
    %s38 = sadd.s32 1, %s29
    %s39 = scalar_select %p36, %s38, %s29
    %p40 = scmp.ge.s32.totalorder %s39, 2
    %s41 = scalar_select %p40, 0, %s39
    %s42 = ssub.s32 %s29, %s41
    %p43 = scmp.eq.s32.totalorder %s42, 0
    %s45 = sadd.s32 %s44, 1
    %s46 = scalar_select %p43, %s44, %s45
    %p49 = pneg %p43
    %p50 = scmp.eq.s32.totalorder %s22, 1
    %p51 = por %p49, %p50
    %p52 = scmp.ne.s32.totalorder %s44, %s47
    %p53 = scmp.eq.s32.totalorder %s22, 0
    %p54 = por %p52, %p53
    %p55 = scmp.ne.s32.totalorder %s44, %s47
    %p56 = scmp.eq.s32.totalorder %s27, 1
    %p57 = por %p55, %p56
    %p58 = scmp.ne.s32.totalorder %s47, %s48
    %p59 = scmp.eq.s32.totalorder %s27, 0
    %p60 = por %p58, %p59
    %p61 = scmp.ne.s32.totalorder %s47, %s48
    %p62 = scmp.eq.s32.totalorder %s28, 1
    %p63 = por %p61, %p62
    %p65 = scmp.ne.s32.totalorder %s48, %s64
    %p66 = scmp.eq.s32.totalorder %s28, 0
    %p67 = por %p65, %p66
    %s68 = ssub.s32 %s29, %s41
    %p69 = scmp.eq.s32.totalorder %s68, 0
    %s71 = sadd.s32 %s70, 1
    %s72 = scalar_select %p69, %s70, %s71
    %p75 = pneg %p69
    %p76 = scmp.eq.s32.totalorder %s22, 1
    %p77 = por %p75, %p76
    %p78 = scmp.ne.s32.totalorder %s70, %s73
    %p79 = scmp.eq.s32.totalorder %s22, 0
    %p80 = por %p78, %p79
    %p81 = scmp.ne.s32.totalorder %s70, %s73
    %p82 = scmp.eq.s32.totalorder %s27, 1
    %p83 = por %p81, %p82
    %p84 = scmp.ne.s32.totalorder %s73, %s74
    %p85 = scmp.eq.s32.totalorder %s27, 0
    %p86 = por %p84, %p85
    %p87 = scmp.ne.s32.totalorder %s73, %s74
    %p88 = scmp.eq.s32.totalorder %s28, 1
    %p89 = por %p87, %p88
    %p91 = scmp.ne.s32.totalorder %s74, %s90
    %p92 = scmp.eq.s32.totalorder %s28, 0
    %p93 = por %p91, %p92
    %s95 = sadd.s32 %s94, 1
    %p98 = scmp.eq.s32.totalorder %s22, 1
    %p99 = scmp.ne.s32.totalorder %s94, %s96
    %p100 = scmp.eq.s32.totalorder %s22, 0
    %p101 = por %p99, %p100
    %p102 = scmp.ne.s32.totalorder %s94, %s96
    %p103 = scmp.eq.s32.totalorder %s27, 1
    %p104 = por %p102, %p103
    %p105 = scmp.ne.s32.totalorder %s96, %s97
    %p106 = scmp.eq.s32.totalorder %s27, 0
    %p107 = por %p105, %p106
    %p108 = scmp.ne.s32.totalorder %s96, %s97
    %p109 = scmp.eq.s32.totalorder %s28, 1
    %p110 = por %p108, %p109
    %p112 = scmp.ne.s32.totalorder %s97, %s111
    %p113 = scmp.eq.s32.totalorder %s28, 0
    %p114 = por %p112, %p113
    %s116 = sadd.s32 %s115, 1
    %p119 = scmp.eq.s32.totalorder %s22, 1
    %p120 = scmp.ne.s32.totalorder %s115, %s117
    %p121 = scmp.eq.s32.totalorder %s22, 0
    %p122 = por %p120, %p121
    %p123 = scmp.ne.s32.totalorder %s115, %s117
    %p124 = scmp.eq.s32.totalorder %s27, 1
    %p125 = por %p123, %p124
    %p126 = scmp.ne.s32.totalorder %s117, %s118
    %p127 = scmp.eq.s32.totalorder %s27, 0
    %p128 = por %p126, %p127
    %p129 = scmp.ne.s32.totalorder %s117, %s118
    %p130 = scmp.eq.s32.totalorder %s28, 1
    %p131 = por %p129, %p130
    %p133 = scmp.ne.s32.totalorder %s118, %s132
    %p134 = scmp.eq.s32.totalorder %s28, 0
    %p135 = por %p133, %p134
    %s137 = sadd.s32 %s136, 1
    %p140 = scmp.eq.s32.totalorder %s22, 1
    %p141 = scmp.ne.s32.totalorder %s136, %s138
    %p142 = scmp.eq.s32.totalorder %s22, 0
    %p143 = por %p141, %p142
    %p144 = scmp.ne.s32.totalorder %s136, %s138
    %p145 = scmp.eq.s32.totalorder %s27, 1
    %p146 = por %p144, %p145
    %p147 = scmp.ne.s32.totalorder %s138, %s139
    %p148 = scmp.eq.s32.totalorder %s27, 0
    %p149 = por %p147, %p148
    %p150 = scmp.ne.s32.totalorder %s138, %s139
    %p151 = scmp.eq.s32.totalorder %s28, 1
    %p152 = por %p150, %p151
    %p154 = scmp.ne.s32.totalorder %s139, %s153
    %p155 = scmp.eq.s32.totalorder %s28, 0
    %p156 = por %p154, %p155
    %s158 = sadd.s32 %s157, 1
    %p161 = scmp.eq.s32.totalorder %s22, 1
    %p162 = scmp.ne.s32.totalorder %s157, %s159
    %p163 = scmp.eq.s32.totalorder %s22, 0
    %p164 = por %p162, %p163
    %p165 = scmp.ne.s32.totalorder %s157, %s159
    %p166 = scmp.eq.s32.totalorder %s27, 1
    %p167 = por %p165, %p166
    %p168 = scmp.ne.s32.totalorder %s159, %s160
    %p169 = scmp.eq.s32.totalorder %s27, 0
    %p170 = por %p168, %p169
    %p171 = scmp.ne.s32.totalorder %s159, %s160
    %p172 = scmp.eq.s32.totalorder %s28, 1
    %p173 = por %p171, %p172
    %p175 = scmp.ne.s32.totalorder %s160, %s174
    %p176 = scmp.eq.s32.totalorder %s28, 0
    %p177 = por %p175, %p176
    %s179 = sadd.s32 %s178, 1
    %p182 = scmp.eq.s32.totalorder %s22, 1
    %p183 = scmp.ne.s32.totalorder %s178, %s180
    %p184 = scmp.eq.s32.totalorder %s22, 0
    %p185 = por %p183, %p184
    %p186 = scmp.ne.s32.totalorder %s178, %s180
    %p187 = scmp.eq.s32.totalorder %s27, 1
    %p188 = por %p186, %p187
    %p189 = scmp.ne.s32.totalorder %s180, %s181
    %p190 = scmp.eq.s32.totalorder %s27, 0
    %p191 = por %p189, %p190
    %p192 = scmp.ne.s32.totalorder %s180, %s181
    %p193 = scmp.eq.s32.totalorder %s28, 1
    %p194 = por %p192, %p193
    %p196 = scmp.ne.s32.totalorder %s181, %s195
    %p197 = scmp.eq.s32.totalorder %s28, 0
    %p198 = por %p196, %p197
    %s200 = sadd.s32 %s199, 1
    %p203 = scmp.eq.s32.totalorder %s22, 1
    %p204 = scmp.ne.s32.totalorder %s199, %s201
    %p205 = scmp.eq.s32.totalorder %s22, 0
    %p206 = por %p204, %p205
    %p207 = scmp.ne.s32.totalorder %s199, %s201
    %p208 = scmp.eq.s32.totalorder %s27, 1
    %p209 = por %p207, %p208
    %p210 = scmp.ne.s32.totalorder %s201, %s202
    %p211 = scmp.eq.s32.totalorder %s27, 0
    %p212 = por %p210, %p211
    %p213 = scmp.ne.s32.totalorder %s201, %s202
    %p214 = scmp.eq.s32.totalorder %s28, 1
    %p215 = por %p213, %p214
    %p217 = scmp.ne.s32.totalorder %s202, %s216
    %p218 = scmp.eq.s32.totalorder %s28, 0
    %p219 = por %p217, %p218
    %s221 = sadd.s32 %s220, 1
    %p224 = scmp.eq.s32.totalorder %s22, 1
    %p225 = scmp.ne.s32.totalorder %s220, %s222
    %p226 = scmp.eq.s32.totalorder %s22, 0
    %p227 = por %p225, %p226
    %p228 = scmp.ne.s32.totalorder %s220, %s222
    %p229 = scmp.eq.s32.totalorder %s27, 1
    %p230 = por %p228, %p229
    %p231 = scmp.ne.s32.totalorder %s222, %s223
    %p232 = scmp.eq.s32.totalorder %s27, 0
    %p233 = por %p231, %p232
    %p234 = scmp.ne.s32.totalorder %s222, %s223
    %p235 = scmp.eq.s32.totalorder %s28, 1
    %p236 = por %p234, %p235
    %p238 = scmp.ne.s32.totalorder %s223, %s237
    %p239 = scmp.eq.s32.totalorder %s28, 0
    %p240 = por %p238, %p239
    %s242 = sadd.s32 %s241, 1
    %p245 = scmp.eq.s32.totalorder %s22, 1
    %p246 = scmp.ne.s32.totalorder %s241, %s243
    %p247 = scmp.eq.s32.totalorder %s22, 0
    %p248 = por %p246, %p247
    %p249 = scmp.ne.s32.totalorder %s241, %s243
    %p250 = scmp.eq.s32.totalorder %s27, 1
    %p251 = por %p249, %p250
    %p252 = scmp.ne.s32.totalorder %s243, %s244
    %p253 = scmp.eq.s32.totalorder %s27, 0
    %p254 = por %p252, %p253
    %p255 = scmp.ne.s32.totalorder %s243, %s244
    %p256 = scmp.eq.s32.totalorder %s28, 1
    %p257 = por %p255, %p256
    %p259 = scmp.ne.s32.totalorder %s244, %s258
    %p260 = scmp.eq.s32.totalorder %s28, 0
    %p261 = por %p259, %p260
    %s263 = sadd.s32 %s262, 1
    %p266 = scmp.eq.s32.totalorder %s22, 1
    %p267 = scmp.ne.s32.totalorder %s262, %s264
    %p268 = scmp.eq.s32.totalorder %s22, 0
    %p269 = por %p267, %p268
    %p270 = scmp.ne.s32.totalorder %s262, %s264
    %p271 = scmp.eq.s32.totalorder %s27, 1
    %p272 = por %p270, %p271
    %p273 = scmp.ne.s32.totalorder %s264, %s265
    %p274 = scmp.eq.s32.totalorder %s27, 0
    %p275 = por %p273, %p274
    %p276 = scmp.ne.s32.totalorder %s264, %s265
    %p277 = scmp.eq.s32.totalorder %s28, 1
    %p278 = por %p276, %p277
    %p280 = scmp.ne.s32.totalorder %s265, %s279
    %p281 = scmp.eq.s32.totalorder %s28, 0
    %p282 = por %p280, %p281
    %s284 = sadd.s32 %s283, 1
    %p287 = scmp.eq.s32.totalorder %s22, 1
    %p288 = scmp.ne.s32.totalorder %s283, %s285
    %p289 = scmp.eq.s32.totalorder %s22, 0
    %p290 = por %p288, %p289
    %p291 = scmp.ne.s32.totalorder %s283, %s285
    %p292 = scmp.eq.s32.totalorder %s27, 1
    %p293 = por %p291, %p292
    %p294 = scmp.ne.s32.totalorder %s285, %s286
    %p295 = scmp.eq.s32.totalorder %s27, 0
    %p296 = por %p294, %p295
    %p297 = scmp.ne.s32.totalorder %s285, %s286
    %p298 = scmp.eq.s32.totalorder %s28, 1
    %p299 = por %p297, %p298
    %p301 = scmp.ne.s32.totalorder %s286, %s300
    %p302 = scmp.eq.s32.totalorder %s28, 0
    %p303 = por %p301, %p302
    %s305 = sadd.s32 %s304, 1
    %p308 = scmp.eq.s32.totalorder %s22, 1
    %p309 = scmp.ne.s32.totalorder %s304, %s306
    %p310 = scmp.eq.s32.totalorder %s22, 0
    %p311 = por %p309, %p310
    %p312 = scmp.ne.s32.totalorder %s304, %s306
    %p313 = scmp.eq.s32.totalorder %s27, 1
    %p314 = por %p312, %p313
    %p315 = scmp.ne.s32.totalorder %s306, %s307
    %p316 = scmp.eq.s32.totalorder %s27, 0
    %p317 = por %p315, %p316
    %p318 = scmp.ne.s32.totalorder %s306, %s307
    %p319 = scmp.eq.s32.totalorder %s28, 1
    %p320 = por %p318, %p319
    %p322 = scmp.ne.s32.totalorder %s307, %s321
    %p323 = scmp.eq.s32.totalorder %s28, 0
    %p324 = por %p322, %p323
    %s326 = sadd.s32 %s325, 1
    %p329 = scmp.eq.s32.totalorder %s22, 1
    %p330 = scmp.ne.s32.totalorder %s325, %s327
    %p331 = scmp.eq.s32.totalorder %s22, 0
    %p332 = por %p330, %p331
    %p333 = scmp.ne.s32.totalorder %s325, %s327
    %p334 = scmp.eq.s32.totalorder %s27, 1
    %p335 = por %p333, %p334
    %p336 = scmp.ne.s32.totalorder %s327, %s328
    %p337 = scmp.eq.s32.totalorder %s27, 0
    %p338 = por %p336, %p337
    %p339 = scmp.ne.s32.totalorder %s327, %s328
    %p340 = scmp.eq.s32.totalorder %s28, 1
    %p341 = por %p339, %p340
    %p343 = scmp.ne.s32.totalorder %s328, %s342
    %p344 = scmp.eq.s32.totalorder %s28, 0
    %p345 = por %p343, %p344
    %s347 = sadd.s32 %s346, 1
    %p350 = scmp.eq.s32.totalorder %s22, 1
    %p351 = scmp.ne.s32.totalorder %s346, %s348
    %p352 = scmp.eq.s32.totalorder %s22, 0
    %p353 = por %p351, %p352
    %p354 = scmp.ne.s32.totalorder %s346, %s348
    %p355 = scmp.eq.s32.totalorder %s27, 1
    %p356 = por %p354, %p355
    %p357 = scmp.ne.s32.totalorder %s348, %s349
    %p358 = scmp.eq.s32.totalorder %s27, 0
    %p359 = por %p357, %p358
    %p360 = scmp.ne.s32.totalorder %s348, %s349
    %p361 = scmp.eq.s32.totalorder %s28, 1
    %p362 = por %p360, %p361
    %p364 = scmp.ne.s32.totalorder %s349, %s363
    %p365 = scmp.eq.s32.totalorder %s28, 0
    %p366 = por %p364, %p365
    %s368 = sadd.s32 %s367, 1
    %p371 = scmp.eq.s32.totalorder %s22, 1
    %p372 = scmp.ne.s32.totalorder %s367, %s369
    %p373 = scmp.eq.s32.totalorder %s22, 0
    %p374 = por %p372, %p373
    %p375 = scmp.ne.s32.totalorder %s367, %s369
    %p376 = scmp.eq.s32.totalorder %s27, 1
    %p377 = por %p375, %p376
    %p378 = scmp.ne.s32.totalorder %s369, %s370
    %p379 = scmp.eq.s32.totalorder %s27, 0
    %p380 = por %p378, %p379
    %p381 = scmp.ne.s32.totalorder %s369, %s370
    %p382 = scmp.eq.s32.totalorder %s28, 1
    %p383 = por %p381, %p382
    %p385 = scmp.ne.s32.totalorder %s370, %s384
    %p386 = scmp.eq.s32.totalorder %s28, 0
    %p387 = por %p385, %p386
    %s388 = ssub.s32 %s29, %s41
    %s389 = ssub.s32 %s30, %s37
    %s390 = sor.u32 %s388, %s389
    %p391 = scmp.eq.s32.totalorder %s390, 0
    %s393 = sadd.s32 %s392, 1
    %s394 = scalar_select %p391, %s392, %s393
    %p397 = pneg %p391
    %p398 = scmp.eq.s32.totalorder %s22, 1
    %p399 = por %p397, %p398
    %p400 = scmp.ne.s32.totalorder %s392, %s395
    %p401 = scmp.eq.s32.totalorder %s22, 0
    %p402 = por %p400, %p401
    %p403 = scmp.ne.s32.totalorder %s392, %s395
    %p404 = scmp.eq.s32.totalorder %s27, 1
    %p405 = por %p403, %p404
    %p406 = scmp.ne.s32.totalorder %s395, %s396
    %p407 = scmp.eq.s32.totalorder %s27, 0
    %p408 = por %p406, %p407
    %p409 = scmp.ne.s32.totalorder %s395, %s396
    %p410 = scmp.eq.s32.totalorder %s28, 1
    %p411 = por %p409, %p410
    %p413 = scmp.ne.s32.totalorder %s396, %s412
    %p414 = scmp.eq.s32.totalorder %s28, 0
    %p415 = por %p413, %p414
    %p416 = scmp.le.s32.totalorder 1, %s22
    %p417 = scmp.lt.s32.totalorder %s22, 3
    %p418 = pnand %p416, %p417
    %p419 = pneg %p418
    // Predicated region
    $region9: #{tpu_custom_call.1} parent=5 // pred_check
      _
    $region10: #{tpu_custom_call.1} parent=5 // pred_check_branch
      %421 = sbr.rel (%p418) target = $region12
    $region11: #{tpu_custom_call.1} parent=5 // pred_region
      %s422 = ssub.s32 %s22, 1
      // Predicated region
      $region13: #{tpu_custom_call.1} parent=11 // pred_check
        %p423 = pneg %p107
      $region14: #{tpu_custom_call.1} parent=11 // pred_check_branch
        %425 = sbr.rel (%p423) target = $region16
      $region15: #{tpu_custom_call.1} parent=11 // pred_region
        _
      $region16: #{tpu_custom_call.1} parent=11 // pred_fallthru
        _
      // Predicated region
      $region17: #{tpu_custom_call.1} parent=11 // pred_check
        %p426 = pneg %p128
      $region18: #{tpu_custom_call.1} parent=11 // pred_check_branch
        %428 = sbr.rel (%p426) target = $region20
      $region19: #{tpu_custom_call.1} parent=11 // pred_region
        _
      $region20: #{tpu_custom_call.1} parent=11 // pred_fallthru
        _
      // Predicated region
      $region21: #{tpu_custom_call.1} parent=11 // pred_check
        %p429 = pneg %p149
      $region22: #{tpu_custom_call.1} parent=11 // pred_check_branch
        %431 = sbr.rel (%p429) target = $region24
      $region23: #{tpu_custom_call.1} parent=11 // pred_region
        _
      $region24: #{tpu_custom_call.1} parent=11 // pred_fallthru
        _
      // Predicated region
      $region25: #{tpu_custom_call.1} parent=11 // pred_check
        %p432 = pneg %p170
      $region26: #{tpu_custom_call.1} parent=11 // pred_check_branch
        %434 = sbr.rel (%p432) target = $region28
      $region27: #{tpu_custom_call.1} parent=11 // pred_region
        _
      $region28: #{tpu_custom_call.1} parent=11 // pred_fallthru
        _
      // Predicated region
      $region29: #{tpu_custom_call.1} parent=11 // pred_check
        %p435 = pneg %p191
      $region30: #{tpu_custom_call.1} parent=11 // pred_check_branch
        %437 = sbr.rel (%p435) target = $region32
      $region31: #{tpu_custom_call.1} parent=11 // pred_region
        _
      $region32: #{tpu_custom_call.1} parent=11 // pred_fallthru
        _
      // Predicated region
      $region33: #{tpu_custom_call.1} parent=11 // pred_check
        %p438 = pneg %p212
      $region34: #{tpu_custom_call.1} parent=11 // pred_check_branch
        %440 = sbr.rel (%p438) target = $region36
      $region35: #{tpu_custom_call.1} parent=11 // pred_region
        _
      $region36: #{tpu_custom_call.1} parent=11 // pred_fallthru
        _
      // Predicated region
      $region37: #{tpu_custom_call.1} parent=11 // pred_check
        %p441 = pneg %p233
      $region38: #{tpu_custom_call.1} parent=11 // pred_check_branch
        %443 = sbr.rel (%p441) target = $region40
      $region39: #{tpu_custom_call.1} parent=11 // pred_region
        _
      $region40: #{tpu_custom_call.1} parent=11 // pred_fallthru
        _
      // Predicated region
      $region41: #{tpu_custom_call.1} parent=11 // pred_check
        %p444 = pneg %p254
      $region42: #{tpu_custom_call.1} parent=11 // pred_check_branch
        %446 = sbr.rel (%p444) target = $region44
      $region43: #{tpu_custom_call.1} parent=11 // pred_region
        _
      $region44: #{tpu_custom_call.1} parent=11 // pred_fallthru
        _
      // Predicated region
      $region45: #{tpu_custom_call.1} parent=11 // pred_check
        %p447 = pneg %p275
      $region46: #{tpu_custom_call.1} parent=11 // pred_check_branch
        %449 = sbr.rel (%p447) target = $region48
      $region47: #{tpu_custom_call.1} parent=11 // pred_region
        _
      $region48: #{tpu_custom_call.1} parent=11 // pred_fallthru
        _
      // Predicated region
      $region49: #{tpu_custom_call.1} parent=11 // pred_check
        %p450 = pneg %p296
      $region50: #{tpu_custom_call.1} parent=11 // pred_check_branch
        %452 = sbr.rel (%p450) target = $region52
      $region51: #{tpu_custom_call.1} parent=11 // pred_region
        _
      $region52: #{tpu_custom_call.1} parent=11 // pred_fallthru
        _
      // Predicated region
      $region53: #{tpu_custom_call.1} parent=11 // pred_check
        %p453 = pneg %p317
      $region54: #{tpu_custom_call.1} parent=11 // pred_check_branch
        %455 = sbr.rel (%p453) target = $region56
      $region55: #{tpu_custom_call.1} parent=11 // pred_region
        _
      $region56: #{tpu_custom_call.1} parent=11 // pred_fallthru
        _
      // Predicated region
      $region57: #{tpu_custom_call.1} parent=11 // pred_check
        %p456 = pneg %p338
      $region58: #{tpu_custom_call.1} parent=11 // pred_check_branch
        %458 = sbr.rel (%p456) target = $region60
      $region59: #{tpu_custom_call.1} parent=11 // pred_region
        _
      $region60: #{tpu_custom_call.1} parent=11 // pred_fallthru
        _
      // Predicated region
      $region61: #{tpu_custom_call.1} parent=11 // pred_check
        %p459 = pneg %p359
      $region62: #{tpu_custom_call.1} parent=11 // pred_check_branch
        %461 = sbr.rel (%p459) target = $region64
      $region63: #{tpu_custom_call.1} parent=11 // pred_region
        _
      $region64: #{tpu_custom_call.1} parent=11 // pred_fallthru
        _
      // Predicated region
      $region65: #{tpu_custom_call.1} parent=11 // pred_check
        %p462 = pneg %p380
      $region66: #{tpu_custom_call.1} parent=11 // pred_check_branch
        %464 = sbr.rel (%p462) target = $region68
      $region67: #{tpu_custom_call.1} parent=11 // pred_region
        _
      $region68: #{tpu_custom_call.1} parent=11 // pred_fallthru
        _
    $region12: #{tpu_custom_call.1} parent=5 // pred_fallthru
      _
    %p465 = scmp.lt.s32.totalorder %s22, 2
    // Predicated region
    $region69: #{tpu_custom_call.1} parent=5 // pred_check
      %p466 = pneg %p465
    $region70: #{tpu_custom_call.1} parent=5 // pred_check_branch
      %468 = sbr.rel (%p466) target = $region72
    $region71: #{tpu_custom_call.1} parent=5 // pred_region
      // Predicated region
      $region73: #{tpu_custom_call.1} parent=71 // pred_check
        %p469 = pneg %p54
      $region74: #{tpu_custom_call.1} parent=71 // pred_check_branch
        %471 = sbr.rel (%p469) target = $region76
      $region75: #{tpu_custom_call.1} parent=71 // pred_region
        %p472 = scmp.lt.s32.totalorder %s29, 1
        %s473 = scalar_select %p472, %s29, 1
        %s474 = scalar_lea.vmem %s0, %s473
      $region76: #{tpu_custom_call.1} parent=71 // pred_fallthru
        _
      // Predicated region
      $region77: #{tpu_custom_call.1} parent=71 // pred_check
        %p475 = pneg %p80
      $region78: #{tpu_custom_call.1} parent=71 // pred_check_branch
        %477 = sbr.rel (%p475) target = $region80
      $region79: #{tpu_custom_call.1} parent=71 // pred_region
        %p478 = scmp.lt.s32.totalorder %s29, 1
        %s479 = scalar_select %p478, %s29, 1
        %s480 = smul.addr %s479, 16
        %s481 = smul.addr %s480, 4
        %s482 = scalar_lea.vmem %s1, %s481
      $region80: #{tpu_custom_call.1} parent=71 // pred_fallthru
        _
    $region72: #{tpu_custom_call.1} parent=5 // pred_fallthru
      _
    %p483 = scmp.le.s32.totalorder 1, %s22
    %p484 = scmp.lt.s32.totalorder %s22, 3
    %p485 = pnand %p483, %p484
    %p486 = pneg %p485
    // Predicated region
    $region81: #{tpu_custom_call.1} parent=5 // pred_check
      _
    $region82: #{tpu_custom_call.1} parent=5 // pred_check_branch
      %488 = sbr.rel (%p485) target = $region84
    $region83: #{tpu_custom_call.1} parent=5 // pred_region
      %s489 = ssub.s32 %s22, 1
      %p490 = scmp.lt.s32.totalorder %s31, 1
      %s491 = scalar_select %p490, %s31, 1
      %s492 = scalar_lea.vmem %s0, %s491
      %p493 = pneg %p60
      %p494 = pneg %p57
      %p495 = scmp.lt.s32.totalorder %s31, 1
      %s496 = scalar_select %p495, %s31, 1
      %s497 = smul.addr %s496, 16
      %s498 = smul.addr %s497, 4
      %s499 = scalar_lea.vmem %s1, %s498
      %p500 = pneg %p86
      %p501 = pneg %p83
      %p502 = pneg %p107
      %p503 = pneg %p104
      %p504 = pneg %p128
      %p505 = pneg %p125
      %p506 = pneg %p149
      %p507 = pneg %p146
      %p508 = pneg %p170
      %p509 = pneg %p167
      %p510 = pneg %p191
      %p511 = pneg %p188
      %p512 = pneg %p212
      %p513 = pneg %p209
      %p514 = pneg %p233
      %p515 = pneg %p230
      %p516 = pneg %p254
      %p517 = pneg %p251
      %p518 = pneg %p275
      %p519 = pneg %p272
      %p520 = pneg %p296
      %p521 = pneg %p293
      %p522 = pneg %p317
      %p523 = pneg %p314
      %p524 = pneg %p338
      %p525 = pneg %p335
      %p526 = pneg %p359
      %p527 = pneg %p356
      %p528 = pneg %p380
      %p529 = pneg %p377
      %p530 = pneg %p408
      %p531 = pneg %p405
      %s532 = smul.u32 16, %s32
      %p533 = scmp.lt.s32.totalorder %s31, 1
      %s534 = scalar_select %p533, %s31, 1
      %p535 = scmp.lt.s32.totalorder %s532, 15
      %s536 = scalar_select %p535, %s532, 15
      %s537 = smul.addr %s534, 16
      %s538 = sadd.s32 %s536, %s537
      %s539 = smul.addr %s538, 8
      %s540 = scalar_lea.vmem %s16, %s539
      %p541 = scmp.lt.s32.totalorder %s31, 1
      %s542 = scalar_select %p541, %s31, 1
      %s543 = scalar_lea.vmem %s0, %s542
      %p544 = scmp.lt.s32.totalorder %s31, 1
      %s545 = scalar_select %p544, %s31, 1
      %s546 = smul.addr %s545, 16
      %s547 = smul.addr %s546, 4
      %s548 = scalar_lea.vmem %s1, %s547
      %s549 = smul.u32 16, %s32
      %p550 = scmp.lt.s32.totalorder %s31, 1
      %s551 = scalar_select %p550, %s31, 1
      %p552 = scmp.lt.s32.totalorder %s549, 15
      %s553 = scalar_select %p552, %s549, 15
      %s554 = smul.addr %s551, 16
      %s555 = sadd.s32 %s553, %s554
      %s556 = smul.addr %s555, 8
      %s557 = scalar_lea.vmem %s16, %s556
      %s558 = smul.u32 16, %s32
      %s560 = smul.u32 %s32, 128
      %p561 = scmp.eq.s32.totalorder %s32, 0
      // Predicated region
      $region85: #{tpu_custom_call.1} parent=83 // pred_check
        %p562 = pneg %p561
      $region86: #{tpu_custom_call.1} parent=83 // pred_check_branch
        %564 = sbr.rel (%p562) target = $region88
      $region87: #{tpu_custom_call.1} parent=83 // pred_region
        %v565 = vld [vmem:[%s548] sm:$0xf]
        %v566 = vld [vmem:[%s548 + $0x4] sm:$0xf]
        %v567 = vld [vmem:[%s548 + $0x8] sm:$0xf]
        %v568 = vld [vmem:[%s548 + $0xc] sm:$0xf]
        %v569 = vld [vmem:[%s548 + $0x10] sm:$0xf]
        %v570 = vld [vmem:[%s548 + $0x14] sm:$0xf]
        %v571 = vld [vmem:[%s548 + $0x18] sm:$0xf]
        %v572 = vld [vmem:[%s548 + $0x1c] sm:$0xf]
        %v573 = vld [vmem:[%s548 + $0x20] sm:$0xf]
        %v574 = vld [vmem:[%s548 + $0x24] sm:$0xf]
        %v575 = vld [vmem:[%s548 + $0x28] sm:$0xf]
        %v576 = vld [vmem:[%s548 + $0x2c] sm:$0xf]
        %v577 = vld [vmem:[%s548 + $0x30] sm:$0xf]
        %v578 = vld [vmem:[%s548 + $0x34] sm:$0xf]
        %v579 = vld [vmem:[%s548 + $0x38] sm:$0xf]
        %v580 = vld [vmem:[%s548 + $0x3c] sm:$0xf]
        %v581 = vld [vmem:[%s4] sm:$0xf]
        %v582 = vld [vmem:[%s4 + $0x4] sm:$0xf]
        %v583 = vld [vmem:[%s4 + $0x8] sm:$0xf]
        %v584 = vld [vmem:[%s4 + $0xc] sm:$0xf]
        %v585 = vld [vmem:[%s5] sm:$0x1]
        %v587 = vlaneseq
        %v588 = vshrl.u32 %v587, 7
        %v589 = vsub.s32 0, %v588
        %v590 = vrot.slane %v585, %v589
        %v608 = vunpack.c.l.b16 %v565
        %v609 = vunpack.c.l.b16 %v566
        %v610 = vunpack.c.l.b16 %v567
        %v611 = vunpack.c.l.b16 %v568
        %v612 = vunpack.c.l.b16 %v569
        %v613 = vunpack.c.l.b16 %v570
        %v614 = vunpack.c.l.b16 %v571
        %v615 = vunpack.c.l.b16 %v572
        %v616 = vunpack.c.l.b16 %v573
        %v617 = vunpack.c.l.b16 %v574
        %v618 = vunpack.c.l.b16 %v575
        %v619 = vunpack.c.l.b16 %v576
        %v620 = vunpack.c.l.b16 %v577
        %v621 = vunpack.c.l.b16 %v578
        %v622 = vunpack.c.l.b16 %v579
        %v623 = vunpack.c.l.b16 %v580
        %v624 = vpack.c.b16 %v609, %v608
        %v625 = vpack.c.b16 %v611, %v610
        %v626 = vpack.c.b16 %v613, %v612
        %v627 = vpack.c.b16 %v615, %v614
        %v628 = vpack.c.b16 %v617, %v616
        %v629 = vpack.c.b16 %v619, %v618
        %v630 = vpack.c.b16 %v621, %v620
        %v631 = vpack.c.b16 %v623, %v622
        %v636 = vunpack.c.l.b16 %v581
        %v637 = vunpack.c.l.b16 %v582
        %v638 = vunpack.c.l.b16 %v583
        %v639 = vunpack.c.l.b16 %v584
        %v640 = vpack.c.b16 %v637, %v636
        %v641 = vpack.c.b16 %v639, %v638
        %vm644 = vcmask 261120
        %v646 = vsel %vm644, %v624, 0
        %v649 = vsel %vm644, %v625, 0
        %v652 = vsel %vm644, %v626, 0
        %v655 = vsel %vm644, %v627, 0
        %v658 = vsel %vm644, %v628, 0
        %v661 = vsel %vm644, %v629, 0
        %v664 = vsel %vm644, %v630, 0
        %v667 = vsel %vm644, %v631, 0
        %669 = vmatprep.subr.bf16.mxu0 0
        %670 = vmatpush1.bf16.msra.mxu0 %v640
        %671 = vmatprep.subr.bf16.mxu0 0
        %672 = vmatpush1.bf16.msra.mxu0 %v641
        %673 = vmatprep.subr.bf16.mxu0 0
        %674 = vmatpush1.bf16.msra.mxu0 0
        %675 = vmatprep.subr.bf16.mxu0 0
        %676 = vmatpush1.bf16.msra.mxu0 0
        %677 = vmatprep.subr.bf16.mxu0 0
        %678 = vmatpush1.bf16.msra.mxu0 0
        %679 = vmatprep.subr.bf16.mxu0 0
        %680 = vmatpush1.bf16.msra.mxu0 0
        %681 = vmatprep.subr.bf16.mxu0 0
        %682 = vmatpush1.bf16.msra.mxu0 0
        %683 = vmatprep.subr.bf16.mxu0 0
        %684 = vmatpush1.bf16.msra.mxu0 0
        %685 = vmatprep.subr.bf16.mxu0 0
        %686 = vmatpush1.bf16.msra.mxu0 0
        %687 = vmatprep.subr.bf16.mxu0 0
        %688 = vmatpush1.bf16.msra.mxu0 0
        %689 = vmatprep.subr.bf16.mxu0 0
        %690 = vmatpush1.bf16.msra.mxu0 0
        %691 = vmatprep.subr.bf16.mxu0 0
        %692 = vmatpush1.bf16.msra.mxu0 0
        %693 = vmatprep.subr.bf16.mxu0 0
        %694 = vmatpush1.bf16.msra.mxu0 0
        %695 = vmatprep.subr.bf16.mxu0 0
        %696 = vmatpush1.bf16.msra.mxu0 0
        %697 = vmatprep.subr.bf16.mxu0 0
        %698 = vmatpush1.bf16.msra.mxu0 0
        %699 = vmatprep.subr.bf16.mxu0 0
        %700 = vmatpush1.bf16.msra.mxu0 0
        %701 = vmatprep.mubr.bf16.mxu0 0
        %702 = vmatmul.mubr.bf16.gmra.mrb[0].mxu0 %v646
        %v703 = vpop.f32.mrb[0].mxu0
        %v704 = vadd.f32 %v590, %v703
        %v705 = vpop.f32.mrb[0].mxu0
        %v706 = vpop.f32.mrb[0].mxu0
        %v707 = vadd.f32 %v590, %v706
        %v708 = vpop.f32.mrb[0].mxu0
        %709 = vmatprep.mubr.bf16.mxu0 0
        %710 = vmatmul.mubr.bf16.gmra.mrb[0].mxu0 %v649
        %v711 = vpop.f32.mrb[0].mxu0
        %v712 = vadd.f32 %v590, %v711
        %v713 = vpop.f32.mrb[0].mxu0
        %v714 = vpop.f32.mrb[0].mxu0
        %v715 = vadd.f32 %v590, %v714
        %v716 = vpop.f32.mrb[0].mxu0
        %717 = vmatprep.mubr.bf16.mxu0 0
        %718 = vmatmul.mubr.bf16.gmra.mrb[0].mxu0 %v652
        %v719 = vpop.f32.mrb[0].mxu0
        %v720 = vadd.f32 %v590, %v719
        %v721 = vpop.f32.mrb[0].mxu0
        %v722 = vpop.f32.mrb[0].mxu0
        %v723 = vadd.f32 %v590, %v722
        %v724 = vpop.f32.mrb[0].mxu0
        %725 = vmatprep.mubr.bf16.mxu0 0
        %726 = vmatmul.mubr.bf16.gmra.mrb[0].mxu0 %v655
        %v727 = vpop.f32.mrb[0].mxu0
        %v728 = vadd.f32 %v590, %v727
        %v729 = vpop.f32.mrb[0].mxu0
        %v730 = vpop.f32.mrb[0].mxu0
        %v731 = vadd.f32 %v590, %v730
        %v732 = vpop.f32.mrb[0].mxu0
        %733 = vmatprep.mubr.bf16.mxu0 0
        %734 = vmatmul.mubr.bf16.gmra.mrb[0].mxu0 %v658
        %v735 = vpop.f32.mrb[0].mxu0
        %v736 = vadd.f32 %v590, %v735
        %v737 = vpop.f32.mrb[0].mxu0
        %v738 = vpop.f32.mrb[0].mxu0
        %v739 = vadd.f32 %v590, %v738
        %v740 = vpop.f32.mrb[0].mxu0
        %741 = vmatprep.mubr.bf16.mxu0 0
        %742 = vmatmul.mubr.bf16.gmra.mrb[0].mxu0 %v661
        %v743 = vpop.f32.mrb[0].mxu0
        %v744 = vadd.f32 %v590, %v743
        %v745 = vpop.f32.mrb[0].mxu0
        %v746 = vpop.f32.mrb[0].mxu0
        %v747 = vadd.f32 %v590, %v746
        %v748 = vpop.f32.mrb[0].mxu0
        %749 = vmatprep.mubr.bf16.mxu0 0
        %750 = vmatmul.mubr.bf16.gmra.mrb[0].mxu0 %v664
        %v751 = vpop.f32.mrb[0].mxu0
        %v752 = vadd.f32 %v590, %v751
        %v753 = vpop.f32.mrb[0].mxu0
        %v754 = vpop.f32.mrb[0].mxu0
        %v755 = vadd.f32 %v590, %v754
        %v756 = vpop.f32.mrb[0].mxu0
        %757 = vmatprep.mubr.bf16.mxu0 0
        %758 = vmatmul.mubr.bf16.gmra.mrb[0].mxu0 %v667
        %v759 = vpop.f32.mrb[0].mxu0
        %v760 = vadd.f32 %v590, %v759
        %v761 = vpop.f32.mrb[0].mxu0
        %v762 = vpop.f32.mrb[0].mxu0
        %v763 = vadd.f32 %v590, %v762
        %v764 = vpop.f32.mrb[0].mxu0
        %765 = vdwg.mxu0
        %v766 = vpack.c.bf16 %v707, %v704
        %v767 = vpack.c.bf16 %v715, %v712
        %v768 = vpack.c.bf16 %v723, %v720
        %v769 = vpack.c.bf16 %v731, %v728
        %v770 = vpack.c.bf16 %v739, %v736
        %v771 = vpack.c.bf16 %v747, %v744
        %v772 = vpack.c.bf16 %v755, %v752
        %v773 = vpack.c.bf16 %v763, %v760
        %774 = vst.msk [vmem:[#allocation2] sm:$0xff] %vm644, %v766
        %775 = vst.msk [vmem:[#allocation2 + $0x8] sm:$0xff] %vm644, %v767
        %776 = vst.msk [vmem:[#allocation2 + $0x10] sm:$0xff] %vm644, %v768
        %777 = vst.msk [vmem:[#allocation2 + $0x18] sm:$0xff] %vm644, %v769
        %778 = vst.msk [vmem:[#allocation2 + $0x20] sm:$0xff] %vm644, %v770
        %779 = vst.msk [vmem:[#allocation2 + $0x28] sm:$0xff] %vm644, %v771
        %780 = vst.msk [vmem:[#allocation2 + $0x30] sm:$0xff] %vm644, %v772
        %781 = vst.msk [vmem:[#allocation2 + $0x38] sm:$0xff] %vm644, %v773
        %790 = vrot.lane.b32.xlu0 %v766, 96
        %v791 = vpop.permute.xlu0 %790
        %792 = vrot.lane.b32.xlu0 %v767, 96
        %v793 = vpop.permute.xlu0 %792
        %794 = vrot.lane.b32.xlu0 %v768, 96
        %v795 = vpop.permute.xlu0 %794
        %796 = vrot.lane.b32.xlu0 %v769, 96
        %v797 = vpop.permute.xlu0 %796
        %798 = vrot.lane.b32.xlu0 %v770, 96
        %v799 = vpop.permute.xlu0 %798
        %800 = vrot.lane.b32.xlu0 %v771, 96
        %v801 = vpop.permute.xlu0 %800
        %802 = vrot.lane.b32.xlu0 %v772, 96
        %v803 = vpop.permute.xlu0 %802
        %804 = vrot.lane.b32.xlu0 %v773, 96
        %v805 = vpop.permute.xlu0 %804
        %814 = vst.msk [vmem:[#allocation3] sm:$0xff] %vm644, %v791
        %815 = vst.msk [vmem:[#allocation3 + $0x8] sm:$0xff] %vm644, %v793
        %816 = vst.msk [vmem:[#allocation3 + $0x10] sm:$0xff] %vm644, %v795
        %817 = vst.msk [vmem:[#allocation3 + $0x18] sm:$0xff] %vm644, %v797
        %818 = vst.msk [vmem:[#allocation3 + $0x20] sm:$0xff] %vm644, %v799
        %819 = vst.msk [vmem:[#allocation3 + $0x28] sm:$0xff] %vm644, %v801
        %820 = vst.msk [vmem:[#allocation3 + $0x30] sm:$0xff] %vm644, %v803
        %821 = vst.msk [vmem:[#allocation3 + $0x38] sm:$0xff] %vm644, %v805
      $region88: #{tpu_custom_call.1} parent=83 // pred_fallthru
        _
      %s822 = sshra.s32 %s560, 3
      %s823 = sand.u32 %s560, 7
      %s824 = smul.addr %s822, 4
      %s825 = scalar_lea.vmem %s548, %s824
      %v826 = vld [vmem:[%s825] sm:$0xf]
      %v827 = vld [vmem:[%s825 + $0x4] sm:$0xf]
      %v828 = vld [vmem:[%s825 + $0x8] sm:$0xf]
      %v829 = vld [vmem:[%s825 + $0xc] sm:$0xf]
      %v830 = vld [vmem:[%s825 + $0x10] sm:$0xf]
      %v831 = vld [vmem:[%s825 + $0x14] sm:$0xf]
      %v832 = vld [vmem:[%s825 + $0x18] sm:$0xf]
      %v833 = vld [vmem:[%s825 + $0x1c] sm:$0xf]
      %v834 = vld [vmem:[%s825 + $0x20] sm:$0xf]
      %v835 = vld [vmem:[%s825 + $0x24] sm:$0xf]
      %v836 = vld [vmem:[%s825 + $0x28] sm:$0xf]
      %v837 = vld [vmem:[%s825 + $0x2c] sm:$0xf]
      %v838 = vld [vmem:[%s825 + $0x30] sm:$0xf]
      %v839 = vld [vmem:[%s825 + $0x34] sm:$0xf]
      %v840 = vld [vmem:[%s825 + $0x38] sm:$0xf]
      %v841 = vld [vmem:[%s825 + $0x3c] sm:$0xf]
      %v842 = vunpack.c.l.bf16 %v826
      %v843 = vunpack.c.l.bf16 %v827
      %v844 = vunpack.c.l.bf16 %v828
      %v845 = vunpack.c.l.bf16 %v829
      %v846 = vunpack.c.l.bf16 %v830
      %v847 = vunpack.c.l.bf16 %v831
      %v848 = vunpack.c.l.bf16 %v832
      %v849 = vunpack.c.l.bf16 %v833
      %v850 = vunpack.c.l.bf16 %v834
      %v851 = vunpack.c.l.bf16 %v835
      %v852 = vunpack.c.l.bf16 %v836
      %v853 = vunpack.c.l.bf16 %v837
      %v854 = vunpack.c.l.bf16 %v838
      %v855 = vunpack.c.l.bf16 %v839
      %v856 = vunpack.c.l.bf16 %v840
      %v857 = vunpack.c.l.bf16 %v841
      %v858 = vld [vmem:[%s2] sm:$0xf]
      %v859 = vld [vmem:[%s2 + $0x4] sm:$0xf]
      %v860 = vld [vmem:[%s2 + $0x8] sm:$0xf]
      %v861 = vld [vmem:[%s2 + $0xc] sm:$0xf]
      %v862 = vld [vmem:[%s3] sm:$0x1]
      %v864 = vlaneseq
      %v865 = vshrl.u32 %v864, 7
      %v866 = vsub.s32 0, %v865
      %v867 = vrot.slane %v862, %v866
      %v885 = vunpack.c.l.b16 %v826
      %v886 = vunpack.c.l.b16 %v827
      %v887 = vunpack.c.l.b16 %v828
      %v888 = vunpack.c.l.b16 %v829
      %v889 = vunpack.c.l.b16 %v830
      %v890 = vunpack.c.l.b16 %v831
      %v891 = vunpack.c.l.b16 %v832
      %v892 = vunpack.c.l.b16 %v833
      %v893 = vunpack.c.l.b16 %v834
      %v894 = vunpack.c.l.b16 %v835
      %v895 = vunpack.c.l.b16 %v836
      %v896 = vunpack.c.l.b16 %v837
      %v897 = vunpack.c.l.b16 %v838
      %v898 = vunpack.c.l.b16 %v839
      %v899 = vunpack.c.l.b16 %v840
      %v900 = vunpack.c.l.b16 %v841
      %v901 = vpack.c.b16 %v886, %v885
      %v902 = vpack.c.b16 %v888, %v887
      %v903 = vpack.c.b16 %v890, %v889
      %v904 = vpack.c.b16 %v892, %v891
      %v905 = vpack.c.b16 %v894, %v893
      %v906 = vpack.c.b16 %v896, %v895
      %v907 = vpack.c.b16 %v898, %v897
      %v908 = vpack.c.b16 %v900, %v899
      %v913 = vunpack.c.l.b16 %v858
      %v914 = vunpack.c.l.b16 %v859
      %v915 = vunpack.c.l.b16 %v860
      %v916 = vunpack.c.l.b16 %v861
      %v917 = vpack.c.b16 %v914, %v913
      %v918 = vpack.c.b16 %v916, %v915
      %vm921 = vcmask 261120
      %v923 = vsel %vm921, %v901, 0
      %v926 = vsel %vm921, %v902, 0
      %v929 = vsel %vm921, %v903, 0
      %v932 = vsel %vm921, %v904, 0
      %v935 = vsel %vm921, %v905, 0
      %v938 = vsel %vm921, %v906, 0
      %v941 = vsel %vm921, %v907, 0
      %v944 = vsel %vm921, %v908, 0
      %946 = vmatprep.subr.bf16.mxu0 0
      %947 = vmatpush1.bf16.msra.mxu0 %v917
      %948 = vmatprep.subr.bf16.mxu0 0
      %949 = vmatpush1.bf16.msra.mxu0 %v918
      %950 = vmatprep.subr.bf16.mxu0 0
      %951 = vmatpush1.bf16.msra.mxu0 0
      %952 = vmatprep.subr.bf16.mxu0 0
      %953 = vmatpush1.bf16.msra.mxu0 0
      %954 = vmatprep.subr.bf16.mxu0 0
      %955 = vmatpush1.bf16.msra.mxu0 0
      %956 = vmatprep.subr.bf16.mxu0 0
      %957 = vmatpush1.bf16.msra.mxu0 0
      %958 = vmatprep.subr.bf16.mxu0 0
      %959 = vmatpush1.bf16.msra.mxu0 0
      %960 = vmatprep.subr.bf16.mxu0 0
      %961 = vmatpush1.bf16.msra.mxu0 0
      %962 = vmatprep.subr.bf16.mxu0 0
      %963 = vmatpush1.bf16.msra.mxu0 0
      %964 = vmatprep.subr.bf16.mxu0 0
      %965 = vmatpush1.bf16.msra.mxu0 0
      %966 = vmatprep.subr.bf16.mxu0 0
      %967 = vmatpush1.bf16.msra.mxu0 0
      %968 = vmatprep.subr.bf16.mxu0 0
      %969 = vmatpush1.bf16.msra.mxu0 0
      %970 = vmatprep.subr.bf16.mxu0 0
      %971 = vmatpush1.bf16.msra.mxu0 0
      %972 = vmatprep.subr.bf16.mxu0 0
      %973 = vmatpush1.bf16.msra.mxu0 0
      %974 = vmatprep.subr.bf16.mxu0 0
      %975 = vmatpush1.bf16.msra.mxu0 0
      %976 = vmatprep.subr.bf16.mxu0 0
      %977 = vmatpush1.bf16.msra.mxu0 0
      %978 = vmatprep.mubr.bf16.mxu0 0
      %979 = vmatmul.mubr.bf16.gmra.mrb[0].mxu0 %v923
      %v980 = vpop.f32.mrb[0].mxu0
      %v981 = vadd.f32 %v867, %v980
      %v982 = vpop.f32.mrb[0].mxu0
      %v983 = vpop.f32.mrb[0].mxu0
      %v984 = vadd.f32 %v867, %v983
      %v985 = vpop.f32.mrb[0].mxu0
      %986 = vmatprep.mubr.bf16.mxu0 0
      %987 = vmatmul.mubr.bf16.gmra.mrb[0].mxu0 %v926
      %v988 = vpop.f32.mrb[0].mxu0
      %v989 = vadd.f32 %v867, %v988
      %v990 = vpop.f32.mrb[0].mxu0
      %v991 = vpop.f32.mrb[0].mxu0
      %v992 = vadd.f32 %v867, %v991
      %v993 = vpop.f32.mrb[0].mxu0
      %994 = vmatprep.mubr.bf16.mxu0 0
      %995 = vmatmul.mubr.bf16.gmra.mrb[0].mxu0 %v929
      %v996 = vpop.f32.mrb[0].mxu0
      %v997 = vadd.f32 %v867, %v996
      %v998 = vpop.f32.mrb[0].mxu0
      %v999 = vpop.f32.mrb[0].mxu0
      %v1000 = vadd.f32 %v867, %v999
      %v1001 = vpop.f32.mrb[0].mxu0
      %1002 = vmatprep.mubr.bf16.mxu0 0
      %1003 = vmatmul.mubr.bf16.gmra.mrb[0].mxu0 %v932
      %v1004 = vpop.f32.mrb[0].mxu0
      %v1005 = vadd.f32 %v867, %v1004
      %v1006 = vpop.f32.mrb[0].mxu0
      %v1007 = vpop.f32.mrb[0].mxu0
      %v1008 = vadd.f32 %v867, %v1007
      %v1009 = vpop.f32.mrb[0].mxu0
      %1010 = vmatprep.mubr.bf16.mxu0 0
      %1011 = vmatmul.mubr.bf16.gmra.mrb[0].mxu0 %v935
      %v1012 = vpop.f32.mrb[0].mxu0
      %v1013 = vadd.f32 %v867, %v1012
      %v1014 = vpop.f32.mrb[0].mxu0
      %v1015 = vpop.f32.mrb[0].mxu0
      %v1016 = vadd.f32 %v867, %v1015
      %v1017 = vpop.f32.mrb[0].mxu0
      %1018 = vmatprep.mubr.bf16.mxu0 0
      %1019 = vmatmul.mubr.bf16.gmra.mrb[0].mxu0 %v938
      %v1020 = vpop.f32.mrb[0].mxu0
      %v1021 = vadd.f32 %v867, %v1020
      %v1022 = vpop.f32.mrb[0].mxu0
      %v1023 = vpop.f32.mrb[0].mxu0
      %v1024 = vadd.f32 %v867, %v1023
      %v1025 = vpop.f32.mrb[0].mxu0
      %1026 = vmatprep.mubr.bf16.mxu0 0
      %1027 = vmatmul.mubr.bf16.gmra.mrb[0].mxu0 %v941
      %v1028 = vpop.f32.mrb[0].mxu0
      %v1029 = vadd.f32 %v867, %v1028
      %v1030 = vpop.f32.mrb[0].mxu0
      %v1031 = vpop.f32.mrb[0].mxu0
      %v1032 = vadd.f32 %v867, %v1031
      %v1033 = vpop.f32.mrb[0].mxu0
      %1034 = vmatprep.mubr.bf16.mxu0 0
      %1035 = vmatmul.mubr.bf16.gmra.mrb[0].mxu0 %v944
      %v1036 = vpop.f32.mrb[0].mxu0
      %v1037 = vadd.f32 %v867, %v1036
      %v1038 = vpop.f32.mrb[0].mxu0
      %v1039 = vpop.f32.mrb[0].mxu0
      %v1040 = vadd.f32 %v867, %v1039
      %v1041 = vpop.f32.mrb[0].mxu0
      %1042 = vdwg.mxu0
      %v1043 = vld [vmem:[%s543] sm:$0x1]
      %v1044 = vlaneseq
      %v1045 = vshrl.u32 %v1044, 7
      %v1046 = vadd.s32 %v1045, 8
      %v1047 = vadd.s32 %v1045, 16
      %v1048 = vadd.s32 %v1045, 24
      %v1049 = vadd.s32 %v1045, 32
      %v1050 = vadd.s32 %v1045, 40
      %v1051 = vadd.s32 %v1045, 48
      %v1052 = vadd.s32 %v1045, 56
      %v1053 = vadd.s32 %v1045, 64
      %v1054 = vadd.s32 %v1045, 72
      %v1055 = vadd.s32 %v1045, 80
      %v1056 = vadd.s32 %v1045, 88
      %v1057 = vadd.s32 %v1045, 96
      %v1058 = vadd.s32 %v1045, 104
      %v1059 = vadd.s32 %v1045, 112
      %v1060 = vadd.s32 %v1045, 120
      %v1061 = vstv %s560
      %v1062 = vadd.s32 %v1045, %v1061
      %v1063 = vadd.s32 %v1046, %v1061
      %v1064 = vadd.s32 %v1047, %v1061
      %v1065 = vadd.s32 %v1048, %v1061
      %v1066 = vadd.s32 %v1049, %v1061
      %v1067 = vadd.s32 %v1050, %v1061
      %v1068 = vadd.s32 %v1051, %v1061
      %v1069 = vadd.s32 %v1052, %v1061
      %v1070 = vadd.s32 %v1053, %v1061
      %v1071 = vadd.s32 %v1054, %v1061
      %v1072 = vadd.s32 %v1055, %v1061
      %v1073 = vadd.s32 %v1056, %v1061
      %v1074 = vadd.s32 %v1057, %v1061
      %v1075 = vadd.s32 %v1058, %v1061
      %v1076 = vadd.s32 %v1059, %v1061
      %v1077 = vadd.s32 %v1060, %v1061
      %v1078 = vlaneseq
      %v1079 = vand.u32 %v1078, 127
      %v1080 = vsub.s32 %v1079, %v1062
      %v1081 = vsub.s32 %v1079, %v1063
      %v1082 = vsub.s32 %v1079, %v1064
      %v1083 = vsub.s32 %v1079, %v1065
      %v1084 = vsub.s32 %v1079, %v1066
      %v1085 = vsub.s32 %v1079, %v1067
      %v1086 = vsub.s32 %v1079, %v1068
      %v1087 = vsub.s32 %v1079, %v1069
      %v1088 = vsub.s32 %v1079, %v1070
      %v1089 = vsub.s32 %v1079, %v1071
      %v1090 = vsub.s32 %v1079, %v1072
      %v1091 = vsub.s32 %v1079, %v1073
      %v1092 = vsub.s32 %v1079, %v1074
      %v1093 = vsub.s32 %v1079, %v1075
      %v1094 = vsub.s32 %v1079, %v1076
      %v1095 = vsub.s32 %v1079, %v1077
      %vm1096 = vcmp.lt.s32.totalorder %v1080, 0
      %v1097 = vsub.s32 0, %v1080
      %v1098 = vsel %vm1096, %v1097, %v1080
      %vm1099 = vcmp.lt.s32.totalorder %v1081, 0
      %v1100 = vsub.s32 0, %v1081
      %v1101 = vsel %vm1099, %v1100, %v1081
      %vm1102 = vcmp.lt.s32.totalorder %v1082, 0
      %v1103 = vsub.s32 0, %v1082
      %v1104 = vsel %vm1102, %v1103, %v1082
      %vm1105 = vcmp.lt.s32.totalorder %v1083, 0
      %v1106 = vsub.s32 0, %v1083
      %v1107 = vsel %vm1105, %v1106, %v1083
      %vm1108 = vcmp.lt.s32.totalorder %v1084, 0
      %v1109 = vsub.s32 0, %v1084
      %v1110 = vsel %vm1108, %v1109, %v1084
      %vm1111 = vcmp.lt.s32.totalorder %v1085, 0
      %v1112 = vsub.s32 0, %v1085
      %v1113 = vsel %vm1111, %v1112, %v1085
      %vm1114 = vcmp.lt.s32.totalorder %v1086, 0
      %v1115 = vsub.s32 0, %v1086
      %v1116 = vsel %vm1114, %v1115, %v1086
      %vm1117 = vcmp.lt.s32.totalorder %v1087, 0
      %v1118 = vsub.s32 0, %v1087
      %v1119 = vsel %vm1117, %v1118, %v1087
      %vm1120 = vcmp.lt.s32.totalorder %v1088, 0
      %v1121 = vsub.s32 0, %v1088
      %v1122 = vsel %vm1120, %v1121, %v1088
      %vm1123 = vcmp.lt.s32.totalorder %v1089, 0
      %v1124 = vsub.s32 0, %v1089
      %v1125 = vsel %vm1123, %v1124, %v1089
      %vm1126 = vcmp.lt.s32.totalorder %v1090, 0
      %v1127 = vsub.s32 0, %v1090
      %v1128 = vsel %vm1126, %v1127, %v1090
      %vm1129 = vcmp.lt.s32.totalorder %v1091, 0
      %v1130 = vsub.s32 0, %v1091
      %v1131 = vsel %vm1129, %v1130, %v1091
      %vm1132 = vcmp.lt.s32.totalorder %v1092, 0
      %v1133 = vsub.s32 0, %v1092
      %v1134 = vsel %vm1132, %v1133, %v1092
      %vm1135 = vcmp.lt.s32.totalorder %v1093, 0
      %v1136 = vsub.s32 0, %v1093
      %v1137 = vsel %vm1135, %v1136, %v1093
      %vm1138 = vcmp.lt.s32.totalorder %v1094, 0
      %v1139 = vsub.s32 0, %v1094
      %v1140 = vsel %vm1138, %v1139, %v1094
      %vm1141 = vcmp.lt.s32.totalorder %v1095, 0
      %v1142 = vsub.s32 0, %v1095
      %v1143 = vsel %vm1141, %v1142, %v1095
      %v1144 = vcvt.s32.f32 %v1098
      %v1145 = vcvt.s32.f32 %v1101
      %v1146 = vcvt.s32.f32 %v1104
      %v1147 = vcvt.s32.f32 %v1107
      %v1148 = vcvt.s32.f32 %v1110
      %v1149 = vcvt.s32.f32 %v1113
      %v1150 = vcvt.s32.f32 %v1116
      %v1151 = vcvt.s32.f32 %v1119
      %v1152 = vcvt.s32.f32 %v1122
      %v1153 = vcvt.s32.f32 %v1125
      %v1154 = vcvt.s32.f32 %v1128
      %v1155 = vcvt.s32.f32 %v1131
      %v1156 = vcvt.s32.f32 %v1134
      %v1157 = vcvt.s32.f32 %v1137
      %v1158 = vcvt.s32.f32 %v1140
      %v1159 = vcvt.s32.f32 %v1143
      %v1160 = vsub.f32 0.0, %v1144
      %v1161 = vsub.f32 0.0, %v1145
      %v1162 = vsub.f32 0.0, %v1146
      %v1163 = vsub.f32 0.0, %v1147
      %v1164 = vsub.f32 0.0, %v1148
      %v1165 = vsub.f32 0.0, %v1149
      %v1166 = vsub.f32 0.0, %v1150
      %v1167 = vsub.f32 0.0, %v1151
      %v1168 = vsub.f32 0.0, %v1152
      %v1169 = vsub.f32 0.0, %v1153
      %v1170 = vsub.f32 0.0, %v1154
      %v1171 = vsub.f32 0.0, %v1155
      %v1172 = vsub.f32 0.0, %v1156
      %v1173 = vsub.f32 0.0, %v1157
      %v1174 = vsub.f32 0.0, %v1158
      %v1175 = vsub.f32 0.0, %v1159
      %v1176 = vpack.c.bf16 %v984, %v981
      %v1177 = vpack.c.bf16 %v992, %v989
      %v1178 = vpack.c.bf16 %v1000, %v997
      %v1179 = vpack.c.bf16 %v1008, %v1005
      %v1180 = vpack.c.bf16 %v1016, %v1013
      %v1181 = vpack.c.bf16 %v1024, %v1021
      %v1182 = vpack.c.bf16 %v1032, %v1029
      %v1183 = vpack.c.bf16 %v1040, %v1037
      %v1184 = vld [vmem:[#allocation2] sm:$0xff]
      %v1185 = vld [vmem:[#allocation2 + $0x8] sm:$0xff]
      %v1186 = vld [vmem:[#allocation2 + $0x10] sm:$0xff]
      %v1187 = vld [vmem:[#allocation2 + $0x18] sm:$0xff]
      %v1188 = vld [vmem:[#allocation2 + $0x20] sm:$0xff]
      %v1189 = vld [vmem:[#allocation2 + $0x28] sm:$0xff]
      %v1190 = vld [vmem:[#allocation2 + $0x30] sm:$0xff]
      %v1191 = vld [vmem:[#allocation2 + $0x38] sm:$0xff]
      %v1192 = vld [vmem:[#allocation3] sm:$0xff]
      %v1193 = vld [vmem:[#allocation3 + $0x8] sm:$0xff]
      %v1194 = vld [vmem:[#allocation3 + $0x10] sm:$0xff]
      %v1195 = vld [vmem:[#allocation3 + $0x18] sm:$0xff]
      %v1196 = vld [vmem:[#allocation3 + $0x20] sm:$0xff]
      %v1197 = vld [vmem:[#allocation3 + $0x28] sm:$0xff]
      %v1198 = vld [vmem:[#allocation3 + $0x30] sm:$0xff]
      %v1199 = vld [vmem:[#allocation3 + $0x38] sm:$0xff]
      %v1200 = vmul.f32 %v1160, 0.25
      %v1201 = vmul.f32 %v1161, 0.25
      %v1202 = vmul.f32 %v1162, 0.25
      %v1203 = vmul.f32 %v1163, 0.25
      %v1204 = vmul.f32 %v1164, 0.25
      %v1205 = vmul.f32 %v1165, 0.25
      %v1206 = vmul.f32 %v1166, 0.25
      %v1207 = vmul.f32 %v1167, 0.25
      %v1208 = vmul.f32 %v1168, 0.25
      %v1209 = vmul.f32 %v1169, 0.25
      %v1210 = vmul.f32 %v1170, 0.25
      %v1211 = vmul.f32 %v1171, 0.25
      %v1212 = vmul.f32 %v1172, 0.25
      %v1213 = vmul.f32 %v1173, 0.25
      %v1214 = vmul.f32 %v1174, 0.25
      %v1215 = vmul.f32 %v1175, 0.25
      %vm1216 = vcmask 64512
      %v1218 = vsel %vm1216, %v1176, 0
      %v1221 = vsel %vm1216, %v1177, 0
      %v1224 = vsel %vm1216, %v1178, 0
      %v1227 = vsel %vm1216, %v1179, 0
      %v1230 = vsel %vm1216, %v1180, 0
      %v1233 = vsel %vm1216, %v1181, 0
      %v1236 = vsel %vm1216, %v1182, 0
      %v1239 = vsel %vm1216, %v1183, 0
      %v1242 = vsel %vm1216, %v1184, 0
      %v1245 = vsel %vm1216, %v1185, 0
      %v1248 = vsel %vm1216, %v1186, 0
      %v1251 = vsel %vm1216, %v1187, 0
      %v1254 = vsel %vm1216, %v1188, 0
      %v1257 = vsel %vm1216, %v1189, 0
      %v1260 = vsel %vm1216, %v1190, 0
      %v1263 = vsel %vm1216, %v1191, 0
      %1265 = vmatprep.subr.bf16.mxu0 0
      %1266 = vmatpush1.bf16.xpose.msra.mxu0 %v1242
      %1267 = vmatprep.subr.bf16.mxu0 0
      %1268 = vmatpush1.bf16.xpose.msra.mxu0 %v1245
      %1269 = vmatprep.subr.bf16.mxu0 0
      %1270 = vmatpush1.bf16.xpose.msra.mxu0 %v1248
      %1271 = vmatprep.subr.bf16.mxu0 0
      %1272 = vmatpush1.bf16.xpose.msra.mxu0 %v1251
      %1273 = vmatprep.subr.bf16.mxu0 0
      %1274 = vmatpush1.bf16.xpose.msra.mxu0 %v1254
      %1275 = vmatprep.subr.bf16.mxu0 0
      %1276 = vmatpush1.bf16.xpose.msra.mxu0 %v1257
      %1277 = vmatprep.subr.bf16.mxu0 0
      %1278 = vmatpush1.bf16.xpose.msra.mxu0 %v1260
      %1279 = vmatprep.subr.bf16.mxu0 0
      %1280 = vmatpush1.bf16.xpose.msra.mxu0 %v1263
      %1281 = vmatprep.subr.bf16.mxu0 0
      %1282 = vmatpush1.bf16.xpose.msra.mxu0 0
      %1283 = vmatprep.subr.bf16.mxu0 0
      %1284 = vmatpush1.bf16.xpose.msra.mxu0 0
      %1285 = vmatprep.subr.bf16.mxu0 0
      %1286 = vmatpush1.bf16.xpose.msra.mxu0 0
      %1287 = vmatprep.subr.bf16.mxu0 0
      %1288 = vmatpush1.bf16.xpose.msra.mxu0 0
      %1289 = vmatprep.subr.bf16.mxu0 0
      %1290 = vmatpush1.bf16.xpose.msra.mxu0 0
      %1291 = vmatprep.subr.bf16.mxu0 0
      %1292 = vmatpush1.bf16.xpose.msra.mxu0 0
      %1293 = vmatprep.subr.bf16.mxu0 0
      %1294 = vmatpush1.bf16.xpose.msra.mxu0 0
      %1295 = vmatprep.subr.bf16.mxu0 0
      %1296 = vmatpush1.bf16.xpose.msra.mxu0 0
      %1297 = vmatprep.mubr.bf16.mxu0 0
      %1298 = vmatmul.mubr.bf16.gmra.mrb[0].mxu0 %v1218
      %v1299 = vpop.f32.mrb[0].mxu0
      %v1300 = vadd.f32 %v1200, %v1299
      %v1301 = vpop.f32.mrb[0].mxu0
      %v1302 = vpop.f32.mrb[0].mxu0
      %v1303 = vadd.f32 %v1201, %v1302
      %v1304 = vpop.f32.mrb[0].mxu0
      %1305 = vmatprep.mubr.bf16.mxu0 0
      %1306 = vmatmul.mubr.bf16.gmra.mrb[0].mxu0 %v1221
      %v1307 = vpop.f32.mrb[0].mxu0
      %v1308 = vadd.f32 %v1202, %v1307
      %v1309 = vpop.f32.mrb[0].mxu0
      %v1310 = vpop.f32.mrb[0].mxu0
      %v1311 = vadd.f32 %v1203, %v1310
      %v1312 = vpop.f32.mrb[0].mxu0
      %1313 = vmatprep.mubr.bf16.mxu0 0
      %1314 = vmatmul.mubr.bf16.gmra.mrb[0].mxu0 %v1224
      %v1315 = vpop.f32.mrb[0].mxu0
      %v1316 = vadd.f32 %v1204, %v1315
      %v1317 = vpop.f32.mrb[0].mxu0
      %v1318 = vpop.f32.mrb[0].mxu0
      %v1319 = vadd.f32 %v1205, %v1318
      %v1320 = vpop.f32.mrb[0].mxu0
      %1321 = vmatprep.mubr.bf16.mxu0 0
      %1322 = vmatmul.mubr.bf16.gmra.mrb[0].mxu0 %v1227
      %v1323 = vpop.f32.mrb[0].mxu0
      %v1324 = vadd.f32 %v1206, %v1323
      %v1325 = vpop.f32.mrb[0].mxu0
      %v1326 = vpop.f32.mrb[0].mxu0
      %v1327 = vadd.f32 %v1207, %v1326
      %v1328 = vpop.f32.mrb[0].mxu0
      %1329 = vmatprep.mubr.bf16.mxu0 0
      %1330 = vmatmul.mubr.bf16.gmra.mrb[0].mxu0 %v1230
      %v1331 = vpop.f32.mrb[0].mxu0
      %v1332 = vadd.f32 %v1208, %v1331
      %v1333 = vpop.f32.mrb[0].mxu0
      %v1334 = vpop.f32.mrb[0].mxu0
      %v1335 = vadd.f32 %v1209, %v1334
      %v1336 = vpop.f32.mrb[0].mxu0
      %1337 = vmatprep.mubr.bf16.mxu0 0
      %1338 = vmatmul.mubr.bf16.gmra.mrb[0].mxu0 %v1233
      %v1339 = vpop.f32.mrb[0].mxu0
      %v1340 = vadd.f32 %v1210, %v1339
      %v1341 = vpop.f32.mrb[0].mxu0
      %v1342 = vpop.f32.mrb[0].mxu0
      %v1343 = vadd.f32 %v1211, %v1342
      %v1344 = vpop.f32.mrb[0].mxu0
      %1345 = vmatprep.mubr.bf16.mxu0 0
      %1346 = vmatmul.mubr.bf16.gmra.mrb[0].mxu0 %v1236
      %v1347 = vpop.f32.mrb[0].mxu0
      %v1348 = vadd.f32 %v1212, %v1347
      %v1349 = vpop.f32.mrb[0].mxu0
      %v1350 = vpop.f32.mrb[0].mxu0
      %v1351 = vadd.f32 %v1213, %v1350
      %v1352 = vpop.f32.mrb[0].mxu0
      %1353 = vmatprep.mubr.bf16.mxu0 0
      %1354 = vmatmul.mubr.bf16.gmra.mrb[0].mxu0 %v1239
      %v1355 = vpop.f32.mrb[0].mxu0
      %v1356 = vadd.f32 %v1214, %v1355
      %v1357 = vpop.f32.mrb[0].mxu0
      %v1358 = vpop.f32.mrb[0].mxu0
      %v1359 = vadd.f32 %v1215, %v1358
      %v1360 = vpop.f32.mrb[0].mxu0
      %1361 = vdwg.mxu0
      %1362 = vmax.xlane.f32.xlu0 %v1300
      %v1363 = vpop.xlane.xlu0 %1362
      %1364 = vmax.xlane.f32.xlu0 %v1303
      %v1365 = vpop.xlane.xlu0 %1364
      %1366 = vmax.xlane.f32.xlu0 %v1308
      %v1367 = vpop.xlane.xlu0 %1366
      %1368 = vmax.xlane.f32.xlu0 %v1311
      %v1369 = vpop.xlane.xlu0 %1368
      %1370 = vmax.xlane.f32.xlu0 %v1316
      %v1371 = vpop.xlane.xlu0 %1370
      %1372 = vmax.xlane.f32.xlu0 %v1319
      %v1373 = vpop.xlane.xlu0 %1372
      %1374 = vmax.xlane.f32.xlu0 %v1324
      %v1375 = vpop.xlane.xlu0 %1374
      %1376 = vmax.xlane.f32.xlu0 %v1327
      %v1377 = vpop.xlane.xlu0 %1376
      %1378 = vmax.xlane.f32.xlu0 %v1332
      %v1379 = vpop.xlane.xlu0 %1378
      %1380 = vmax.xlane.f32.xlu0 %v1335
      %v1381 = vpop.xlane.xlu0 %1380
      %1382 = vmax.xlane.f32.xlu0 %v1340
      %v1383 = vpop.xlane.xlu0 %1382
      %1384 = vmax.xlane.f32.xlu0 %v1343
      %v1385 = vpop.xlane.xlu0 %1384
      %1386 = vmax.xlane.f32.xlu0 %v1348
      %v1387 = vpop.xlane.xlu0 %1386
      %1388 = vmax.xlane.f32.xlu0 %v1351
      %v1389 = vpop.xlane.xlu0 %1388
      %1390 = vmax.xlane.f32.xlu0 %v1356
      %v1391 = vpop.xlane.xlu0 %1390
      %1392 = vmax.xlane.f32.xlu0 %v1359
      %v1393 = vpop.xlane.xlu0 %1392
      %v1394 = vsub.f32 %v1300, %v1363
      %v1395 = vsub.f32 %v1303, %v1365
      %v1396 = vsub.f32 %v1308, %v1367
      %v1397 = vsub.f32 %v1311, %v1369
      %v1398 = vsub.f32 %v1316, %v1371
      %v1399 = vsub.f32 %v1319, %v1373
      %v1400 = vsub.f32 %v1324, %v1375
      %v1401 = vsub.f32 %v1327, %v1377
      %v1402 = vsub.f32 %v1332, %v1379
      %v1403 = vsub.f32 %v1335, %v1381
      %v1404 = vsub.f32 %v1340, %v1383
      %v1405 = vsub.f32 %v1343, %v1385
      %v1406 = vsub.f32 %v1348, %v1387
      %v1407 = vsub.f32 %v1351, %v1389
      %v1408 = vsub.f32 %v1356, %v1391
      %v1409 = vsub.f32 %v1359, %v1393
      %v1410 = vmul.f32 %v1394, 1.442695
      %v1411 = vpow.pop %v1410
      %v1412 = vmul.f32 %v1395, 1.442695
      %v1413 = vpow.pop %v1412
      %v1414 = vmul.f32 %v1396, 1.442695
      %v1415 = vpow.pop %v1414
      %v1416 = vmul.f32 %v1397, 1.442695
      %v1417 = vpow.pop %v1416
      %v1418 = vmul.f32 %v1398, 1.442695
      %v1419 = vpow.pop %v1418
      %v1420 = vmul.f32 %v1399, 1.442695
      %v1421 = vpow.pop %v1420
      %v1422 = vmul.f32 %v1400, 1.442695
      %v1423 = vpow.pop %v1422
      %v1424 = vmul.f32 %v1401, 1.442695
      %v1425 = vpow.pop %v1424
      %v1426 = vmul.f32 %v1402, 1.442695
      %v1427 = vpow.pop %v1426
      %v1428 = vmul.f32 %v1403, 1.442695
      %v1429 = vpow.pop %v1428
      %v1430 = vmul.f32 %v1404, 1.442695
      %v1431 = vpow.pop %v1430
      %v1432 = vmul.f32 %v1405, 1.442695
      %v1433 = vpow.pop %v1432
      %v1434 = vmul.f32 %v1406, 1.442695
      %v1435 = vpow.pop %v1434
      %v1436 = vmul.f32 %v1407, 1.442695
      %v1437 = vpow.pop %v1436
      %v1438 = vmul.f32 %v1408, 1.442695
      %v1439 = vpow.pop %v1438
      %v1440 = vmul.f32 %v1409, 1.442695
      %v1441 = vpow.pop %v1440
      %v1443 = vlaneseq
      %v1444 = vshrl.u32 %v1443, 7
      %v1445 = vsub.s32 0, %v1444
      %v1446 = vrot.slane %v1043, %v1445
      %v1448 = vmul.f32 %v1411, %v1446
      %v1449 = vmul.f32 %v1413, %v1446
      %v1450 = vmul.f32 %v1415, %v1446
      %v1451 = vmul.f32 %v1417, %v1446
      %v1452 = vmul.f32 %v1419, %v1446
      %v1453 = vmul.f32 %v1421, %v1446
      %v1454 = vmul.f32 %v1423, %v1446
      %v1455 = vmul.f32 %v1425, %v1446
      %v1456 = vmul.f32 %v1427, %v1446
      %v1457 = vmul.f32 %v1429, %v1446
      %v1458 = vmul.f32 %v1431, %v1446
      %v1459 = vmul.f32 %v1433, %v1446
      %v1460 = vmul.f32 %v1435, %v1446
      %v1461 = vmul.f32 %v1437, %v1446
      %v1462 = vmul.f32 %v1439, %v1446
      %v1463 = vmul.f32 %v1441, %v1446
      %1464 = vadd.xlane.f32.xlu0 %v1448
      %v1465 = vpop.xlane.xlu0 %1464
      %1466 = vadd.xlane.f32.xlu0 %v1449
      %v1467 = vpop.xlane.xlu0 %1466
      %1468 = vadd.xlane.f32.xlu0 %v1450
      %v1469 = vpop.xlane.xlu0 %1468
      %1470 = vadd.xlane.f32.xlu0 %v1451
      %v1471 = vpop.xlane.xlu0 %1470
      %1472 = vadd.xlane.f32.xlu0 %v1452
      %v1473 = vpop.xlane.xlu0 %1472
      %1474 = vadd.xlane.f32.xlu0 %v1453
      %v1475 = vpop.xlane.xlu0 %1474
      %1476 = vadd.xlane.f32.xlu0 %v1454
      %v1477 = vpop.xlane.xlu0 %1476
      %1478 = vadd.xlane.f32.xlu0 %v1455
      %v1479 = vpop.xlane.xlu0 %1478
      %1480 = vadd.xlane.f32.xlu0 %v1456
      %v1481 = vpop.xlane.xlu0 %1480
      %1482 = vadd.xlane.f32.xlu0 %v1457
      %v1483 = vpop.xlane.xlu0 %1482
      %1484 = vadd.xlane.f32.xlu0 %v1458
      %v1485 = vpop.xlane.xlu0 %1484
      %1486 = vadd.xlane.f32.xlu0 %v1459
      %v1487 = vpop.xlane.xlu0 %1486
      %1488 = vadd.xlane.f32.xlu0 %v1460
      %v1489 = vpop.xlane.xlu0 %1488
      %1490 = vadd.xlane.f32.xlu0 %v1461
      %v1491 = vpop.xlane.xlu0 %1490
      %1492 = vadd.xlane.f32.xlu0 %v1462
      %v1493 = vpop.xlane.xlu0 %1492
      %1494 = vadd.xlane.f32.xlu0 %v1463
      %v1495 = vpop.xlane.xlu0 %1494
      %v1496 = vrcp.pop %v1465
      %v1497 = vrcp.pop %v1467
      %v1498 = vrcp.pop %v1469
      %v1499 = vrcp.pop %v1471
      %v1500 = vrcp.pop %v1473
      %v1501 = vrcp.pop %v1475
      %v1502 = vrcp.pop %v1477
      %v1503 = vrcp.pop %v1479
      %v1504 = vrcp.pop %v1481
      %v1505 = vrcp.pop %v1483
      %v1506 = vrcp.pop %v1485
      %v1507 = vrcp.pop %v1487
      %v1508 = vrcp.pop %v1489
      %v1509 = vrcp.pop %v1491
      %v1510 = vrcp.pop %v1493
      %v1511 = vrcp.pop %v1495
      %v1512 = vmul.f32 %v1448, %v1496
      %v1513 = vmul.f32 %v1449, %v1497
      %v1514 = vmul.f32 %v1450, %v1498
      %v1515 = vmul.f32 %v1451, %v1499
      %v1516 = vmul.f32 %v1452, %v1500
      %v1517 = vmul.f32 %v1453, %v1501
      %v1518 = vmul.f32 %v1454, %v1502
      %v1519 = vmul.f32 %v1455, %v1503
      %v1520 = vmul.f32 %v1456, %v1504
      %v1521 = vmul.f32 %v1457, %v1505
      %v1522 = vmul.f32 %v1458, %v1506
      %v1523 = vmul.f32 %v1459, %v1507
      %v1524 = vmul.f32 %v1460, %v1508
      %v1525 = vmul.f32 %v1461, %v1509
      %v1526 = vmul.f32 %v1462, %v1510
      %v1527 = vmul.f32 %v1463, %v1511
      %v1528 = vpack.c.bf16 %v1513, %v1512
      %v1529 = vpack.c.bf16 %v1515, %v1514
      %v1530 = vpack.c.bf16 %v1517, %v1516
      %v1531 = vpack.c.bf16 %v1519, %v1518
      %v1532 = vpack.c.bf16 %v1521, %v1520
      %v1533 = vpack.c.bf16 %v1523, %v1522
      %v1534 = vpack.c.bf16 %v1525, %v1524
      %v1535 = vpack.c.bf16 %v1527, %v1526
      %1536 = vmatprep.subr.bf16.mxu0 0
      %1537 = vmatpush1.bf16.msra.mxu0 %v1192
      %1538 = vmatprep.subr.bf16.mxu0 0
      %1539 = vmatpush1.bf16.msra.mxu0 %v1193
      %1540 = vmatprep.subr.bf16.mxu0 0
      %1541 = vmatpush1.bf16.msra.mxu0 %v1194
      %1542 = vmatprep.subr.bf16.mxu0 0
      %1543 = vmatpush1.bf16.msra.mxu0 %v1195
      %1544 = vmatprep.subr.bf16.mxu0 0
      %1545 = vmatpush1.bf16.msra.mxu0 %v1196
      %1546 = vmatprep.subr.bf16.mxu0 0
      %1547 = vmatpush1.bf16.msra.mxu0 %v1197
      %1548 = vmatprep.subr.bf16.mxu0 0
      %1549 = vmatpush1.bf16.msra.mxu0 %v1198
      %1550 = vmatprep.subr.bf16.mxu0 0
      %1551 = vmatpush1.bf16.msra.mxu0 %v1199
      %1552 = vmatprep.subr.bf16.mxu0 0
      %1553 = vmatpush1.bf16.msra.mxu0 0
      %1554 = vmatprep.subr.bf16.mxu0 0
      %1555 = vmatpush1.bf16.msra.mxu0 0
      %1556 = vmatprep.subr.bf16.mxu0 0
      %1557 = vmatpush1.bf16.msra.mxu0 0
      %1558 = vmatprep.subr.bf16.mxu0 0
      %1559 = vmatpush1.bf16.msra.mxu0 0
      %1560 = vmatprep.subr.bf16.mxu0 0
      %1561 = vmatpush1.bf16.msra.mxu0 0
      %1562 = vmatprep.subr.bf16.mxu0 0
      %1563 = vmatpush1.bf16.msra.mxu0 0
      %1564 = vmatprep.subr.bf16.mxu0 0
      %1565 = vmatpush1.bf16.msra.mxu0 0
      %1566 = vmatprep.subr.bf16.mxu0 0
      %1567 = vmatpush1.bf16.msra.mxu0 0
      %1568 = vmatprep.mubr.bf16.mxu0 0
      %1569 = vmatmul.mubr.bf16.gmra.mrb[0].mxu0 %v1528
      %v1570 = vpop.f32.mrb[0].mxu0
      %v1571 = vadd.f32 0.0, %v1570
      %v1572 = vpop.f32.mrb[0].mxu0
      %v1573 = vpop.f32.mrb[0].mxu0
      %v1574 = vadd.f32 0.0, %v1573
      %v1575 = vpop.f32.mrb[0].mxu0
      %1576 = vmatprep.mubr.bf16.mxu0 0
      %1577 = vmatmul.mubr.bf16.gmra.mrb[0].mxu0 %v1529
      %v1578 = vpop.f32.mrb[0].mxu0
      %v1579 = vadd.f32 0.0, %v1578
      %v1580 = vpop.f32.mrb[0].mxu0
      %v1581 = vpop.f32.mrb[0].mxu0
      %v1582 = vadd.f32 0.0, %v1581
      %v1583 = vpop.f32.mrb[0].mxu0
      %1584 = vmatprep.mubr.bf16.mxu0 0
      %1585 = vmatmul.mubr.bf16.gmra.mrb[0].mxu0 %v1530
      %v1586 = vpop.f32.mrb[0].mxu0
      %v1587 = vadd.f32 0.0, %v1586
      %v1588 = vpop.f32.mrb[0].mxu0
      %v1589 = vpop.f32.mrb[0].mxu0
      %v1590 = vadd.f32 0.0, %v1589
      %v1591 = vpop.f32.mrb[0].mxu0
      %1592 = vmatprep.mubr.bf16.mxu0 0
      %1593 = vmatmul.mubr.bf16.gmra.mrb[0].mxu0 %v1531
      %v1594 = vpop.f32.mrb[0].mxu0
      %v1595 = vadd.f32 0.0, %v1594
      %v1596 = vpop.f32.mrb[0].mxu0
      %v1597 = vpop.f32.mrb[0].mxu0
      %v1598 = vadd.f32 0.0, %v1597
      %v1599 = vpop.f32.mrb[0].mxu0
      %1600 = vmatprep.mubr.bf16.mxu0 0
      %1601 = vmatmul.mubr.bf16.gmra.mrb[0].mxu0 %v1532
      %v1602 = vpop.f32.mrb[0].mxu0
      %v1603 = vadd.f32 0.0, %v1602
      %v1604 = vpop.f32.mrb[0].mxu0
      %v1605 = vpop.f32.mrb[0].mxu0
      %v1606 = vadd.f32 0.0, %v1605
      %v1607 = vpop.f32.mrb[0].mxu0
      %1608 = vmatprep.mubr.bf16.mxu0 0
      %1609 = vmatmul.mubr.bf16.gmra.mrb[0].mxu0 %v1533
      %v1610 = vpop.f32.mrb[0].mxu0
      %v1611 = vadd.f32 0.0, %v1610
      %v1612 = vpop.f32.mrb[0].mxu0
      %v1613 = vpop.f32.mrb[0].mxu0
      %v1614 = vadd.f32 0.0, %v1613
      %v1615 = vpop.f32.mrb[0].mxu0
      %1616 = vmatprep.mubr.bf16.mxu0 0
      %1617 = vmatmul.mubr.bf16.gmra.mrb[0].mxu0 %v1534
      %v1618 = vpop.f32.mrb[0].mxu0
      %v1619 = vadd.f32 0.0, %v1618
      %v1620 = vpop.f32.mrb[0].mxu0
      %v1621 = vpop.f32.mrb[0].mxu0
      %v1622 = vadd.f32 0.0, %v1621
      %v1623 = vpop.f32.mrb[0].mxu0
      %1624 = vmatprep.mubr.bf16.mxu0 0
      %1625 = vmatmul.mubr.bf16.gmra.mrb[0].mxu0 %v1535
      %v1626 = vpop.f32.mrb[0].mxu0
      %v1627 = vadd.f32 0.0, %v1626
      %v1628 = vpop.f32.mrb[0].mxu0
      %v1629 = vpop.f32.mrb[0].mxu0
      %v1630 = vadd.f32 0.0, %v1629
      %v1631 = vpop.f32.mrb[0].mxu0
      %1632 = vdwg.mxu0
      %1633 = vst.msk [vmem:[#allocation4] sm:$0xff] %vm1216, %v1571
      %1634 = vst.msk [vmem:[#allocation4 + $0x8] sm:$0xff] %vm1216, %v1574
      %1635 = vst.msk [vmem:[#allocation4 + $0x10] sm:$0xff] %vm1216, %v1579
      %1636 = vst.msk [vmem:[#allocation4 + $0x18] sm:$0xff] %vm1216, %v1582
      %1637 = vst.msk [vmem:[#allocation4 + $0x20] sm:$0xff] %vm1216, %v1587
      %1638 = vst.msk [vmem:[#allocation4 + $0x28] sm:$0xff] %vm1216, %v1590
      %1639 = vst.msk [vmem:[#allocation4 + $0x30] sm:$0xff] %vm1216, %v1595
      %1640 = vst.msk [vmem:[#allocation4 + $0x38] sm:$0xff] %vm1216, %v1598
      %1641 = vst.msk [vmem:[#allocation4 + $0x40] sm:$0xff] %vm1216, %v1603
      %1642 = vst.msk [vmem:[#allocation4 + $0x48] sm:$0xff] %vm1216, %v1606
      %1643 = vst.msk [vmem:[#allocation4 + $0x50] sm:$0xff] %vm1216, %v1611
      %1644 = vst.msk [vmem:[#allocation4 + $0x58] sm:$0xff] %vm1216, %v1614
      %1645 = vst.msk [vmem:[#allocation4 + $0x60] sm:$0xff] %vm1216, %v1619
      %1646 = vst.msk [vmem:[#allocation4 + $0x68] sm:$0xff] %vm1216, %v1622
      %1647 = vst.msk [vmem:[#allocation4 + $0x70] sm:$0xff] %vm1216, %v1627
      %1648 = vst.msk [vmem:[#allocation4 + $0x78] sm:$0xff] %vm1216, %v1630
      %v1649 = vld [vmem:[#allocation2] sm:$0xff]
      %v1650 = vld [vmem:[#allocation2 + $0x8] sm:$0xff]
      %v1651 = vld [vmem:[#allocation2 + $0x10] sm:$0xff]
      %v1652 = vld [vmem:[#allocation2 + $0x18] sm:$0xff]
      %v1653 = vld [vmem:[#allocation2 + $0x20] sm:$0xff]
      %v1654 = vld [vmem:[#allocation2 + $0x28] sm:$0xff]
      %v1655 = vld [vmem:[#allocation2 + $0x30] sm:$0xff]
      %v1656 = vld [vmem:[#allocation2 + $0x38] sm:$0xff]
      %v1657 = vld [vmem:[#allocation3] sm:$0xff]
      %v1658 = vld [vmem:[#allocation3 + $0x8] sm:$0xff]
      %v1659 = vld [vmem:[#allocation3 + $0x10] sm:$0xff]
      %v1660 = vld [vmem:[#allocation3 + $0x18] sm:$0xff]
      %v1661 = vld [vmem:[#allocation3 + $0x20] sm:$0xff]
      %v1662 = vld [vmem:[#allocation3 + $0x28] sm:$0xff]
      %v1663 = vld [vmem:[#allocation3 + $0x30] sm:$0xff]
      %v1664 = vld [vmem:[#allocation3 + $0x38] sm:$0xff]
      %v1665 = vmul.f32 %v1160, 0.0625
      %v1666 = vmul.f32 %v1161, 0.0625
      %v1667 = vmul.f32 %v1162, 0.0625
      %v1668 = vmul.f32 %v1163, 0.0625
      %v1669 = vmul.f32 %v1164, 0.0625
      %v1670 = vmul.f32 %v1165, 0.0625
      %v1671 = vmul.f32 %v1166, 0.0625
      %v1672 = vmul.f32 %v1167, 0.0625
      %v1673 = vmul.f32 %v1168, 0.0625
      %v1674 = vmul.f32 %v1169, 0.0625
      %v1675 = vmul.f32 %v1170, 0.0625
      %v1676 = vmul.f32 %v1171, 0.0625
      %v1677 = vmul.f32 %v1172, 0.0625
      %v1678 = vmul.f32 %v1173, 0.0625
      %v1679 = vmul.f32 %v1174, 0.0625
      %v1680 = vmul.f32 %v1175, 0.0625
      %1689 = vrot.lane.b32.xlu0 %v1176, 120
      %v1690 = vpop.permute.xlu0 %1689
      %1691 = vrot.lane.b32.xlu0 %v1177, 120
      %v1692 = vpop.permute.xlu0 %1691
      %1693 = vrot.lane.b32.xlu0 %v1178, 120
      %v1694 = vpop.permute.xlu0 %1693
      %1695 = vrot.lane.b32.xlu0 %v1179, 120
      %v1696 = vpop.permute.xlu0 %1695
      %1697 = vrot.lane.b32.xlu0 %v1180, 120
      %v1698 = vpop.permute.xlu0 %1697
      %1699 = vrot.lane.b32.xlu0 %v1181, 120
      %v1700 = vpop.permute.xlu0 %1699
      %1701 = vrot.lane.b32.xlu0 %v1182, 120
      %v1702 = vpop.permute.xlu0 %1701
      %1703 = vrot.lane.b32.xlu0 %v1183, 120
      %v1704 = vpop.permute.xlu0 %1703
      %1713 = vrot.lane.b32.xlu0 %v1649, 120
      %v1714 = vpop.permute.xlu0 %1713
      %1715 = vrot.lane.b32.xlu0 %v1650, 120
      %v1716 = vpop.permute.xlu0 %1715
      %1717 = vrot.lane.b32.xlu0 %v1651, 120
      %v1718 = vpop.permute.xlu0 %1717
      %1719 = vrot.lane.b32.xlu0 %v1652, 120
      %v1720 = vpop.permute.xlu0 %1719
      %1721 = vrot.lane.b32.xlu0 %v1653, 120
      %v1722 = vpop.permute.xlu0 %1721
      %1723 = vrot.lane.b32.xlu0 %v1654, 120
      %v1724 = vpop.permute.xlu0 %1723
      %1725 = vrot.lane.b32.xlu0 %v1655, 120
      %v1726 = vpop.permute.xlu0 %1725
      %1727 = vrot.lane.b32.xlu0 %v1656, 120
      %v1728 = vpop.permute.xlu0 %1727
      %v1730 = vsel %vm1216, %v1690, 0
      %v1733 = vsel %vm1216, %v1692, 0
      %v1736 = vsel %vm1216, %v1694, 0
      %v1739 = vsel %vm1216, %v1696, 0
      %v1742 = vsel %vm1216, %v1698, 0
      %v1745 = vsel %vm1216, %v1700, 0
      %v1748 = vsel %vm1216, %v1702, 0
      %v1751 = vsel %vm1216, %v1704, 0
      %v1754 = vsel %vm1216, %v1714, 0
      %v1757 = vsel %vm1216, %v1716, 0
      %v1760 = vsel %vm1216, %v1718, 0
      %v1763 = vsel %vm1216, %v1720, 0
      %v1766 = vsel %vm1216, %v1722, 0
      %v1769 = vsel %vm1216, %v1724, 0
      %v1772 = vsel %vm1216, %v1726, 0
      %v1775 = vsel %vm1216, %v1728, 0
      %1777 = vmatprep.subr.bf16.mxu0 0
      %1778 = vmatpush1.bf16.xpose.msra.mxu0 %v1754
      %1779 = vmatprep.subr.bf16.mxu0 0
      %1780 = vmatpush1.bf16.xpose.msra.mxu0 %v1757
      %1781 = vmatprep.subr.bf16.mxu0 0
      %1782 = vmatpush1.bf16.xpose.msra.mxu0 %v1760
      %1783 = vmatprep.subr.bf16.mxu0 0
      %1784 = vmatpush1.bf16.xpose.msra.mxu0 %v1763
      %1785 = vmatprep.subr.bf16.mxu0 0
      %1786 = vmatpush1.bf16.xpose.msra.mxu0 %v1766
      %1787 = vmatprep.subr.bf16.mxu0 0
      %1788 = vmatpush1.bf16.xpose.msra.mxu0 %v1769
      %1789 = vmatprep.subr.bf16.mxu0 0
      %1790 = vmatpush1.bf16.xpose.msra.mxu0 %v1772
      %1791 = vmatprep.subr.bf16.mxu0 0
      %1792 = vmatpush1.bf16.xpose.msra.mxu0 %v1775
      %1793 = vmatprep.subr.bf16.mxu0 0
      %1794 = vmatpush1.bf16.xpose.msra.mxu0 0
      %1795 = vmatprep.subr.bf16.mxu0 0
      %1796 = vmatpush1.bf16.xpose.msra.mxu0 0
      %1797 = vmatprep.subr.bf16.mxu0 0
      %1798 = vmatpush1.bf16.xpose.msra.mxu0 0
      %1799 = vmatprep.subr.bf16.mxu0 0
      %1800 = vmatpush1.bf16.xpose.msra.mxu0 0
      %1801 = vmatprep.subr.bf16.mxu0 0
      %1802 = vmatpush1.bf16.xpose.msra.mxu0 0
      %1803 = vmatprep.subr.bf16.mxu0 0
      %1804 = vmatpush1.bf16.xpose.msra.mxu0 0
      %1805 = vmatprep.subr.bf16.mxu0 0
      %1806 = vmatpush1.bf16.xpose.msra.mxu0 0
      %1807 = vmatprep.subr.bf16.mxu0 0
      %1808 = vmatpush1.bf16.xpose.msra.mxu0 0
      %1809 = vmatprep.mubr.bf16.mxu0 0
      %1810 = vmatmul.mubr.bf16.gmra.mrb[0].mxu0 %v1730
      %v1811 = vpop.f32.mrb[0].mxu0
      %v1812 = vadd.f32 %v1665, %v1811
      %v1813 = vpop.f32.mrb[0].mxu0
      %v1814 = vpop.f32.mrb[0].mxu0
      %v1815 = vadd.f32 %v1666, %v1814
      %v1816 = vpop.f32.mrb[0].mxu0
      %1817 = vmatprep.mubr.bf16.mxu0 0
      %1818 = vmatmul.mubr.bf16.gmra.mrb[0].mxu0 %v1733
      %v1819 = vpop.f32.mrb[0].mxu0
      %v1820 = vadd.f32 %v1667, %v1819
      %v1821 = vpop.f32.mrb[0].mxu0
      %v1822 = vpop.f32.mrb[0].mxu0
      %v1823 = vadd.f32 %v1668, %v1822
      %v1824 = vpop.f32.mrb[0].mxu0
      %1825 = vmatprep.mubr.bf16.mxu0 0
      %1826 = vmatmul.mubr.bf16.gmra.mrb[0].mxu0 %v1736
      %v1827 = vpop.f32.mrb[0].mxu0
      %v1828 = vadd.f32 %v1669, %v1827
      %v1829 = vpop.f32.mrb[0].mxu0
      %v1830 = vpop.f32.mrb[0].mxu0
      %v1831 = vadd.f32 %v1670, %v1830
      %v1832 = vpop.f32.mrb[0].mxu0
      %1833 = vmatprep.mubr.bf16.mxu0 0
      %1834 = vmatmul.mubr.bf16.gmra.mrb[0].mxu0 %v1739
      %v1835 = vpop.f32.mrb[0].mxu0
      %v1836 = vadd.f32 %v1671, %v1835
      %v1837 = vpop.f32.mrb[0].mxu0
      %v1838 = vpop.f32.mrb[0].mxu0
      %v1839 = vadd.f32 %v1672, %v1838
      %v1840 = vpop.f32.mrb[0].mxu0
      %1841 = vmatprep.mubr.bf16.mxu0 0
      %1842 = vmatmul.mubr.bf16.gmra.mrb[0].mxu0 %v1742
      %v1843 = vpop.f32.mrb[0].mxu0
      %v1844 = vadd.f32 %v1673, %v1843
      %v1845 = vpop.f32.mrb[0].mxu0
      %v1846 = vpop.f32.mrb[0].mxu0
      %v1847 = vadd.f32 %v1674, %v1846
      %v1848 = vpop.f32.mrb[0].mxu0
      %1849 = vmatprep.mubr.bf16.mxu0 0
      %1850 = vmatmul.mubr.bf16.gmra.mrb[0].mxu0 %v1745
      %v1851 = vpop.f32.mrb[0].mxu0
      %v1852 = vadd.f32 %v1675, %v1851
      %v1853 = vpop.f32.mrb[0].mxu0
      %v1854 = vpop.f32.mrb[0].mxu0
      %v1855 = vadd.f32 %v1676, %v1854
      %v1856 = vpop.f32.mrb[0].mxu0
      %1857 = vmatprep.mubr.bf16.mxu0 0
      %1858 = vmatmul.mubr.bf16.gmra.mrb[0].mxu0 %v1748
      %v1859 = vpop.f32.mrb[0].mxu0
      %v1860 = vadd.f32 %v1677, %v1859
      %v1861 = vpop.f32.mrb[0].mxu0
      %v1862 = vpop.f32.mrb[0].mxu0
      %v1863 = vadd.f32 %v1678, %v1862
      %v1864 = vpop.f32.mrb[0].mxu0
      %1865 = vmatprep.mubr.bf16.mxu0 0
      %1866 = vmatmul.mubr.bf16.gmra.mrb[0].mxu0 %v1751
      %v1867 = vpop.f32.mrb[0].mxu0
      %v1868 = vadd.f32 %v1679, %v1867
      %v1869 = vpop.f32.mrb[0].mxu0
      %v1870 = vpop.f32.mrb[0].mxu0
      %v1871 = vadd.f32 %v1680, %v1870
      %v1872 = vpop.f32.mrb[0].mxu0
      %1873 = vdwg.mxu0
      %1874 = vmax.xlane.f32.xlu0 %v1812
      %v1875 = vpop.xlane.xlu0 %1874
      %1876 = vmax.xlane.f32.xlu0 %v1815
      %v1877 = vpop.xlane.xlu0 %1876
      %1878 = vmax.xlane.f32.xlu0 %v1820
      %v1879 = vpop.xlane.xlu0 %1878
      %1880 = vmax.xlane.f32.xlu0 %v1823
      %v1881 = vpop.xlane.xlu0 %1880
      %1882 = vmax.xlane.f32.xlu0 %v1828
      %v1883 = vpop.xlane.xlu0 %1882
      %1884 = vmax.xlane.f32.xlu0 %v1831
      %v1885 = vpop.xlane.xlu0 %1884
      %1886 = vmax.xlane.f32.xlu0 %v1836
      %v1887 = vpop.xlane.xlu0 %1886
      %1888 = vmax.xlane.f32.xlu0 %v1839
      %v1889 = vpop.xlane.xlu0 %1888
      %1890 = vmax.xlane.f32.xlu0 %v1844
      %v1891 = vpop.xlane.xlu0 %1890
      %1892 = vmax.xlane.f32.xlu0 %v1847
      %v1893 = vpop.xlane.xlu0 %1892
      %1894 = vmax.xlane.f32.xlu0 %v1852
      %v1895 = vpop.xlane.xlu0 %1894
      %1896 = vmax.xlane.f32.xlu0 %v1855
      %v1897 = vpop.xlane.xlu0 %1896
      %1898 = vmax.xlane.f32.xlu0 %v1860
      %v1899 = vpop.xlane.xlu0 %1898
      %1900 = vmax.xlane.f32.xlu0 %v1863
      %v1901 = vpop.xlane.xlu0 %1900
      %1902 = vmax.xlane.f32.xlu0 %v1868
      %v1903 = vpop.xlane.xlu0 %1902
      %1904 = vmax.xlane.f32.xlu0 %v1871
      %v1905 = vpop.xlane.xlu0 %1904
      %v1906 = vsub.f32 %v1812, %v1875
      %v1907 = vsub.f32 %v1815, %v1877
      %v1908 = vsub.f32 %v1820, %v1879
      %v1909 = vsub.f32 %v1823, %v1881
      %v1910 = vsub.f32 %v1828, %v1883
      %v1911 = vsub.f32 %v1831, %v1885
      %v1912 = vsub.f32 %v1836, %v1887
      %v1913 = vsub.f32 %v1839, %v1889
      %v1914 = vsub.f32 %v1844, %v1891
      %v1915 = vsub.f32 %v1847, %v1893
      %v1916 = vsub.f32 %v1852, %v1895
      %v1917 = vsub.f32 %v1855, %v1897
      %v1918 = vsub.f32 %v1860, %v1899
      %v1919 = vsub.f32 %v1863, %v1901
      %v1920 = vsub.f32 %v1868, %v1903
      %v1921 = vsub.f32 %v1871, %v1905
      %v1922 = vmul.f32 %v1906, 1.442695
      %v1923 = vpow.pop %v1922
      %v1924 = vmul.f32 %v1907, 1.442695
      %v1925 = vpow.pop %v1924
      %v1926 = vmul.f32 %v1908, 1.442695
      %v1927 = vpow.pop %v1926
      %v1928 = vmul.f32 %v1909, 1.442695
      %v1929 = vpow.pop %v1928
      %v1930 = vmul.f32 %v1910, 1.442695
      %v1931 = vpow.pop %v1930
      %v1932 = vmul.f32 %v1911, 1.442695
      %v1933 = vpow.pop %v1932
      %v1934 = vmul.f32 %v1912, 1.442695
      %v1935 = vpow.pop %v1934
      %v1936 = vmul.f32 %v1913, 1.442695
      %v1937 = vpow.pop %v1936
      %v1938 = vmul.f32 %v1914, 1.442695
      %v1939 = vpow.pop %v1938
      %v1940 = vmul.f32 %v1915, 1.442695
      %v1941 = vpow.pop %v1940
      %v1942 = vmul.f32 %v1916, 1.442695
      %v1943 = vpow.pop %v1942
      %v1944 = vmul.f32 %v1917, 1.442695
      %v1945 = vpow.pop %v1944
      %v1946 = vmul.f32 %v1918, 1.442695
      %v1947 = vpow.pop %v1946
      %v1948 = vmul.f32 %v1919, 1.442695
      %v1949 = vpow.pop %v1948
      %v1950 = vmul.f32 %v1920, 1.442695
      %v1951 = vpow.pop %v1950
      %v1952 = vmul.f32 %v1921, 1.442695
      %v1953 = vpow.pop %v1952
      %v1954 = vmul.f32 %v1923, %v1446
      %v1955 = vmul.f32 %v1925, %v1446
      %v1956 = vmul.f32 %v1927, %v1446
      %v1957 = vmul.f32 %v1929, %v1446
      %v1958 = vmul.f32 %v1931, %v1446
      %v1959 = vmul.f32 %v1933, %v1446
      %v1960 = vmul.f32 %v1935, %v1446
      %v1961 = vmul.f32 %v1937, %v1446
      %v1962 = vmul.f32 %v1939, %v1446
      %v1963 = vmul.f32 %v1941, %v1446
      %v1964 = vmul.f32 %v1943, %v1446
      %v1965 = vmul.f32 %v1945, %v1446
      %v1966 = vmul.f32 %v1947, %v1446
      %v1967 = vmul.f32 %v1949, %v1446
      %v1968 = vmul.f32 %v1951, %v1446
      %v1969 = vmul.f32 %v1953, %v1446
      %1970 = vadd.xlane.f32.xlu0 %v1954
      %v1971 = vpop.xlane.xlu0 %1970
      %1972 = vadd.xlane.f32.xlu0 %v1955
      %v1973 = vpop.xlane.xlu0 %1972
      %1974 = vadd.xlane.f32.xlu0 %v1956
      %v1975 = vpop.xlane.xlu0 %1974
      %1976 = vadd.xlane.f32.xlu0 %v1957
      %v1977 = vpop.xlane.xlu0 %1976
      %1978 = vadd.xlane.f32.xlu0 %v1958
      %v1979 = vpop.xlane.xlu0 %1978
      %1980 = vadd.xlane.f32.xlu0 %v1959
      %v1981 = vpop.xlane.xlu0 %1980
      %1982 = vadd.xlane.f32.xlu0 %v1960
      %v1983 = vpop.xlane.xlu0 %1982
      %1984 = vadd.xlane.f32.xlu0 %v1961
      %v1985 = vpop.xlane.xlu0 %1984
      %1986 = vadd.xlane.f32.xlu0 %v1962
      %v1987 = vpop.xlane.xlu0 %1986
      %1988 = vadd.xlane.f32.xlu0 %v1963
      %v1989 = vpop.xlane.xlu0 %1988
      %1990 = vadd.xlane.f32.xlu0 %v1964
      %v1991 = vpop.xlane.xlu0 %1990
      %1992 = vadd.xlane.f32.xlu0 %v1965
      %v1993 = vpop.xlane.xlu0 %1992
      %1994 = vadd.xlane.f32.xlu0 %v1966
      %v1995 = vpop.xlane.xlu0 %1994
      %1996 = vadd.xlane.f32.xlu0 %v1967
      %v1997 = vpop.xlane.xlu0 %1996
      %1998 = vadd.xlane.f32.xlu0 %v1968
      %v1999 = vpop.xlane.xlu0 %1998
      %2000 = vadd.xlane.f32.xlu0 %v1969
      %v2001 = vpop.xlane.xlu0 %2000
      %v2002 = vrcp.pop %v1971
      %v2003 = vrcp.pop %v1973
      %v2004 = vrcp.pop %v1975
      %v2005 = vrcp.pop %v1977
      %v2006 = vrcp.pop %v1979
      %v2007 = vrcp.pop %v1981
      %v2008 = vrcp.pop %v1983
      %v2009 = vrcp.pop %v1985
      %v2010 = vrcp.pop %v1987
      %v2011 = vrcp.pop %v1989
      %v2012 = vrcp.pop %v1991
      %v2013 = vrcp.pop %v1993
      %v2014 = vrcp.pop %v1995
      %v2015 = vrcp.pop %v1997
      %v2016 = vrcp.pop %v1999
      %v2017 = vrcp.pop %v2001
      %v2018 = vmul.f32 %v1954, %v2002
      %v2019 = vmul.f32 %v1955, %v2003
      %v2020 = vmul.f32 %v1956, %v2004
      %v2021 = vmul.f32 %v1957, %v2005
      %v2022 = vmul.f32 %v1958, %v2006
      %v2023 = vmul.f32 %v1959, %v2007
      %v2024 = vmul.f32 %v1960, %v2008
      %v2025 = vmul.f32 %v1961, %v2009
      %v2026 = vmul.f32 %v1962, %v2010
      %v2027 = vmul.f32 %v1963, %v2011
      %v2028 = vmul.f32 %v1964, %v2012
      %v2029 = vmul.f32 %v1965, %v2013
      %v2030 = vmul.f32 %v1966, %v2014
      %v2031 = vmul.f32 %v1967, %v2015
      %v2032 = vmul.f32 %v1968, %v2016
      %v2033 = vmul.f32 %v1969, %v2017
      %v2034 = vpack.c.bf16 %v2019, %v2018
      %v2035 = vpack.c.bf16 %v2021, %v2020
      %v2036 = vpack.c.bf16 %v2023, %v2022
      %v2037 = vpack.c.bf16 %v2025, %v2024
      %v2038 = vpack.c.bf16 %v2027, %v2026
      %v2039 = vpack.c.bf16 %v2029, %v2028
      %v2040 = vpack.c.bf16 %v2031, %v2030
      %v2041 = vpack.c.bf16 %v2033, %v2032
      %2050 = vrot.lane.b32.xlu0 %v1657, 120
      %v2051 = vpop.permute.xlu0 %2050
      %2052 = vrot.lane.b32.xlu0 %v1658, 120
      %v2053 = vpop.permute.xlu0 %2052
      %2054 = vrot.lane.b32.xlu0 %v1659, 120
      %v2055 = vpop.permute.xlu0 %2054
      %2056 = vrot.lane.b32.xlu0 %v1660, 120
      %v2057 = vpop.permute.xlu0 %2056
      %2058 = vrot.lane.b32.xlu0 %v1661, 120
      %v2059 = vpop.permute.xlu0 %2058
      %2060 = vrot.lane.b32.xlu0 %v1662, 120
      %v2061 = vpop.permute.xlu0 %2060
      %2062 = vrot.lane.b32.xlu0 %v1663, 120
      %v2063 = vpop.permute.xlu0 %2062
      %2064 = vrot.lane.b32.xlu0 %v1664, 120
      %v2065 = vpop.permute.xlu0 %2064
      %2074 = vmatprep.subr.bf16.mxu0 0
      %2075 = vmatpush1.bf16.msra.mxu0 %v2051
      %2076 = vmatprep.subr.bf16.mxu0 0
      %2077 = vmatpush1.bf16.msra.mxu0 %v2053
      %2078 = vmatprep.subr.bf16.mxu0 0
      %2079 = vmatpush1.bf16.msra.mxu0 %v2055
      %2080 = vmatprep.subr.bf16.mxu0 0
      %2081 = vmatpush1.bf16.msra.mxu0 %v2057
      %2082 = vmatprep.subr.bf16.mxu0 0
      %2083 = vmatpush1.bf16.msra.mxu0 %v2059
      %2084 = vmatprep.subr.bf16.mxu0 0
      %2085 = vmatpush1.bf16.msra.mxu0 %v2061
      %2086 = vmatprep.subr.bf16.mxu0 0
      %2087 = vmatpush1.bf16.msra.mxu0 %v2063
      %2088 = vmatprep.subr.bf16.mxu0 0
      %2089 = vmatpush1.bf16.msra.mxu0 %v2065
      %2090 = vmatprep.subr.bf16.mxu0 0
      %2091 = vmatpush1.bf16.msra.mxu0 0
      %2092 = vmatprep.subr.bf16.mxu0 0
      %2093 = vmatpush1.bf16.msra.mxu0 0
      %2094 = vmatprep.subr.bf16.mxu0 0
      %2095 = vmatpush1.bf16.msra.mxu0 0
      %2096 = vmatprep.subr.bf16.mxu0 0
      %2097 = vmatpush1.bf16.msra.mxu0 0
      %2098 = vmatprep.subr.bf16.mxu0 0
      %2099 = vmatpush1.bf16.msra.mxu0 0
      %2100 = vmatprep.subr.bf16.mxu0 0
      %2101 = vmatpush1.bf16.msra.mxu0 0
      %2102 = vmatprep.subr.bf16.mxu0 0
      %2103 = vmatpush1.bf16.msra.mxu0 0
      %2104 = vmatprep.subr.bf16.mxu0 0
      %2105 = vmatpush1.bf16.msra.mxu0 0
      %2106 = vmatprep.mubr.bf16.mxu0 0
      %2107 = vmatmul.mubr.bf16.gmra.mrb[0].mxu0 %v2034
      %v2108 = vpop.f32.mrb[0].mxu0
      %v2109 = vadd.f32 0.0, %v2108
      %v2110 = vpop.f32.mrb[0].mxu0
      %v2111 = vpop.f32.mrb[0].mxu0
      %v2112 = vadd.f32 0.0, %v2111
      %v2113 = vpop.f32.mrb[0].mxu0
      %2114 = vmatprep.mubr.bf16.mxu0 0
      %2115 = vmatmul.mubr.bf16.gmra.mrb[0].mxu0 %v2035
      %v2116 = vpop.f32.mrb[0].mxu0
      %v2117 = vadd.f32 0.0, %v2116
      %v2118 = vpop.f32.mrb[0].mxu0
      %v2119 = vpop.f32.mrb[0].mxu0
      %v2120 = vadd.f32 0.0, %v2119
      %v2121 = vpop.f32.mrb[0].mxu0
      %2122 = vmatprep.mubr.bf16.mxu0 0
      %2123 = vmatmul.mubr.bf16.gmra.mrb[0].mxu0 %v2036
      %v2124 = vpop.f32.mrb[0].mxu0
      %v2125 = vadd.f32 0.0, %v2124
      %v2126 = vpop.f32.mrb[0].mxu0
      %v2127 = vpop.f32.mrb[0].mxu0
      %v2128 = vadd.f32 0.0, %v2127
      %v2129 = vpop.f32.mrb[0].mxu0
      %2130 = vmatprep.mubr.bf16.mxu0 0
      %2131 = vmatmul.mubr.bf16.gmra.mrb[0].mxu0 %v2037
      %v2132 = vpop.f32.mrb[0].mxu0
      %v2133 = vadd.f32 0.0, %v2132
      %v2134 = vpop.f32.mrb[0].mxu0
      %v2135 = vpop.f32.mrb[0].mxu0
      %v2136 = vadd.f32 0.0, %v2135
      %v2137 = vpop.f32.mrb[0].mxu0
      %2138 = vmatprep.mubr.bf16.mxu0 0
      %2139 = vmatmul.mubr.bf16.gmra.mrb[0].mxu0 %v2038
      %v2140 = vpop.f32.mrb[0].mxu0
      %v2141 = vadd.f32 0.0, %v2140
      %v2142 = vpop.f32.mrb[0].mxu0
      %v2143 = vpop.f32.mrb[0].mxu0
      %v2144 = vadd.f32 0.0, %v2143
      %v2145 = vpop.f32.mrb[0].mxu0
      %2146 = vmatprep.mubr.bf16.mxu0 0
      %2147 = vmatmul.mubr.bf16.gmra.mrb[0].mxu0 %v2039
      %v2148 = vpop.f32.mrb[0].mxu0
      %v2149 = vadd.f32 0.0, %v2148
      %v2150 = vpop.f32.mrb[0].mxu0
      %v2151 = vpop.f32.mrb[0].mxu0
      %v2152 = vadd.f32 0.0, %v2151
      %v2153 = vpop.f32.mrb[0].mxu0
      %2154 = vmatprep.mubr.bf16.mxu0 0
      %2155 = vmatmul.mubr.bf16.gmra.mrb[0].mxu0 %v2040
      %v2156 = vpop.f32.mrb[0].mxu0
      %v2157 = vadd.f32 0.0, %v2156
      %v2158 = vpop.f32.mrb[0].mxu0
      %v2159 = vpop.f32.mrb[0].mxu0
      %v2160 = vadd.f32 0.0, %v2159
      %v2161 = vpop.f32.mrb[0].mxu0
      %2162 = vmatprep.mubr.bf16.mxu0 0
      %2163 = vmatmul.mubr.bf16.gmra.mrb[0].mxu0 %v2041
      %v2164 = vpop.f32.mrb[0].mxu0
      %v2165 = vadd.f32 0.0, %v2164
      %v2166 = vpop.f32.mrb[0].mxu0
      %v2167 = vpop.f32.mrb[0].mxu0
      %v2168 = vadd.f32 0.0, %v2167
      %v2169 = vpop.f32.mrb[0].mxu0
      %2170 = vdwg.mxu0
      %2187 = vrot.lane.b32.xlu0 %v2109, 8
      %v2188 = vpop.permute.xlu0 %2187
      %2189 = vrot.lane.b32.xlu0 %v2112, 8
      %v2190 = vpop.permute.xlu0 %2189
      %2191 = vrot.lane.b32.xlu0 %v2117, 8
      %v2192 = vpop.permute.xlu0 %2191
      %2193 = vrot.lane.b32.xlu0 %v2120, 8
      %v2194 = vpop.permute.xlu0 %2193
      %2195 = vrot.lane.b32.xlu0 %v2125, 8
      %v2196 = vpop.permute.xlu0 %2195
      %2197 = vrot.lane.b32.xlu0 %v2128, 8
      %v2198 = vpop.permute.xlu0 %2197
      %2199 = vrot.lane.b32.xlu0 %v2133, 8
      %v2200 = vpop.permute.xlu0 %2199
      %2201 = vrot.lane.b32.xlu0 %v2136, 8
      %v2202 = vpop.permute.xlu0 %2201
      %2203 = vrot.lane.b32.xlu0 %v2141, 8
      %v2204 = vpop.permute.xlu0 %2203
      %2205 = vrot.lane.b32.xlu0 %v2144, 8
      %v2206 = vpop.permute.xlu0 %2205
      %2207 = vrot.lane.b32.xlu0 %v2149, 8
      %v2208 = vpop.permute.xlu0 %2207
      %2209 = vrot.lane.b32.xlu0 %v2152, 8
      %v2210 = vpop.permute.xlu0 %2209
      %2211 = vrot.lane.b32.xlu0 %v2157, 8
      %v2212 = vpop.permute.xlu0 %2211
      %2213 = vrot.lane.b32.xlu0 %v2160, 8
      %v2214 = vpop.permute.xlu0 %2213
      %2215 = vrot.lane.b32.xlu0 %v2165, 8
      %v2216 = vpop.permute.xlu0 %2215
      %2217 = vrot.lane.b32.xlu0 %v2168, 8
      %v2218 = vpop.permute.xlu0 %2217
      %vm2235 = vcmask 130112
      %2236 = vst.msk [vmem:[#allocation4] sm:$0xff] %vm2235, %v2188
      %2237 = vst.msk [vmem:[#allocation4 + $0x8] sm:$0xff] %vm2235, %v2190
      %2238 = vst.msk [vmem:[#allocation4 + $0x10] sm:$0xff] %vm2235, %v2192
      %2239 = vst.msk [vmem:[#allocation4 + $0x18] sm:$0xff] %vm2235, %v2194
      %2240 = vst.msk [vmem:[#allocation4 + $0x20] sm:$0xff] %vm2235, %v2196
      %2241 = vst.msk [vmem:[#allocation4 + $0x28] sm:$0xff] %vm2235, %v2198
      %2242 = vst.msk [vmem:[#allocation4 + $0x30] sm:$0xff] %vm2235, %v2200
      %2243 = vst.msk [vmem:[#allocation4 + $0x38] sm:$0xff] %vm2235, %v2202
      %2244 = vst.msk [vmem:[#allocation4 + $0x40] sm:$0xff] %vm2235, %v2204
      %2245 = vst.msk [vmem:[#allocation4 + $0x48] sm:$0xff] %vm2235, %v2206
      %2246 = vst.msk [vmem:[#allocation4 + $0x50] sm:$0xff] %vm2235, %v2208
      %2247 = vst.msk [vmem:[#allocation4 + $0x58] sm:$0xff] %vm2235, %v2210
      %2248 = vst.msk [vmem:[#allocation4 + $0x60] sm:$0xff] %vm2235, %v2212
      %2249 = vst.msk [vmem:[#allocation4 + $0x68] sm:$0xff] %vm2235, %v2214
      %2250 = vst.msk [vmem:[#allocation4 + $0x70] sm:$0xff] %vm2235, %v2216
      %2251 = vst.msk [vmem:[#allocation4 + $0x78] sm:$0xff] %vm2235, %v2218
      %v2252 = vld [vmem:[#allocation2] sm:$0xff]
      %v2253 = vld [vmem:[#allocation2 + $0x8] sm:$0xff]
      %v2254 = vld [vmem:[#allocation2 + $0x10] sm:$0xff]
      %v2255 = vld [vmem:[#allocation2 + $0x18] sm:$0xff]
      %v2256 = vld [vmem:[#allocation2 + $0x20] sm:$0xff]
      %v2257 = vld [vmem:[#allocation2 + $0x28] sm:$0xff]
      %v2258 = vld [vmem:[#allocation2 + $0x30] sm:$0xff]
      %v2259 = vld [vmem:[#allocation2 + $0x38] sm:$0xff]
      %v2260 = vld [vmem:[#allocation3] sm:$0xff]
      %v2261 = vld [vmem:[#allocation3 + $0x8] sm:$0xff]
      %v2262 = vld [vmem:[#allocation3 + $0x10] sm:$0xff]
      %v2263 = vld [vmem:[#allocation3 + $0x18] sm:$0xff]
      %v2264 = vld [vmem:[#allocation3 + $0x20] sm:$0xff]
      %v2265 = vld [vmem:[#allocation3 + $0x28] sm:$0xff]
      %v2266 = vld [vmem:[#allocation3 + $0x30] sm:$0xff]
      %v2267 = vld [vmem:[#allocation3 + $0x38] sm:$0xff]
      %v2268 = vmul.f32 %v1160, 0.015625
      %v2269 = vmul.f32 %v1161, 0.015625
      %v2270 = vmul.f32 %v1162, 0.015625
      %v2271 = vmul.f32 %v1163, 0.015625
      %v2272 = vmul.f32 %v1164, 0.015625
      %v2273 = vmul.f32 %v1165, 0.015625
      %v2274 = vmul.f32 %v1166, 0.015625
      %v2275 = vmul.f32 %v1167, 0.015625
      %v2276 = vmul.f32 %v1168, 0.015625
      %v2277 = vmul.f32 %v1169, 0.015625
      %v2278 = vmul.f32 %v1170, 0.015625
      %v2279 = vmul.f32 %v1171, 0.015625
      %v2280 = vmul.f32 %v1172, 0.015625
      %v2281 = vmul.f32 %v1173, 0.015625
      %v2282 = vmul.f32 %v1174, 0.015625
      %v2283 = vmul.f32 %v1175, 0.015625
      %2284 = vrot.lane.b32.xlu0 %v1176, 112
      %v2285 = vpop.permute.xlu0 %2284
      %2286 = vrot.lane.b32.xlu0 %v1177, 112
      %v2287 = vpop.permute.xlu0 %2286
      %2288 = vrot.lane.b32.xlu0 %v1178, 112
      %v2289 = vpop.permute.xlu0 %2288
      %2290 = vrot.lane.b32.xlu0 %v1179, 112
      %v2291 = vpop.permute.xlu0 %2290
      %2292 = vrot.lane.b32.xlu0 %v1180, 112
      %v2293 = vpop.permute.xlu0 %2292
      %2294 = vrot.lane.b32.xlu0 %v1181, 112
      %v2295 = vpop.permute.xlu0 %2294
      %2296 = vrot.lane.b32.xlu0 %v1182, 112
      %v2297 = vpop.permute.xlu0 %2296
      %2298 = vrot.lane.b32.xlu0 %v1183, 112
      %v2299 = vpop.permute.xlu0 %2298
      %2308 = vrot.lane.b32.xlu0 %v2252, 112
      %v2309 = vpop.permute.xlu0 %2308
      %2310 = vrot.lane.b32.xlu0 %v2253, 112
      %v2311 = vpop.permute.xlu0 %2310
      %2312 = vrot.lane.b32.xlu0 %v2254, 112
      %v2313 = vpop.permute.xlu0 %2312
      %2314 = vrot.lane.b32.xlu0 %v2255, 112
      %v2315 = vpop.permute.xlu0 %2314
      %2316 = vrot.lane.b32.xlu0 %v2256, 112
      %v2317 = vpop.permute.xlu0 %2316
      %2318 = vrot.lane.b32.xlu0 %v2257, 112
      %v2319 = vpop.permute.xlu0 %2318
      %2320 = vrot.lane.b32.xlu0 %v2258, 112
      %v2321 = vpop.permute.xlu0 %2320
      %2322 = vrot.lane.b32.xlu0 %v2259, 112
      %v2323 = vpop.permute.xlu0 %2322
      %v2325 = vsel %vm1216, %v2285, 0
      %v2328 = vsel %vm1216, %v2287, 0
      %v2331 = vsel %vm1216, %v2289, 0
      %v2334 = vsel %vm1216, %v2291, 0
      %v2337 = vsel %vm1216, %v2293, 0
      %v2340 = vsel %vm1216, %v2295, 0
      %v2343 = vsel %vm1216, %v2297, 0
      %v2346 = vsel %vm1216, %v2299, 0
      %v2349 = vsel %vm1216, %v2309, 0
      %v2352 = vsel %vm1216, %v2311, 0
      %v2355 = vsel %vm1216, %v2313, 0
      %v2358 = vsel %vm1216, %v2315, 0
      %v2361 = vsel %vm1216, %v2317, 0
      %v2364 = vsel %vm1216, %v2319, 0
      %v2367 = vsel %vm1216, %v2321, 0
      %v2370 = vsel %vm1216, %v2323, 0
      %2372 = vmatprep.subr.bf16.mxu0 0
      %2373 = vmatpush1.bf16.xpose.msra.mxu0 %v2349
      %2374 = vmatprep.subr.bf16.mxu0 0
      %2375 = vmatpush1.bf16.xpose.msra.mxu0 %v2352
      %2376 = vmatprep.subr.bf16.mxu0 0
      %2377 = vmatpush1.bf16.xpose.msra.mxu0 %v2355
      %2378 = vmatprep.subr.bf16.mxu0 0
      %2379 = vmatpush1.bf16.xpose.msra.mxu0 %v2358
      %2380 = vmatprep.subr.bf16.mxu0 0
      %2381 = vmatpush1.bf16.xpose.msra.mxu0 %v2361
      %2382 = vmatprep.subr.bf16.mxu0 0
      %2383 = vmatpush1.bf16.xpose.msra.mxu0 %v2364
      %2384 = vmatprep.subr.bf16.mxu0 0
      %2385 = vmatpush1.bf16.xpose.msra.mxu0 %v2367
      %2386 = vmatprep.subr.bf16.mxu0 0
      %2387 = vmatpush1.bf16.xpose.msra.mxu0 %v2370
      %2388 = vmatprep.subr.bf16.mxu0 0
      %2389 = vmatpush1.bf16.xpose.msra.mxu0 0
      %2390 = vmatprep.subr.bf16.mxu0 0
      %2391 = vmatpush1.bf16.xpose.msra.mxu0 0
      %2392 = vmatprep.subr.bf16.mxu0 0
      %2393 = vmatpush1.bf16.xpose.msra.mxu0 0
      %2394 = vmatprep.subr.bf16.mxu0 0
      %2395 = vmatpush1.bf16.xpose.msra.mxu0 0
      %2396 = vmatprep.subr.bf16.mxu0 0
      %2397 = vmatpush1.bf16.xpose.msra.mxu0 0
      %2398 = vmatprep.subr.bf16.mxu0 0
      %2399 = vmatpush1.bf16.xpose.msra.mxu0 0
      %2400 = vmatprep.subr.bf16.mxu0 0
      %2401 = vmatpush1.bf16.xpose.msra.mxu0 0
      %2402 = vmatprep.subr.bf16.mxu0 0
      %2403 = vmatpush1.bf16.xpose.msra.mxu0 0
      %2404 = vmatprep.mubr.bf16.mxu0 0
      %2405 = vmatmul.mubr.bf16.gmra.mrb[0].mxu0 %v2325
      %v2406 = vpop.f32.mrb[0].mxu0
      %v2407 = vadd.f32 %v2268, %v2406
      %v2408 = vpop.f32.mrb[0].mxu0
      %v2409 = vpop.f32.mrb[0].mxu0
      %v2410 = vadd.f32 %v2269, %v2409
      %v2411 = vpop.f32.mrb[0].mxu0
      %2412 = vmatprep.mubr.bf16.mxu0 0
      %2413 = vmatmul.mubr.bf16.gmra.mrb[0].mxu0 %v2328
      %v2414 = vpop.f32.mrb[0].mxu0
      %v2415 = vadd.f32 %v2270, %v2414
      %v2416 = vpop.f32.mrb[0].mxu0
      %v2417 = vpop.f32.mrb[0].mxu0
      %v2418 = vadd.f32 %v2271, %v2417
      %v2419 = vpop.f32.mrb[0].mxu0
      %2420 = vmatprep.mubr.bf16.mxu0 0
      %2421 = vmatmul.mubr.bf16.gmra.mrb[0].mxu0 %v2331
      %v2422 = vpop.f32.mrb[0].mxu0
      %v2423 = vadd.f32 %v2272, %v2422
      %v2424 = vpop.f32.mrb[0].mxu0
      %v2425 = vpop.f32.mrb[0].mxu0
      %v2426 = vadd.f32 %v2273, %v2425
      %v2427 = vpop.f32.mrb[0].mxu0
      %2428 = vmatprep.mubr.bf16.mxu0 0
      %2429 = vmatmul.mubr.bf16.gmra.mrb[0].mxu0 %v2334
      %v2430 = vpop.f32.mrb[0].mxu0
      %v2431 = vadd.f32 %v2274, %v2430
      %v2432 = vpop.f32.mrb[0].mxu0
      %v2433 = vpop.f32.mrb[0].mxu0
      %v2434 = vadd.f32 %v2275, %v2433
      %v2435 = vpop.f32.mrb[0].mxu0
      %2436 = vmatprep.mubr.bf16.mxu0 0
      %2437 = vmatmul.mubr.bf16.gmra.mrb[0].mxu0 %v2337
      %v2438 = vpop.f32.mrb[0].mxu0
      %v2439 = vadd.f32 %v2276, %v2438
      %v2440 = vpop.f32.mrb[0].mxu0
      %v2441 = vpop.f32.mrb[0].mxu0
      %v2442 = vadd.f32 %v2277, %v2441
      %v2443 = vpop.f32.mrb[0].mxu0
      %2444 = vmatprep.mubr.bf16.mxu0 0
      %2445 = vmatmul.mubr.bf16.gmra.mrb[0].mxu0 %v2340
      %v2446 = vpop.f32.mrb[0].mxu0
      %v2447 = vadd.f32 %v2278, %v2446
      %v2448 = vpop.f32.mrb[0].mxu0
      %v2449 = vpop.f32.mrb[0].mxu0
      %v2450 = vadd.f32 %v2279, %v2449
      %v2451 = vpop.f32.mrb[0].mxu0
      %2452 = vmatprep.mubr.bf16.mxu0 0
      %2453 = vmatmul.mubr.bf16.gmra.mrb[0].mxu0 %v2343
      %v2454 = vpop.f32.mrb[0].mxu0
      %v2455 = vadd.f32 %v2280, %v2454
      %v2456 = vpop.f32.mrb[0].mxu0
      %v2457 = vpop.f32.mrb[0].mxu0
      %v2458 = vadd.f32 %v2281, %v2457
      %v2459 = vpop.f32.mrb[0].mxu0
      %2460 = vmatprep.mubr.bf16.mxu0 0
      %2461 = vmatmul.mubr.bf16.gmra.mrb[0].mxu0 %v2346
      %v2462 = vpop.f32.mrb[0].mxu0
      %v2463 = vadd.f32 %v2282, %v2462
      %v2464 = vpop.f32.mrb[0].mxu0
      %v2465 = vpop.f32.mrb[0].mxu0
      %v2466 = vadd.f32 %v2283, %v2465
      %v2467 = vpop.f32.mrb[0].mxu0
      %2468 = vdwg.mxu0
      %2469 = vmax.xlane.f32.xlu0 %v2407
      %v2470 = vpop.xlane.xlu0 %2469
      %2471 = vmax.xlane.f32.xlu0 %v2410
      %v2472 = vpop.xlane.xlu0 %2471
      %2473 = vmax.xlane.f32.xlu0 %v2415
      %v2474 = vpop.xlane.xlu0 %2473
      %2475 = vmax.xlane.f32.xlu0 %v2418
      %v2476 = vpop.xlane.xlu0 %2475
      %2477 = vmax.xlane.f32.xlu0 %v2423
      %v2478 = vpop.xlane.xlu0 %2477
      %2479 = vmax.xlane.f32.xlu0 %v2426
      %v2480 = vpop.xlane.xlu0 %2479
      %2481 = vmax.xlane.f32.xlu0 %v2431
      %v2482 = vpop.xlane.xlu0 %2481
      %2483 = vmax.xlane.f32.xlu0 %v2434
      %v2484 = vpop.xlane.xlu0 %2483
      %2485 = vmax.xlane.f32.xlu0 %v2439
      %v2486 = vpop.xlane.xlu0 %2485
      %2487 = vmax.xlane.f32.xlu0 %v2442
      %v2488 = vpop.xlane.xlu0 %2487
      %2489 = vmax.xlane.f32.xlu0 %v2447
      %v2490 = vpop.xlane.xlu0 %2489
      %2491 = vmax.xlane.f32.xlu0 %v2450
      %v2492 = vpop.xlane.xlu0 %2491
      %2493 = vmax.xlane.f32.xlu0 %v2455
      %v2494 = vpop.xlane.xlu0 %2493
      %2495 = vmax.xlane.f32.xlu0 %v2458
      %v2496 = vpop.xlane.xlu0 %2495
      %2497 = vmax.xlane.f32.xlu0 %v2463
      %v2498 = vpop.xlane.xlu0 %2497
      %2499 = vmax.xlane.f32.xlu0 %v2466
      %v2500 = vpop.xlane.xlu0 %2499
      %v2501 = vsub.f32 %v2407, %v2470
      %v2502 = vsub.f32 %v2410, %v2472
      %v2503 = vsub.f32 %v2415, %v2474
      %v2504 = vsub.f32 %v2418, %v2476
      %v2505 = vsub.f32 %v2423, %v2478
      %v2506 = vsub.f32 %v2426, %v2480
      %v2507 = vsub.f32 %v2431, %v2482
      %v2508 = vsub.f32 %v2434, %v2484
      %v2509 = vsub.f32 %v2439, %v2486
      %v2510 = vsub.f32 %v2442, %v2488
      %v2511 = vsub.f32 %v2447, %v2490
      %v2512 = vsub.f32 %v2450, %v2492
      %v2513 = vsub.f32 %v2455, %v2494
      %v2514 = vsub.f32 %v2458, %v2496
      %v2515 = vsub.f32 %v2463, %v2498
      %v2516 = vsub.f32 %v2466, %v2500
      %v2517 = vmul.f32 %v2501, 1.442695
      %v2518 = vpow.pop %v2517
      %v2519 = vmul.f32 %v2502, 1.442695
      %v2520 = vpow.pop %v2519
      %v2521 = vmul.f32 %v2503, 1.442695
      %v2522 = vpow.pop %v2521
      %v2523 = vmul.f32 %v2504, 1.442695
      %v2524 = vpow.pop %v2523
      %v2525 = vmul.f32 %v2505, 1.442695
      %v2526 = vpow.pop %v2525
      %v2527 = vmul.f32 %v2506, 1.442695
      %v2528 = vpow.pop %v2527
      %v2529 = vmul.f32 %v2507, 1.442695
      %v2530 = vpow.pop %v2529
      %v2531 = vmul.f32 %v2508, 1.442695
      %v2532 = vpow.pop %v2531
      %v2533 = vmul.f32 %v2509, 1.442695
      %v2534 = vpow.pop %v2533
      %v2535 = vmul.f32 %v2510, 1.442695
      %v2536 = vpow.pop %v2535
      %v2537 = vmul.f32 %v2511, 1.442695
      %v2538 = vpow.pop %v2537
      %v2539 = vmul.f32 %v2512, 1.442695
      %v2540 = vpow.pop %v2539
      %v2541 = vmul.f32 %v2513, 1.442695
      %v2542 = vpow.pop %v2541
      %v2543 = vmul.f32 %v2514, 1.442695
      %v2544 = vpow.pop %v2543
      %v2545 = vmul.f32 %v2515, 1.442695
      %v2546 = vpow.pop %v2545
      %v2547 = vmul.f32 %v2516, 1.442695
      %v2548 = vpow.pop %v2547
      %v2549 = vmul.f32 %v2518, %v1446
      %v2550 = vmul.f32 %v2520, %v1446
      %v2551 = vmul.f32 %v2522, %v1446
      %v2552 = vmul.f32 %v2524, %v1446
      %v2553 = vmul.f32 %v2526, %v1446
      %v2554 = vmul.f32 %v2528, %v1446
      %v2555 = vmul.f32 %v2530, %v1446
      %v2556 = vmul.f32 %v2532, %v1446
      %v2557 = vmul.f32 %v2534, %v1446
      %v2558 = vmul.f32 %v2536, %v1446
      %v2559 = vmul.f32 %v2538, %v1446
      %v2560 = vmul.f32 %v2540, %v1446
      %v2561 = vmul.f32 %v2542, %v1446
      %v2562 = vmul.f32 %v2544, %v1446
      %v2563 = vmul.f32 %v2546, %v1446
      %v2564 = vmul.f32 %v2548, %v1446
      %2565 = vadd.xlane.f32.xlu0 %v2549
      %v2566 = vpop.xlane.xlu0 %2565
      %2567 = vadd.xlane.f32.xlu0 %v2550
      %v2568 = vpop.xlane.xlu0 %2567
      %2569 = vadd.xlane.f32.xlu0 %v2551
      %v2570 = vpop.xlane.xlu0 %2569
      %2571 = vadd.xlane.f32.xlu0 %v2552
      %v2572 = vpop.xlane.xlu0 %2571
      %2573 = vadd.xlane.f32.xlu0 %v2553
      %v2574 = vpop.xlane.xlu0 %2573
      %2575 = vadd.xlane.f32.xlu0 %v2554
      %v2576 = vpop.xlane.xlu0 %2575
      %2577 = vadd.xlane.f32.xlu0 %v2555
      %v2578 = vpop.xlane.xlu0 %2577
      %2579 = vadd.xlane.f32.xlu0 %v2556
      %v2580 = vpop.xlane.xlu0 %2579
      %2581 = vadd.xlane.f32.xlu0 %v2557
      %v2582 = vpop.xlane.xlu0 %2581
      %2583 = vadd.xlane.f32.xlu0 %v2558
      %v2584 = vpop.xlane.xlu0 %2583
      %2585 = vadd.xlane.f32.xlu0 %v2559
      %v2586 = vpop.xlane.xlu0 %2585
      %2587 = vadd.xlane.f32.xlu0 %v2560
      %v2588 = vpop.xlane.xlu0 %2587
      %2589 = vadd.xlane.f32.xlu0 %v2561
      %v2590 = vpop.xlane.xlu0 %2589
      %2591 = vadd.xlane.f32.xlu0 %v2562
      %v2592 = vpop.xlane.xlu0 %2591
      %2593 = vadd.xlane.f32.xlu0 %v2563
      %v2594 = vpop.xlane.xlu0 %2593
      %2595 = vadd.xlane.f32.xlu0 %v2564
      %v2596 = vpop.xlane.xlu0 %2595
      %v2597 = vrcp.pop %v2566
      %v2598 = vrcp.pop %v2568
      %v2599 = vrcp.pop %v2570
      %v2600 = vrcp.pop %v2572
      %v2601 = vrcp.pop %v2574
      %v2602 = vrcp.pop %v2576
      %v2603 = vrcp.pop %v2578
      %v2604 = vrcp.pop %v2580
      %v2605 = vrcp.pop %v2582
      %v2606 = vrcp.pop %v2584
      %v2607 = vrcp.pop %v2586
      %v2608 = vrcp.pop %v2588
      %v2609 = vrcp.pop %v2590
      %v2610 = vrcp.pop %v2592
      %v2611 = vrcp.pop %v2594
      %v2612 = vrcp.pop %v2596
      %v2613 = vmul.f32 %v2549, %v2597
      %v2614 = vmul.f32 %v2550, %v2598
      %v2615 = vmul.f32 %v2551, %v2599
      %v2616 = vmul.f32 %v2552, %v2600
      %v2617 = vmul.f32 %v2553, %v2601
      %v2618 = vmul.f32 %v2554, %v2602
      %v2619 = vmul.f32 %v2555, %v2603
      %v2620 = vmul.f32 %v2556, %v2604
      %v2621 = vmul.f32 %v2557, %v2605
      %v2622 = vmul.f32 %v2558, %v2606
      %v2623 = vmul.f32 %v2559, %v2607
      %v2624 = vmul.f32 %v2560, %v2608
      %v2625 = vmul.f32 %v2561, %v2609
      %v2626 = vmul.f32 %v2562, %v2610
      %v2627 = vmul.f32 %v2563, %v2611
      %v2628 = vmul.f32 %v2564, %v2612
      %v2629 = vpack.c.bf16 %v2614, %v2613
      %v2630 = vpack.c.bf16 %v2616, %v2615
      %v2631 = vpack.c.bf16 %v2618, %v2617
      %v2632 = vpack.c.bf16 %v2620, %v2619
      %v2633 = vpack.c.bf16 %v2622, %v2621
      %v2634 = vpack.c.bf16 %v2624, %v2623
      %v2635 = vpack.c.bf16 %v2626, %v2625
      %v2636 = vpack.c.bf16 %v2628, %v2627
      %2645 = vrot.lane.b32.xlu0 %v2260, 112
      %v2646 = vpop.permute.xlu0 %2645
      %2647 = vrot.lane.b32.xlu0 %v2261, 112
      %v2648 = vpop.permute.xlu0 %2647
      %2649 = vrot.lane.b32.xlu0 %v2262, 112
      %v2650 = vpop.permute.xlu0 %2649
      %2651 = vrot.lane.b32.xlu0 %v2263, 112
      %v2652 = vpop.permute.xlu0 %2651
      %2653 = vrot.lane.b32.xlu0 %v2264, 112
      %v2654 = vpop.permute.xlu0 %2653
      %2655 = vrot.lane.b32.xlu0 %v2265, 112
      %v2656 = vpop.permute.xlu0 %2655
      %2657 = vrot.lane.b32.xlu0 %v2266, 112
      %v2658 = vpop.permute.xlu0 %2657
      %2659 = vrot.lane.b32.xlu0 %v2267, 112
      %v2660 = vpop.permute.xlu0 %2659
      %2669 = vmatprep.subr.bf16.mxu0 0
      %2670 = vmatpush1.bf16.msra.mxu0 %v2646
      %2671 = vmatprep.subr.bf16.mxu0 0
      %2672 = vmatpush1.bf16.msra.mxu0 %v2648
      %2673 = vmatprep.subr.bf16.mxu0 0
      %2674 = vmatpush1.bf16.msra.mxu0 %v2650
      %2675 = vmatprep.subr.bf16.mxu0 0
      %2676 = vmatpush1.bf16.msra.mxu0 %v2652
      %2677 = vmatprep.subr.bf16.mxu0 0
      %2678 = vmatpush1.bf16.msra.mxu0 %v2654
      %2679 = vmatprep.subr.bf16.mxu0 0
      %2680 = vmatpush1.bf16.msra.mxu0 %v2656
      %2681 = vmatprep.subr.bf16.mxu0 0
      %2682 = vmatpush1.bf16.msra.mxu0 %v2658
      %2683 = vmatprep.subr.bf16.mxu0 0
      %2684 = vmatpush1.bf16.msra.mxu0 %v2660
      %2685 = vmatprep.subr.bf16.mxu0 0
      %2686 = vmatpush1.bf16.msra.mxu0 0
      %2687 = vmatprep.subr.bf16.mxu0 0
      %2688 = vmatpush1.bf16.msra.mxu0 0
      %2689 = vmatprep.subr.bf16.mxu0 0
      %2690 = vmatpush1.bf16.msra.mxu0 0
      %2691 = vmatprep.subr.bf16.mxu0 0
      %2692 = vmatpush1.bf16.msra.mxu0 0
      %2693 = vmatprep.subr.bf16.mxu0 0
      %2694 = vmatpush1.bf16.msra.mxu0 0
      %2695 = vmatprep.subr.bf16.mxu0 0
      %2696 = vmatpush1.bf16.msra.mxu0 0
      %2697 = vmatprep.subr.bf16.mxu0 0
      %2698 = vmatpush1.bf16.msra.mxu0 0
      %2699 = vmatprep.subr.bf16.mxu0 0
      %2700 = vmatpush1.bf16.msra.mxu0 0
      %2701 = vmatprep.mubr.bf16.mxu0 0
      %2702 = vmatmul.mubr.bf16.gmra.mrb[0].mxu0 %v2629
      %v2703 = vpop.f32.mrb[0].mxu0
      %v2704 = vadd.f32 0.0, %v2703
      %v2705 = vpop.f32.mrb[0].mxu0
      %v2706 = vpop.f32.mrb[0].mxu0
      %v2707 = vadd.f32 0.0, %v2706
      %v2708 = vpop.f32.mrb[0].mxu0
      %2709 = vmatprep.mubr.bf16.mxu0 0
      %2710 = vmatmul.mubr.bf16.gmra.mrb[0].mxu0 %v2630
      %v2711 = vpop.f32.mrb[0].mxu0
      %v2712 = vadd.f32 0.0, %v2711
      %v2713 = vpop.f32.mrb[0].mxu0
      %v2714 = vpop.f32.mrb[0].mxu0
      %v2715 = vadd.f32 0.0, %v2714
      %v2716 = vpop.f32.mrb[0].mxu0
      %2717 = vmatprep.mubr.bf16.mxu0 0
      %2718 = vmatmul.mubr.bf16.gmra.mrb[0].mxu0 %v2631
      %v2719 = vpop.f32.mrb[0].mxu0
      %v2720 = vadd.f32 0.0, %v2719
      %v2721 = vpop.f32.mrb[0].mxu0
      %v2722 = vpop.f32.mrb[0].mxu0
      %v2723 = vadd.f32 0.0, %v2722
      %v2724 = vpop.f32.mrb[0].mxu0
      %2725 = vmatprep.mubr.bf16.mxu0 0
      %2726 = vmatmul.mubr.bf16.gmra.mrb[0].mxu0 %v2632
      %v2727 = vpop.f32.mrb[0].mxu0
      %v2728 = vadd.f32 0.0, %v2727
      %v2729 = vpop.f32.mrb[0].mxu0
      %v2730 = vpop.f32.mrb[0].mxu0
      %v2731 = vadd.f32 0.0, %v2730
      %v2732 = vpop.f32.mrb[0].mxu0
      %2733 = vmatprep.mubr.bf16.mxu0 0
      %2734 = vmatmul.mubr.bf16.gmra.mrb[0].mxu0 %v2633
      %v2735 = vpop.f32.mrb[0].mxu0
      %v2736 = vadd.f32 0.0, %v2735
      %v2737 = vpop.f32.mrb[0].mxu0
      %v2738 = vpop.f32.mrb[0].mxu0
      %v2739 = vadd.f32 0.0, %v2738
      %v2740 = vpop.f32.mrb[0].mxu0
      %2741 = vmatprep.mubr.bf16.mxu0 0
      %2742 = vmatmul.mubr.bf16.gmra.mrb[0].mxu0 %v2634
      %v2743 = vpop.f32.mrb[0].mxu0
      %v2744 = vadd.f32 0.0, %v2743
      %v2745 = vpop.f32.mrb[0].mxu0
      %v2746 = vpop.f32.mrb[0].mxu0
      %v2747 = vadd.f32 0.0, %v2746
      %v2748 = vpop.f32.mrb[0].mxu0
      %2749 = vmatprep.mubr.bf16.mxu0 0
      %2750 = vmatmul.mubr.bf16.gmra.mrb[0].mxu0 %v2635
      %v2751 = vpop.f32.mrb[0].mxu0
      %v2752 = vadd.f32 0.0, %v2751
      %v2753 = vpop.f32.mrb[0].mxu0
      %v2754 = vpop.f32.mrb[0].mxu0
      %v2755 = vadd.f32 0.0, %v2754
      %v2756 = vpop.f32.mrb[0].mxu0
      %2757 = vmatprep.mubr.bf16.mxu0 0
      %2758 = vmatmul.mubr.bf16.gmra.mrb[0].mxu0 %v2636
      %v2759 = vpop.f32.mrb[0].mxu0
      %v2760 = vadd.f32 0.0, %v2759
      %v2761 = vpop.f32.mrb[0].mxu0
      %v2762 = vpop.f32.mrb[0].mxu0
      %v2763 = vadd.f32 0.0, %v2762
      %v2764 = vpop.f32.mrb[0].mxu0
      %2765 = vdwg.mxu0
      %2782 = vrot.lane.b32.xlu0 %v2704, 16
      %v2783 = vpop.permute.xlu0 %2782
      %2784 = vrot.lane.b32.xlu0 %v2707, 16
      %v2785 = vpop.permute.xlu0 %2784
      %2786 = vrot.lane.b32.xlu0 %v2712, 16
      %v2787 = vpop.permute.xlu0 %2786
      %2788 = vrot.lane.b32.xlu0 %v2715, 16
      %v2789 = vpop.permute.xlu0 %2788
      %2790 = vrot.lane.b32.xlu0 %v2720, 16
      %v2791 = vpop.permute.xlu0 %2790
      %2792 = vrot.lane.b32.xlu0 %v2723, 16
      %v2793 = vpop.permute.xlu0 %2792
      %2794 = vrot.lane.b32.xlu0 %v2728, 16
      %v2795 = vpop.permute.xlu0 %2794
      %2796 = vrot.lane.b32.xlu0 %v2731, 16
      %v2797 = vpop.permute.xlu0 %2796
      %2798 = vrot.lane.b32.xlu0 %v2736, 16
      %v2799 = vpop.permute.xlu0 %2798
      %2800 = vrot.lane.b32.xlu0 %v2739, 16
      %v2801 = vpop.permute.xlu0 %2800
      %2802 = vrot.lane.b32.xlu0 %v2744, 16
      %v2803 = vpop.permute.xlu0 %2802
      %2804 = vrot.lane.b32.xlu0 %v2747, 16
      %v2805 = vpop.permute.xlu0 %2804
      %2806 = vrot.lane.b32.xlu0 %v2752, 16
      %v2807 = vpop.permute.xlu0 %2806
      %2808 = vrot.lane.b32.xlu0 %v2755, 16
      %v2809 = vpop.permute.xlu0 %2808
      %2810 = vrot.lane.b32.xlu0 %v2760, 16
      %v2811 = vpop.permute.xlu0 %2810
      %2812 = vrot.lane.b32.xlu0 %v2763, 16
      %v2813 = vpop.permute.xlu0 %2812
      %vm2830 = vcmask 195712
      %2831 = vst.msk [vmem:[#allocation4] sm:$0xff] %vm2830, %v2783
      %2832 = vst.msk [vmem:[#allocation4 + $0x8] sm:$0xff] %vm2830, %v2785
      %2833 = vst.msk [vmem:[#allocation4 + $0x10] sm:$0xff] %vm2830, %v2787
      %2834 = vst.msk [vmem:[#allocation4 + $0x18] sm:$0xff] %vm2830, %v2789
      %2835 = vst.msk [vmem:[#allocation4 + $0x20] sm:$0xff] %vm2830, %v2791
      %2836 = vst.msk [vmem:[#allocation4 + $0x28] sm:$0xff] %vm2830, %v2793
      %2837 = vst.msk [vmem:[#allocation4 + $0x30] sm:$0xff] %vm2830, %v2795
      %2838 = vst.msk [vmem:[#allocation4 + $0x38] sm:$0xff] %vm2830, %v2797
      %2839 = vst.msk [vmem:[#allocation4 + $0x40] sm:$0xff] %vm2830, %v2799
      %2840 = vst.msk [vmem:[#allocation4 + $0x48] sm:$0xff] %vm2830, %v2801
      %2841 = vst.msk [vmem:[#allocation4 + $0x50] sm:$0xff] %vm2830, %v2803
      %2842 = vst.msk [vmem:[#allocation4 + $0x58] sm:$0xff] %vm2830, %v2805
      %2843 = vst.msk [vmem:[#allocation4 + $0x60] sm:$0xff] %vm2830, %v2807
      %2844 = vst.msk [vmem:[#allocation4 + $0x68] sm:$0xff] %vm2830, %v2809
      %2845 = vst.msk [vmem:[#allocation4 + $0x70] sm:$0xff] %vm2830, %v2811
      %2846 = vst.msk [vmem:[#allocation4 + $0x78] sm:$0xff] %vm2830, %v2813
      %v2847 = vld [vmem:[#allocation2] sm:$0xff]
      %v2848 = vld [vmem:[#allocation2 + $0x8] sm:$0xff]
      %v2849 = vld [vmem:[#allocation2 + $0x10] sm:$0xff]
      %v2850 = vld [vmem:[#allocation2 + $0x18] sm:$0xff]
      %v2851 = vld [vmem:[#allocation2 + $0x20] sm:$0xff]
      %v2852 = vld [vmem:[#allocation2 + $0x28] sm:$0xff]
      %v2853 = vld [vmem:[#allocation2 + $0x30] sm:$0xff]
      %v2854 = vld [vmem:[#allocation2 + $0x38] sm:$0xff]
      %v2855 = vld [vmem:[#allocation3] sm:$0xff]
      %v2856 = vld [vmem:[#allocation3 + $0x8] sm:$0xff]
      %v2857 = vld [vmem:[#allocation3 + $0x10] sm:$0xff]
      %v2858 = vld [vmem:[#allocation3 + $0x18] sm:$0xff]
      %v2859 = vld [vmem:[#allocation3 + $0x20] sm:$0xff]
      %v2860 = vld [vmem:[#allocation3 + $0x28] sm:$0xff]
      %v2861 = vld [vmem:[#allocation3 + $0x30] sm:$0xff]
      %v2862 = vld [vmem:[#allocation3 + $0x38] sm:$0xff]
      %v2863 = vmul.f32 %v1160, 0.00390625
      %v2864 = vmul.f32 %v1161, 0.00390625
      %v2865 = vmul.f32 %v1162, 0.00390625
      %v2866 = vmul.f32 %v1163, 0.00390625
      %v2867 = vmul.f32 %v1164, 0.00390625
      %v2868 = vmul.f32 %v1165, 0.00390625
      %v2869 = vmul.f32 %v1166, 0.00390625
      %v2870 = vmul.f32 %v1167, 0.00390625
      %v2871 = vmul.f32 %v1168, 0.00390625
      %v2872 = vmul.f32 %v1169, 0.00390625
      %v2873 = vmul.f32 %v1170, 0.00390625
      %v2874 = vmul.f32 %v1171, 0.00390625
      %v2875 = vmul.f32 %v1172, 0.00390625
      %v2876 = vmul.f32 %v1173, 0.00390625
      %v2877 = vmul.f32 %v1174, 0.00390625
      %v2878 = vmul.f32 %v1175, 0.00390625
      %2879 = vrot.lane.b32.xlu0 %v1176, 104
      %v2880 = vpop.permute.xlu0 %2879
      %2881 = vrot.lane.b32.xlu0 %v1177, 104
      %v2882 = vpop.permute.xlu0 %2881
      %2883 = vrot.lane.b32.xlu0 %v1178, 104
      %v2884 = vpop.permute.xlu0 %2883
      %2885 = vrot.lane.b32.xlu0 %v1179, 104
      %v2886 = vpop.permute.xlu0 %2885
      %2887 = vrot.lane.b32.xlu0 %v1180, 104
      %v2888 = vpop.permute.xlu0 %2887
      %2889 = vrot.lane.b32.xlu0 %v1181, 104
      %v2890 = vpop.permute.xlu0 %2889
      %2891 = vrot.lane.b32.xlu0 %v1182, 104
      %v2892 = vpop.permute.xlu0 %2891
      %2893 = vrot.lane.b32.xlu0 %v1183, 104
      %v2894 = vpop.permute.xlu0 %2893
      %2903 = vrot.lane.b32.xlu0 %v2847, 104
      %v2904 = vpop.permute.xlu0 %2903
      %2905 = vrot.lane.b32.xlu0 %v2848, 104
      %v2906 = vpop.permute.xlu0 %2905
      %2907 = vrot.lane.b32.xlu0 %v2849, 104
      %v2908 = vpop.permute.xlu0 %2907
      %2909 = vrot.lane.b32.xlu0 %v2850, 104
      %v2910 = vpop.permute.xlu0 %2909
      %2911 = vrot.lane.b32.xlu0 %v2851, 104
      %v2912 = vpop.permute.xlu0 %2911
      %2913 = vrot.lane.b32.xlu0 %v2852, 104
      %v2914 = vpop.permute.xlu0 %2913
      %2915 = vrot.lane.b32.xlu0 %v2853, 104
      %v2916 = vpop.permute.xlu0 %2915
      %2917 = vrot.lane.b32.xlu0 %v2854, 104
      %v2918 = vpop.permute.xlu0 %2917
      %v2920 = vsel %vm1216, %v2880, 0
      %v2923 = vsel %vm1216, %v2882, 0
      %v2926 = vsel %vm1216, %v2884, 0
      %v2929 = vsel %vm1216, %v2886, 0
      %v2932 = vsel %vm1216, %v2888, 0
      %v2935 = vsel %vm1216, %v2890, 0
      %v2938 = vsel %vm1216, %v2892, 0
      %v2941 = vsel %vm1216, %v2894, 0
      %v2944 = vsel %vm1216, %v2904, 0
      %v2947 = vsel %vm1216, %v2906, 0
      %v2950 = vsel %vm1216, %v2908, 0
      %v2953 = vsel %vm1216, %v2910, 0
      %v2956 = vsel %vm1216, %v2912, 0
      %v2959 = vsel %vm1216, %v2914, 0
      %v2962 = vsel %vm1216, %v2916, 0
      %v2965 = vsel %vm1216, %v2918, 0
      %2967 = vmatprep.subr.bf16.mxu0 0
      %2968 = vmatpush1.bf16.xpose.msra.mxu0 %v2944
      %2969 = vmatprep.subr.bf16.mxu0 0
      %2970 = vmatpush1.bf16.xpose.msra.mxu0 %v2947
      %2971 = vmatprep.subr.bf16.mxu0 0
      %2972 = vmatpush1.bf16.xpose.msra.mxu0 %v2950
      %2973 = vmatprep.subr.bf16.mxu0 0
      %2974 = vmatpush1.bf16.xpose.msra.mxu0 %v2953
      %2975 = vmatprep.subr.bf16.mxu0 0
      %2976 = vmatpush1.bf16.xpose.msra.mxu0 %v2956
      %2977 = vmatprep.subr.bf16.mxu0 0
      %2978 = vmatpush1.bf16.xpose.msra.mxu0 %v2959
      %2979 = vmatprep.subr.bf16.mxu0 0
      %2980 = vmatpush1.bf16.xpose.msra.mxu0 %v2962
      %2981 = vmatprep.subr.bf16.mxu0 0
      %2982 = vmatpush1.bf16.xpose.msra.mxu0 %v2965
      %2983 = vmatprep.subr.bf16.mxu0 0
      %2984 = vmatpush1.bf16.xpose.msra.mxu0 0
      %2985 = vmatprep.subr.bf16.mxu0 0
      %2986 = vmatpush1.bf16.xpose.msra.mxu0 0
      %2987 = vmatprep.subr.bf16.mxu0 0
      %2988 = vmatpush1.bf16.xpose.msra.mxu0 0
      %2989 = vmatprep.subr.bf16.mxu0 0
      %2990 = vmatpush1.bf16.xpose.msra.mxu0 0
      %2991 = vmatprep.subr.bf16.mxu0 0
      %2992 = vmatpush1.bf16.xpose.msra.mxu0 0
      %2993 = vmatprep.subr.bf16.mxu0 0
      %2994 = vmatpush1.bf16.xpose.msra.mxu0 0
      %2995 = vmatprep.subr.bf16.mxu0 0
      %2996 = vmatpush1.bf16.xpose.msra.mxu0 0
      %2997 = vmatprep.subr.bf16.mxu0 0
      %2998 = vmatpush1.bf16.xpose.msra.mxu0 0
      %2999 = vmatprep.mubr.bf16.mxu0 0
      %3000 = vmatmul.mubr.bf16.gmra.mrb[0].mxu0 %v2920
      %v3001 = vpop.f32.mrb[0].mxu0
      %v3002 = vadd.f32 %v2863, %v3001
      %v3003 = vpop.f32.mrb[0].mxu0
      %v3004 = vpop.f32.mrb[0].mxu0
      %v3005 = vadd.f32 %v2864, %v3004
      %v3006 = vpop.f32.mrb[0].mxu0
      %3007 = vmatprep.mubr.bf16.mxu0 0
      %3008 = vmatmul.mubr.bf16.gmra.mrb[0].mxu0 %v2923
      %v3009 = vpop.f32.mrb[0].mxu0
      %v3010 = vadd.f32 %v2865, %v3009
      %v3011 = vpop.f32.mrb[0].mxu0
      %v3012 = vpop.f32.mrb[0].mxu0
      %v3013 = vadd.f32 %v2866, %v3012
      %v3014 = vpop.f32.mrb[0].mxu0
      %3015 = vmatprep.mubr.bf16.mxu0 0
      %3016 = vmatmul.mubr.bf16.gmra.mrb[0].mxu0 %v2926
      %v3017 = vpop.f32.mrb[0].mxu0
      %v3018 = vadd.f32 %v2867, %v3017
      %v3019 = vpop.f32.mrb[0].mxu0
      %v3020 = vpop.f32.mrb[0].mxu0
      %v3021 = vadd.f32 %v2868, %v3020
      %v3022 = vpop.f32.mrb[0].mxu0
      %3023 = vmatprep.mubr.bf16.mxu0 0
      %3024 = vmatmul.mubr.bf16.gmra.mrb[0].mxu0 %v2929
      %v3025 = vpop.f32.mrb[0].mxu0
      %v3026 = vadd.f32 %v2869, %v3025
      %v3027 = vpop.f32.mrb[0].mxu0
      %v3028 = vpop.f32.mrb[0].mxu0
      %v3029 = vadd.f32 %v2870, %v3028
      %v3030 = vpop.f32.mrb[0].mxu0
      %3031 = vmatprep.mubr.bf16.mxu0 0
      %3032 = vmatmul.mubr.bf16.gmra.mrb[0].mxu0 %v2932
      %v3033 = vpop.f32.mrb[0].mxu0
      %v3034 = vadd.f32 %v2871, %v3033
      %v3035 = vpop.f32.mrb[0].mxu0
      %v3036 = vpop.f32.mrb[0].mxu0
      %v3037 = vadd.f32 %v2872, %v3036
      %v3038 = vpop.f32.mrb[0].mxu0
      %3039 = vmatprep.mubr.bf16.mxu0 0
      %3040 = vmatmul.mubr.bf16.gmra.mrb[0].mxu0 %v2935
      %v3041 = vpop.f32.mrb[0].mxu0
      %v3042 = vadd.f32 %v2873, %v3041
      %v3043 = vpop.f32.mrb[0].mxu0
      %v3044 = vpop.f32.mrb[0].mxu0
      %v3045 = vadd.f32 %v2874, %v3044
      %v3046 = vpop.f32.mrb[0].mxu0
      %3047 = vmatprep.mubr.bf16.mxu0 0
      %3048 = vmatmul.mubr.bf16.gmra.mrb[0].mxu0 %v2938
      %v3049 = vpop.f32.mrb[0].mxu0
      %v3050 = vadd.f32 %v2875, %v3049
      %v3051 = vpop.f32.mrb[0].mxu0
      %v3052 = vpop.f32.mrb[0].mxu0
      %v3053 = vadd.f32 %v2876, %v3052
      %v3054 = vpop.f32.mrb[0].mxu0
      %3055 = vmatprep.mubr.bf16.mxu0 0
      %3056 = vmatmul.mubr.bf16.gmra.mrb[0].mxu0 %v2941
      %v3057 = vpop.f32.mrb[0].mxu0
      %v3058 = vadd.f32 %v2877, %v3057
      %v3059 = vpop.f32.mrb[0].mxu0
      %v3060 = vpop.f32.mrb[0].mxu0
      %v3061 = vadd.f32 %v2878, %v3060
      %v3062 = vpop.f32.mrb[0].mxu0
      %3063 = vdwg.mxu0
      %3064 = vmax.xlane.f32.xlu0 %v3002
      %v3065 = vpop.xlane.xlu0 %3064
      %3066 = vmax.xlane.f32.xlu0 %v3005
      %v3067 = vpop.xlane.xlu0 %3066
      %3068 = vmax.xlane.f32.xlu0 %v3010
      %v3069 = vpop.xlane.xlu0 %3068
      %3070 = vmax.xlane.f32.xlu0 %v3013
      %v3071 = vpop.xlane.xlu0 %3070
      %3072 = vmax.xlane.f32.xlu0 %v3018
      %v3073 = vpop.xlane.xlu0 %3072
      %3074 = vmax.xlane.f32.xlu0 %v3021
      %v3075 = vpop.xlane.xlu0 %3074
      %3076 = vmax.xlane.f32.xlu0 %v3026
      %v3077 = vpop.xlane.xlu0 %3076
      %3078 = vmax.xlane.f32.xlu0 %v3029
      %v3079 = vpop.xlane.xlu0 %3078
      %3080 = vmax.xlane.f32.xlu0 %v3034
      %v3081 = vpop.xlane.xlu0 %3080
      %3082 = vmax.xlane.f32.xlu0 %v3037
      %v3083 = vpop.xlane.xlu0 %3082
      %3084 = vmax.xlane.f32.xlu0 %v3042
      %v3085 = vpop.xlane.xlu0 %3084
      %3086 = vmax.xlane.f32.xlu0 %v3045
      %v3087 = vpop.xlane.xlu0 %3086
      %3088 = vmax.xlane.f32.xlu0 %v3050
      %v3089 = vpop.xlane.xlu0 %3088
      %3090 = vmax.xlane.f32.xlu0 %v3053
      %v3091 = vpop.xlane.xlu0 %3090
      %3092 = vmax.xlane.f32.xlu0 %v3058
      %v3093 = vpop.xlane.xlu0 %3092
      %3094 = vmax.xlane.f32.xlu0 %v3061
      %v3095 = vpop.xlane.xlu0 %3094
      %v3096 = vsub.f32 %v3002, %v3065
      %v3097 = vsub.f32 %v3005, %v3067
      %v3098 = vsub.f32 %v3010, %v3069
      %v3099 = vsub.f32 %v3013, %v3071
      %v3100 = vsub.f32 %v3018, %v3073
      %v3101 = vsub.f32 %v3021, %v3075
      %v3102 = vsub.f32 %v3026, %v3077
      %v3103 = vsub.f32 %v3029, %v3079
      %v3104 = vsub.f32 %v3034, %v3081
      %v3105 = vsub.f32 %v3037, %v3083
      %v3106 = vsub.f32 %v3042, %v3085
      %v3107 = vsub.f32 %v3045, %v3087
      %v3108 = vsub.f32 %v3050, %v3089
      %v3109 = vsub.f32 %v3053, %v3091
      %v3110 = vsub.f32 %v3058, %v3093
      %v3111 = vsub.f32 %v3061, %v3095
      %v3112 = vmul.f32 %v3096, 1.442695
      %v3113 = vpow.pop %v3112
      %v3114 = vmul.f32 %v3097, 1.442695
      %v3115 = vpow.pop %v3114
      %v3116 = vmul.f32 %v3098, 1.442695
      %v3117 = vpow.pop %v3116
      %v3118 = vmul.f32 %v3099, 1.442695
      %v3119 = vpow.pop %v3118
      %v3120 = vmul.f32 %v3100, 1.442695
      %v3121 = vpow.pop %v3120
      %v3122 = vmul.f32 %v3101, 1.442695
      %v3123 = vpow.pop %v3122
      %v3124 = vmul.f32 %v3102, 1.442695
      %v3125 = vpow.pop %v3124
      %v3126 = vmul.f32 %v3103, 1.442695
      %v3127 = vpow.pop %v3126
      %v3128 = vmul.f32 %v3104, 1.442695
      %v3129 = vpow.pop %v3128
      %v3130 = vmul.f32 %v3105, 1.442695
      %v3131 = vpow.pop %v3130
      %v3132 = vmul.f32 %v3106, 1.442695
      %v3133 = vpow.pop %v3132
      %v3134 = vmul.f32 %v3107, 1.442695
      %v3135 = vpow.pop %v3134
      %v3136 = vmul.f32 %v3108, 1.442695
      %v3137 = vpow.pop %v3136
      %v3138 = vmul.f32 %v3109, 1.442695
      %v3139 = vpow.pop %v3138
      %v3140 = vmul.f32 %v3110, 1.442695
      %v3141 = vpow.pop %v3140
      %v3142 = vmul.f32 %v3111, 1.442695
      %v3143 = vpow.pop %v3142
      %v3144 = vmul.f32 %v3113, %v1446
      %v3145 = vmul.f32 %v3115, %v1446
      %v3146 = vmul.f32 %v3117, %v1446
      %v3147 = vmul.f32 %v3119, %v1446
      %v3148 = vmul.f32 %v3121, %v1446
      %v3149 = vmul.f32 %v3123, %v1446
      %v3150 = vmul.f32 %v3125, %v1446
      %v3151 = vmul.f32 %v3127, %v1446
      %v3152 = vmul.f32 %v3129, %v1446
      %v3153 = vmul.f32 %v3131, %v1446
      %v3154 = vmul.f32 %v3133, %v1446
      %v3155 = vmul.f32 %v3135, %v1446
      %v3156 = vmul.f32 %v3137, %v1446
      %v3157 = vmul.f32 %v3139, %v1446
      %v3158 = vmul.f32 %v3141, %v1446
      %v3159 = vmul.f32 %v3143, %v1446
      %3160 = vadd.xlane.f32.xlu0 %v3144
      %v3161 = vpop.xlane.xlu0 %3160
      %3162 = vadd.xlane.f32.xlu0 %v3145
      %v3163 = vpop.xlane.xlu0 %3162
      %3164 = vadd.xlane.f32.xlu0 %v3146
      %v3165 = vpop.xlane.xlu0 %3164
      %3166 = vadd.xlane.f32.xlu0 %v3147
      %v3167 = vpop.xlane.xlu0 %3166
      %3168 = vadd.xlane.f32.xlu0 %v3148
      %v3169 = vpop.xlane.xlu0 %3168
      %3170 = vadd.xlane.f32.xlu0 %v3149
      %v3171 = vpop.xlane.xlu0 %3170
      %3172 = vadd.xlane.f32.xlu0 %v3150
      %v3173 = vpop.xlane.xlu0 %3172
      %3174 = vadd.xlane.f32.xlu0 %v3151
      %v3175 = vpop.xlane.xlu0 %3174
      %3176 = vadd.xlane.f32.xlu0 %v3152
      %v3177 = vpop.xlane.xlu0 %3176
      %3178 = vadd.xlane.f32.xlu0 %v3153
      %v3179 = vpop.xlane.xlu0 %3178
      %3180 = vadd.xlane.f32.xlu0 %v3154
      %v3181 = vpop.xlane.xlu0 %3180
      %3182 = vadd.xlane.f32.xlu0 %v3155
      %v3183 = vpop.xlane.xlu0 %3182
      %3184 = vadd.xlane.f32.xlu0 %v3156
      %v3185 = vpop.xlane.xlu0 %3184
      %3186 = vadd.xlane.f32.xlu0 %v3157
      %v3187 = vpop.xlane.xlu0 %3186
      %3188 = vadd.xlane.f32.xlu0 %v3158
      %v3189 = vpop.xlane.xlu0 %3188
      %3190 = vadd.xlane.f32.xlu0 %v3159
      %v3191 = vpop.xlane.xlu0 %3190
      %v3192 = vrcp.pop %v3161
      %v3193 = vrcp.pop %v3163
      %v3194 = vrcp.pop %v3165
      %v3195 = vrcp.pop %v3167
      %v3196 = vrcp.pop %v3169
      %v3197 = vrcp.pop %v3171
      %v3198 = vrcp.pop %v3173
      %v3199 = vrcp.pop %v3175
      %v3200 = vrcp.pop %v3177
      %v3201 = vrcp.pop %v3179
      %v3202 = vrcp.pop %v3181
      %v3203 = vrcp.pop %v3183
      %v3204 = vrcp.pop %v3185
      %v3205 = vrcp.pop %v3187
      %v3206 = vrcp.pop %v3189
      %v3207 = vrcp.pop %v3191
      %v3208 = vmul.f32 %v3144, %v3192
      %v3209 = vmul.f32 %v3145, %v3193
      %v3210 = vmul.f32 %v3146, %v3194
      %v3211 = vmul.f32 %v3147, %v3195
      %v3212 = vmul.f32 %v3148, %v3196
      %v3213 = vmul.f32 %v3149, %v3197
      %v3214 = vmul.f32 %v3150, %v3198
      %v3215 = vmul.f32 %v3151, %v3199
      %v3216 = vmul.f32 %v3152, %v3200
      %v3217 = vmul.f32 %v3153, %v3201
      %v3218 = vmul.f32 %v3154, %v3202
      %v3219 = vmul.f32 %v3155, %v3203
      %v3220 = vmul.f32 %v3156, %v3204
      %v3221 = vmul.f32 %v3157, %v3205
      %v3222 = vmul.f32 %v3158, %v3206
      %v3223 = vmul.f32 %v3159, %v3207
      %v3224 = vpack.c.bf16 %v3209, %v3208
      %v3225 = vpack.c.bf16 %v3211, %v3210
      %v3226 = vpack.c.bf16 %v3213, %v3212
      %v3227 = vpack.c.bf16 %v3215, %v3214
      %v3228 = vpack.c.bf16 %v3217, %v3216
      %v3229 = vpack.c.bf16 %v3219, %v3218
      %v3230 = vpack.c.bf16 %v3221, %v3220
      %v3231 = vpack.c.bf16 %v3223, %v3222
      %3240 = vrot.lane.b32.xlu0 %v2855, 104
      %v3241 = vpop.permute.xlu0 %3240
      %3242 = vrot.lane.b32.xlu0 %v2856, 104
      %v3243 = vpop.permute.xlu0 %3242
      %3244 = vrot.lane.b32.xlu0 %v2857, 104
      %v3245 = vpop.permute.xlu0 %3244
      %3246 = vrot.lane.b32.xlu0 %v2858, 104
      %v3247 = vpop.permute.xlu0 %3246
      %3248 = vrot.lane.b32.xlu0 %v2859, 104
      %v3249 = vpop.permute.xlu0 %3248
      %3250 = vrot.lane.b32.xlu0 %v2860, 104
      %v3251 = vpop.permute.xlu0 %3250
      %3252 = vrot.lane.b32.xlu0 %v2861, 104
      %v3253 = vpop.permute.xlu0 %3252
      %3254 = vrot.lane.b32.xlu0 %v2862, 104
      %v3255 = vpop.permute.xlu0 %3254
      %3264 = vmatprep.subr.bf16.mxu0 0
      %3265 = vmatpush1.bf16.msra.mxu0 %v3241
      %3266 = vmatprep.subr.bf16.mxu0 0
      %3267 = vmatpush1.bf16.msra.mxu0 %v3243
      %3268 = vmatprep.subr.bf16.mxu0 0
      %3269 = vmatpush1.bf16.msra.mxu0 %v3245
      %3270 = vmatprep.subr.bf16.mxu0 0
      %3271 = vmatpush1.bf16.msra.mxu0 %v3247
      %3272 = vmatprep.subr.bf16.mxu0 0
      %3273 = vmatpush1.bf16.msra.mxu0 %v3249
      %3274 = vmatprep.subr.bf16.mxu0 0
      %3275 = vmatpush1.bf16.msra.mxu0 %v3251
      %3276 = vmatprep.subr.bf16.mxu0 0
      %3277 = vmatpush1.bf16.msra.mxu0 %v3253
      %3278 = vmatprep.subr.bf16.mxu0 0
      %3279 = vmatpush1.bf16.msra.mxu0 %v3255
      %3280 = vmatprep.subr.bf16.mxu0 0
      %3281 = vmatpush1.bf16.msra.mxu0 0
      %3282 = vmatprep.subr.bf16.mxu0 0
      %3283 = vmatpush1.bf16.msra.mxu0 0
      %3284 = vmatprep.subr.bf16.mxu0 0
      %3285 = vmatpush1.bf16.msra.mxu0 0
      %3286 = vmatprep.subr.bf16.mxu0 0
      %3287 = vmatpush1.bf16.msra.mxu0 0
      %3288 = vmatprep.subr.bf16.mxu0 0
      %3289 = vmatpush1.bf16.msra.mxu0 0
      %3290 = vmatprep.subr.bf16.mxu0 0
      %3291 = vmatpush1.bf16.msra.mxu0 0
      %3292 = vmatprep.subr.bf16.mxu0 0
      %3293 = vmatpush1.bf16.msra.mxu0 0
      %3294 = vmatprep.subr.bf16.mxu0 0
      %3295 = vmatpush1.bf16.msra.mxu0 0
      %3296 = vmatprep.mubr.bf16.mxu0 0
      %3297 = vmatmul.mubr.bf16.gmra.mrb[0].mxu0 %v3224
      %v3298 = vpop.f32.mrb[0].mxu0
      %v3299 = vadd.f32 0.0, %v3298
      %v3300 = vpop.f32.mrb[0].mxu0
      %v3301 = vpop.f32.mrb[0].mxu0
      %v3302 = vadd.f32 0.0, %v3301
      %v3303 = vpop.f32.mrb[0].mxu0
      %3304 = vmatprep.mubr.bf16.mxu0 0
      %3305 = vmatmul.mubr.bf16.gmra.mrb[0].mxu0 %v3225
      %v3306 = vpop.f32.mrb[0].mxu0
      %v3307 = vadd.f32 0.0, %v3306
      %v3308 = vpop.f32.mrb[0].mxu0
      %v3309 = vpop.f32.mrb[0].mxu0
      %v3310 = vadd.f32 0.0, %v3309
      %v3311 = vpop.f32.mrb[0].mxu0
      %3312 = vmatprep.mubr.bf16.mxu0 0
      %3313 = vmatmul.mubr.bf16.gmra.mrb[0].mxu0 %v3226
      %v3314 = vpop.f32.mrb[0].mxu0
      %v3315 = vadd.f32 0.0, %v3314
      %v3316 = vpop.f32.mrb[0].mxu0
      %v3317 = vpop.f32.mrb[0].mxu0
      %v3318 = vadd.f32 0.0, %v3317
      %v3319 = vpop.f32.mrb[0].mxu0
      %3320 = vmatprep.mubr.bf16.mxu0 0
      %3321 = vmatmul.mubr.bf16.gmra.mrb[0].mxu0 %v3227
      %v3322 = vpop.f32.mrb[0].mxu0
      %v3323 = vadd.f32 0.0, %v3322
      %v3324 = vpop.f32.mrb[0].mxu0
      %v3325 = vpop.f32.mrb[0].mxu0
      %v3326 = vadd.f32 0.0, %v3325
      %v3327 = vpop.f32.mrb[0].mxu0
      %3328 = vmatprep.mubr.bf16.mxu0 0
      %3329 = vmatmul.mubr.bf16.gmra.mrb[0].mxu0 %v3228
      %v3330 = vpop.f32.mrb[0].mxu0
      %v3331 = vadd.f32 0.0, %v3330
      %v3332 = vpop.f32.mrb[0].mxu0
      %v3333 = vpop.f32.mrb[0].mxu0
      %v3334 = vadd.f32 0.0, %v3333
      %v3335 = vpop.f32.mrb[0].mxu0
      %3336 = vmatprep.mubr.bf16.mxu0 0
      %3337 = vmatmul.mubr.bf16.gmra.mrb[0].mxu0 %v3229
      %v3338 = vpop.f32.mrb[0].mxu0
      %v3339 = vadd.f32 0.0, %v3338
      %v3340 = vpop.f32.mrb[0].mxu0
      %v3341 = vpop.f32.mrb[0].mxu0
      %v3342 = vadd.f32 0.0, %v3341
      %v3343 = vpop.f32.mrb[0].mxu0
      %3344 = vmatprep.mubr.bf16.mxu0 0
      %3345 = vmatmul.mubr.bf16.gmra.mrb[0].mxu0 %v3230
      %v3346 = vpop.f32.mrb[0].mxu0
      %v3347 = vadd.f32 0.0, %v3346
      %v3348 = vpop.f32.mrb[0].mxu0
      %v3349 = vpop.f32.mrb[0].mxu0
      %v3350 = vadd.f32 0.0, %v3349
      %v3351 = vpop.f32.mrb[0].mxu0
      %3352 = vmatprep.mubr.bf16.mxu0 0
      %3353 = vmatmul.mubr.bf16.gmra.mrb[0].mxu0 %v3231
      %v3354 = vpop.f32.mrb[0].mxu0
      %v3355 = vadd.f32 0.0, %v3354
      %v3356 = vpop.f32.mrb[0].mxu0
      %v3357 = vpop.f32.mrb[0].mxu0
      %v3358 = vadd.f32 0.0, %v3357
      %v3359 = vpop.f32.mrb[0].mxu0
      %3360 = vdwg.mxu0
      %3377 = vrot.lane.b32.xlu0 %v3299, 24
      %v3378 = vpop.permute.xlu0 %3377
      %3379 = vrot.lane.b32.xlu0 %v3302, 24
      %v3380 = vpop.permute.xlu0 %3379
      %3381 = vrot.lane.b32.xlu0 %v3307, 24
      %v3382 = vpop.permute.xlu0 %3381
      %3383 = vrot.lane.b32.xlu0 %v3310, 24
      %v3384 = vpop.permute.xlu0 %3383
      %3385 = vrot.lane.b32.xlu0 %v3315, 24
      %v3386 = vpop.permute.xlu0 %3385
      %3387 = vrot.lane.b32.xlu0 %v3318, 24
      %v3388 = vpop.permute.xlu0 %3387
      %3389 = vrot.lane.b32.xlu0 %v3323, 24
      %v3390 = vpop.permute.xlu0 %3389
      %3391 = vrot.lane.b32.xlu0 %v3326, 24
      %v3392 = vpop.permute.xlu0 %3391
      %3393 = vrot.lane.b32.xlu0 %v3331, 24
      %v3394 = vpop.permute.xlu0 %3393
      %3395 = vrot.lane.b32.xlu0 %v3334, 24
      %v3396 = vpop.permute.xlu0 %3395
      %3397 = vrot.lane.b32.xlu0 %v3339, 24
      %v3398 = vpop.permute.xlu0 %3397
      %3399 = vrot.lane.b32.xlu0 %v3342, 24
      %v3400 = vpop.permute.xlu0 %3399
      %3401 = vrot.lane.b32.xlu0 %v3347, 24
      %v3402 = vpop.permute.xlu0 %3401
      %3403 = vrot.lane.b32.xlu0 %v3350, 24
      %v3404 = vpop.permute.xlu0 %3403
      %3405 = vrot.lane.b32.xlu0 %v3355, 24
      %v3406 = vpop.permute.xlu0 %3405
      %3407 = vrot.lane.b32.xlu0 %v3358, 24
      %v3408 = vpop.permute.xlu0 %3407
      %vm3425 = vcmask 261312
      %3426 = vst.msk [vmem:[#allocation4] sm:$0xff] %vm3425, %v3378
      %3427 = vst.msk [vmem:[#allocation4 + $0x8] sm:$0xff] %vm3425, %v3380
      %3428 = vst.msk [vmem:[#allocation4 + $0x10] sm:$0xff] %vm3425, %v3382
      %3429 = vst.msk [vmem:[#allocation4 + $0x18] sm:$0xff] %vm3425, %v3384
      %3430 = vst.msk [vmem:[#allocation4 + $0x20] sm:$0xff] %vm3425, %v3386
      %3431 = vst.msk [vmem:[#allocation4 + $0x28] sm:$0xff] %vm3425, %v3388
      %3432 = vst.msk [vmem:[#allocation4 + $0x30] sm:$0xff] %vm3425, %v3390
      %3433 = vst.msk [vmem:[#allocation4 + $0x38] sm:$0xff] %vm3425, %v3392
      %3434 = vst.msk [vmem:[#allocation4 + $0x40] sm:$0xff] %vm3425, %v3394
      %3435 = vst.msk [vmem:[#allocation4 + $0x48] sm:$0xff] %vm3425, %v3396
      %3436 = vst.msk [vmem:[#allocation4 + $0x50] sm:$0xff] %vm3425, %v3398
      %3437 = vst.msk [vmem:[#allocation4 + $0x58] sm:$0xff] %vm3425, %v3400
      %3438 = vst.msk [vmem:[#allocation4 + $0x60] sm:$0xff] %vm3425, %v3402
      %3439 = vst.msk [vmem:[#allocation4 + $0x68] sm:$0xff] %vm3425, %v3404
      %3440 = vst.msk [vmem:[#allocation4 + $0x70] sm:$0xff] %vm3425, %v3406
      %3441 = vst.msk [vmem:[#allocation4 + $0x78] sm:$0xff] %vm3425, %v3408
      %v3442 = vld [vmem:[#allocation4] sm:$0xff]
      %v3443 = vld [vmem:[#allocation4 + $0x8] sm:$0xff]
      %v3444 = vld [vmem:[#allocation4 + $0x10] sm:$0xff]
      %v3445 = vld [vmem:[#allocation4 + $0x18] sm:$0xff]
      %v3446 = vld [vmem:[#allocation4 + $0x20] sm:$0xff]
      %v3447 = vld [vmem:[#allocation4 + $0x28] sm:$0xff]
      %v3448 = vld [vmem:[#allocation4 + $0x30] sm:$0xff]
      %v3449 = vld [vmem:[#allocation4 + $0x38] sm:$0xff]
      %v3450 = vld [vmem:[#allocation4 + $0x40] sm:$0xff]
      %v3451 = vld [vmem:[#allocation4 + $0x48] sm:$0xff]
      %v3452 = vld [vmem:[#allocation4 + $0x50] sm:$0xff]
      %v3453 = vld [vmem:[#allocation4 + $0x58] sm:$0xff]
      %v3454 = vld [vmem:[#allocation4 + $0x60] sm:$0xff]
      %v3455 = vld [vmem:[#allocation4 + $0x68] sm:$0xff]
      %v3456 = vld [vmem:[#allocation4 + $0x70] sm:$0xff]
      %v3457 = vld [vmem:[#allocation4 + $0x78] sm:$0xff]
      %v3458 = vpack.c.bf16 %v3443, %v3442
      %v3459 = vpack.c.bf16 %v3445, %v3444
      %v3460 = vpack.c.bf16 %v3447, %v3446
      %v3461 = vpack.c.bf16 %v3449, %v3448
      %v3462 = vpack.c.bf16 %v3451, %v3450
      %v3463 = vpack.c.bf16 %v3453, %v3452
      %v3464 = vpack.c.bf16 %v3455, %v3454
      %v3465 = vpack.c.bf16 %v3457, %v3456
      %v3466 = vld [vmem:[%s6] sm:$0xf]
      %v3467 = vld [vmem:[%s6 + $0x4] sm:$0xf]
      %v3468 = vld [vmem:[%s6 + $0x8] sm:$0xf]
      %v3469 = vld [vmem:[%s6 + $0xc] sm:$0xf]
      %v3470 = vld [vmem:[%s7] sm:$0x1]
      %v3472 = vlaneseq
      %v3473 = vshrl.u32 %v3472, 7
      %v3474 = vsub.s32 0, %v3473
      %v3475 = vrot.slane %v3470, %v3474
      %v3481 = vunpack.c.l.b16 %v3466
      %v3482 = vunpack.c.l.b16 %v3467
      %v3483 = vunpack.c.l.b16 %v3468
      %v3484 = vunpack.c.l.b16 %v3469
      %v3485 = vpack.c.b16 %v3482, %v3481
      %v3486 = vpack.c.b16 %v3484, %v3483
      %v3490 = vsel %vm921, %v3458, 0
      %v3493 = vsel %vm921, %v3459, 0
      %v3496 = vsel %vm921, %v3460, 0
      %v3499 = vsel %vm921, %v3461, 0
      %v3502 = vsel %vm921, %v3462, 0
      %v3505 = vsel %vm921, %v3463, 0
      %v3508 = vsel %vm921, %v3464, 0
      %v3511 = vsel %vm921, %v3465, 0
      %3513 = vmatprep.subr.bf16.mxu0 0
      %3514 = vmatpush1.bf16.msra.mxu0 %v3485
      %3515 = vmatprep.subr.bf16.mxu0 0
      %3516 = vmatpush1.bf16.msra.mxu0 %v3486
      %3517 = vmatprep.subr.bf16.mxu0 0
      %3518 = vmatpush1.bf16.msra.mxu0 0
      %3519 = vmatprep.subr.bf16.mxu0 0
      %3520 = vmatpush1.bf16.msra.mxu0 0
      %3521 = vmatprep.subr.bf16.mxu0 0
      %3522 = vmatpush1.bf16.msra.mxu0 0
      %3523 = vmatprep.subr.bf16.mxu0 0
      %3524 = vmatpush1.bf16.msra.mxu0 0
      %3525 = vmatprep.subr.bf16.mxu0 0
      %3526 = vmatpush1.bf16.msra.mxu0 0
      %3527 = vmatprep.subr.bf16.mxu0 0
      %3528 = vmatpush1.bf16.msra.mxu0 0
      %3529 = vmatprep.subr.bf16.mxu0 0
      %3530 = vmatpush1.bf16.msra.mxu0 0
      %3531 = vmatprep.subr.bf16.mxu0 0
      %3532 = vmatpush1.bf16.msra.mxu0 0
      %3533 = vmatprep.subr.bf16.mxu0 0
      %3534 = vmatpush1.bf16.msra.mxu0 0
      %3535 = vmatprep.subr.bf16.mxu0 0
      %3536 = vmatpush1.bf16.msra.mxu0 0
      %3537 = vmatprep.subr.bf16.mxu0 0
      %3538 = vmatpush1.bf16.msra.mxu0 0
      %3539 = vmatprep.subr.bf16.mxu0 0
      %3540 = vmatpush1.bf16.msra.mxu0 0
      %3541 = vmatprep.subr.bf16.mxu0 0
      %3542 = vmatpush1.bf16.msra.mxu0 0
      %3543 = vmatprep.subr.bf16.mxu0 0
      %3544 = vmatpush1.bf16.msra.mxu0 0
      %3545 = vmatprep.mubr.bf16.mxu0 0
      %3546 = vmatmul.mubr.bf16.gmra.mrb[0].mxu0 %v3490
      %v3547 = vpop.f32.mrb[0].mxu0
      %v3548 = vadd.f32 %v3475, %v3547
      %v3549 = vpop.f32.mrb[0].mxu0
      %v3550 = vpop.f32.mrb[0].mxu0
      %v3551 = vadd.f32 %v3475, %v3550
      %v3552 = vpop.f32.mrb[0].mxu0
      %3553 = vmatprep.mubr.bf16.mxu0 0
      %3554 = vmatmul.mubr.bf16.gmra.mrb[0].mxu0 %v3493
      %v3555 = vpop.f32.mrb[0].mxu0
      %v3556 = vadd.f32 %v3475, %v3555
      %v3557 = vpop.f32.mrb[0].mxu0
      %v3558 = vpop.f32.mrb[0].mxu0
      %v3559 = vadd.f32 %v3475, %v3558
      %v3560 = vpop.f32.mrb[0].mxu0
      %3561 = vmatprep.mubr.bf16.mxu0 0
      %3562 = vmatmul.mubr.bf16.gmra.mrb[0].mxu0 %v3496
      %v3563 = vpop.f32.mrb[0].mxu0
      %v3564 = vadd.f32 %v3475, %v3563
      %v3565 = vpop.f32.mrb[0].mxu0
      %v3566 = vpop.f32.mrb[0].mxu0
      %v3567 = vadd.f32 %v3475, %v3566
      %v3568 = vpop.f32.mrb[0].mxu0
      %3569 = vmatprep.mubr.bf16.mxu0 0
      %3570 = vmatmul.mubr.bf16.gmra.mrb[0].mxu0 %v3499
      %v3571 = vpop.f32.mrb[0].mxu0
      %v3572 = vadd.f32 %v3475, %v3571
      %v3573 = vpop.f32.mrb[0].mxu0
      %v3574 = vpop.f32.mrb[0].mxu0
      %v3575 = vadd.f32 %v3475, %v3574
      %v3576 = vpop.f32.mrb[0].mxu0
      %3577 = vmatprep.mubr.bf16.mxu0 0
      %3578 = vmatmul.mubr.bf16.gmra.mrb[0].mxu0 %v3502
      %v3579 = vpop.f32.mrb[0].mxu0
      %v3580 = vadd.f32 %v3475, %v3579
      %v3581 = vpop.f32.mrb[0].mxu0
      %v3582 = vpop.f32.mrb[0].mxu0
      %v3583 = vadd.f32 %v3475, %v3582
      %v3584 = vpop.f32.mrb[0].mxu0
      %3585 = vmatprep.mubr.bf16.mxu0 0
      %3586 = vmatmul.mubr.bf16.gmra.mrb[0].mxu0 %v3505
      %v3587 = vpop.f32.mrb[0].mxu0
      %v3588 = vadd.f32 %v3475, %v3587
      %v3589 = vpop.f32.mrb[0].mxu0
      %v3590 = vpop.f32.mrb[0].mxu0
      %v3591 = vadd.f32 %v3475, %v3590
      %v3592 = vpop.f32.mrb[0].mxu0
      %3593 = vmatprep.mubr.bf16.mxu0 0
      %3594 = vmatmul.mubr.bf16.gmra.mrb[0].mxu0 %v3508
      %v3595 = vpop.f32.mrb[0].mxu0
      %v3596 = vadd.f32 %v3475, %v3595
      %v3597 = vpop.f32.mrb[0].mxu0
      %v3598 = vpop.f32.mrb[0].mxu0
      %v3599 = vadd.f32 %v3475, %v3598
      %v3600 = vpop.f32.mrb[0].mxu0
      %3601 = vmatprep.mubr.bf16.mxu0 0
      %3602 = vmatmul.mubr.bf16.gmra.mrb[0].mxu0 %v3511
      %v3603 = vpop.f32.mrb[0].mxu0
      %v3604 = vadd.f32 %v3475, %v3603
      %v3605 = vpop.f32.mrb[0].mxu0
      %v3606 = vpop.f32.mrb[0].mxu0
      %v3607 = vadd.f32 %v3475, %v3606
      %v3608 = vpop.f32.mrb[0].mxu0
      %3609 = vdwg.mxu0
      %v3610 = vadd.f32 %v842, %v3548
      %v3611 = vadd.f32 %v843, %v3551
      %v3612 = vadd.f32 %v844, %v3556
      %v3613 = vadd.f32 %v845, %v3559
      %v3614 = vadd.f32 %v846, %v3564
      %v3615 = vadd.f32 %v847, %v3567
      %v3616 = vadd.f32 %v848, %v3572
      %v3617 = vadd.f32 %v849, %v3575
      %v3618 = vadd.f32 %v850, %v3580
      %v3619 = vadd.f32 %v851, %v3583
      %v3620 = vadd.f32 %v852, %v3588
      %v3621 = vadd.f32 %v853, %v3591
      %v3622 = vadd.f32 %v854, %v3596
      %v3623 = vadd.f32 %v855, %v3599
      %v3624 = vadd.f32 %v856, %v3604
      %v3625 = vadd.f32 %v857, %v3607
      %v3626 = vld [vmem:[%s8] sm:$0x1]
      %v3627 = vld [vmem:[%s9] sm:$0x1]
      %v3628 = vsel %vm921, %v3610, 0.0
      %3629 = vadd.xlane.f32.xlu0 %v3628
      %v3630 = vpop.xlane.xlu0 %3629
      %v3631 = vsel %vm921, %v3611, 0.0
      %3632 = vadd.xlane.f32.xlu0 %v3631
      %v3633 = vpop.xlane.xlu0 %3632
      %v3634 = vsel %vm921, %v3612, 0.0
      %3635 = vadd.xlane.f32.xlu0 %v3634
      %v3636 = vpop.xlane.xlu0 %3635
      %v3637 = vsel %vm921, %v3613, 0.0
      %3638 = vadd.xlane.f32.xlu0 %v3637
      %v3639 = vpop.xlane.xlu0 %3638
      %v3640 = vsel %vm921, %v3614, 0.0
      %3641 = vadd.xlane.f32.xlu0 %v3640
      %v3642 = vpop.xlane.xlu0 %3641
      %v3643 = vsel %vm921, %v3615, 0.0
      %3644 = vadd.xlane.f32.xlu0 %v3643
      %v3645 = vpop.xlane.xlu0 %3644
      %v3646 = vsel %vm921, %v3616, 0.0
      %3647 = vadd.xlane.f32.xlu0 %v3646
      %v3648 = vpop.xlane.xlu0 %3647
      %v3649 = vsel %vm921, %v3617, 0.0
      %3650 = vadd.xlane.f32.xlu0 %v3649
      %v3651 = vpop.xlane.xlu0 %3650
      %v3652 = vsel %vm921, %v3618, 0.0
      %3653 = vadd.xlane.f32.xlu0 %v3652
      %v3654 = vpop.xlane.xlu0 %3653
      %v3655 = vsel %vm921, %v3619, 0.0
      %3656 = vadd.xlane.f32.xlu0 %v3655
      %v3657 = vpop.xlane.xlu0 %3656
      %v3658 = vsel %vm921, %v3620, 0.0
      %3659 = vadd.xlane.f32.xlu0 %v3658
      %v3660 = vpop.xlane.xlu0 %3659
      %v3661 = vsel %vm921, %v3621, 0.0
      %3662 = vadd.xlane.f32.xlu0 %v3661
      %v3663 = vpop.xlane.xlu0 %3662
      %v3664 = vsel %vm921, %v3622, 0.0
      %3665 = vadd.xlane.f32.xlu0 %v3664
      %v3666 = vpop.xlane.xlu0 %3665
      %v3667 = vsel %vm921, %v3623, 0.0
      %3668 = vadd.xlane.f32.xlu0 %v3667
      %v3669 = vpop.xlane.xlu0 %3668
      %v3670 = vsel %vm921, %v3624, 0.0
      %3671 = vadd.xlane.f32.xlu0 %v3670
      %v3672 = vpop.xlane.xlu0 %3671
      %v3673 = vsel %vm921, %v3625, 0.0
      %3674 = vadd.xlane.f32.xlu0 %v3673
      %v3675 = vpop.xlane.xlu0 %3674
      %v3676 = vrcp.pop 32.0
      %v3677 = vmul.f32 %v3630, %v3676
      %v3678 = vmul.f32 %v3633, %v3676
      %v3679 = vmul.f32 %v3636, %v3676
      %v3680 = vmul.f32 %v3639, %v3676
      %v3681 = vmul.f32 %v3642, %v3676
      %v3682 = vmul.f32 %v3645, %v3676
      %v3683 = vmul.f32 %v3648, %v3676
      %v3684 = vmul.f32 %v3651, %v3676
      %v3685 = vmul.f32 %v3654, %v3676
      %v3686 = vmul.f32 %v3657, %v3676
      %v3687 = vmul.f32 %v3660, %v3676
      %v3688 = vmul.f32 %v3663, %v3676
      %v3689 = vmul.f32 %v3666, %v3676
      %v3690 = vmul.f32 %v3669, %v3676
      %v3691 = vmul.f32 %v3672, %v3676
      %v3692 = vmul.f32 %v3675, %v3676
      %v3693 = vsub.f32 %v3610, %v3677
      %v3694 = vsub.f32 %v3611, %v3678
      %v3695 = vsub.f32 %v3612, %v3679
      %v3696 = vsub.f32 %v3613, %v3680
      %v3697 = vsub.f32 %v3614, %v3681
      %v3698 = vsub.f32 %v3615, %v3682
      %v3699 = vsub.f32 %v3616, %v3683
      %v3700 = vsub.f32 %v3617, %v3684
      %v3701 = vsub.f32 %v3618, %v3685
      %v3702 = vsub.f32 %v3619, %v3686
      %v3703 = vsub.f32 %v3620, %v3687
      %v3704 = vsub.f32 %v3621, %v3688
      %v3705 = vsub.f32 %v3622, %v3689
      %v3706 = vsub.f32 %v3623, %v3690
      %v3707 = vsub.f32 %v3624, %v3691
      %v3708 = vsub.f32 %v3625, %v3692
      %v3709 = vmul.f32 %v3693, %v3693
      %v3710 = vmul.f32 %v3694, %v3694
      %v3711 = vmul.f32 %v3695, %v3695
      %v3712 = vmul.f32 %v3696, %v3696
      %v3713 = vmul.f32 %v3697, %v3697
      %v3714 = vmul.f32 %v3698, %v3698
      %v3715 = vmul.f32 %v3699, %v3699
      %v3716 = vmul.f32 %v3700, %v3700
      %v3717 = vmul.f32 %v3701, %v3701
      %v3718 = vmul.f32 %v3702, %v3702
      %v3719 = vmul.f32 %v3703, %v3703
      %v3720 = vmul.f32 %v3704, %v3704
      %v3721 = vmul.f32 %v3705, %v3705
      %v3722 = vmul.f32 %v3706, %v3706
      %v3723 = vmul.f32 %v3707, %v3707
      %v3724 = vmul.f32 %v3708, %v3708
      %v3725 = vsel %vm921, %v3709, 0.0
      %3726 = vadd.xlane.f32.xlu0 %v3725
      %v3727 = vpop.xlane.xlu0 %3726
      %v3728 = vsel %vm921, %v3710, 0.0
      %3729 = vadd.xlane.f32.xlu0 %v3728
      %v3730 = vpop.xlane.xlu0 %3729
      %v3731 = vsel %vm921, %v3711, 0.0
      %3732 = vadd.xlane.f32.xlu0 %v3731
      %v3733 = vpop.xlane.xlu0 %3732
      %v3734 = vsel %vm921, %v3712, 0.0
      %3735 = vadd.xlane.f32.xlu0 %v3734
      %v3736 = vpop.xlane.xlu0 %3735
      %v3737 = vsel %vm921, %v3713, 0.0
      %3738 = vadd.xlane.f32.xlu0 %v3737
      %v3739 = vpop.xlane.xlu0 %3738
      %v3740 = vsel %vm921, %v3714, 0.0
      %3741 = vadd.xlane.f32.xlu0 %v3740
      %v3742 = vpop.xlane.xlu0 %3741
      %v3743 = vsel %vm921, %v3715, 0.0
      %3744 = vadd.xlane.f32.xlu0 %v3743
      %v3745 = vpop.xlane.xlu0 %3744
      %v3746 = vsel %vm921, %v3716, 0.0
      %3747 = vadd.xlane.f32.xlu0 %v3746
      %v3748 = vpop.xlane.xlu0 %3747
      %v3749 = vsel %vm921, %v3717, 0.0
      %3750 = vadd.xlane.f32.xlu0 %v3749
      %v3751 = vpop.xlane.xlu0 %3750
      %v3752 = vsel %vm921, %v3718, 0.0
      %3753 = vadd.xlane.f32.xlu0 %v3752
      %v3754 = vpop.xlane.xlu0 %3753
      %v3755 = vsel %vm921, %v3719, 0.0
      %3756 = vadd.xlane.f32.xlu0 %v3755
      %v3757 = vpop.xlane.xlu0 %3756
      %v3758 = vsel %vm921, %v3720, 0.0
      %3759 = vadd.xlane.f32.xlu0 %v3758
      %v3760 = vpop.xlane.xlu0 %3759
      %v3761 = vsel %vm921, %v3721, 0.0
      %3762 = vadd.xlane.f32.xlu0 %v3761
      %v3763 = vpop.xlane.xlu0 %3762
      %v3764 = vsel %vm921, %v3722, 0.0
      %3765 = vadd.xlane.f32.xlu0 %v3764
      %v3766 = vpop.xlane.xlu0 %3765
      %v3767 = vsel %vm921, %v3723, 0.0
      %3768 = vadd.xlane.f32.xlu0 %v3767
      %v3769 = vpop.xlane.xlu0 %3768
      %v3770 = vsel %vm921, %v3724, 0.0
      %3771 = vadd.xlane.f32.xlu0 %v3770
      %v3772 = vpop.xlane.xlu0 %3771
      %v3773 = vmul.f32 %v3727, %v3676
      %v3774 = vmul.f32 %v3730, %v3676
      %v3775 = vmul.f32 %v3733, %v3676
      %v3776 = vmul.f32 %v3736, %v3676
      %v3777 = vmul.f32 %v3739, %v3676
      %v3778 = vmul.f32 %v3742, %v3676
      %v3779 = vmul.f32 %v3745, %v3676
      %v3780 = vmul.f32 %v3748, %v3676
      %v3781 = vmul.f32 %v3751, %v3676
      %v3782 = vmul.f32 %v3754, %v3676
      %v3783 = vmul.f32 %v3757, %v3676
      %v3784 = vmul.f32 %v3760, %v3676
      %v3785 = vmul.f32 %v3763, %v3676
      %v3786 = vmul.f32 %v3766, %v3676
      %v3787 = vmul.f32 %v3769, %v3676
      %v3788 = vmul.f32 %v3772, %v3676
      %v3789 = vadd.f32 %v3773, 1e-12
      %v3790 = vadd.f32 %v3774, 1e-12
      %v3791 = vadd.f32 %v3775, 1e-12
      %v3792 = vadd.f32 %v3776, 1e-12
      %v3793 = vadd.f32 %v3777, 1e-12
      %v3794 = vadd.f32 %v3778, 1e-12
      %v3795 = vadd.f32 %v3779, 1e-12
      %v3796 = vadd.f32 %v3780, 1e-12
      %v3797 = vadd.f32 %v3781, 1e-12
      %v3798 = vadd.f32 %v3782, 1e-12
      %v3799 = vadd.f32 %v3783, 1e-12
      %v3800 = vadd.f32 %v3784, 1e-12
      %v3801 = vadd.f32 %v3785, 1e-12
      %v3802 = vadd.f32 %v3786, 1e-12
      %v3803 = vadd.f32 %v3787, 1e-12
      %v3804 = vadd.f32 %v3788, 1e-12
      %v3805 = vrsqrt.pop %v3789
      %v3806 = vrsqrt.pop %v3790
      %v3807 = vrsqrt.pop %v3791
      %v3808 = vrsqrt.pop %v3792
      %v3809 = vrsqrt.pop %v3793
      %v3810 = vrsqrt.pop %v3794
      %v3811 = vrsqrt.pop %v3795
      %v3812 = vrsqrt.pop %v3796
      %v3813 = vrsqrt.pop %v3797
      %v3814 = vrsqrt.pop %v3798
      %v3815 = vrsqrt.pop %v3799
      %v3816 = vrsqrt.pop %v3800
      %v3817 = vrsqrt.pop %v3801
      %v3818 = vrsqrt.pop %v3802
      %v3819 = vrsqrt.pop %v3803
      %v3820 = vrsqrt.pop %v3804
      %v3821 = vmul.f32 %v3693, %v3805
      %v3822 = vmul.f32 %v3694, %v3806
      %v3823 = vmul.f32 %v3695, %v3807
      %v3824 = vmul.f32 %v3696, %v3808
      %v3825 = vmul.f32 %v3697, %v3809
      %v3826 = vmul.f32 %v3698, %v3810
      %v3827 = vmul.f32 %v3699, %v3811
      %v3828 = vmul.f32 %v3700, %v3812
      %v3829 = vmul.f32 %v3701, %v3813
      %v3830 = vmul.f32 %v3702, %v3814
      %v3831 = vmul.f32 %v3703, %v3815
      %v3832 = vmul.f32 %v3704, %v3816
      %v3833 = vmul.f32 %v3705, %v3817
      %v3834 = vmul.f32 %v3706, %v3818
      %v3835 = vmul.f32 %v3707, %v3819
      %v3836 = vmul.f32 %v3708, %v3820
      %v3838 = vlaneseq
      %v3839 = vshrl.u32 %v3838, 7
      %v3840 = vsub.s32 0, %v3839
      %v3841 = vrot.slane %v3626, %v3840
      %v3843 = vmul.f32 %v3821, %v3841
      %v3844 = vmul.f32 %v3822, %v3841
      %v3845 = vmul.f32 %v3823, %v3841
      %v3846 = vmul.f32 %v3824, %v3841
      %v3847 = vmul.f32 %v3825, %v3841
      %v3848 = vmul.f32 %v3826, %v3841
      %v3849 = vmul.f32 %v3827, %v3841
      %v3850 = vmul.f32 %v3828, %v3841
      %v3851 = vmul.f32 %v3829, %v3841
      %v3852 = vmul.f32 %v3830, %v3841
      %v3853 = vmul.f32 %v3831, %v3841
      %v3854 = vmul.f32 %v3832, %v3841
      %v3855 = vmul.f32 %v3833, %v3841
      %v3856 = vmul.f32 %v3834, %v3841
      %v3857 = vmul.f32 %v3835, %v3841
      %v3858 = vmul.f32 %v3836, %v3841
      %v3860 = vlaneseq
      %v3861 = vshrl.u32 %v3860, 7
      %v3862 = vsub.s32 0, %v3861
      %v3863 = vrot.slane %v3627, %v3862
      %v3865 = vadd.f32 %v3843, %v3863
      %v3866 = vadd.f32 %v3844, %v3863
      %v3867 = vadd.f32 %v3845, %v3863
      %v3868 = vadd.f32 %v3846, %v3863
      %v3869 = vadd.f32 %v3847, %v3863
      %v3870 = vadd.f32 %v3848, %v3863
      %v3871 = vadd.f32 %v3849, %v3863
      %v3872 = vadd.f32 %v3850, %v3863
      %v3873 = vadd.f32 %v3851, %v3863
      %v3874 = vadd.f32 %v3852, %v3863
      %v3875 = vadd.f32 %v3853, %v3863
      %v3876 = vadd.f32 %v3854, %v3863
      %v3877 = vadd.f32 %v3855, %v3863
      %v3878 = vadd.f32 %v3856, %v3863
      %v3879 = vadd.f32 %v3857, %v3863
      %v3880 = vadd.f32 %v3858, %v3863
      %v3881 = vpack.c.bf16 %v3866, %v3865
      %v3882 = vpack.c.bf16 %v3868, %v3867
      %v3883 = vpack.c.bf16 %v3870, %v3869
      %v3884 = vpack.c.bf16 %v3872, %v3871
      %v3885 = vpack.c.bf16 %v3874, %v3873
      %v3886 = vpack.c.bf16 %v3876, %v3875
      %v3887 = vpack.c.bf16 %v3878, %v3877
      %v3888 = vpack.c.bf16 %v3880, %v3879
      %v3889 = vld [vmem:[%s10] sm:$0xf]
      %v3890 = vld [vmem:[%s10 + $0x4] sm:$0xf]
      %v3891 = vld [vmem:[%s10 + $0x8] sm:$0xf]
      %v3892 = vld [vmem:[%s10 + $0xc] sm:$0xf]
      %v3893 = vld [vmem:[%s11] sm:$0x1]
      %v3895 = vlaneseq
      %v3896 = vshrl.u32 %v3895, 7
      %v3897 = vsub.s32 0, %v3896
      %v3898 = vrot.slane %v3893, %v3897
      %v3904 = vunpack.c.l.b16 %v3889
      %v3905 = vunpack.c.l.b16 %v3890
      %v3906 = vunpack.c.l.b16 %v3891
      %v3907 = vunpack.c.l.b16 %v3892
      %v3908 = vpack.c.b16 %v3905, %v3904
      %v3909 = vpack.c.b16 %v3907, %v3906
      %v3913 = vsel %vm921, %v3881, 0
      %v3916 = vsel %vm921, %v3882, 0
      %v3919 = vsel %vm921, %v3883, 0
      %v3922 = vsel %vm921, %v3884, 0
      %v3925 = vsel %vm921, %v3885, 0
      %v3928 = vsel %vm921, %v3886, 0
      %v3931 = vsel %vm921, %v3887, 0
      %v3934 = vsel %vm921, %v3888, 0
      %3936 = vmatprep.subr.bf16.mxu0 0
      %3937 = vmatpush1.bf16.msra.mxu0 %v3908
      %3938 = vmatprep.subr.bf16.mxu0 0
      %3939 = vmatpush1.bf16.msra.mxu0 %v3909
      %3940 = vmatprep.subr.bf16.mxu0 0
      %3941 = vmatpush1.bf16.msra.mxu0 0
      %3942 = vmatprep.subr.bf16.mxu0 0
      %3943 = vmatpush1.bf16.msra.mxu0 0
      %3944 = vmatprep.subr.bf16.mxu0 0
      %3945 = vmatpush1.bf16.msra.mxu0 0
      %3946 = vmatprep.subr.bf16.mxu0 0
      %3947 = vmatpush1.bf16.msra.mxu0 0
      %3948 = vmatprep.subr.bf16.mxu0 0
      %3949 = vmatpush1.bf16.msra.mxu0 0
      %3950 = vmatprep.subr.bf16.mxu0 0
      %3951 = vmatpush1.bf16.msra.mxu0 0
      %3952 = vmatprep.subr.bf16.mxu0 0
      %3953 = vmatpush1.bf16.msra.mxu0 0
      %3954 = vmatprep.subr.bf16.mxu0 0
      %3955 = vmatpush1.bf16.msra.mxu0 0
      %3956 = vmatprep.subr.bf16.mxu0 0
      %3957 = vmatpush1.bf16.msra.mxu0 0
      %3958 = vmatprep.subr.bf16.mxu0 0
      %3959 = vmatpush1.bf16.msra.mxu0 0
      %3960 = vmatprep.subr.bf16.mxu0 0
      %3961 = vmatpush1.bf16.msra.mxu0 0
      %3962 = vmatprep.subr.bf16.mxu0 0
      %3963 = vmatpush1.bf16.msra.mxu0 0
      %3964 = vmatprep.subr.bf16.mxu0 0
      %3965 = vmatpush1.bf16.msra.mxu0 0
      %3966 = vmatprep.subr.bf16.mxu0 0
      %3967 = vmatpush1.bf16.msra.mxu0 0
      %3968 = vmatprep.mubr.bf16.mxu0 0
      %3969 = vmatmul.mubr.bf16.gmra.mrb[0].mxu0 %v3913
      %v3970 = vpop.f32.mrb[0].mxu0
      %v3971 = vadd.f32 %v3898, %v3970
      %v3972 = vpop.f32.mrb[0].mxu0
      %v3973 = vpop.f32.mrb[0].mxu0
      %v3974 = vadd.f32 %v3898, %v3973
      %v3975 = vpop.f32.mrb[0].mxu0
      %3976 = vmatprep.mubr.bf16.mxu0 0
      %3977 = vmatmul.mubr.bf16.gmra.mrb[0].mxu0 %v3916
      %v3978 = vpop.f32.mrb[0].mxu0
      %v3979 = vadd.f32 %v3898, %v3978
      %v3980 = vpop.f32.mrb[0].mxu0
      %v3981 = vpop.f32.mrb[0].mxu0
      %v3982 = vadd.f32 %v3898, %v3981
      %v3983 = vpop.f32.mrb[0].mxu0
      %3984 = vmatprep.mubr.bf16.mxu0 0
      %3985 = vmatmul.mubr.bf16.gmra.mrb[0].mxu0 %v3919
      %v3986 = vpop.f32.mrb[0].mxu0
      %v3987 = vadd.f32 %v3898, %v3986
      %v3988 = vpop.f32.mrb[0].mxu0
      %v3989 = vpop.f32.mrb[0].mxu0
      %v3990 = vadd.f32 %v3898, %v3989
      %v3991 = vpop.f32.mrb[0].mxu0
      %3992 = vmatprep.mubr.bf16.mxu0 0
      %3993 = vmatmul.mubr.bf16.gmra.mrb[0].mxu0 %v3922
      %v3994 = vpop.f32.mrb[0].mxu0
      %v3995 = vadd.f32 %v3898, %v3994
      %v3996 = vpop.f32.mrb[0].mxu0
      %v3997 = vpop.f32.mrb[0].mxu0
      %v3998 = vadd.f32 %v3898, %v3997
      %v3999 = vpop.f32.mrb[0].mxu0
      %4000 = vmatprep.mubr.bf16.mxu0 0
      %4001 = vmatmul.mubr.bf16.gmra.mrb[0].mxu0 %v3925
      %v4002 = vpop.f32.mrb[0].mxu0
      %v4003 = vadd.f32 %v3898, %v4002
      %v4004 = vpop.f32.mrb[0].mxu0
      %v4005 = vpop.f32.mrb[0].mxu0
      %v4006 = vadd.f32 %v3898, %v4005
      %v4007 = vpop.f32.mrb[0].mxu0
      %4008 = vmatprep.mubr.bf16.mxu0 0
      %4009 = vmatmul.mubr.bf16.gmra.mrb[0].mxu0 %v3928
      %v4010 = vpop.f32.mrb[0].mxu0
      %v4011 = vadd.f32 %v3898, %v4010
      %v4012 = vpop.f32.mrb[0].mxu0
      %v4013 = vpop.f32.mrb[0].mxu0
      %v4014 = vadd.f32 %v3898, %v4013
      %v4015 = vpop.f32.mrb[0].mxu0
      %4016 = vmatprep.mubr.bf16.mxu0 0
      %4017 = vmatmul.mubr.bf16.gmra.mrb[0].mxu0 %v3931
      %v4018 = vpop.f32.mrb[0].mxu0
      %v4019 = vadd.f32 %v3898, %v4018
      %v4020 = vpop.f32.mrb[0].mxu0
      %v4021 = vpop.f32.mrb[0].mxu0
      %v4022 = vadd.f32 %v3898, %v4021
      %v4023 = vpop.f32.mrb[0].mxu0
      %4024 = vmatprep.mubr.bf16.mxu0 0
      %4025 = vmatmul.mubr.bf16.gmra.mrb[0].mxu0 %v3934
      %v4026 = vpop.f32.mrb[0].mxu0
      %v4027 = vadd.f32 %v3898, %v4026
      %v4028 = vpop.f32.mrb[0].mxu0
      %v4029 = vpop.f32.mrb[0].mxu0
      %v4030 = vadd.f32 %v3898, %v4029
      %v4031 = vpop.f32.mrb[0].mxu0
      %4032 = vdwg.mxu0
      %v4033 = vmul.f32 %v3971, %v3971
      %v4034 = vmul.f32 %v3974, %v3974
      %v4035 = vmul.f32 %v3979, %v3979
      %v4036 = vmul.f32 %v3982, %v3982
      %v4037 = vmul.f32 %v3987, %v3987
      %v4038 = vmul.f32 %v3990, %v3990
      %v4039 = vmul.f32 %v3995, %v3995
      %v4040 = vmul.f32 %v3998, %v3998
      %v4041 = vmul.f32 %v4003, %v4003
      %v4042 = vmul.f32 %v4006, %v4006
      %v4043 = vmul.f32 %v4011, %v4011
      %v4044 = vmul.f32 %v4014, %v4014
      %v4045 = vmul.f32 %v4019, %v4019
      %v4046 = vmul.f32 %v4022, %v4022
      %v4047 = vmul.f32 %v4027, %v4027
      %v4048 = vmul.f32 %v4030, %v4030
      %v4049 = vmul.f32 %v3971, %v4033
      %v4050 = vmul.f32 %v3974, %v4034
      %v4051 = vmul.f32 %v3979, %v4035
      %v4052 = vmul.f32 %v3982, %v4036
      %v4053 = vmul.f32 %v3987, %v4037
      %v4054 = vmul.f32 %v3990, %v4038
      %v4055 = vmul.f32 %v3995, %v4039
      %v4056 = vmul.f32 %v3998, %v4040
      %v4057 = vmul.f32 %v4003, %v4041
      %v4058 = vmul.f32 %v4006, %v4042
      %v4059 = vmul.f32 %v4011, %v4043
      %v4060 = vmul.f32 %v4014, %v4044
      %v4061 = vmul.f32 %v4019, %v4045
      %v4062 = vmul.f32 %v4022, %v4046
      %v4063 = vmul.f32 %v4027, %v4047
      %v4064 = vmul.f32 %v4030, %v4048
      %v4065 = vmul.f32 %v4049, 0.044715
      %v4066 = vmul.f32 %v4050, 0.044715
      %v4067 = vmul.f32 %v4051, 0.044715
      %v4068 = vmul.f32 %v4052, 0.044715
      %v4069 = vmul.f32 %v4053, 0.044715
      %v4070 = vmul.f32 %v4054, 0.044715
      %v4071 = vmul.f32 %v4055, 0.044715
      %v4072 = vmul.f32 %v4056, 0.044715
      %v4073 = vmul.f32 %v4057, 0.044715
      %v4074 = vmul.f32 %v4058, 0.044715
      %v4075 = vmul.f32 %v4059, 0.044715
      %v4076 = vmul.f32 %v4060, 0.044715
      %v4077 = vmul.f32 %v4061, 0.044715
      %v4078 = vmul.f32 %v4062, 0.044715
      %v4079 = vmul.f32 %v4063, 0.044715
      %v4080 = vmul.f32 %v4064, 0.044715
      %v4081 = vadd.f32 %v3971, %v4065
      %v4082 = vadd.f32 %v3974, %v4066
      %v4083 = vadd.f32 %v3979, %v4067
      %v4084 = vadd.f32 %v3982, %v4068
      %v4085 = vadd.f32 %v3987, %v4069
      %v4086 = vadd.f32 %v3990, %v4070
      %v4087 = vadd.f32 %v3995, %v4071
      %v4088 = vadd.f32 %v3998, %v4072
      %v4089 = vadd.f32 %v4003, %v4073
      %v4090 = vadd.f32 %v4006, %v4074
      %v4091 = vadd.f32 %v4011, %v4075
      %v4092 = vadd.f32 %v4014, %v4076
      %v4093 = vadd.f32 %v4019, %v4077
      %v4094 = vadd.f32 %v4022, %v4078
      %v4095 = vadd.f32 %v4027, %v4079
      %v4096 = vadd.f32 %v4030, %v4080
      %v4097 = vmul.f32 %v4081, 0.7978846
      %v4098 = vmul.f32 %v4082, 0.7978846
      %v4099 = vmul.f32 %v4083, 0.7978846
      %v4100 = vmul.f32 %v4084, 0.7978846
      %v4101 = vmul.f32 %v4085, 0.7978846
      %v4102 = vmul.f32 %v4086, 0.7978846
      %v4103 = vmul.f32 %v4087, 0.7978846
      %v4104 = vmul.f32 %v4088, 0.7978846
      %v4105 = vmul.f32 %v4089, 0.7978846
      %v4106 = vmul.f32 %v4090, 0.7978846
      %v4107 = vmul.f32 %v4091, 0.7978846
      %v4108 = vmul.f32 %v4092, 0.7978846
      %v4109 = vmul.f32 %v4093, 0.7978846
      %v4110 = vmul.f32 %v4094, 0.7978846
      %v4111 = vmul.f32 %v4095, 0.7978846
      %v4112 = vmul.f32 %v4096, 0.7978846
      %v4113 = vtanh.pop %v4097
      %v4114 = vtanh.pop %v4098
      %v4115 = vtanh.pop %v4099
      %v4116 = vtanh.pop %v4100
      %v4117 = vtanh.pop %v4101
      %v4118 = vtanh.pop %v4102
      %v4119 = vtanh.pop %v4103
      %v4120 = vtanh.pop %v4104
      %v4121 = vtanh.pop %v4105
      %v4122 = vtanh.pop %v4106
      %v4123 = vtanh.pop %v4107
      %v4124 = vtanh.pop %v4108
      %v4125 = vtanh.pop %v4109
      %v4126 = vtanh.pop %v4110
      %v4127 = vtanh.pop %v4111
      %v4128 = vtanh.pop %v4112
      %v4129 = vadd.f32 %v4113, 1.0
      %v4130 = vadd.f32 %v4114, 1.0
      %v4131 = vadd.f32 %v4115, 1.0
      %v4132 = vadd.f32 %v4116, 1.0
      %v4133 = vadd.f32 %v4117, 1.0
      %v4134 = vadd.f32 %v4118, 1.0
      %v4135 = vadd.f32 %v4119, 1.0
      %v4136 = vadd.f32 %v4120, 1.0
      %v4137 = vadd.f32 %v4121, 1.0
      %v4138 = vadd.f32 %v4122, 1.0
      %v4139 = vadd.f32 %v4123, 1.0
      %v4140 = vadd.f32 %v4124, 1.0
      %v4141 = vadd.f32 %v4125, 1.0
      %v4142 = vadd.f32 %v4126, 1.0
      %v4143 = vadd.f32 %v4127, 1.0
      %v4144 = vadd.f32 %v4128, 1.0
      %v4145 = vmul.f32 %v4129, 0.5
      %v4146 = vmul.f32 %v4130, 0.5
      %v4147 = vmul.f32 %v4131, 0.5
      %v4148 = vmul.f32 %v4132, 0.5
      %v4149 = vmul.f32 %v4133, 0.5
      %v4150 = vmul.f32 %v4134, 0.5
      %v4151 = vmul.f32 %v4135, 0.5
      %v4152 = vmul.f32 %v4136, 0.5
      %v4153 = vmul.f32 %v4137, 0.5
      %v4154 = vmul.f32 %v4138, 0.5
      %v4155 = vmul.f32 %v4139, 0.5
      %v4156 = vmul.f32 %v4140, 0.5
      %v4157 = vmul.f32 %v4141, 0.5
      %v4158 = vmul.f32 %v4142, 0.5
      %v4159 = vmul.f32 %v4143, 0.5
      %v4160 = vmul.f32 %v4144, 0.5
      %v4161 = vmul.f32 %v3971, %v4145
      %v4162 = vmul.f32 %v3974, %v4146
      %v4163 = vmul.f32 %v3979, %v4147
      %v4164 = vmul.f32 %v3982, %v4148
      %v4165 = vmul.f32 %v3987, %v4149
      %v4166 = vmul.f32 %v3990, %v4150
      %v4167 = vmul.f32 %v3995, %v4151
      %v4168 = vmul.f32 %v3998, %v4152
      %v4169 = vmul.f32 %v4003, %v4153
      %v4170 = vmul.f32 %v4006, %v4154
      %v4171 = vmul.f32 %v4011, %v4155
      %v4172 = vmul.f32 %v4014, %v4156
      %v4173 = vmul.f32 %v4019, %v4157
      %v4174 = vmul.f32 %v4022, %v4158
      %v4175 = vmul.f32 %v4027, %v4159
      %v4176 = vmul.f32 %v4030, %v4160
      %v4177 = vpack.c.bf16 %v4162, %v4161
      %v4178 = vpack.c.bf16 %v4164, %v4163
      %v4179 = vpack.c.bf16 %v4166, %v4165
      %v4180 = vpack.c.bf16 %v4168, %v4167
      %v4181 = vpack.c.bf16 %v4170, %v4169
      %v4182 = vpack.c.bf16 %v4172, %v4171
      %v4183 = vpack.c.bf16 %v4174, %v4173
      %v4184 = vpack.c.bf16 %v4176, %v4175
      %v4185 = vld [vmem:[%s12] sm:$0xf]
      %v4186 = vld [vmem:[%s12 + $0x4] sm:$0xf]
      %v4187 = vld [vmem:[%s12 + $0x8] sm:$0xf]
      %v4188 = vld [vmem:[%s12 + $0xc] sm:$0xf]
      %v4189 = vld [vmem:[%s12 + $0x10] sm:$0xf]
      %v4190 = vld [vmem:[%s12 + $0x14] sm:$0xf]
      %v4191 = vld [vmem:[%s12 + $0x18] sm:$0xf]
      %v4192 = vld [vmem:[%s12 + $0x1c] sm:$0xf]
      %v4193 = vld [vmem:[%s12 + $0x20] sm:$0xf]
      %v4194 = vld [vmem:[%s12 + $0x24] sm:$0xf]
      %v4195 = vld [vmem:[%s12 + $0x28] sm:$0xf]
      %v4196 = vld [vmem:[%s12 + $0x2c] sm:$0xf]
      %v4197 = vld [vmem:[%s12 + $0x30] sm:$0xf]
      %v4198 = vld [vmem:[%s12 + $0x34] sm:$0xf]
      %v4199 = vld [vmem:[%s12 + $0x38] sm:$0xf]
      %v4200 = vld [vmem:[%s12 + $0x3c] sm:$0xf]
      %v4201 = vld [vmem:[%s13] sm:$0x1]
      %v4203 = vlaneseq
      %v4204 = vshrl.u32 %v4203, 7
      %v4205 = vsub.s32 0, %v4204
      %v4206 = vrot.slane %v4201, %v4205
      %v4224 = vunpack.c.l.b16 %v4185
      %v4225 = vunpack.c.l.b16 %v4186
      %v4226 = vunpack.c.l.b16 %v4187
      %v4227 = vunpack.c.l.b16 %v4188
      %v4228 = vunpack.c.l.b16 %v4189
      %v4229 = vunpack.c.l.b16 %v4190
      %v4230 = vunpack.c.l.b16 %v4191
      %v4231 = vunpack.c.l.b16 %v4192
      %v4232 = vunpack.c.l.b16 %v4193
      %v4233 = vunpack.c.l.b16 %v4194
      %v4234 = vunpack.c.l.b16 %v4195
      %v4235 = vunpack.c.l.b16 %v4196
      %v4236 = vunpack.c.l.b16 %v4197
      %v4237 = vunpack.c.l.b16 %v4198
      %v4238 = vunpack.c.l.b16 %v4199
      %v4239 = vunpack.c.l.b16 %v4200
      %v4240 = vpack.c.b16 %v4225, %v4224
      %v4241 = vpack.c.b16 %v4227, %v4226
      %v4242 = vpack.c.b16 %v4229, %v4228
      %v4243 = vpack.c.b16 %v4231, %v4230
      %v4244 = vpack.c.b16 %v4233, %v4232
      %v4245 = vpack.c.b16 %v4235, %v4234
      %v4246 = vpack.c.b16 %v4237, %v4236
      %v4247 = vpack.c.b16 %v4239, %v4238
      %4256 = vmatprep.subr.bf16.mxu0 0
      %4257 = vmatpush1.bf16.msra.mxu0 %v4240
      %4258 = vmatprep.subr.bf16.mxu0 0
      %4259 = vmatpush1.bf16.msra.mxu0 %v4241
      %4260 = vmatprep.subr.bf16.mxu0 0
      %4261 = vmatpush1.bf16.msra.mxu0 %v4242
      %4262 = vmatprep.subr.bf16.mxu0 0
      %4263 = vmatpush1.bf16.msra.mxu0 %v4243
      %4264 = vmatprep.subr.bf16.mxu0 0
      %4265 = vmatpush1.bf16.msra.mxu0 %v4244
      %4266 = vmatprep.subr.bf16.mxu0 0
      %4267 = vmatpush1.bf16.msra.mxu0 %v4245
      %4268 = vmatprep.subr.bf16.mxu0 0
      %4269 = vmatpush1.bf16.msra.mxu0 %v4246
      %4270 = vmatprep.subr.bf16.mxu0 0
      %4271 = vmatpush1.bf16.msra.mxu0 %v4247
      %4272 = vmatprep.subr.bf16.mxu0 0
      %4273 = vmatpush1.bf16.msra.mxu0 0
      %4274 = vmatprep.subr.bf16.mxu0 0
      %4275 = vmatpush1.bf16.msra.mxu0 0
      %4276 = vmatprep.subr.bf16.mxu0 0
      %4277 = vmatpush1.bf16.msra.mxu0 0
      %4278 = vmatprep.subr.bf16.mxu0 0
      %4279 = vmatpush1.bf16.msra.mxu0 0
      %4280 = vmatprep.subr.bf16.mxu0 0
      %4281 = vmatpush1.bf16.msra.mxu0 0
      %4282 = vmatprep.subr.bf16.mxu0 0
      %4283 = vmatpush1.bf16.msra.mxu0 0
      %4284 = vmatprep.subr.bf16.mxu0 0
      %4285 = vmatpush1.bf16.msra.mxu0 0
      %4286 = vmatprep.subr.bf16.mxu0 0
      %4287 = vmatpush1.bf16.msra.mxu0 0
      %4288 = vmatprep.mubr.bf16.mxu0 0
      %4289 = vmatmul.mubr.bf16.gmra.mrb[0].mxu0 %v4177
      %v4290 = vpop.f32.mrb[0].mxu0
      %v4291 = vadd.f32 %v4206, %v4290
      %v4292 = vpop.f32.mrb[0].mxu0
      %v4293 = vpop.f32.mrb[0].mxu0
      %v4294 = vadd.f32 %v4206, %v4293
      %v4295 = vpop.f32.mrb[0].mxu0
      %4296 = vmatprep.mubr.bf16.mxu0 0
      %4297 = vmatmul.mubr.bf16.gmra.mrb[0].mxu0 %v4178
      %v4298 = vpop.f32.mrb[0].mxu0
      %v4299 = vadd.f32 %v4206, %v4298
      %v4300 = vpop.f32.mrb[0].mxu0
      %v4301 = vpop.f32.mrb[0].mxu0
      %v4302 = vadd.f32 %v4206, %v4301
      %v4303 = vpop.f32.mrb[0].mxu0
      %4304 = vmatprep.mubr.bf16.mxu0 0
      %4305 = vmatmul.mubr.bf16.gmra.mrb[0].mxu0 %v4179
      %v4306 = vpop.f32.mrb[0].mxu0
      %v4307 = vadd.f32 %v4206, %v4306
      %v4308 = vpop.f32.mrb[0].mxu0
      %v4309 = vpop.f32.mrb[0].mxu0
      %v4310 = vadd.f32 %v4206, %v4309
      %v4311 = vpop.f32.mrb[0].mxu0
      %4312 = vmatprep.mubr.bf16.mxu0 0
      %4313 = vmatmul.mubr.bf16.gmra.mrb[0].mxu0 %v4180
      %v4314 = vpop.f32.mrb[0].mxu0
      %v4315 = vadd.f32 %v4206, %v4314
      %v4316 = vpop.f32.mrb[0].mxu0
      %v4317 = vpop.f32.mrb[0].mxu0
      %v4318 = vadd.f32 %v4206, %v4317
      %v4319 = vpop.f32.mrb[0].mxu0
      %4320 = vmatprep.mubr.bf16.mxu0 0
      %4321 = vmatmul.mubr.bf16.gmra.mrb[0].mxu0 %v4181
      %v4322 = vpop.f32.mrb[0].mxu0
      %v4323 = vadd.f32 %v4206, %v4322
      %v4324 = vpop.f32.mrb[0].mxu0
      %v4325 = vpop.f32.mrb[0].mxu0
      %v4326 = vadd.f32 %v4206, %v4325
      %v4327 = vpop.f32.mrb[0].mxu0
      %4328 = vmatprep.mubr.bf16.mxu0 0
      %4329 = vmatmul.mubr.bf16.gmra.mrb[0].mxu0 %v4182
      %v4330 = vpop.f32.mrb[0].mxu0
      %v4331 = vadd.f32 %v4206, %v4330
      %v4332 = vpop.f32.mrb[0].mxu0
      %v4333 = vpop.f32.mrb[0].mxu0
      %v4334 = vadd.f32 %v4206, %v4333
      %v4335 = vpop.f32.mrb[0].mxu0
      %4336 = vmatprep.mubr.bf16.mxu0 0
      %4337 = vmatmul.mubr.bf16.gmra.mrb[0].mxu0 %v4183
      %v4338 = vpop.f32.mrb[0].mxu0
      %v4339 = vadd.f32 %v4206, %v4338
      %v4340 = vpop.f32.mrb[0].mxu0
      %v4341 = vpop.f32.mrb[0].mxu0
      %v4342 = vadd.f32 %v4206, %v4341
      %v4343 = vpop.f32.mrb[0].mxu0
      %4344 = vmatprep.mubr.bf16.mxu0 0
      %4345 = vmatmul.mubr.bf16.gmra.mrb[0].mxu0 %v4184
      %v4346 = vpop.f32.mrb[0].mxu0
      %v4347 = vadd.f32 %v4206, %v4346
      %v4348 = vpop.f32.mrb[0].mxu0
      %v4349 = vpop.f32.mrb[0].mxu0
      %v4350 = vadd.f32 %v4206, %v4349
      %v4351 = vpop.f32.mrb[0].mxu0
      %4352 = vdwg.mxu0
      %v4353 = vadd.f32 %v3865, %v4291
      %v4354 = vadd.f32 %v3866, %v4294
      %v4355 = vadd.f32 %v3867, %v4299
      %v4356 = vadd.f32 %v3868, %v4302
      %v4357 = vadd.f32 %v3869, %v4307
      %v4358 = vadd.f32 %v3870, %v4310
      %v4359 = vadd.f32 %v3871, %v4315
      %v4360 = vadd.f32 %v3872, %v4318
      %v4361 = vadd.f32 %v3873, %v4323
      %v4362 = vadd.f32 %v3874, %v4326
      %v4363 = vadd.f32 %v3875, %v4331
      %v4364 = vadd.f32 %v3876, %v4334
      %v4365 = vadd.f32 %v3877, %v4339
      %v4366 = vadd.f32 %v3878, %v4342
      %v4367 = vadd.f32 %v3879, %v4347
      %v4368 = vadd.f32 %v3880, %v4350
      %v4369 = vld [vmem:[%s14] sm:$0x1]
      %v4370 = vld [vmem:[%s15] sm:$0x1]
      %v4371 = vsel %vm921, %v4353, 0.0
      %4372 = vadd.xlane.f32.xlu0 %v4371
      %v4373 = vpop.xlane.xlu0 %4372
      %v4374 = vsel %vm921, %v4354, 0.0
      %4375 = vadd.xlane.f32.xlu0 %v4374
      %v4376 = vpop.xlane.xlu0 %4375
      %v4377 = vsel %vm921, %v4355, 0.0
      %4378 = vadd.xlane.f32.xlu0 %v4377
      %v4379 = vpop.xlane.xlu0 %4378
      %v4380 = vsel %vm921, %v4356, 0.0
      %4381 = vadd.xlane.f32.xlu0 %v4380
      %v4382 = vpop.xlane.xlu0 %4381
      %v4383 = vsel %vm921, %v4357, 0.0
      %4384 = vadd.xlane.f32.xlu0 %v4383
      %v4385 = vpop.xlane.xlu0 %4384
      %v4386 = vsel %vm921, %v4358, 0.0
      %4387 = vadd.xlane.f32.xlu0 %v4386
      %v4388 = vpop.xlane.xlu0 %4387
      %v4389 = vsel %vm921, %v4359, 0.0
      %4390 = vadd.xlane.f32.xlu0 %v4389
      %v4391 = vpop.xlane.xlu0 %4390
      %v4392 = vsel %vm921, %v4360, 0.0
      %4393 = vadd.xlane.f32.xlu0 %v4392
      %v4394 = vpop.xlane.xlu0 %4393
      %v4395 = vsel %vm921, %v4361, 0.0
      %4396 = vadd.xlane.f32.xlu0 %v4395
      %v4397 = vpop.xlane.xlu0 %4396
      %v4398 = vsel %vm921, %v4362, 0.0
      %4399 = vadd.xlane.f32.xlu0 %v4398
      %v4400 = vpop.xlane.xlu0 %4399
      %v4401 = vsel %vm921, %v4363, 0.0
      %4402 = vadd.xlane.f32.xlu0 %v4401
      %v4403 = vpop.xlane.xlu0 %4402
      %v4404 = vsel %vm921, %v4364, 0.0
      %4405 = vadd.xlane.f32.xlu0 %v4404
      %v4406 = vpop.xlane.xlu0 %4405
      %v4407 = vsel %vm921, %v4365, 0.0
      %4408 = vadd.xlane.f32.xlu0 %v4407
      %v4409 = vpop.xlane.xlu0 %4408
      %v4410 = vsel %vm921, %v4366, 0.0
      %4411 = vadd.xlane.f32.xlu0 %v4410
      %v4412 = vpop.xlane.xlu0 %4411
      %v4413 = vsel %vm921, %v4367, 0.0
      %4414 = vadd.xlane.f32.xlu0 %v4413
      %v4415 = vpop.xlane.xlu0 %4414
      %v4416 = vsel %vm921, %v4368, 0.0
      %4417 = vadd.xlane.f32.xlu0 %v4416
      %v4418 = vpop.xlane.xlu0 %4417
      %v4419 = vmul.f32 %v4373, %v3676
      %v4420 = vmul.f32 %v4376, %v3676
      %v4421 = vmul.f32 %v4379, %v3676
      %v4422 = vmul.f32 %v4382, %v3676
      %v4423 = vmul.f32 %v4385, %v3676
      %v4424 = vmul.f32 %v4388, %v3676
      %v4425 = vmul.f32 %v4391, %v3676
      %v4426 = vmul.f32 %v4394, %v3676
      %v4427 = vmul.f32 %v4397, %v3676
      %v4428 = vmul.f32 %v4400, %v3676
      %v4429 = vmul.f32 %v4403, %v3676
      %v4430 = vmul.f32 %v4406, %v3676
      %v4431 = vmul.f32 %v4409, %v3676
      %v4432 = vmul.f32 %v4412, %v3676
      %v4433 = vmul.f32 %v4415, %v3676
      %v4434 = vmul.f32 %v4418, %v3676
      %v4435 = vsub.f32 %v4353, %v4419
      %v4436 = vsub.f32 %v4354, %v4420
      %v4437 = vsub.f32 %v4355, %v4421
      %v4438 = vsub.f32 %v4356, %v4422
      %v4439 = vsub.f32 %v4357, %v4423
      %v4440 = vsub.f32 %v4358, %v4424
      %v4441 = vsub.f32 %v4359, %v4425
      %v4442 = vsub.f32 %v4360, %v4426
      %v4443 = vsub.f32 %v4361, %v4427
      %v4444 = vsub.f32 %v4362, %v4428
      %v4445 = vsub.f32 %v4363, %v4429
      %v4446 = vsub.f32 %v4364, %v4430
      %v4447 = vsub.f32 %v4365, %v4431
      %v4448 = vsub.f32 %v4366, %v4432
      %v4449 = vsub.f32 %v4367, %v4433
      %v4450 = vsub.f32 %v4368, %v4434
      %v4451 = vmul.f32 %v4435, %v4435
      %v4452 = vmul.f32 %v4436, %v4436
      %v4453 = vmul.f32 %v4437, %v4437
      %v4454 = vmul.f32 %v4438, %v4438
      %v4455 = vmul.f32 %v4439, %v4439
      %v4456 = vmul.f32 %v4440, %v4440
      %v4457 = vmul.f32 %v4441, %v4441
      %v4458 = vmul.f32 %v4442, %v4442
      %v4459 = vmul.f32 %v4443, %v4443
      %v4460 = vmul.f32 %v4444, %v4444
      %v4461 = vmul.f32 %v4445, %v4445
      %v4462 = vmul.f32 %v4446, %v4446
      %v4463 = vmul.f32 %v4447, %v4447
      %v4464 = vmul.f32 %v4448, %v4448
      %v4465 = vmul.f32 %v4449, %v4449
      %v4466 = vmul.f32 %v4450, %v4450
      %v4467 = vsel %vm921, %v4451, 0.0
      %4468 = vadd.xlane.f32.xlu0 %v4467
      %v4469 = vpop.xlane.xlu0 %4468
      %v4470 = vsel %vm921, %v4452, 0.0
      %4471 = vadd.xlane.f32.xlu0 %v4470
      %v4472 = vpop.xlane.xlu0 %4471
      %v4473 = vsel %vm921, %v4453, 0.0
      %4474 = vadd.xlane.f32.xlu0 %v4473
      %v4475 = vpop.xlane.xlu0 %4474
      %v4476 = vsel %vm921, %v4454, 0.0
      %4477 = vadd.xlane.f32.xlu0 %v4476
      %v4478 = vpop.xlane.xlu0 %4477
      %v4479 = vsel %vm921, %v4455, 0.0
      %4480 = vadd.xlane.f32.xlu0 %v4479
      %v4481 = vpop.xlane.xlu0 %4480
      %v4482 = vsel %vm921, %v4456, 0.0
      %4483 = vadd.xlane.f32.xlu0 %v4482
      %v4484 = vpop.xlane.xlu0 %4483
      %v4485 = vsel %vm921, %v4457, 0.0
      %4486 = vadd.xlane.f32.xlu0 %v4485
      %v4487 = vpop.xlane.xlu0 %4486
      %v4488 = vsel %vm921, %v4458, 0.0
      %4489 = vadd.xlane.f32.xlu0 %v4488
      %v4490 = vpop.xlane.xlu0 %4489
      %v4491 = vsel %vm921, %v4459, 0.0
      %4492 = vadd.xlane.f32.xlu0 %v4491
      %v4493 = vpop.xlane.xlu0 %4492
      %v4494 = vsel %vm921, %v4460, 0.0
      %4495 = vadd.xlane.f32.xlu0 %v4494
      %v4496 = vpop.xlane.xlu0 %4495
      %v4497 = vsel %vm921, %v4461, 0.0
      %4498 = vadd.xlane.f32.xlu0 %v4497
      %v4499 = vpop.xlane.xlu0 %4498
      %v4500 = vsel %vm921, %v4462, 0.0
      %4501 = vadd.xlane.f32.xlu0 %v4500
      %v4502 = vpop.xlane.xlu0 %4501
      %v4503 = vsel %vm921, %v4463, 0.0
      %4504 = vadd.xlane.f32.xlu0 %v4503
      %v4505 = vpop.xlane.xlu0 %4504
      %v4506 = vsel %vm921, %v4464, 0.0
      %4507 = vadd.xlane.f32.xlu0 %v4506
      %v4508 = vpop.xlane.xlu0 %4507
      %v4509 = vsel %vm921, %v4465, 0.0
      %4510 = vadd.xlane.f32.xlu0 %v4509
      %v4511 = vpop.xlane.xlu0 %4510
      %v4512 = vsel %vm921, %v4466, 0.0
      %4513 = vadd.xlane.f32.xlu0 %v4512
      %v4514 = vpop.xlane.xlu0 %4513
      %v4515 = vmul.f32 %v4469, %v3676
      %v4516 = vmul.f32 %v4472, %v3676
      %v4517 = vmul.f32 %v4475, %v3676
      %v4518 = vmul.f32 %v4478, %v3676
      %v4519 = vmul.f32 %v4481, %v3676
      %v4520 = vmul.f32 %v4484, %v3676
      %v4521 = vmul.f32 %v4487, %v3676
      %v4522 = vmul.f32 %v4490, %v3676
      %v4523 = vmul.f32 %v4493, %v3676
      %v4524 = vmul.f32 %v4496, %v3676
      %v4525 = vmul.f32 %v4499, %v3676
      %v4526 = vmul.f32 %v4502, %v3676
      %v4527 = vmul.f32 %v4505, %v3676
      %v4528 = vmul.f32 %v4508, %v3676
      %v4529 = vmul.f32 %v4511, %v3676
      %v4530 = vmul.f32 %v4514, %v3676
      %v4531 = vadd.f32 %v4515, 1e-12
      %v4532 = vadd.f32 %v4516, 1e-12
      %v4533 = vadd.f32 %v4517, 1e-12
      %v4534 = vadd.f32 %v4518, 1e-12
      %v4535 = vadd.f32 %v4519, 1e-12
      %v4536 = vadd.f32 %v4520, 1e-12
      %v4537 = vadd.f32 %v4521, 1e-12
      %v4538 = vadd.f32 %v4522, 1e-12
      %v4539 = vadd.f32 %v4523, 1e-12
      %v4540 = vadd.f32 %v4524, 1e-12
      %v4541 = vadd.f32 %v4525, 1e-12
      %v4542 = vadd.f32 %v4526, 1e-12
      %v4543 = vadd.f32 %v4527, 1e-12
      %v4544 = vadd.f32 %v4528, 1e-12
      %v4545 = vadd.f32 %v4529, 1e-12
      %v4546 = vadd.f32 %v4530, 1e-12
      %v4547 = vrsqrt.pop %v4531
      %v4548 = vrsqrt.pop %v4532
      %v4549 = vrsqrt.pop %v4533
      %v4550 = vrsqrt.pop %v4534
      %v4551 = vrsqrt.pop %v4535
      %v4552 = vrsqrt.pop %v4536
      %v4553 = vrsqrt.pop %v4537
      %v4554 = vrsqrt.pop %v4538
      %v4555 = vrsqrt.pop %v4539
      %v4556 = vrsqrt.pop %v4540
      %v4557 = vrsqrt.pop %v4541
      %v4558 = vrsqrt.pop %v4542
      %v4559 = vrsqrt.pop %v4543
      %v4560 = vrsqrt.pop %v4544
      %v4561 = vrsqrt.pop %v4545
      %v4562 = vrsqrt.pop %v4546
      %v4563 = vmul.f32 %v4435, %v4547
      %v4564 = vmul.f32 %v4436, %v4548
      %v4565 = vmul.f32 %v4437, %v4549
      %v4566 = vmul.f32 %v4438, %v4550
      %v4567 = vmul.f32 %v4439, %v4551
      %v4568 = vmul.f32 %v4440, %v4552
      %v4569 = vmul.f32 %v4441, %v4553
      %v4570 = vmul.f32 %v4442, %v4554
      %v4571 = vmul.f32 %v4443, %v4555
      %v4572 = vmul.f32 %v4444, %v4556
      %v4573 = vmul.f32 %v4445, %v4557
      %v4574 = vmul.f32 %v4446, %v4558
      %v4575 = vmul.f32 %v4447, %v4559
      %v4576 = vmul.f32 %v4448, %v4560
      %v4577 = vmul.f32 %v4449, %v4561
      %v4578 = vmul.f32 %v4450, %v4562
      %v4580 = vlaneseq
      %v4581 = vshrl.u32 %v4580, 7
      %v4582 = vsub.s32 0, %v4581
      %v4583 = vrot.slane %v4369, %v4582
      %v4585 = vmul.f32 %v4563, %v4583
      %v4586 = vmul.f32 %v4564, %v4583
      %v4587 = vmul.f32 %v4565, %v4583
      %v4588 = vmul.f32 %v4566, %v4583
      %v4589 = vmul.f32 %v4567, %v4583
      %v4590 = vmul.f32 %v4568, %v4583
      %v4591 = vmul.f32 %v4569, %v4583
      %v4592 = vmul.f32 %v4570, %v4583
      %v4593 = vmul.f32 %v4571, %v4583
      %v4594 = vmul.f32 %v4572, %v4583
      %v4595 = vmul.f32 %v4573, %v4583
      %v4596 = vmul.f32 %v4574, %v4583
      %v4597 = vmul.f32 %v4575, %v4583
      %v4598 = vmul.f32 %v4576, %v4583
      %v4599 = vmul.f32 %v4577, %v4583
      %v4600 = vmul.f32 %v4578, %v4583
      %v4602 = vlaneseq
      %v4603 = vshrl.u32 %v4602, 7
      %v4604 = vsub.s32 0, %v4603
      %v4605 = vrot.slane %v4370, %v4604
      %v4607 = vadd.f32 %v4585, %v4605
      %v4608 = vadd.f32 %v4586, %v4605
      %v4609 = vadd.f32 %v4587, %v4605
      %v4610 = vadd.f32 %v4588, %v4605
      %v4611 = vadd.f32 %v4589, %v4605
      %v4612 = vadd.f32 %v4590, %v4605
      %v4613 = vadd.f32 %v4591, %v4605
      %v4614 = vadd.f32 %v4592, %v4605
      %v4615 = vadd.f32 %v4593, %v4605
      %v4616 = vadd.f32 %v4594, %v4605
      %v4617 = vadd.f32 %v4595, %v4605
      %v4618 = vadd.f32 %v4596, %v4605
      %v4619 = vadd.f32 %v4597, %v4605
      %v4620 = vadd.f32 %v4598, %v4605
      %v4621 = vadd.f32 %v4599, %v4605
      %v4622 = vadd.f32 %v4600, %v4605
      %4623 = vst.msk [vmem:[%s557] sm:$0xff] %vm921, %v4607
      %4624 = vst.msk [vmem:[%s557 + $0x8] sm:$0xff] %vm921, %v4608
      %4625 = vst.msk [vmem:[%s557 + $0x10] sm:$0xff] %vm921, %v4609
      %4626 = vst.msk [vmem:[%s557 + $0x18] sm:$0xff] %vm921, %v4610
      %4627 = vst.msk [vmem:[%s557 + $0x20] sm:$0xff] %vm921, %v4611
      %4628 = vst.msk [vmem:[%s557 + $0x28] sm:$0xff] %vm921, %v4612
      %4629 = vst.msk [vmem:[%s557 + $0x30] sm:$0xff] %vm921, %v4613
      %4630 = vst.msk [vmem:[%s557 + $0x38] sm:$0xff] %vm921, %v4614
      %4631 = vst.msk [vmem:[%s557 + $0x40] sm:$0xff] %vm921, %v4615
      %4632 = vst.msk [vmem:[%s557 + $0x48] sm:$0xff] %vm921, %v4616
      %4633 = vst.msk [vmem:[%s557 + $0x50] sm:$0xff] %vm921, %v4617
      %4634 = vst.msk [vmem:[%s557 + $0x58] sm:$0xff] %vm921, %v4618
      %4635 = vst.msk [vmem:[%s557 + $0x60] sm:$0xff] %vm921, %v4619
      %4636 = vst.msk [vmem:[%s557 + $0x68] sm:$0xff] %vm921, %v4620
      %4637 = vst.msk [vmem:[%s557 + $0x70] sm:$0xff] %vm921, %v4621
      %4638 = vst.msk [vmem:[%s557 + $0x78] sm:$0xff] %vm921, %v4622
      %s4639 = smul.u32 16, %s32
      %p4640 = scmp.lt.s32.totalorder %s31, 1
      %s4641 = scalar_select %p4640, %s31, 1
      %p4642 = scmp.lt.s32.totalorder %s4639, 15
      %s4643 = scalar_select %p4642, %s4639, 15
      %s4644 = smul.addr %s4641, 16
      %s4645 = sadd.s32 %s4643, %s4644
      %s4646 = smul.addr %s4645, 8
      %s4647 = scalar_lea.vmem %s16, %s4646
      // Predicated region
      $region89: #{tpu_custom_call.1} parent=83 // pred_check
        %p4648 = pneg %p405
      $region90: #{tpu_custom_call.1} parent=83 // pred_check_branch
        %4650 = sbr.rel (%p4648) target = $region92
      $region91: #{tpu_custom_call.1} parent=83 // pred_region
        %s4651 = smul.u32 16, %s32
      $region92: #{tpu_custom_call.1} parent=83 // pred_fallthru
        _
    $region84: #{tpu_custom_call.1} parent=5 // pred_fallthru
      _
    %p4652 = scmp.le.s32.totalorder 2, %s22
    // Predicated region
    $region93: #{tpu_custom_call.1} parent=5 // pred_check
      %p4653 = pneg %p4652
    $region94: #{tpu_custom_call.1} parent=5 // pred_check_branch
      %4655 = sbr.rel (%p4653) target = $region96
    $region95: #{tpu_custom_call.1} parent=5 // pred_region
      %s4656 = ssub.s32 %s22, 2
      // Predicated region
      $region97: #{tpu_custom_call.1} parent=95 // pred_check
        %p4657 = pneg %p411
      $region98: #{tpu_custom_call.1} parent=95 // pred_check_branch
        %4659 = sbr.rel (%p4657) target = $region100
      $region99: #{tpu_custom_call.1} parent=95 // pred_region
        %s4660 = smul.u32 16, %s34
        %p4661 = scmp.lt.s32.totalorder %s33, 1
        %s4662 = scalar_select %p4661, %s33, 1
        %p4663 = scmp.lt.s32.totalorder %s4660, 15
        %s4664 = scalar_select %p4663, %s4660, 15
        %s4665 = smul.addr %s4662, 16
        %s4666 = sadd.s32 %s4664, %s4665
        %s4667 = smul.addr %s4666, 8
        %s4668 = scalar_lea.vmem %s16, %s4667
      $region100: #{tpu_custom_call.1} parent=95 // pred_fallthru
        _
    $region96: #{tpu_custom_call.1} parent=5 // pred_fallthru
      _
  $region6: #{tpu_custom_call.1} parent=0 // loop_footer
    %s26 = sadd.s32 1, %s22
  $region7: #{tpu_custom_call.1} parent=0 // loop_footer_branch
    %21 = sbr.rel target = $region3
  $region8: #{tpu_custom_call.1} parent=0 // loop_exit
    _

// kernel: tpu_custom_call.1
$region0: #{tpu_custom_call.1}
  #allocation0 [shape = 'u32[]', space=smem, size = 0x4, offset = 0x4, fixed_abs, tag = 'smem constant byte address 0x4 - core index']
  #allocation1 [shape = 'u32[144,128]{1,0:T(1,128)}', space=vmem, size = 0x12000, scoped, tag = 'internal scratch']
  #allocation2 [shape = 'bf16[128,32]{1,0:T(16,128)(2,1)}', space=vmem, size = 0x8000, scoped, tag = 'scratch operand']
  #allocation3 [shape = 'bf16[128,32]{1,0:T(16,128)(2,1)}', space=vmem, size = 0x8000, scoped, tag = 'scratch operand']
  #allocation4 [shape = 'f32[128,32]{1,0:T(8,128)}', space=vmem, size = 0x10000, scoped, tag = 'scratch operand']
  %s0 = inlined_call_operand.vmem [shape: f32[2,1,128], index: 0, kind: input, shape index: {}]
  %s1 = inlined_call_operand.vmem [shape: bf16[2,128,32], index: 1, kind: input, shape index: {}]
  %s2 = inlined_call_operand.vmem [shape: bf16[32,32], index: 2, kind: input, shape index: {}]
  %s3 = inlined_call_operand.vmem [shape: f32[1,32], index: 3, kind: input, shape index: {}]
  %s4 = inlined_call_operand.vmem [shape: bf16[32,64], index: 4, kind: input, shape index: {}]
  %s5 = inlined_call_operand.vmem [shape: f32[1,64], index: 5, kind: input, shape index: {}]
  %s6 = inlined_call_operand.vmem [shape: bf16[32,32], index: 6, kind: input, shape index: {}]
  %s7 = inlined_call_operand.vmem [shape: f32[1,32], index: 7, kind: input, shape index: {}]
  %s8 = inlined_call_operand.vmem [shape: f32[1,32], index: 8, kind: input, shape index: {}]
  %s9 = inlined_call_operand.vmem [shape: f32[1,32], index: 9, kind: input, shape index: {}]
  %s10 = inlined_call_operand.vmem [shape: bf16[32,128], index: 10, kind: input, shape index: {}]
  %s11 = inlined_call_operand.vmem [shape: f32[1,128], index: 11, kind: input, shape index: {}]
  %s12 = inlined_call_operand.vmem [shape: bf16[128,32], index: 12, kind: input, shape index: {}]
  %s13 = inlined_call_operand.vmem [shape: f32[1,32], index: 13, kind: input, shape index: {}]
  %s14 = inlined_call_operand.vmem [shape: f32[1,32], index: 14, kind: input, shape index: {}]
  %s15 = inlined_call_operand.vmem [shape: f32[1,32], index: 15, kind: input, shape index: {}]
  %s16 = inlined_call_operand.vmem [shape: f32[2,128,32], index: 16, kind: output, shape index: {}]
  %s17 = sld [smem:[#allocation0]]
  $region101: #{tpu_custom_call.1} parent=0
    _
  %s19 = ssub.s32 1, %s17
  %s20 = scalar_select 0, %s19, %s17
  loop: start=0, step=1, limit=4
  $region2: #{tpu_custom_call.1} parent=0 // loop_pre_header
    _
  $region3: #{tpu_custom_call.1} parent=0 // loop_header
    %s22 = sphi 0, %s26
    %p23 = scmp.ge.s32.totalorder %s22, 4
    %s29 = sphi 0, %s41
    %s30 = sphi 0, %s37
    %s31 = sphi 0, %s29
    %s32 = sphi 0, %s30
    %s33 = sphi 0, %s31
    %s34 = sphi 0, %s32
    %s44 = sphi 0, %s46
    %s47 = sphi 0, %s44
    %s48 = sphi 0, %s47
    %s64 = sphi 0, %s48
    %s70 = sphi 0, %s72
    %s73 = sphi 0, %s70
    %s74 = sphi 0, %s73
    %s90 = sphi 0, %s74
    %s94 = sphi 0, %s94
    %s96 = sphi 0, %s94
    %s97 = sphi 0, %s96
    %s111 = sphi 0, %s97
    %s115 = sphi 0, %s115
    %s117 = sphi 0, %s115
    %s118 = sphi 0, %s117
    %s132 = sphi 0, %s118
    %s136 = sphi 0, %s136
    %s138 = sphi 0, %s136
    %s139 = sphi 0, %s138
    %s153 = sphi 0, %s139
    %s157 = sphi 0, %s157
    %s159 = sphi 0, %s157
    %s160 = sphi 0, %s159
    %s174 = sphi 0, %s160
    %s178 = sphi 0, %s178
    %s180 = sphi 0, %s178
    %s181 = sphi 0, %s180
    %s195 = sphi 0, %s181
    %s199 = sphi 0, %s199
    %s201 = sphi 0, %s199
    %s202 = sphi 0, %s201
    %s216 = sphi 0, %s202
    %s220 = sphi 0, %s220
    %s222 = sphi 0, %s220
    %s223 = sphi 0, %s222
    %s237 = sphi 0, %s223
    %s241 = sphi 0, %s241
    %s243 = sphi 0, %s241
    %s244 = sphi 0, %s243
    %s258 = sphi 0, %s244
    %s262 = sphi 0, %s262
    %s264 = sphi 0, %s262
    %s265 = sphi 0, %s264
    %s279 = sphi 0, %s265
    %s283 = sphi 0, %s283
    %s285 = sphi 0, %s283
    %s286 = sphi 0, %s285
    %s300 = sphi 0, %s286
    %s304 = sphi 0, %s304
    %s306 = sphi 0, %s304
    %s307 = sphi 0, %s306
    %s321 = sphi 0, %s307
    %s325 = sphi 0, %s325
    %s327 = sphi 0, %s325
    %s328 = sphi 0, %s327
    %s342 = sphi 0, %s328
    %s346 = sphi 0, %s346
    %s348 = sphi 0, %s346
    %s349 = sphi 0, %s348
    %s363 = sphi 0, %s349
    %s367 = sphi 0, %s367
    %s369 = sphi 0, %s367
    %s370 = sphi 0, %s369
    %s384 = sphi 0, %s370
    %s392 = sphi 0, %s394
    %s395 = sphi 0, %s392
    %s396 = sphi 0, %s395
    %s412 = sphi 0, %s396
  $region4: #{tpu_custom_call.1} parent=0 // loop_header_branch
    %25 = sbr.rel (%p23) target = $region8
  $region5: #{tpu_custom_call.1} parent=0 // loop_body
    %s27 = ssub.s32 %s22, 1
    %s28 = ssub.s32 %s22, 2
    %s35 = sadd.s32 1, %s30
    %p36 = scmp.ge.s32.totalorder %s35, 1
    %s37 = scalar_select %p36, 0, %s35
    %s38 = sadd.s32 1, %s29
    %s39 = scalar_select %p36, %s38, %s29
    %p40 = scmp.ge.s32.totalorder %s39, 2
    %s41 = scalar_select %p40, 0, %s39
    %s42 = ssub.s32 %s29, %s41
    %p43 = scmp.eq.s32.totalorder %s42, 0
    %s45 = sadd.s32 %s44, 1
    %s46 = scalar_select %p43, %s44, %s45
    %p49 = pneg %p43
    %p50 = scmp.eq.s32.totalorder %s22, 1
    %p51 = por %p49, %p50
    %p52 = scmp.ne.s32.totalorder %s44, %s47
    %p53 = scmp.eq.s32.totalorder %s22, 0
    %p54 = por %p52, %p53
    %p55 = scmp.ne.s32.totalorder %s44, %s47
    %p56 = scmp.eq.s32.totalorder %s27, 1
    %p57 = por %p55, %p56
    %p58 = scmp.ne.s32.totalorder %s47, %s48
    %p59 = scmp.eq.s32.totalorder %s27, 0
    %p60 = por %p58, %p59
    %p61 = scmp.ne.s32.totalorder %s47, %s48
    %p62 = scmp.eq.s32.totalorder %s28, 1
    %p63 = por %p61, %p62
    %p65 = scmp.ne.s32.totalorder %s48, %s64
    %p66 = scmp.eq.s32.totalorder %s28, 0
    %p67 = por %p65, %p66
    %s68 = ssub.s32 %s29, %s41
    %p69 = scmp.eq.s32.totalorder %s68, 0
    %s71 = sadd.s32 %s70, 1
    %s72 = scalar_select %p69, %s70, %s71
    %p75 = pneg %p69
    %p76 = scmp.eq.s32.totalorder %s22, 1
    %p77 = por %p75, %p76
    %p78 = scmp.ne.s32.totalorder %s70, %s73
    %p79 = scmp.eq.s32.totalorder %s22, 0
    %p80 = por %p78, %p79
    %p81 = scmp.ne.s32.totalorder %s70, %s73
    %p82 = scmp.eq.s32.totalorder %s27, 1
    %p83 = por %p81, %p82
    %p84 = scmp.ne.s32.totalorder %s73, %s74
    %p85 = scmp.eq.s32.totalorder %s27, 0
    %p86 = por %p84, %p85
    %p87 = scmp.ne.s32.totalorder %s73, %s74
    %p88 = scmp.eq.s32.totalorder %s28, 1
    %p89 = por %p87, %p88
    %p91 = scmp.ne.s32.totalorder %s74, %s90
    %p92 = scmp.eq.s32.totalorder %s28, 0
    %p93 = por %p91, %p92
    %s95 = sadd.s32 %s94, 1
    %p98 = scmp.eq.s32.totalorder %s22, 1
    %p99 = scmp.ne.s32.totalorder %s94, %s96
    %p100 = scmp.eq.s32.totalorder %s22, 0
    %p101 = por %p99, %p100
    %p102 = scmp.ne.s32.totalorder %s94, %s96
    %p103 = scmp.eq.s32.totalorder %s27, 1
    %p104 = por %p102, %p103
    %p105 = scmp.ne.s32.totalorder %s96, %s97
    %p106 = scmp.eq.s32.totalorder %s27, 0
    %p107 = por %p105, %p106
    %p108 = scmp.ne.s32.totalorder %s96, %s97
    %p109 = scmp.eq.s32.totalorder %s28, 1
    %p110 = por %p108, %p109
    %p112 = scmp.ne.s32.totalorder %s97, %s111
    %p113 = scmp.eq.s32.totalorder %s28, 0
    %p114 = por %p112, %p113
    %s116 = sadd.s32 %s115, 1
    %p119 = scmp.eq.s32.totalorder %s22, 1
    %p120 = scmp.ne.s32.totalorder %s115, %s117
    %p121 = scmp.eq.s32.totalorder %s22, 0
    %p122 = por %p120, %p121
    %p123 = scmp.ne.s32.totalorder %s115, %s117
    %p124 = scmp.eq.s32.totalorder %s27, 1
    %p125 = por %p123, %p124
    %p126 = scmp.ne.s32.totalorder %s117, %s118
    %p127 = scmp.eq.s32.totalorder %s27, 0
    %p128 = por %p126, %p127
    %p129 = scmp.ne.s32.totalorder %s117, %s118
    %p130 = scmp.eq.s32.totalorder %s28, 1
    %p131 = por %p129, %p130
    %p133 = scmp.ne.s32.totalorder %s118, %s132
    %p134 = scmp.eq.s32.totalorder %s28, 0
    %p135 = por %p133, %p134
    %s137 = sadd.s32 %s136, 1
    %p140 = scmp.eq.s32.totalorder %s22, 1
    %p141 = scmp.ne.s32.totalorder %s136, %s138
    %p142 = scmp.eq.s32.totalorder %s22, 0
    %p143 = por %p141, %p142
    %p144 = scmp.ne.s32.totalorder %s136, %s138
    %p145 = scmp.eq.s32.totalorder %s27, 1
    %p146 = por %p144, %p145
    %p147 = scmp.ne.s32.totalorder %s138, %s139
    %p148 = scmp.eq.s32.totalorder %s27, 0
    %p149 = por %p147, %p148
    %p150 = scmp.ne.s32.totalorder %s138, %s139
    %p151 = scmp.eq.s32.totalorder %s28, 1
    %p152 = por %p150, %p151
    %p154 = scmp.ne.s32.totalorder %s139, %s153
    %p155 = scmp.eq.s32.totalorder %s28, 0
    %p156 = por %p154, %p155
    %s158 = sadd.s32 %s157, 1
    %p161 = scmp.eq.s32.totalorder %s22, 1
    %p162 = scmp.ne.s32.totalorder %s157, %s159
    %p163 = scmp.eq.s32.totalorder %s22, 0
    %p164 = por %p162, %p163
    %p165 = scmp.ne.s32.totalorder %s157, %s159
    %p166 = scmp.eq.s32.totalorder %s27, 1
    %p167 = por %p165, %p166
    %p168 = scmp.ne.s32.totalorder %s159, %s160
    %p169 = scmp.eq.s32.totalorder %s27, 0
    %p170 = por %p168, %p169
    %p171 = scmp.ne.s32.totalorder %s159, %s160
    %p172 = scmp.eq.s32.totalorder %s28, 1
    %p173 = por %p171, %p172
    %p175 = scmp.ne.s32.totalorder %s160, %s174
    %p176 = scmp.eq.s32.totalorder %s28, 0
    %p177 = por %p175, %p176
    %s179 = sadd.s32 %s178, 1
    %p182 = scmp.eq.s32.totalorder %s22, 1
    %p183 = scmp.ne.s32.totalorder %s178, %s180
    %p184 = scmp.eq.s32.totalorder %s22, 0
    %p185 = por %p183, %p184
    %p186 = scmp.ne.s32.totalorder %s178, %s180
    %p187 = scmp.eq.s32.totalorder %s27, 1
    %p188 = por %p186, %p187
    %p189 = scmp.ne.s32.totalorder %s180, %s181
    %p190 = scmp.eq.s32.totalorder %s27, 0
    %p191 = por %p189, %p190
    %p192 = scmp.ne.s32.totalorder %s180, %s181
    %p193 = scmp.eq.s32.totalorder %s28, 1
    %p194 = por %p192, %p193
    %p196 = scmp.ne.s32.totalorder %s181, %s195
    %p197 = scmp.eq.s32.totalorder %s28, 0
    %p198 = por %p196, %p197
    %s200 = sadd.s32 %s199, 1
    %p203 = scmp.eq.s32.totalorder %s22, 1
    %p204 = scmp.ne.s32.totalorder %s199, %s201
    %p205 = scmp.eq.s32.totalorder %s22, 0
    %p206 = por %p204, %p205
    %p207 = scmp.ne.s32.totalorder %s199, %s201
    %p208 = scmp.eq.s32.totalorder %s27, 1
    %p209 = por %p207, %p208
    %p210 = scmp.ne.s32.totalorder %s201, %s202
    %p211 = scmp.eq.s32.totalorder %s27, 0
    %p212 = por %p210, %p211
    %p213 = scmp.ne.s32.totalorder %s201, %s202
    %p214 = scmp.eq.s32.totalorder %s28, 1
    %p215 = por %p213, %p214
    %p217 = scmp.ne.s32.totalorder %s202, %s216
    %p218 = scmp.eq.s32.totalorder %s28, 0
    %p219 = por %p217, %p218
    %s221 = sadd.s32 %s220, 1
    %p224 = scmp.eq.s32.totalorder %s22, 1
    %p225 = scmp.ne.s32.totalorder %s220, %s222
    %p226 = scmp.eq.s32.totalorder %s22, 0
    %p227 = por %p225, %p226
    %p228 = scmp.ne.s32.totalorder %s220, %s222
    %p229 = scmp.eq.s32.totalorder %s27, 1
    %p230 = por %p228, %p229
    %p231 = scmp.ne.s32.totalorder %s222, %s223
    %p232 = scmp.eq.s32.totalorder %s27, 0
    %p233 = por %p231, %p232
    %p234 = scmp.ne.s32.totalorder %s222, %s223
    %p235 = scmp.eq.s32.totalorder %s28, 1
    %p236 = por %p234, %p235
    %p238 = scmp.ne.s32.totalorder %s223, %s237
    %p239 = scmp.eq.s32.totalorder %s28, 0
    %p240 = por %p238, %p239
    %s242 = sadd.s32 %s241, 1
    %p245 = scmp.eq.s32.totalorder %s22, 1
    %p246 = scmp.ne.s32.totalorder %s241, %s243
    %p247 = scmp.eq.s32.totalorder %s22, 0
    %p248 = por %p246, %p247
    %p249 = scmp.ne.s32.totalorder %s241, %s243
    %p250 = scmp.eq.s32.totalorder %s27, 1
    %p251 = por %p249, %p250
    %p252 = scmp.ne.s32.totalorder %s243, %s244
    %p253 = scmp.eq.s32.totalorder %s27, 0
    %p254 = por %p252, %p253
    %p255 = scmp.ne.s32.totalorder %s243, %s244
    %p256 = scmp.eq.s32.totalorder %s28, 1
    %p257 = por %p255, %p256
    %p259 = scmp.ne.s32.totalorder %s244, %s258
    %p260 = scmp.eq.s32.totalorder %s28, 0
    %p261 = por %p259, %p260
    %s263 = sadd.s32 %s262, 1
    %p266 = scmp.eq.s32.totalorder %s22, 1
    %p267 = scmp.ne.s32.totalorder %s262, %s264
    %p268 = scmp.eq.s32.totalorder %s22, 0
    %p269 = por %p267, %p268
    %p270 = scmp.ne.s32.totalorder %s262, %s264
    %p271 = scmp.eq.s32.totalorder %s27, 1
    %p272 = por %p270, %p271
    %p273 = scmp.ne.s32.totalorder %s264, %s265
    %p274 = scmp.eq.s32.totalorder %s27, 0
    %p275 = por %p273, %p274
    %p276 = scmp.ne.s32.totalorder %s264, %s265
    %p277 = scmp.eq.s32.totalorder %s28, 1
    %p278 = por %p276, %p277
    %p280 = scmp.ne.s32.totalorder %s265, %s279
    %p281 = scmp.eq.s32.totalorder %s28, 0
    %p282 = por %p280, %p281
    %s284 = sadd.s32 %s283, 1
    %p287 = scmp.eq.s32.totalorder %s22, 1
    %p288 = scmp.ne.s32.totalorder %s283, %s285
    %p289 = scmp.eq.s32.totalorder %s22, 0
    %p290 = por %p288, %p289
    %p291 = scmp.ne.s32.totalorder %s283, %s285
    %p292 = scmp.eq.s32.totalorder %s27, 1
    %p293 = por %p291, %p292
    %p294 = scmp.ne.s32.totalorder %s285, %s286
    %p295 = scmp.eq.s32.totalorder %s27, 0
    %p296 = por %p294, %p295
    %p297 = scmp.ne.s32.totalorder %s285, %s286
    %p298 = scmp.eq.s32.totalorder %s28, 1
    %p299 = por %p297, %p298
    %p301 = scmp.ne.s32.totalorder %s286, %s300
    %p302 = scmp.eq.s32.totalorder %s28, 0
    %p303 = por %p301, %p302
    %s305 = sadd.s32 %s304, 1
    %p308 = scmp.eq.s32.totalorder %s22, 1
    %p309 = scmp.ne.s32.totalorder %s304, %s306
    %p310 = scmp.eq.s32.totalorder %s22, 0
    %p311 = por %p309, %p310
    %p312 = scmp.ne.s32.totalorder %s304, %s306
    %p313 = scmp.eq.s32.totalorder %s27, 1
    %p314 = por %p312, %p313
    %p315 = scmp.ne.s32.totalorder %s306, %s307
    %p316 = scmp.eq.s32.totalorder %s27, 0
    %p317 = por %p315, %p316
    %p318 = scmp.ne.s32.totalorder %s306, %s307
    %p319 = scmp.eq.s32.totalorder %s28, 1
    %p320 = por %p318, %p319
    %p322 = scmp.ne.s32.totalorder %s307, %s321
    %p323 = scmp.eq.s32.totalorder %s28, 0
    %p324 = por %p322, %p323
    %s326 = sadd.s32 %s325, 1
    %p329 = scmp.eq.s32.totalorder %s22, 1
    %p330 = scmp.ne.s32.totalorder %s325, %s327
    %p331 = scmp.eq.s32.totalorder %s22, 0
    %p332 = por %p330, %p331
    %p333 = scmp.ne.s32.totalorder %s325, %s327
    %p334 = scmp.eq.s32.totalorder %s27, 1
    %p335 = por %p333, %p334
    %p336 = scmp.ne.s32.totalorder %s327, %s328
    %p337 = scmp.eq.s32.totalorder %s27, 0
    %p338 = por %p336, %p337
    %p339 = scmp.ne.s32.totalorder %s327, %s328
    %p340 = scmp.eq.s32.totalorder %s28, 1
    %p341 = por %p339, %p340
    %p343 = scmp.ne.s32.totalorder %s328, %s342
    %p344 = scmp.eq.s32.totalorder %s28, 0
    %p345 = por %p343, %p344
    %s347 = sadd.s32 %s346, 1
    %p350 = scmp.eq.s32.totalorder %s22, 1
    %p351 = scmp.ne.s32.totalorder %s346, %s348
    %p352 = scmp.eq.s32.totalorder %s22, 0
    %p353 = por %p351, %p352
    %p354 = scmp.ne.s32.totalorder %s346, %s348
    %p355 = scmp.eq.s32.totalorder %s27, 1
    %p356 = por %p354, %p355
    %p357 = scmp.ne.s32.totalorder %s348, %s349
    %p358 = scmp.eq.s32.totalorder %s27, 0
    %p359 = por %p357, %p358
    %p360 = scmp.ne.s32.totalorder %s348, %s349
    %p361 = scmp.eq.s32.totalorder %s28, 1
    %p362 = por %p360, %p361
    %p364 = scmp.ne.s32.totalorder %s349, %s363
    %p365 = scmp.eq.s32.totalorder %s28, 0
    %p366 = por %p364, %p365
    %s368 = sadd.s32 %s367, 1
    %p371 = scmp.eq.s32.totalorder %s22, 1
    %p372 = scmp.ne.s32.totalorder %s367, %s369
    %p373 = scmp.eq.s32.totalorder %s22, 0
    %p374 = por %p372, %p373
    %p375 = scmp.ne.s32.totalorder %s367, %s369
    %p376 = scmp.eq.s32.totalorder %s27, 1
    %p377 = por %p375, %p376
    %p378 = scmp.ne.s32.totalorder %s369, %s370
    %p379 = scmp.eq.s32.totalorder %s27, 0
    %p380 = por %p378, %p379
    %p381 = scmp.ne.s32.totalorder %s369, %s370
    %p382 = scmp.eq.s32.totalorder %s28, 1
    %p383 = por %p381, %p382
    %p385 = scmp.ne.s32.totalorder %s370, %s384
    %p386 = scmp.eq.s32.totalorder %s28, 0
    %p387 = por %p385, %p386
    %s388 = ssub.s32 %s29, %s41
    %s389 = ssub.s32 %s30, %s37
    %s390 = sor.u32 %s388, %s389
    %p391 = scmp.eq.s32.totalorder %s390, 0
    %s393 = sadd.s32 %s392, 1
    %s394 = scalar_select %p391, %s392, %s393
    %p397 = pneg %p391
    %p398 = scmp.eq.s32.totalorder %s22, 1
    %p399 = por %p397, %p398
    %p400 = scmp.ne.s32.totalorder %s392, %s395
    %p401 = scmp.eq.s32.totalorder %s22, 0
    %p402 = por %p400, %p401
    %p403 = scmp.ne.s32.totalorder %s392, %s395
    %p404 = scmp.eq.s32.totalorder %s27, 1
    %p405 = por %p403, %p404
    %p406 = scmp.ne.s32.totalorder %s395, %s396
    %p407 = scmp.eq.s32.totalorder %s27, 0
    %p408 = por %p406, %p407
    %p409 = scmp.ne.s32.totalorder %s395, %s396
    %p410 = scmp.eq.s32.totalorder %s28, 1
    %p411 = por %p409, %p410
    %p413 = scmp.ne.s32.totalorder %s396, %s412
    %p414 = scmp.eq.s32.totalorder %s28, 0
    %p415 = por %p413, %p414
    %p416 = scmp.le.s32.totalorder 1, %s22
    %p417 = scmp.lt.s32.totalorder %s22, 3
    %p418 = pnand %p416, %p417
    %p419 = pneg %p418
    // Predicated region
    $region9: #{tpu_custom_call.1} parent=5 // pred_check
      _
    $region10: #{tpu_custom_call.1} parent=5 // pred_check_branch
      %421 = sbr.rel (%p418) target = $region12
    $region11: #{tpu_custom_call.1} parent=5 // pred_region
      %s422 = ssub.s32 %s22, 1
      // Predicated region
      $region13: #{tpu_custom_call.1} parent=11 // pred_check
        %p423 = pneg %p107
      $region14: #{tpu_custom_call.1} parent=11 // pred_check_branch
        %425 = sbr.rel (%p423) target = $region16
      $region15: #{tpu_custom_call.1} parent=11 // pred_region
        _
      $region16: #{tpu_custom_call.1} parent=11 // pred_fallthru
        _
      // Predicated region
      $region17: #{tpu_custom_call.1} parent=11 // pred_check
        %p426 = pneg %p128
      $region18: #{tpu_custom_call.1} parent=11 // pred_check_branch
        %428 = sbr.rel (%p426) target = $region20
      $region19: #{tpu_custom_call.1} parent=11 // pred_region
        _
      $region20: #{tpu_custom_call.1} parent=11 // pred_fallthru
        _
      // Predicated region
      $region21: #{tpu_custom_call.1} parent=11 // pred_check
        %p429 = pneg %p149
      $region22: #{tpu_custom_call.1} parent=11 // pred_check_branch
        %431 = sbr.rel (%p429) target = $region24
      $region23: #{tpu_custom_call.1} parent=11 // pred_region
        _
      $region24: #{tpu_custom_call.1} parent=11 // pred_fallthru
        _
      // Predicated region
      $region25: #{tpu_custom_call.1} parent=11 // pred_check
        %p432 = pneg %p170
      $region26: #{tpu_custom_call.1} parent=11 // pred_check_branch
        %434 = sbr.rel (%p432) target = $region28
      $region27: #{tpu_custom_call.1} parent=11 // pred_region
        _
      $region28: #{tpu_custom_call.1} parent=11 // pred_fallthru
        _
      // Predicated region
      $region29: #{tpu_custom_call.1} parent=11 // pred_check
        %p435 = pneg %p191
      $region30: #{tpu_custom_call.1} parent=11 // pred_check_branch
        %437 = sbr.rel (%p435) target = $region32
      $region31: #{tpu_custom_call.1} parent=11 // pred_region
        _
      $region32: #{tpu_custom_call.1} parent=11 // pred_fallthru
        _
      // Predicated region
      $region33: #{tpu_custom_call.1} parent=11 // pred_check
        %p438 = pneg %p212
      $region34: #{tpu_custom_call.1} parent=11 // pred_check_branch
        %440 = sbr.rel (%p438) target = $region36
      $region35: #{tpu_custom_call.1} parent=11 // pred_region
        _
      $region36: #{tpu_custom_call.1} parent=11 // pred_fallthru
        _
      // Predicated region
      $region37: #{tpu_custom_call.1} parent=11 // pred_check
        %p441 = pneg %p233
      $region38: #{tpu_custom_call.1} parent=11 // pred_check_branch
        %443 = sbr.rel (%p441) target = $region40
      $region39: #{tpu_custom_call.1} parent=11 // pred_region
        _
      $region40: #{tpu_custom_call.1} parent=11 // pred_fallthru
        _
      // Predicated region
      $region41: #{tpu_custom_call.1} parent=11 // pred_check
        %p444 = pneg %p254
      $region42: #{tpu_custom_call.1} parent=11 // pred_check_branch
        %446 = sbr.rel (%p444) target = $region44
      $region43: #{tpu_custom_call.1} parent=11 // pred_region
        _
      $region44: #{tpu_custom_call.1} parent=11 // pred_fallthru
        _
      // Predicated region
      $region45: #{tpu_custom_call.1} parent=11 // pred_check
        %p447 = pneg %p275
      $region46: #{tpu_custom_call.1} parent=11 // pred_check_branch
        %449 = sbr.rel (%p447) target = $region48
      $region47: #{tpu_custom_call.1} parent=11 // pred_region
        _
      $region48: #{tpu_custom_call.1} parent=11 // pred_fallthru
        _
      // Predicated region
      $region49: #{tpu_custom_call.1} parent=11 // pred_check
        %p450 = pneg %p296
      $region50: #{tpu_custom_call.1} parent=11 // pred_check_branch
        %452 = sbr.rel (%p450) target = $region52
      $region51: #{tpu_custom_call.1} parent=11 // pred_region
        _
      $region52: #{tpu_custom_call.1} parent=11 // pred_fallthru
        _
      // Predicated region
      $region53: #{tpu_custom_call.1} parent=11 // pred_check
        %p453 = pneg %p317
      $region54: #{tpu_custom_call.1} parent=11 // pred_check_branch
        %455 = sbr.rel (%p453) target = $region56
      $region55: #{tpu_custom_call.1} parent=11 // pred_region
        _
      $region56: #{tpu_custom_call.1} parent=11 // pred_fallthru
        _
      // Predicated region
      $region57: #{tpu_custom_call.1} parent=11 // pred_check
        %p456 = pneg %p338
      $region58: #{tpu_custom_call.1} parent=11 // pred_check_branch
        %458 = sbr.rel (%p456) target = $region60
      $region59: #{tpu_custom_call.1} parent=11 // pred_region
        _
      $region60: #{tpu_custom_call.1} parent=11 // pred_fallthru
        _
      // Predicated region
      $region61: #{tpu_custom_call.1} parent=11 // pred_check
        %p459 = pneg %p359
      $region62: #{tpu_custom_call.1} parent=11 // pred_check_branch
        %461 = sbr.rel (%p459) target = $region64
      $region63: #{tpu_custom_call.1} parent=11 // pred_region
        _
      $region64: #{tpu_custom_call.1} parent=11 // pred_fallthru
        _
      // Predicated region
      $region65: #{tpu_custom_call.1} parent=11 // pred_check
        %p462 = pneg %p380
      $region66: #{tpu_custom_call.1} parent=11 // pred_check_branch
        %464 = sbr.rel (%p462) target = $region68
      $region67: #{tpu_custom_call.1} parent=11 // pred_region
        _
      $region68: #{tpu_custom_call.1} parent=11 // pred_fallthru
        _
    $region12: #{tpu_custom_call.1} parent=5 // pred_fallthru
      _
    %p465 = scmp.lt.s32.totalorder %s22, 2
    // Predicated region
    $region69: #{tpu_custom_call.1} parent=5 // pred_check
      %p466 = pneg %p465
    $region70: #{tpu_custom_call.1} parent=5 // pred_check_branch
      %468 = sbr.rel (%p466) target = $region72
    $region71: #{tpu_custom_call.1} parent=5 // pred_region
      // Predicated region
      $region73: #{tpu_custom_call.1} parent=71 // pred_check
        %p469 = pneg %p54
      $region74: #{tpu_custom_call.1} parent=71 // pred_check_branch
        %471 = sbr.rel (%p469) target = $region76
      $region75: #{tpu_custom_call.1} parent=71 // pred_region
        %p472 = scmp.lt.s32.totalorder %s29, 1
        %s473 = scalar_select %p472, %s29, 1
        %s474 = scalar_lea.vmem %s0, %s473
      $region76: #{tpu_custom_call.1} parent=71 // pred_fallthru
        _
      // Predicated region
      $region77: #{tpu_custom_call.1} parent=71 // pred_check
        %p475 = pneg %p80
      $region78: #{tpu_custom_call.1} parent=71 // pred_check_branch
        %477 = sbr.rel (%p475) target = $region80
      $region79: #{tpu_custom_call.1} parent=71 // pred_region
        %p478 = scmp.lt.s32.totalorder %s29, 1
        %s479 = scalar_select %p478, %s29, 1
        %s480 = smul.addr %s479, 16
        %s481 = smul.addr %s480, 4
        %s482 = scalar_lea.vmem %s1, %s481
      $region80: #{tpu_custom_call.1} parent=71 // pred_fallthru
        _
    $region72: #{tpu_custom_call.1} parent=5 // pred_fallthru
      _
    %p483 = scmp.le.s32.totalorder 1, %s22
    %p484 = scmp.lt.s32.totalorder %s22, 3
    %p485 = pnand %p483, %p484
    %p486 = pneg %p485
    // Predicated region
    $region81: #{tpu_custom_call.1} parent=5 // pred_check
      _
    $region82: #{tpu_custom_call.1} parent=5 // pred_check_branch
      %488 = sbr.rel (%p485) target = $region84
    $region83: #{tpu_custom_call.1} parent=5 // pred_region
      %s489 = ssub.s32 %s22, 1
      %p490 = scmp.lt.s32.totalorder %s31, 1
      %s491 = scalar_select %p490, %s31, 1
      %s492 = scalar_lea.vmem %s0, %s491
      %p493 = pneg %p60
      %p494 = pneg %p57
      %p495 = scmp.lt.s32.totalorder %s31, 1
      %s496 = scalar_select %p495, %s31, 1
      %s497 = smul.addr %s496, 16
      %s498 = smul.addr %s497, 4
      %s499 = scalar_lea.vmem %s1, %s498
      %p500 = pneg %p86
      %p501 = pneg %p83
      %p502 = pneg %p107
      %p503 = pneg %p104
      %p504 = pneg %p128
      %p505 = pneg %p125
      %p506 = pneg %p149
      %p507 = pneg %p146
      %p508 = pneg %p170
      %p509 = pneg %p167
      %p510 = pneg %p191
      %p511 = pneg %p188
      %p512 = pneg %p212
      %p513 = pneg %p209
      %p514 = pneg %p233
      %p515 = pneg %p230
      %p516 = pneg %p254
      %p517 = pneg %p251
      %p518 = pneg %p275
      %p519 = pneg %p272
      %p520 = pneg %p296
      %p521 = pneg %p293
      %p522 = pneg %p317
      %p523 = pneg %p314
      %p524 = pneg %p338
      %p525 = pneg %p335
      %p526 = pneg %p359
      %p527 = pneg %p356
      %p528 = pneg %p380
      %p529 = pneg %p377
      %p530 = pneg %p408
      %p531 = pneg %p405
      %s532 = smul.u32 16, %s32
      %p533 = scmp.lt.s32.totalorder %s31, 1
      %s534 = scalar_select %p533, %s31, 1
      %p535 = scmp.lt.s32.totalorder %s532, 15
      %s536 = scalar_select %p535, %s532, 15
      %s537 = smul.addr %s534, 16
      %s538 = sadd.s32 %s536, %s537
      %s539 = smul.addr %s538, 8
      %s540 = scalar_lea.vmem %s16, %s539
      %p541 = scmp.lt.s32.totalorder %s31, 1
      %s542 = scalar_select %p541, %s31, 1
      %s543 = scalar_lea.vmem %s0, %s542
      %p544 = scmp.lt.s32.totalorder %s31, 1
      %s545 = scalar_select %p544, %s31, 1
      %s546 = smul.addr %s545, 16
      %s547 = smul.addr %s546, 4
      %s548 = scalar_lea.vmem %s1, %s547
      %s549 = smul.u32 16, %s32
      %p550 = scmp.lt.s32.totalorder %s31, 1
      %s551 = scalar_select %p550, %s31, 1
      %p552 = scmp.lt.s32.totalorder %s549, 15
      %s553 = scalar_select %p552, %s549, 15
      %s554 = smul.addr %s551, 16
      %s555 = sadd.s32 %s553, %s554
      %s556 = smul.addr %s555, 8
      %s557 = scalar_lea.vmem %s16, %s556
      %s558 = smul.u32 16, %s32
      %s560 = smul.u32 %s32, 128
      %p561 = scmp.eq.s32.totalorder %s32, 0
      // Predicated region
      $region85: #{tpu_custom_call.1} parent=83 // pred_check
        %p562 = pneg %p561
      $region86: #{tpu_custom_call.1} parent=83 // pred_check_branch
        %564 = sbr.rel (%p562) target = $region88
      $region87: #{tpu_custom_call.1} parent=83 // pred_region
        %v565 = vld [vmem:[%s548] sm:$0xf]
        %v566 = vld [vmem:[%s548 + $0x4] sm:$0xf]
        %v567 = vld [vmem:[%s548 + $0x8] sm:$0xf]
        %v568 = vld [vmem:[%s548 + $0xc] sm:$0xf]
        %v569 = vld [vmem:[%s548 + $0x10] sm:$0xf]
        %v570 = vld [vmem:[%s548 + $0x14] sm:$0xf]
        %v571 = vld [vmem:[%s548 + $0x18] sm:$0xf]
        %v572 = vld [vmem:[%s548 + $0x1c] sm:$0xf]
        %v573 = vld [vmem:[%s548 + $0x20] sm:$0xf]
        %v574 = vld [vmem:[%s548 + $0x24] sm:$0xf]
        %v575 = vld [vmem:[%s548 + $0x28] sm:$0xf]
        %v576 = vld [vmem:[%s548 + $0x2c] sm:$0xf]
        %v577 = vld [vmem:[%s548 + $0x30] sm:$0xf]
        %v578 = vld [vmem:[%s548 + $0x34] sm:$0xf]
        %v579 = vld [vmem:[%s548 + $0x38] sm:$0xf]
        %v580 = vld [vmem:[%s548 + $0x3c] sm:$0xf]
        %v581 = vld [vmem:[%s4] sm:$0xf]
        %v582 = vld [vmem:[%s4 + $0x4] sm:$0xf]
        %v583 = vld [vmem:[%s4 + $0x8] sm:$0xf]
        %v584 = vld [vmem:[%s4 + $0xc] sm:$0xf]
        %v585 = vld [vmem:[%s5] sm:$0x1]
        %v587 = vlaneseq
        %v588 = vshrl.u32 %v587, 7
        %v589 = vsub.s32 0, %v588
        %v590 = vrot.slane %v585, %v589
        %v608 = vunpack.c.l.b16 %v565
        %v609 = vunpack.c.l.b16 %v566
        %v610 = vunpack.c.l.b16 %v567
        %v611 = vunpack.c.l.b16 %v568
        %v612 = vunpack.c.l.b16 %v569
        %v613 = vunpack.c.l.b16 %v570
        %v614 = vunpack.c.l.b16 %v571
        %v615 = vunpack.c.l.b16 %v572
        %v616 = vunpack.c.l.b16 %v573
        %v617 = vunpack.c.l.b16 %v574
        %v618 = vunpack.c.l.b16 %v575
        %v619 = vunpack.c.l.b16 %v576
        %v620 = vunpack.c.l.b16 %v577
        %v621 = vunpack.c.l.b16 %v578
        %v622 = vunpack.c.l.b16 %v579
        %v623 = vunpack.c.l.b16 %v580
        %v624 = vpack.c.b16 %v609, %v608
        %v625 = vpack.c.b16 %v611, %v610
        %v626 = vpack.c.b16 %v613, %v612
        %v627 = vpack.c.b16 %v615, %v614
        %v628 = vpack.c.b16 %v617, %v616
        %v629 = vpack.c.b16 %v619, %v618
        %v630 = vpack.c.b16 %v621, %v620
        %v631 = vpack.c.b16 %v623, %v622
        %v636 = vunpack.c.l.b16 %v581
        %v637 = vunpack.c.l.b16 %v582
        %v638 = vunpack.c.l.b16 %v583
        %v639 = vunpack.c.l.b16 %v584
        %v640 = vpack.c.b16 %v637, %v636
        %v641 = vpack.c.b16 %v639, %v638
        %vm644 = vcmask 261120
        %v646 = vsel %vm644, %v624, 0
        %v649 = vsel %vm644, %v625, 0
        %v652 = vsel %vm644, %v626, 0
        %v655 = vsel %vm644, %v627, 0
        %v658 = vsel %vm644, %v628, 0
        %v661 = vsel %vm644, %v629, 0
        %v664 = vsel %vm644, %v630, 0
        %v667 = vsel %vm644, %v631, 0
        %669 = vmatprep.subr.bf16.mxu0 0
        %670 = vmatpush1.bf16.msra.mxu0 %v640
        %671 = vmatprep.subr.bf16.mxu0 0
        %672 = vmatpush1.bf16.msra.mxu0 %v641
        %673 = vmatprep.subr.bf16.mxu0 0
        %674 = vmatpush1.bf16.msra.mxu0 0
        %675 = vmatprep.subr.bf16.mxu0 0
        %676 = vmatpush1.bf16.msra.mxu0 0
        %677 = vmatprep.subr.bf16.mxu0 0
        %678 = vmatpush1.bf16.msra.mxu0 0
        %679 = vmatprep.subr.bf16.mxu0 0
        %680 = vmatpush1.bf16.msra.mxu0 0
        %681 = vmatprep.subr.bf16.mxu0 0
        %682 = vmatpush1.bf16.msra.mxu0 0
        %683 = vmatprep.subr.bf16.mxu0 0
        %684 = vmatpush1.bf16.msra.mxu0 0
        %685 = vmatprep.subr.bf16.mxu0 0
        %686 = vmatpush1.bf16.msra.mxu0 0
        %687 = vmatprep.subr.bf16.mxu0 0
        %688 = vmatpush1.bf16.msra.mxu0 0
        %689 = vmatprep.subr.bf16.mxu0 0
        %690 = vmatpush1.bf16.msra.mxu0 0
        %691 = vmatprep.subr.bf16.mxu0 0
        %692 = vmatpush1.bf16.msra.mxu0 0
        %693 = vmatprep.subr.bf16.mxu0 0
        %694 = vmatpush1.bf16.msra.mxu0 0
        %695 = vmatprep.subr.bf16.mxu0 0
        %696 = vmatpush1.bf16.msra.mxu0 0
        %697 = vmatprep.subr.bf16.mxu0 0
        %698 = vmatpush1.bf16.msra.mxu0 0
        %699 = vmatprep.subr.bf16.mxu0 0
        %700 = vmatpush1.bf16.msra.mxu0 0
        %701 = vmatprep.mubr.bf16.mxu0 0
        %702 = vmatmul.mubr.bf16.gmra.mrb[0].mxu0 %v646
        %v703 = vpop.f32.mrb[0].mxu0
        %v704 = vadd.f32 %v590, %v703
        %v705 = vpop.f32.mrb[0].mxu0
        %v706 = vpop.f32.mrb[0].mxu0
        %v707 = vadd.f32 %v590, %v706
        %v708 = vpop.f32.mrb[0].mxu0
        %709 = vmatprep.mubr.bf16.mxu0 0
        %710 = vmatmul.mubr.bf16.gmra.mrb[0].mxu0 %v649
        %v711 = vpop.f32.mrb[0].mxu0
        %v712 = vadd.f32 %v590, %v711
        %v713 = vpop.f32.mrb[0].mxu0
        %v714 = vpop.f32.mrb[0].mxu0
        %v715 = vadd.f32 %v590, %v714
        %v716 = vpop.f32.mrb[0].mxu0
        %717 = vmatprep.mubr.bf16.mxu0 0
        %718 = vmatmul.mubr.bf16.gmra.mrb[0].mxu0 %v652
        %v719 = vpop.f32.mrb[0].mxu0
        %v720 = vadd.f32 %v590, %v719
        %v721 = vpop.f32.mrb[0].mxu0
        %v722 = vpop.f32.mrb[0].mxu0
        %v723 = vadd.f32 %v590, %v722
        %v724 = vpop.f32.mrb[0].mxu0
        %725 = vmatprep.mubr.bf16.mxu0 0
        %726 = vmatmul.mubr.bf16.gmra.mrb[0].mxu0 %v655
        %v727 = vpop.f32.mrb[0].mxu0
        %v728 = vadd.f32 %v590, %v727
        %v729 = vpop.f32.mrb[0].mxu0
        %v730 = vpop.f32.mrb[0].mxu0
        %v731 = vadd.f32 %v590, %v730
        %v732 = vpop.f32.mrb[0].mxu0
        %733 = vmatprep.mubr.bf16.mxu0 0
        %734 = vmatmul.mubr.bf16.gmra.mrb[0].mxu0 %v658
        %v735 = vpop.f32.mrb[0].mxu0
        %v736 = vadd.f32 %v590, %v735
        %v737 = vpop.f32.mrb[0].mxu0
        %v738 = vpop.f32.mrb[0].mxu0
        %v739 = vadd.f32 %v590, %v738
        %v740 = vpop.f32.mrb[0].mxu0
        %741 = vmatprep.mubr.bf16.mxu0 0
        %742 = vmatmul.mubr.bf16.gmra.mrb[0].mxu0 %v661
        %v743 = vpop.f32.mrb[0].mxu0
        %v744 = vadd.f32 %v590, %v743
        %v745 = vpop.f32.mrb[0].mxu0
        %v746 = vpop.f32.mrb[0].mxu0
        %v747 = vadd.f32 %v590, %v746
        %v748 = vpop.f32.mrb[0].mxu0
        %749 = vmatprep.mubr.bf16.mxu0 0
        %750 = vmatmul.mubr.bf16.gmra.mrb[0].mxu0 %v664
        %v751 = vpop.f32.mrb[0].mxu0
        %v752 = vadd.f32 %v590, %v751
        %v753 = vpop.f32.mrb[0].mxu0
        %v754 = vpop.f32.mrb[0].mxu0
        %v755 = vadd.f32 %v590, %v754
        %v756 = vpop.f32.mrb[0].mxu0
        %757 = vmatprep.mubr.bf16.mxu0 0
        %758 = vmatmul.mubr.bf16.gmra.mrb[0].mxu0 %v667
        %v759 = vpop.f32.mrb[0].mxu0
        %v760 = vadd.f32 %v590, %v759
        %v761 = vpop.f32.mrb[0].mxu0
        %v762 = vpop.f32.mrb[0].mxu0
        %v763 = vadd.f32 %v590, %v762
        %v764 = vpop.f32.mrb[0].mxu0
        %765 = vdwg.mxu0
        %v766 = vpack.c.bf16 %v707, %v704
        %v767 = vpack.c.bf16 %v715, %v712
        %v768 = vpack.c.bf16 %v723, %v720
        %v769 = vpack.c.bf16 %v731, %v728
        %v770 = vpack.c.bf16 %v739, %v736
        %v771 = vpack.c.bf16 %v747, %v744
        %v772 = vpack.c.bf16 %v755, %v752
        %v773 = vpack.c.bf16 %v763, %v760
        %774 = vst.msk [vmem:[#allocation2] sm:$0xff] %vm644, %v766
        %775 = vst.msk [vmem:[#allocation2 + $0x8] sm:$0xff] %vm644, %v767
        %776 = vst.msk [vmem:[#allocation2 + $0x10] sm:$0xff] %vm644, %v768
        %777 = vst.msk [vmem:[#allocation2 + $0x18] sm:$0xff] %vm644, %v769
        %778 = vst.msk [vmem:[#allocation2 + $0x20] sm:$0xff] %vm644, %v770
        %779 = vst.msk [vmem:[#allocation2 + $0x28] sm:$0xff] %vm644, %v771
        %780 = vst.msk [vmem:[#allocation2 + $0x30] sm:$0xff] %vm644, %v772
        %781 = vst.msk [vmem:[#allocation2 + $0x38] sm:$0xff] %vm644, %v773
        %790 = vrot.lane.b32.xlu0 %v766, 96
        %v791 = vpop.permute.xlu0 %790
        %792 = vrot.lane.b32.xlu0 %v767, 96
        %v793 = vpop.permute.xlu0 %792
        %794 = vrot.lane.b32.xlu0 %v768, 96
        %v795 = vpop.permute.xlu0 %794
        %796 = vrot.lane.b32.xlu0 %v769, 96
        %v797 = vpop.permute.xlu0 %796
        %798 = vrot.lane.b32.xlu0 %v770, 96
        %v799 = vpop.permute.xlu0 %798
        %800 = vrot.lane.b32.xlu0 %v771, 96
        %v801 = vpop.permute.xlu0 %800
        %802 = vrot.lane.b32.xlu0 %v772, 96
        %v803 = vpop.permute.xlu0 %802
        %804 = vrot.lane.b32.xlu0 %v773, 96
        %v805 = vpop.permute.xlu0 %804
        %814 = vst.msk [vmem:[#allocation3] sm:$0xff] %vm644, %v791
        %815 = vst.msk [vmem:[#allocation3 + $0x8] sm:$0xff] %vm644, %v793
        %816 = vst.msk [vmem:[#allocation3 + $0x10] sm:$0xff] %vm644, %v795
        %817 = vst.msk [vmem:[#allocation3 + $0x18] sm:$0xff] %vm644, %v797
        %818 = vst.msk [vmem:[#allocation3 + $0x20] sm:$0xff] %vm644, %v799
        %819 = vst.msk [vmem:[#allocation3 + $0x28] sm:$0xff] %vm644, %v801
        %820 = vst.msk [vmem:[#allocation3 + $0x30] sm:$0xff] %vm644, %v803
        %821 = vst.msk [vmem:[#allocation3 + $0x38] sm:$0xff] %vm644, %v805
      $region88: #{tpu_custom_call.1} parent=83 // pred_fallthru
        _
      %s822 = sshra.s32 %s560, 3
      %s823 = sand.u32 %s560, 7
      %s824 = smul.addr %s822, 4
      %s825 = scalar_lea.vmem %s548, %s824
      %v826 = vld [vmem:[%s825] sm:$0xf]
      %v827 = vld [vmem:[%s825 + $0x4] sm:$0xf]
      %v828 = vld [vmem:[%s825 + $0x8] sm:$0xf]
      %v829 = vld [vmem:[%s825 + $0xc] sm:$0xf]
      %v830 = vld [vmem:[%s825 + $0x10] sm:$0xf]
      %v831 = vld [vmem:[%s825 + $0x14] sm:$0xf]
      %v832 = vld [vmem:[%s825 + $0x18] sm:$0xf]
      %v833 = vld [vmem:[%s825 + $0x1c] sm:$0xf]
      %v834 = vld [vmem:[%s825 + $0x20] sm:$0xf]
      %v835 = vld [vmem:[%s825 + $0x24] sm:$0xf]
      %v836 = vld [vmem:[%s825 + $0x28] sm:$0xf]
      %v837 = vld [vmem:[%s825 + $0x2c] sm:$0xf]
      %v838 = vld [vmem:[%s825 + $0x30] sm:$0xf]
      %v839 = vld [vmem:[%s825 + $0x34] sm:$0xf]
      %v840 = vld [vmem:[%s825 + $0x38] sm:$0xf]
      %v841 = vld [vmem:[%s825 + $0x3c] sm:$0xf]
      %v842 = vunpack.c.l.bf16 %v826
      %v843 = vunpack.c.l.bf16 %v827
      %v844 = vunpack.c.l.bf16 %v828
      %v845 = vunpack.c.l.bf16 %v829
      %v846 = vunpack.c.l.bf16 %v830
      %v847 = vunpack.c.l.bf16 %v831
      %v848 = vunpack.c.l.bf16 %v832
      %v849 = vunpack.c.l.bf16 %v833
      %v850 = vunpack.c.l.bf16 %v834
      %v851 = vunpack.c.l.bf16 %v835
      %v852 = vunpack.c.l.bf16 %v836
      %v853 = vunpack.c.l.bf16 %v837
      %v854 = vunpack.c.l.bf16 %v838
      %v855 = vunpack.c.l.bf16 %v839
      %v856 = vunpack.c.l.bf16 %v840
      %v857 = vunpack.c.l.bf16 %v841
      %v858 = vld [vmem:[%s2] sm:$0xf]
      %v859 = vld [vmem:[%s2 + $0x4] sm:$0xf]
      %v860 = vld [vmem:[%s2 + $0x8] sm:$0xf]
      %v861 = vld [vmem:[%s2 + $0xc] sm:$0xf]
      %v862 = vld [vmem:[%s3] sm:$0x1]
      %v864 = vlaneseq
      %v865 = vshrl.u32 %v864, 7
      %v866 = vsub.s32 0, %v865
      %v867 = vrot.slane %v862, %v866
      %v885 = vunpack.c.l.b16 %v826
      %v886 = vunpack.c.l.b16 %v827
      %v887 = vunpack.c.l.b16 %v828
      %v888 = vunpack.c.l.b16 %v829
      %v889 = vunpack.c.l.b16 %v830
      %v890 = vunpack.c.l.b16 %v831
      %v891 = vunpack.c.l.b16 %v832
      %v892 = vunpack.c.l.b16 %v833
      %v893 = vunpack.c.l.b16 %v834
      %v894 = vunpack.c.l.b16 %v835
      %v895 = vunpack.c.l.b16 %v836
      %v896 = vunpack.c.l.b16 %v837
      %v897 = vunpack.c.l.b16 %v838
      %v898 = vunpack.c.l.b16 %v839
      %v899 = vunpack.c.l.b16 %v840
      %v900 = vunpack.c.l.b16 %v841
      %v901 = vpack.c.b16 %v886, %v885
      %v902 = vpack.c.b16 %v888, %v887
      %v903 = vpack.c.b16 %v890, %v889
      %v904 = vpack.c.b16 %v892, %v891
      %v905 = vpack.c.b16 %v894, %v893
      %v906 = vpack.c.b16 %v896, %v895
      %v907 = vpack.c.b16 %v898, %v897
      %v908 = vpack.c.b16 %v900, %v899
      %v913 = vunpack.c.l.b16 %v858
      %v914 = vunpack.c.l.b16 %v859
      %v915 = vunpack.c.l.b16 %v860
      %v916 = vunpack.c.l.b16 %v861
      %v917 = vpack.c.b16 %v914, %v913
      %v918 = vpack.c.b16 %v916, %v915
      %vm921 = vcmask 261120
      %v923 = vsel %vm921, %v901, 0
      %v926 = vsel %vm921, %v902, 0
      %v929 = vsel %vm921, %v903, 0
      %v932 = vsel %vm921, %v904, 0
      %v935 = vsel %vm921, %v905, 0
      %v938 = vsel %vm921, %v906, 0
      %v941 = vsel %vm921, %v907, 0
      %v944 = vsel %vm921, %v908, 0
      %946 = vmatprep.subr.bf16.mxu0 0
      %947 = vmatpush1.bf16.msra.mxu0 %v917
      %948 = vmatprep.subr.bf16.mxu0 0
      %949 = vmatpush1.bf16.msra.mxu0 %v918
      %950 = vmatprep.subr.bf16.mxu0 0
      %951 = vmatpush1.bf16.msra.mxu0 0
      %952 = vmatprep.subr.bf16.mxu0 0
      %953 = vmatpush1.bf16.msra.mxu0 0
      %954 = vmatprep.subr.bf16.mxu0 0
      %955 = vmatpush1.bf16.msra.mxu0 0
      %956 = vmatprep.subr.bf16.mxu0 0
      %957 = vmatpush1.bf16.msra.mxu0 0
      %958 = vmatprep.subr.bf16.mxu0 0
      %959 = vmatpush1.bf16.msra.mxu0 0
      %960 = vmatprep.subr.bf16.mxu0 0
      %961 = vmatpush1.bf16.msra.mxu0 0
      %962 = vmatprep.subr.bf16.mxu0 0
      %963 = vmatpush1.bf16.msra.mxu0 0
      %964 = vmatprep.subr.bf16.mxu0 0
      %965 = vmatpush1.bf16.msra.mxu0 0
      %966 = vmatprep.subr.bf16.mxu0 0
      %967 = vmatpush1.bf16.msra.mxu0 0
      %968 = vmatprep.subr.bf16.mxu0 0
      %969 = vmatpush1.bf16.msra.mxu0 0
      %970 = vmatprep.subr.bf16.mxu0 0
      %971 = vmatpush1.bf16.msra.mxu0 0
      %972 = vmatprep.subr.bf16.mxu0 0
      %973 = vmatpush1.bf16.msra.mxu0 0
      %974 = vmatprep.subr.bf16.mxu0 0
      %975 = vmatpush1.bf16.msra.mxu0 0
      %976 = vmatprep.subr.bf16.mxu0 0
      %977 = vmatpush1.bf16.msra.mxu0 0
      %978 = vmatprep.mubr.bf16.mxu0 0
      %979 = vmatmul.mubr.bf16.gmra.mrb[0].mxu0 %v923
      %v980 = vpop.f32.mrb[0].mxu0
      %v981 = vadd.f32 %v867, %v980
      %v982 = vpop.f32.mrb[0].mxu0
      %v983 = vpop.f32.mrb[0].mxu0
      %v984 = vadd.f32 %v867, %v983
      %v985 = vpop.f32.mrb[0].mxu0
      %986 = vmatprep.mubr.bf16.mxu0 0
      %987 = vmatmul.mubr.bf16.gmra.mrb[0].mxu0 %v926
      %v988 = vpop.f32.mrb[0].mxu0
      %v989 = vadd.f32 %v867, %v988
      %v990 = vpop.f32.mrb[0].mxu0
      %v991 = vpop.f32.mrb[0].mxu0
      %v992 = vadd.f32 %v867, %v991
      %v993 = vpop.f32.mrb[0].mxu0
      %994 = vmatprep.mubr.bf16.mxu0 0
      %995 = vmatmul.mubr.bf16.gmra.mrb[0].mxu0 %v929
      %v996 = vpop.f32.mrb[0].mxu0
      %v997 = vadd.f32 %v867, %v996
      %v998 = vpop.f32.mrb[0].mxu0
      %v999 = vpop.f32.mrb[0].mxu0
      %v1000 = vadd.f32 %v867, %v999
      %v1001 = vpop.f32.mrb[0].mxu0
      %1002 = vmatprep.mubr.bf16.mxu0 0
      %1003 = vmatmul.mubr.bf16.gmra.mrb[0].mxu0 %v932
      %v1004 = vpop.f32.mrb[0].mxu0
      %v1005 = vadd.f32 %v867, %v1004
      %v1006 = vpop.f32.mrb[0].mxu0
      %v1007 = vpop.f32.mrb[0].mxu0
      %v1008 = vadd.f32 %v867, %v1007
      %v1009 = vpop.f32.mrb[0].mxu0
      %1010 = vmatprep.mubr.bf16.mxu0 0
      %1011 = vmatmul.mubr.bf16.gmra.mrb[0].mxu0 %v935
      %v1012 = vpop.f32.mrb[0].mxu0
      %v1013 = vadd.f32 %v867, %v1012
      %v1014 = vpop.f32.mrb[0].mxu0
      %v1015 = vpop.f32.mrb[0].mxu0
      %v1016 = vadd.f32 %v867, %v1015
      %v1017 = vpop.f32.mrb[0].mxu0
      %1018 = vmatprep.mubr.bf16.mxu0 0
      %1019 = vmatmul.mubr.bf16.gmra.mrb[0].mxu0 %v938
      %v1020 = vpop.f32.mrb[0].mxu0
      %v1021 = vadd.f32 %v867, %v1020
      %v1022 = vpop.f32.mrb[0].mxu0
      %v1023 = vpop.f32.mrb[0].mxu0
      %v1024 = vadd.f32 %v867, %v1023
      %v1025 = vpop.f32.mrb[0].mxu0
      %1026 = vmatprep.mubr.bf16.mxu0 0
      %1027 = vmatmul.mubr.bf16.gmra.mrb[0].mxu0 %v941
      %v1028 = vpop.f32.mrb[0].mxu0
      %v1029 = vadd.f32 %v867, %v1028
      %v1030 = vpop.f32.mrb[0].mxu0
      %v1031 = vpop.f32.mrb[0].mxu0
      %v1032 = vadd.f32 %v867, %v1031
      %v1033 = vpop.f32.mrb[0].mxu0
      %1034 = vmatprep.mubr.bf16.mxu0 0
      %1035 = vmatmul.mubr.bf16.gmra.mrb[0].mxu0 %v944
      %v1036 = vpop.f32.mrb[0].mxu0
      %v1037 = vadd.f32 %v867, %v1036
      %v1038 = vpop.f32.mrb[0].mxu0
      %v1039 = vpop.f32.mrb[0].mxu0
      %v1040 = vadd.f32 %v867, %v1039
      %v1041 = vpop.f32.mrb[0].mxu0
      %1042 = vdwg.mxu0
      %v1043 = vld [vmem:[%s543] sm:$0x1]
      %v1044 = vlaneseq
      %v1045 = vshrl.u32 %v1044, 7
      %v1046 = vadd.s32 %v1045, 8
      %v1047 = vadd.s32 %v1045, 16
      %v1048 = vadd.s32 %v1045, 24
      %v1049 = vadd.s32 %v1045, 32
      %v1050 = vadd.s32 %v1045, 40
      %v1051 = vadd.s32 %v1045, 48
      %v1052 = vadd.s32 %v1045, 56
      %v1053 = vadd.s32 %v1045, 64
      %v1054 = vadd.s32 %v1045, 72
      %v1055 = vadd.s32 %v1045, 80
      %v1056 = vadd.s32 %v1045, 88
      %v1057 = vadd.s32 %v1045, 96
      %v1058 = vadd.s32 %v1045, 104
      %v1059 = vadd.s32 %v1045, 112
      %v1060 = vadd.s32 %v1045, 120
      %v1061 = vstv %s560
      %v1062 = vadd.s32 %v1045, %v1061
      %v1063 = vadd.s32 %v1046, %v1061
      %v1064 = vadd.s32 %v1047, %v1061
      %v1065 = vadd.s32 %v1048, %v1061
      %v1066 = vadd.s32 %v1049, %v1061
      %v1067 = vadd.s32 %v1050, %v1061
      %v1068 = vadd.s32 %v1051, %v1061
      %v1069 = vadd.s32 %v1052, %v1061
      %v1070 = vadd.s32 %v1053, %v1061
      %v1071 = vadd.s32 %v1054, %v1061
      %v1072 = vadd.s32 %v1055, %v1061
      %v1073 = vadd.s32 %v1056, %v1061
      %v1074 = vadd.s32 %v1057, %v1061
      %v1075 = vadd.s32 %v1058, %v1061
      %v1076 = vadd.s32 %v1059, %v1061
      %v1077 = vadd.s32 %v1060, %v1061
      %v1078 = vlaneseq
      %v1079 = vand.u32 %v1078, 127
      %v1080 = vsub.s32 %v1079, %v1062
      %v1081 = vsub.s32 %v1079, %v1063
      %v1082 = vsub.s32 %v1079, %v1064
      %v1083 = vsub.s32 %v1079, %v1065
      %v1084 = vsub.s32 %v1079, %v1066
      %v1085 = vsub.s32 %v1079, %v1067
      %v1086 = vsub.s32 %v1079, %v1068
      %v1087 = vsub.s32 %v1079, %v1069
      %v1088 = vsub.s32 %v1079, %v1070
      %v1089 = vsub.s32 %v1079, %v1071
      %v1090 = vsub.s32 %v1079, %v1072
      %v1091 = vsub.s32 %v1079, %v1073
      %v1092 = vsub.s32 %v1079, %v1074
      %v1093 = vsub.s32 %v1079, %v1075
      %v1094 = vsub.s32 %v1079, %v1076
      %v1095 = vsub.s32 %v1079, %v1077
      %vm1096 = vcmp.lt.s32.totalorder %v1080, 0
      %v1097 = vsub.s32 0, %v1080
      %v1098 = vsel %vm1096, %v1097, %v1080
      %vm1099 = vcmp.lt.s32.totalorder %v1081, 0
      %v1100 = vsub.s32 0, %v1081
      %v1101 = vsel %vm1099, %v1100, %v1081
      %vm1102 = vcmp.lt.s32.totalorder %v1082, 0
      %v1103 = vsub.s32 0, %v1082
      %v1104 = vsel %vm1102, %v1103, %v1082
      %vm1105 = vcmp.lt.s32.totalorder %v1083, 0
      %v1106 = vsub.s32 0, %v1083
      %v1107 = vsel %vm1105, %v1106, %v1083
      %vm1108 = vcmp.lt.s32.totalorder %v1084, 0
      %v1109 = vsub.s32 0, %v1084
      %v1110 = vsel %vm1108, %v1109, %v1084
      %vm1111 = vcmp.lt.s32.totalorder %v1085, 0
      %v1112 = vsub.s32 0, %v1085
      %v1113 = vsel %vm1111, %v1112, %v1085
      %vm1114 = vcmp.lt.s32.totalorder %v1086, 0
      %v1115 = vsub.s32 0, %v1086
      %v1116 = vsel %vm1114, %v1115, %v1086
      %vm1117 = vcmp.lt.s32.totalorder %v1087, 0
      %v1118 = vsub.s32 0, %v1087
      %v1119 = vsel %vm1117, %v1118, %v1087
      %vm1120 = vcmp.lt.s32.totalorder %v1088, 0
      %v1121 = vsub.s32 0, %v1088
      %v1122 = vsel %vm1120, %v1121, %v1088
      %vm1123 = vcmp.lt.s32.totalorder %v1089, 0
      %v1124 = vsub.s32 0, %v1089
      %v1125 = vsel %vm1123, %v1124, %v1089
      %vm1126 = vcmp.lt.s32.totalorder %v1090, 0
      %v1127 = vsub.s32 0, %v1090
      %v1128 = vsel %vm1126, %v1127, %v1090
      %vm1129 = vcmp.lt.s32.totalorder %v1091, 0
      %v1130 = vsub.s32 0, %v1091
      %v1131 = vsel %vm1129, %v1130, %v1091
      %vm1132 = vcmp.lt.s32.totalorder %v1092, 0
      %v1133 = vsub.s32 0, %v1092
      %v1134 = vsel %vm1132, %v1133, %v1092
      %vm1135 = vcmp.lt.s32.totalorder %v1093, 0
      %v1136 = vsub.s32 0, %v1093
      %v1137 = vsel %vm1135, %v1136, %v1093
      %vm1138 = vcmp.lt.s32.totalorder %v1094, 0
      %v1139 = vsub.s32 0, %v1094
      %v1140 = vsel %vm1138, %v1139, %v1094
      %vm1141 = vcmp.lt.s32.totalorder %v1095, 0
      %v1142 = vsub.s32 0, %v1095
      %v1143 = vsel %vm1141, %v1142, %v1095
      %v1144 = vcvt.s32.f32 %v1098
      %v1145 = vcvt.s32.f32 %v1101
      %v1146 = vcvt.s32.f32 %v1104
      %v1147 = vcvt.s32.f32 %v1107
      %v1148 = vcvt.s32.f32 %v1110
      %v1149 = vcvt.s32.f32 %v1113
      %v1150 = vcvt.s32.f32 %v1116
      %v1151 = vcvt.s32.f32 %v1119
      %v1152 = vcvt.s32.f32 %v1122
      %v1153 = vcvt.s32.f32 %v1125
      %v1154 = vcvt.s32.f32 %v1128
      %v1155 = vcvt.s32.f32 %v1131
      %v1156 = vcvt.s32.f32 %v1134
      %v1157 = vcvt.s32.f32 %v1137
      %v1158 = vcvt.s32.f32 %v1140
      %v1159 = vcvt.s32.f32 %v1143
      %v1160 = vsub.f32 0.0, %v1144
      %v1161 = vsub.f32 0.0, %v1145
      %v1162 = vsub.f32 0.0, %v1146
      %v1163 = vsub.f32 0.0, %v1147
      %v1164 = vsub.f32 0.0, %v1148
      %v1165 = vsub.f32 0.0, %v1149
      %v1166 = vsub.f32 0.0, %v1150
      %v1167 = vsub.f32 0.0, %v1151
      %v1168 = vsub.f32 0.0, %v1152
      %v1169 = vsub.f32 0.0, %v1153
      %v1170 = vsub.f32 0.0, %v1154
      %v1171 = vsub.f32 0.0, %v1155
      %v1172 = vsub.f32 0.0, %v1156
      %v1173 = vsub.f32 0.0, %v1157
      %v1174 = vsub.f32 0.0, %v1158
      %v1175 = vsub.f32 0.0, %v1159
      %v1176 = vpack.c.bf16 %v984, %v981
      %v1177 = vpack.c.bf16 %v992, %v989
      %v1178 = vpack.c.bf16 %v1000, %v997
      %v1179 = vpack.c.bf16 %v1008, %v1005
      %v1180 = vpack.c.bf16 %v1016, %v1013
      %v1181 = vpack.c.bf16 %v1024, %v1021
      %v1182 = vpack.c.bf16 %v1032, %v1029
      %v1183 = vpack.c.bf16 %v1040, %v1037
      %v1184 = vld [vmem:[#allocation2] sm:$0xff]
      %v1185 = vld [vmem:[#allocation2 + $0x8] sm:$0xff]
      %v1186 = vld [vmem:[#allocation2 + $0x10] sm:$0xff]
      %v1187 = vld [vmem:[#allocation2 + $0x18] sm:$0xff]
      %v1188 = vld [vmem:[#allocation2 + $0x20] sm:$0xff]
      %v1189 = vld [vmem:[#allocation2 + $0x28] sm:$0xff]
      %v1190 = vld [vmem:[#allocation2 + $0x30] sm:$0xff]
      %v1191 = vld [vmem:[#allocation2 + $0x38] sm:$0xff]
      %v1192 = vld [vmem:[#allocation3] sm:$0xff]
      %v1193 = vld [vmem:[#allocation3 + $0x8] sm:$0xff]
      %v1194 = vld [vmem:[#allocation3 + $0x10] sm:$0xff]
      %v1195 = vld [vmem:[#allocation3 + $0x18] sm:$0xff]
      %v1196 = vld [vmem:[#allocation3 + $0x20] sm:$0xff]
      %v1197 = vld [vmem:[#allocation3 + $0x28] sm:$0xff]
      %v1198 = vld [vmem:[#allocation3 + $0x30] sm:$0xff]
      %v1199 = vld [vmem:[#allocation3 + $0x38] sm:$0xff]
      %v1200 = vmul.f32 %v1160, 0.25
      %v1201 = vmul.f32 %v1161, 0.25
      %v1202 = vmul.f32 %v1162, 0.25
      %v1203 = vmul.f32 %v1163, 0.25
      %v1204 = vmul.f32 %v1164, 0.25
      %v1205 = vmul.f32 %v1165, 0.25
      %v1206 = vmul.f32 %v1166, 0.25
      %v1207 = vmul.f32 %v1167, 0.25
      %v1208 = vmul.f32 %v1168, 0.25
      %v1209 = vmul.f32 %v1169, 0.25
      %v1210 = vmul.f32 %v1170, 0.25
      %v1211 = vmul.f32 %v1171, 0.25
      %v1212 = vmul.f32 %v1172, 0.25
      %v1213 = vmul.f32 %v1173, 0.25
      %v1214 = vmul.f32 %v1174, 0.25
      %v1215 = vmul.f32 %v1175, 0.25
      %vm1216 = vcmask 64512
      %v1218 = vsel %vm1216, %v1176, 0
      %v1221 = vsel %vm1216, %v1177, 0
      %v1224 = vsel %vm1216, %v1178, 0
      %v1227 = vsel %vm1216, %v1179, 0
      %v1230 = vsel %vm1216, %v1180, 0
      %v1233 = vsel %vm1216, %v1181, 0
      %v1236 = vsel %vm1216, %v1182, 0
      %v1239 = vsel %vm1216, %v1183, 0
      %v1242 = vsel %vm1216, %v1184, 0
      %v1245 = vsel %vm1216, %v1185, 0
      %v1248 = vsel %vm1216, %v1186, 0
      %v1251 = vsel %vm1216, %v1187, 0
      %v1254 = vsel %vm1216, %v1188, 0
      %v1257 = vsel %vm1216, %v1189, 0
      %v1260 = vsel %vm1216, %v1190, 0
      %v1263 = vsel %vm1216, %v1191, 0
      %1265 = vmatprep.subr.bf16.mxu0 0
      %1266 = vmatpush1.bf16.xpose.msra.mxu0 %v1242
      %1267 = vmatprep.subr.bf16.mxu0 0
      %1268 = vmatpush1.bf16.xpose.msra.mxu0 %v1245
      %1269 = vmatprep.subr.bf16.mxu0 0
      %1270 = vmatpush1.bf16.xpose.msra.mxu0 %v1248
      %1271 = vmatprep.subr.bf16.mxu0 0
      %1272 = vmatpush1.bf16.xpose.msra.mxu0 %v1251
      %1273 = vmatprep.subr.bf16.mxu0 0
      %1274 = vmatpush1.bf16.xpose.msra.mxu0 %v1254
      %1275 = vmatprep.subr.bf16.mxu0 0
      %1276 = vmatpush1.bf16.xpose.msra.mxu0 %v1257
      %1277 = vmatprep.subr.bf16.mxu0 0
      %1278 = vmatpush1.bf16.xpose.msra.mxu0 %v1260
      %1279 = vmatprep.subr.bf16.mxu0 0
      %1280 = vmatpush1.bf16.xpose.msra.mxu0 %v1263
      %1281 = vmatprep.subr.bf16.mxu0 0
      %1282 = vmatpush1.bf16.xpose.msra.mxu0 0
      %1283 = vmatprep.subr.bf16.mxu0 0
      %1284 = vmatpush1.bf16.xpose.msra.mxu0 0
      %1285 = vmatprep.subr.bf16.mxu0 0
      %1286 = vmatpush1.bf16.xpose.msra.mxu0 0
      %1287 = vmatprep.subr.bf16.mxu0 0
      %1288 = vmatpush1.bf16.xpose.msra.mxu0 0
      %1289 = vmatprep.subr.bf16.mxu0 0
      %1290 = vmatpush1.bf16.xpose.msra.mxu0 0
      %1291 = vmatprep.subr.bf16.mxu0 0
      %1292 = vmatpush1.bf16.xpose.msra.mxu0 0
      %1293 = vmatprep.subr.bf16.mxu0 0
      %1294 = vmatpush1.bf16.xpose.msra.mxu0 0
      %1295 = vmatprep.subr.bf16.mxu0 0
      %1296 = vmatpush1.bf16.xpose.msra.mxu0 0
      %1297 = vmatprep.mubr.bf16.mxu0 0
      %1298 = vmatmul.mubr.bf16.gmra.mrb[0].mxu0 %v1218
      %v1299 = vpop.f32.mrb[0].mxu0
      %v1300 = vadd.f32 %v1200, %v1299
      %v1301 = vpop.f32.mrb[0].mxu0
      %v1302 = vpop.f32.mrb[0].mxu0
      %v1303 = vadd.f32 %v1201, %v1302
      %v1304 = vpop.f32.mrb[0].mxu0
      %1305 = vmatprep.mubr.bf16.mxu0 0
      %1306 = vmatmul.mubr.bf16.gmra.mrb[0].mxu0 %v1221
      %v1307 = vpop.f32.mrb[0].mxu0
      %v1308 = vadd.f32 %v1202, %v1307
      %v1309 = vpop.f32.mrb[0].mxu0
      %v1310 = vpop.f32.mrb[0].mxu0
      %v1311 = vadd.f32 %v1203, %v1310
      %v1312 = vpop.f32.mrb[0].mxu0
      %1313 = vmatprep.mubr.bf16.mxu0 0
      %1314 = vmatmul.mubr.bf16.gmra.mrb[0].mxu0 %v1224
      %v1315 = vpop.f32.mrb[0].mxu0
      %v1316 = vadd.f32 %v1204, %v1315
      %v1317 = vpop.f32.mrb[0].mxu0
      %v1318 = vpop.f32.mrb[0].mxu0
      %v1319 = vadd.f32 %v1205, %v1318
      %v1320 = vpop.f32.mrb[0].mxu0
      %1321 = vmatprep.mubr.bf16.mxu0 0
      %1322 = vmatmul.mubr.bf16.gmra.mrb[0].mxu0 %v1227
      %v1323 = vpop.f32.mrb[0].mxu0
      %v1324 = vadd.f32 %v1206, %v1323
      %v1325 = vpop.f32.mrb[0].mxu0
      %v1326 = vpop.f32.mrb[0].mxu0
      %v1327 = vadd.f32 %v1207, %v1326
      %v1328 = vpop.f32.mrb[0].mxu0
      %1329 = vmatprep.mubr.bf16.mxu0 0
      %1330 = vmatmul.mubr.bf16.gmra.mrb[0].mxu0 %v1230
      %v1331 = vpop.f32.mrb[0].mxu0
      %v1332 = vadd.f32 %v1208, %v1331
      %v1333 = vpop.f32.mrb[0].mxu0
      %v1334 = vpop.f32.mrb[0].mxu0
      %v1335 = vadd.f32 %v1209, %v1334
      %v1336 = vpop.f32.mrb[0].mxu0
      %1337 = vmatprep.mubr.bf16.mxu0 0
      %1338 = vmatmul.mubr.bf16.gmra.mrb[0].mxu0 %v1233
      %v1339 = vpop.f32.mrb[0].mxu0
      %v1340 = vadd.f32 %v1210, %v1339
      %v1341 = vpop.f32.mrb[0].mxu0
      %v1342 = vpop.f32.mrb[0].mxu0
      %v1343 = vadd.f32 %v1211, %v1342
      %v1344 = vpop.f32.mrb[0].mxu0
      %1345 = vmatprep.mubr.bf16.mxu0 0
      %1346 = vmatmul.mubr.bf16.gmra.mrb[0].mxu0 %v1236
      %v1347 = vpop.f32.mrb[0].mxu0
      %v1348 = vadd.f32 %v1212, %v1347
      %v1349 = vpop.f32.mrb[0].mxu0
      %v1350 = vpop.f32.mrb[0].mxu0
      %v1351 = vadd.f32 %v1213, %v1350
      %v1352 = vpop.f32.mrb[0].mxu0
      %1353 = vmatprep.mubr.bf16.mxu0 0
      %1354 = vmatmul.mubr.bf16.gmra.mrb[0].mxu0 %v1239
      %v1355 = vpop.f32.mrb[0].mxu0
      %v1356 = vadd.f32 %v1214, %v1355
      %v1357 = vpop.f32.mrb[0].mxu0
      %v1358 = vpop.f32.mrb[0].mxu0
      %v1359 = vadd.f32 %v1215, %v1358
      %v1360 = vpop.f32.mrb[0].mxu0
      %1361 = vdwg.mxu0
      %1362 = vmax.xlane.f32.xlu0 %v1300
      %v1363 = vpop.xlane.xlu0 %1362
      %1364 = vmax.xlane.f32.xlu0 %v1303
      %v1365 = vpop.xlane.xlu0 %1364
      %1366 = vmax.xlane.f32.xlu0 %v1308
      %v1367 = vpop.xlane.xlu0 %1366
      %1368 = vmax.xlane.f32.xlu0 %v1311
      %v1369 = vpop.xlane.xlu0 %1368
      %1370 = vmax.xlane.f32.xlu0 %v1316
      %v1371 = vpop.xlane.xlu0 %1370
      %1372 = vmax.xlane.f32.xlu0 %v1319
      %v1373 = vpop.xlane.xlu0 %1372
      %1374 = vmax.xlane.f32.xlu0 %v1324
      %v1375 = vpop.xlane.xlu0 %1374
      %1376 = vmax.xlane.f32.xlu0 %v1327
      %v1377 = vpop.xlane.xlu0 %1376
      %1378 = vmax.xlane.f32.xlu0 %v1332
      %v1379 = vpop.xlane.xlu0 %1378
      %1380 = vmax.xlane.f32.xlu0 %v1335
      %v1381 = vpop.xlane.xlu0 %1380
      %1382 = vmax.xlane.f32.xlu0 %v1340
      %v1383 = vpop.xlane.xlu0 %1382
      %1384 = vmax.xlane.f32.xlu0 %v1343
      %v1385 = vpop.xlane.xlu0 %1384
      %1386 = vmax.xlane.f32.xlu0 %v1348
      %v1387 = vpop.xlane.xlu0 %1386
      %1388 = vmax.xlane.f32.xlu0 %v1351
      %v1389 = vpop.xlane.xlu0 %1388
      %1390 = vmax.xlane.f32.xlu0 %v1356
      %v1391 = vpop.xlane.xlu0 %1390
      %1392 = vmax.xlane.f32.xlu0 %v1359
      %v1393 = vpop.xlane.xlu0 %1392
      %v1394 = vsub.f32 %v1300, %v1363
      %v1395 = vsub.f32 %v1303, %v1365
      %v1396 = vsub.f32 %v1308, %v1367
      %v1397 = vsub.f32 %v1311, %v1369
      %v1398 = vsub.f32 %v1316, %v1371
      %v1399 = vsub.f32 %v1319, %v1373
      %v1400 = vsub.f32 %v1324, %v1375
      %v1401 = vsub.f32 %v1327, %v1377
      %v1402 = vsub.f32 %v1332, %v1379
      %v1403 = vsub.f32 %v1335, %v1381
      %v1404 = vsub.f32 %v1340, %v1383
      %v1405 = vsub.f32 %v1343, %v1385
      %v1406 = vsub.f32 %v1348, %v1387
      %v1407 = vsub.f32 %v1351, %v1389
      %v1408 = vsub.f32 %v1356, %v1391
      %v1409 = vsub.f32 %v1359, %v1393
      %v1410 = vmul.f32 %v1394, 1.442695
      %v1411 = vpow.pop %v1410
      %v1412 = vmul.f32 %v1395, 1.442695
      %v1413 = vpow.pop %v1412
      %v1414 = vmul.f32 %v1396, 1.442695
      %v1415 = vpow.pop %v1414
      %v1416 = vmul.f32 %v1397, 1.442695
      %v1417 = vpow.pop %v1416
      %v1418 = vmul.f32 %v1398, 1.442695
      %v1419 = vpow.pop %v1418
      %v1420 = vmul.f32 %v1399, 1.442695
      %v1421 = vpow.pop %v1420
      %v1422 = vmul.f32 %v1400, 1.442695
      %v1423 = vpow.pop %v1422
      %v1424 = vmul.f32 %v1401, 1.442695
      %v1425 = vpow.pop %v1424
      %v1426 = vmul.f32 %v1402, 1.442695
      %v1427 = vpow.pop %v1426
      %v1428 = vmul.f32 %v1403, 1.442695
      %v1429 = vpow.pop %v1428
      %v1430 = vmul.f32 %v1404, 1.442695
      %v1431 = vpow.pop %v1430
      %v1432 = vmul.f32 %v1405, 1.442695
      %v1433 = vpow.pop %v1432
      %v1434 = vmul.f32 %v1406, 1.442695
      %v1435 = vpow.pop %v1434
      %v1436 = vmul.f32 %v1407, 1.442695
      %v1437 = vpow.pop %v1436
      %v1438 = vmul.f32 %v1408, 1.442695
      %v1439 = vpow.pop %v1438
      %v1440 = vmul.f32 %v1409, 1.442695
      %v1441 = vpow.pop %v1440
      %v1443 = vlaneseq
      %v1444 = vshrl.u32 %v1443, 7
      %v1445 = vsub.s32 0, %v1444
      %v1446 = vrot.slane %v1043, %v1445
      %v1448 = vmul.f32 %v1411, %v1446
      %v1449 = vmul.f32 %v1413, %v1446
      %v1450 = vmul.f32 %v1415, %v1446
      %v1451 = vmul.f32 %v1417, %v1446
      %v1452 = vmul.f32 %v1419, %v1446
      %v1453 = vmul.f32 %v1421, %v1446
      %v1454 = vmul.f32 %v1423, %v1446
      %v1455 = vmul.f32 %v1425, %v1446
      %v1456 = vmul.f32 %v1427, %v1446
      %v1457 = vmul.f32 %v1429, %v1446
      %v1458 = vmul.f32 %v1431, %v1446
      %v1459 = vmul.f32 %v1433, %v1446
      %v1460 = vmul.f32 %v1435, %v1446
      %v1461 = vmul.f32 %v1437, %v1446
      %v1462 = vmul.f32 %v1439, %v1446
      %v1463 = vmul.f32 %v1441, %v1446
      %1464 = vadd.xlane.f32.xlu0 %v1448
      %v1465 = vpop.xlane.xlu0 %1464
      %1466 = vadd.xlane.f32.xlu0 %v1449
      %v1467 = vpop.xlane.xlu0 %1466
      %1468 = vadd.xlane.f32.xlu0 %v1450
      %v1469 = vpop.xlane.xlu0 %1468
      %1470 = vadd.xlane.f32.xlu0 %v1451
      %v1471 = vpop.xlane.xlu0 %1470
      %1472 = vadd.xlane.f32.xlu0 %v1452
      %v1473 = vpop.xlane.xlu0 %1472
      %1474 = vadd.xlane.f32.xlu0 %v1453
      %v1475 = vpop.xlane.xlu0 %1474
      %1476 = vadd.xlane.f32.xlu0 %v1454
      %v1477 = vpop.xlane.xlu0 %1476
      %1478 = vadd.xlane.f32.xlu0 %v1455
      %v1479 = vpop.xlane.xlu0 %1478
      %1480 = vadd.xlane.f32.xlu0 %v1456
      %v1481 = vpop.xlane.xlu0 %1480
      %1482 = vadd.xlane.f32.xlu0 %v1457
      %v1483 = vpop.xlane.xlu0 %1482
      %1484 = vadd.xlane.f32.xlu0 %v1458
      %v1485 = vpop.xlane.xlu0 %1484
      %1486 = vadd.xlane.f32.xlu0 %v1459
      %v1487 = vpop.xlane.xlu0 %1486
      %1488 = vadd.xlane.f32.xlu0 %v1460
      %v1489 = vpop.xlane.xlu0 %1488
      %1490 = vadd.xlane.f32.xlu0 %v1461
      %v1491 = vpop.xlane.xlu0 %1490
      %1492 = vadd.xlane.f32.xlu0 %v1462
      %v1493 = vpop.xlane.xlu0 %1492
      %1494 = vadd.xlane.f32.xlu0 %v1463
      %v1495 = vpop.xlane.xlu0 %1494
      %v1496 = vrcp.pop %v1465
      %v1497 = vrcp.pop %v1467
      %v1498 = vrcp.pop %v1469
      %v1499 = vrcp.pop %v1471
      %v1500 = vrcp.pop %v1473
      %v1501 = vrcp.pop %v1475
      %v1502 = vrcp.pop %v1477
      %v1503 = vrcp.pop %v1479
      %v1504 = vrcp.pop %v1481
      %v1505 = vrcp.pop %v1483
      %v1506 = vrcp.pop %v1485
      %v1507 = vrcp.pop %v1487
      %v1508 = vrcp.pop %v1489
      %v1509 = vrcp.pop %v1491
      %v1510 = vrcp.pop %v1493
      %v1511 = vrcp.pop %v1495
      %v1512 = vmul.f32 %v1448, %v1496
      %v1513 = vmul.f32 %v1449, %v1497
      %v1514 = vmul.f32 %v1450, %v1498
      %v1515 = vmul.f32 %v1451, %v1499
      %v1516 = vmul.f32 %v1452, %v1500
      %v1517 = vmul.f32 %v1453, %v1501
      %v1518 = vmul.f32 %v1454, %v1502
      %v1519 = vmul.f32 %v1455, %v1503
      %v1520 = vmul.f32 %v1456, %v1504
      %v1521 = vmul.f32 %v1457, %v1505
      %v1522 = vmul.f32 %v1458, %v1506
      %v1523 = vmul.f32 %v1459, %v1507
      %v1524 = vmul.f32 %v1460, %v1508
      %v1525 = vmul.f32 %v1461, %v1509
      %v1526 = vmul.f32 %v1462, %v1510
      %v1527 = vmul.f32 %v1463, %v1511
      %v1528 = vpack.c.bf16 %v1513, %v1512
      %v1529 = vpack.c.bf16 %v1515, %v1514
      %v1530 = vpack.c.bf16 %v1517, %v1516
      %v1531 = vpack.c.bf16 %v1519, %v1518
      %v1532 = vpack.c.bf16 %v1521, %v1520
      %v1533 = vpack.c.bf16 %v1523, %v1522
      %v1534 = vpack.c.bf16 %v1525, %v1524
      %v1535 = vpack.c.bf16 %v1527, %v1526
      %1536 = vmatprep.subr.bf16.mxu0 0
      %1537 = vmatpush1.bf16.msra.mxu0 %v1192
      %1538 = vmatprep.subr.bf16.mxu0 0
      %1539 = vmatpush1.bf16.msra.mxu0 %v1193
      %1540 = vmatprep.subr.bf16.mxu0 0
      %1541 = vmatpush1.bf16.msra.mxu0 %v1194
      %1542 = vmatprep.subr.bf16.mxu0 0
      %1543 = vmatpush1.bf16.msra.mxu0 %v1195
      %1544 = vmatprep.subr.bf16.mxu0 0
      %1545 = vmatpush1.bf16.msra.mxu0 %v1196
      %1546 = vmatprep.subr.bf16.mxu0 0
      %1547 = vmatpush1.bf16.msra.mxu0 %v1197
      %1548 = vmatprep.subr.bf16.mxu0 0
      %1549 = vmatpush1.bf16.msra.mxu0 %v1198
      %1550 = vmatprep.subr.bf16.mxu0 0
      %1551 = vmatpush1.bf16.msra.mxu0 %v1199
      %1552 = vmatprep.subr.bf16.mxu0 0
      %1553 = vmatpush1.bf16.msra.mxu0 0
      %1554 = vmatprep.subr.bf16.mxu0 0
      %1555 = vmatpush1.bf16.msra.mxu0 0
      %1556 = vmatprep.subr.bf16.mxu0 0
      %1557 = vmatpush1.bf16.msra.mxu0 0
      %1558 = vmatprep.subr.bf16.mxu0 0
      %1559 = vmatpush1.bf16.msra.mxu0 0
      %1560 = vmatprep.subr.bf16.mxu0 0
      %1561 = vmatpush1.bf16.msra.mxu0 0
      %1562 = vmatprep.subr.bf16.mxu0 0
      %1563 = vmatpush1.bf16.msra.mxu0 0
      %1564 = vmatprep.subr.bf16.mxu0 0
      %1565 = vmatpush1.bf16.msra.mxu0 0
      %1566 = vmatprep.subr.bf16.mxu0 0
      %1567 = vmatpush1.bf16.msra.mxu0 0
      %1568 = vmatprep.mubr.bf16.mxu0 0
      %1569 = vmatmul.mubr.bf16.gmra.mrb[0].mxu0 %v1528
      %v1570 = vpop.f32.mrb[0].mxu0
      %v1571 = vadd.f32 0.0, %v1570
      %v1572 = vpop.f32.mrb[0].mxu0
      %v1573 = vpop.f32.mrb[0].mxu0
      %v1574 = vadd.f32 0.0, %v1573
      %v1575 = vpop.f32.mrb[0].mxu0
      %1576 = vmatprep.mubr.bf16.mxu0 0
      %1577 = vmatmul.mubr.bf16.gmra.mrb[0].mxu0 %v1529
      %v1578 = vpop.f32.mrb[0].mxu0
      %v1579 = vadd.f32 0.0, %v1578
      %v1580 = vpop.f32.mrb[0].mxu0
      %v1581 = vpop.f32.mrb[0].mxu0
      %v1582 = vadd.f32 0.0, %v1581
      %v1583 = vpop.f32.mrb[0].mxu0
      %1584 = vmatprep.mubr.bf16.mxu0 0
      %1585 = vmatmul.mubr.bf16.gmra.mrb[0].mxu0 %v1530
      %v1586 = vpop.f32.mrb[0].mxu0
      %v1587 = vadd.f32 0.0, %v1586
      %v1588 = vpop.f32.mrb[0].mxu0
      %v1589 = vpop.f32.mrb[0].mxu0
      %v1590 = vadd.f32 0.0, %v1589
      %v1591 = vpop.f32.mrb[0].mxu0
      %1592 = vmatprep.mubr.bf16.mxu0 0
      %1593 = vmatmul.mubr.bf16.gmra.mrb[0].mxu0 %v1531
      %v1594 = vpop.f32.mrb[0].mxu0
      %v1595 = vadd.f32 0.0, %v1594
      %v1596 = vpop.f32.mrb[0].mxu0
      %v1597 = vpop.f32.mrb[0].mxu0
      %v1598 = vadd.f32 0.0, %v1597
      %v1599 = vpop.f32.mrb[0].mxu0
      %1600 = vmatprep.mubr.bf16.mxu0 0
      %1601 = vmatmul.mubr.bf16.gmra.mrb[0].mxu0 %v1532
      %v1602 = vpop.f32.mrb[0].mxu0
      %v1603 = vadd.f32 0.0, %v1602
      %v1604 = vpop.f32.mrb[0].mxu0
      %v1605 = vpop.f32.mrb[0].mxu0
      %v1606 = vadd.f32 0.0, %v1605
      %v1607 = vpop.f32.mrb[0].mxu0
      %1608 = vmatprep.mubr.bf16.mxu0 0
      %1609 = vmatmul.mubr.bf16.gmra.mrb[0].mxu0 %v1533
      %v1610 = vpop.f32.mrb[0].mxu0
      %v1611 = vadd.f32 0.0, %v1610
      %v1612 = vpop.f32.mrb[0].mxu0
      %v1613 = vpop.f32.mrb[0].mxu0
      %v1614 = vadd.f32 0.0, %v1613
      %v1615 = vpop.f32.mrb[0].mxu0
      %1616 = vmatprep.mubr.bf16.mxu0 0
      %1617 = vmatmul.mubr.bf16.gmra.mrb[0].mxu0 %v1534
      %v1618 = vpop.f32.mrb[0].mxu0
      %v1619 = vadd.f32 0.0, %v1618
      %v1620 = vpop.f32.mrb[0].mxu0
      %v1621 = vpop.f32.mrb[0].mxu0
      %v1622 = vadd.f32 0.0, %v1621
      %v1623 = vpop.f32.mrb[0].mxu0
      %1624 = vmatprep.mubr.bf16.mxu0 0
      %1625 = vmatmul.mubr.bf16.gmra.mrb[0].mxu0 %v1535
      %v1626 = vpop.f32.mrb[0].mxu0
      %v1627 = vadd.f32 0.0, %v1626
      %v1628 = vpop.f32.mrb[0].mxu0
      %v1629 = vpop.f32.mrb[0].mxu0
      %v1630 = vadd.f32 0.0, %v1629
      %v1631 = vpop.f32.mrb[0].mxu0
      %1632 = vdwg.mxu0
      %1633 = vst.msk [vmem:[#allocation4] sm:$0xff] %vm1216, %v1571
      %1634 = vst.msk [vmem:[#allocation4 + $0x8] sm:$0xff] %vm1216, %v1574
      %1635 = vst.msk [vmem:[#allocation4 + $0x10] sm:$0xff] %vm1216, %v1579
      %1636 = vst.msk [vmem:[#allocation4 + $0x18] sm:$0xff] %vm1216, %v1582
      %1637 = vst.msk [vmem:[#allocation4 + $0x20] sm:$0xff] %vm1216, %v1587
      %1638 = vst.msk [vmem:[#allocation4 + $0x28] sm:$0xff] %vm1216, %v1590
      %1639 = vst.msk [vmem:[#allocation4 + $0x30] sm:$0xff] %vm1216, %v1595
      %1640 = vst.msk [vmem:[#allocation4 + $0x38] sm:$0xff] %vm1216, %v1598
      %1641 = vst.msk [vmem:[#allocation4 + $0x40] sm:$0xff] %vm1216, %v1603
      %1642 = vst.msk [vmem:[#allocation4 + $0x48] sm:$0xff] %vm1216, %v1606
      %1643 = vst.msk [vmem:[#allocation4 + $0x50] sm:$0xff] %vm1216, %v1611
      %1644 = vst.msk [vmem:[#allocation4 + $0x58] sm:$0xff] %vm1216, %v1614
      %1645 = vst.msk [vmem:[#allocation4 + $0x60] sm:$0xff] %vm1216, %v1619
      %1646 = vst.msk [vmem:[#allocation4 + $0x68] sm:$0xff] %vm1216, %v1622
      %1647 = vst.msk [vmem:[#allocation4 + $0x70] sm:$0xff] %vm1216, %v1627
      %1648 = vst.msk [vmem:[#allocation4 + $0x78] sm:$0xff] %vm1216, %v1630
      %v1649 = vld [vmem:[#allocation2] sm:$0xff]
      %v1650 = vld [vmem:[#allocation2 + $0x8] sm:$0xff]
      %v1651 = vld [vmem:[#allocation2 + $0x10] sm:$0xff]
      %v1652 = vld [vmem:[#allocation2 + $0x18] sm:$0xff]
      %v1653 = vld [vmem:[#allocation2 + $0x20] sm:$0xff]
      %v1654 = vld [vmem:[#allocation2 + $0x28] sm:$0xff]
      %v1655 = vld [vmem:[#allocation2 + $0x30] sm:$0xff]
      %v1656 = vld [vmem:[#allocation2 + $0x38] sm:$0xff]
      %v1657 = vld [vmem:[#allocation3] sm:$0xff]
      %v1658 = vld [vmem:[#allocation3 + $0x8] sm:$0xff]
      %v1659 = vld [vmem:[#allocation3 + $0x10] sm:$0xff]
      %v1660 = vld [vmem:[#allocation3 + $0x18] sm:$0xff]
      %v1661 = vld [vmem:[#allocation3 + $0x20] sm:$0xff]
      %v1662 = vld [vmem:[#allocation3 + $0x28] sm:$0xff]
      %v1663 = vld [vmem:[#allocation3 + $0x30] sm:$0xff]
      %v1664 = vld [vmem:[#allocation3 + $0x38] sm:$0xff]
      %v1665 = vmul.f32 %v1160, 0.0625
      %v1666 = vmul.f32 %v1161, 0.0625
      %v1667 = vmul.f32 %v1162, 0.0625
      %v1668 = vmul.f32 %v1163, 0.0625
      %v1669 = vmul.f32 %v1164, 0.0625
      %v1670 = vmul.f32 %v1165, 0.0625
      %v1671 = vmul.f32 %v1166, 0.0625
      %v1672 = vmul.f32 %v1167, 0.0625
      %v1673 = vmul.f32 %v1168, 0.0625
      %v1674 = vmul.f32 %v1169, 0.0625
      %v1675 = vmul.f32 %v1170, 0.0625
      %v1676 = vmul.f32 %v1171, 0.0625
      %v1677 = vmul.f32 %v1172, 0.0625
      %v1678 = vmul.f32 %v1173, 0.0625
      %v1679 = vmul.f32 %v1174, 0.0625
      %v1680 = vmul.f32 %v1175, 0.0625
      %1689 = vrot.lane.b32.xlu0 %v1176, 120
      %v1690 = vpop.permute.xlu0 %1689
      %1691 = vrot.lane.b32.xlu0 %v1177, 120
      %v1692 = vpop.permute.xlu0 %1691
      %1693 = vrot.lane.b32.xlu0 %v1178, 120
      %v1694 = vpop.permute.xlu0 %1693
      %1695 = vrot.lane.b32.xlu0 %v1179, 120
      %v1696 = vpop.permute.xlu0 %1695
      %1697 = vrot.lane.b32.xlu0 %v1180, 120
      %v1698 = vpop.permute.xlu0 %1697
      %1699 = vrot.lane.b32.xlu0 %v1181, 120
      %v1700 = vpop.permute.xlu0 %1699
      %1701 = vrot.lane.b32.xlu0 %v1182, 120
      %v1702 = vpop.permute.xlu0 %1701
      %1703 = vrot.lane.b32.xlu0 %v1183, 120
      %v1704 = vpop.permute.xlu0 %1703
      %1713 = vrot.lane.b32.xlu0 %v1649, 120
      %v1714 = vpop.permute.xlu0 %1713
      %1715 = vrot.lane.b32.xlu0 %v1650, 120
      %v1716 = vpop.permute.xlu0 %1715
      %1717 = vrot.lane.b32.xlu0 %v1651, 120
      %v1718 = vpop.permute.xlu0 %1717
      %1719 = vrot.lane.b32.xlu0 %v1652, 120
      %v1720 = vpop.permute.xlu0 %1719
      %1721 = vrot.lane.b32.xlu0 %v1653, 120
      %v1722 = vpop.permute.xlu0 %1721
      %1723 = vrot.lane.b32.xlu0 %v1654, 120
      %v1724 = vpop.permute.xlu0 %1723
      %1725 = vrot.lane.b32.xlu0 %v1655, 120
      %v1726 = vpop.permute.xlu0 %1725
      %1727 = vrot.lane.b32.xlu0 %v1656, 120
      %v1728 = vpop.permute.xlu0 %1727
      %v1730 = vsel %vm1216, %v1690, 0
      %v1733 = vsel %vm1216, %v1692, 0
      %v1736 = vsel %vm1216, %v1694, 0
      %v1739 = vsel %vm1216, %v1696, 0
      %v1742 = vsel %vm1216, %v1698, 0
      %v1745 = vsel %vm1216, %v1700, 0
      %v1748 = vsel %vm1216, %v1702, 0
      %v1751 = vsel %vm1216, %v1704, 0
      %v1754 = vsel %vm1216, %v1714, 0
      %v1757 = vsel %vm1216, %v1716, 0
      %v1760 = vsel %vm1216, %v1718, 0
      %v1763 = vsel %vm1216, %v1720, 0
      %v1766 = vsel %vm1216, %v1722, 0
      %v1769 = vsel %vm1216, %v1724, 0
      %v1772 = vsel %vm1216, %v1726, 0
      %v1775 = vsel %vm1216, %v1728, 0
      %1777 = vmatprep.subr.bf16.mxu0 0
      %1778 = vmatpush1.bf16.xpose.msra.mxu0 %v1754
      %1779 = vmatprep.subr.bf16.mxu0 0
      %1780 = vmatpush1.bf16.xpose.msra.mxu0 %v1757
      %1781 = vmatprep.subr.bf16.mxu0 0
      %1782 = vmatpush1.bf16.xpose.msra.mxu0 %v1760
      %1783 = vmatprep.subr.bf16.mxu0 0
      %1784 = vmatpush1.bf16.xpose.msra.mxu0 %v1763
      %1785 = vmatprep.subr.bf16.mxu0 0
      %1786 = vmatpush1.bf16.xpose.msra.mxu0 %v1766
      %1787 = vmatprep.subr.bf16.mxu0 0
      %1788 = vmatpush1.bf16.xpose.msra.mxu0 %v1769
      %1789 = vmatprep.subr.bf16.mxu0 0
      %1790 = vmatpush1.bf16.xpose.msra.mxu0 %v1772
      %1791 = vmatprep.subr.bf16.mxu0 0
      %1792 = vmatpush1.bf16.xpose.msra.mxu0 %v1775
      %1793 = vmatprep.subr.bf16.mxu0 0
      %1794 = vmatpush1.bf16.xpose.msra.mxu0 0
      %1795 = vmatprep.subr.bf16.mxu0 0
      %1796 = vmatpush1.bf16.xpose.msra.mxu0 0
      %1797 = vmatprep.subr.bf16.mxu0 0
      %1798 = vmatpush1.bf16.xpose.msra.mxu0 0
      %1799 = vmatprep.subr.bf16.mxu0 0
      %1800 = vmatpush1.bf16.xpose.msra.mxu0 0
      %1801 = vmatprep.subr.bf16.mxu0 0
      %1802 = vmatpush1.bf16.xpose.msra.mxu0 0
      %1803 = vmatprep.subr.bf16.mxu0 0
      %1804 = vmatpush1.bf16.xpose.msra.mxu0 0
      %1805 = vmatprep.subr.bf16.mxu0 0
      %1806 = vmatpush1.bf16.xpose.msra.mxu0 0
      %1807 = vmatprep.subr.bf16.mxu0 0
      %1808 = vmatpush1.bf16.xpose.msra.mxu0 0
      %1809 = vmatprep.mubr.bf16.mxu0 0
      %1810 = vmatmul.mubr.bf16.gmra.mrb[0].mxu0 %v1730
      %v1811 = vpop.f32.mrb[0].mxu0
      %v1812 = vadd.f32 %v1665, %v1811
      %v1813 = vpop.f32.mrb[0].mxu0
      %v1814 = vpop.f32.mrb[0].mxu0
      %v1815 = vadd.f32 %v1666, %v1814
      %v1816 = vpop.f32.mrb[0].mxu0
      %1817 = vmatprep.mubr.bf16.mxu0 0
      %1818 = vmatmul.mubr.bf16.gmra.mrb[0].mxu0 %v1733
      %v1819 = vpop.f32.mrb[0].mxu0
      %v1820 = vadd.f32 %v1667, %v1819
      %v1821 = vpop.f32.mrb[0].mxu0
      %v1822 = vpop.f32.mrb[0].mxu0
      %v1823 = vadd.f32 %v1668, %v1822
      %v1824 = vpop.f32.mrb[0].mxu0
      %1825 = vmatprep.mubr.bf16.mxu0 0
      %1826 = vmatmul.mubr.bf16.gmra.mrb[0].mxu0 %v1736
      %v1827 = vpop.f32.mrb[0].mxu0
      %v1828 = vadd.f32 %v1669, %v1827
      %v1829 = vpop.f32.mrb[0].mxu0
      %v1830 = vpop.f32.mrb[0].mxu0
      %v1831 = vadd.f32 %v1670, %v1830
      %v1832 = vpop.f32.mrb[0].mxu0
      %1833 = vmatprep.mubr.bf16.mxu0 0
      %1834 = vmatmul.mubr.bf16.gmra.mrb[0].mxu0 %v1739
      %v1835 = vpop.f32.mrb[0].mxu0
      %v1836 = vadd.f32 %v1671, %v1835
      %v1837 = vpop.f32.mrb[0].mxu0
      %v1838 = vpop.f32.mrb[0].mxu0
      %v1839 = vadd.f32 %v1672, %v1838
      %v1840 = vpop.f32.mrb[0].mxu0
      %1841 = vmatprep.mubr.bf16.mxu0 0
      %1842 = vmatmul.mubr.bf16.gmra.mrb[0].mxu0 %v1742
      %v1843 = vpop.f32.mrb[0].mxu0
      %v1844 = vadd.f32 %v1673, %v1843
      %v1845 = vpop.f32.mrb[0].mxu0
      %v1846 = vpop.f32.mrb[0].mxu0
      %v1847 = vadd.f32 %v1674, %v1846
      %v1848 = vpop.f32.mrb[0].mxu0
      %1849 = vmatprep.mubr.bf16.mxu0 0
      %1850 = vmatmul.mubr.bf16.gmra.mrb[0].mxu0 %v1745
      %v1851 = vpop.f32.mrb[0].mxu0
      %v1852 = vadd.f32 %v1675, %v1851
      %v1853 = vpop.f32.mrb[0].mxu0
      %v1854 = vpop.f32.mrb[0].mxu0
      %v1855 = vadd.f32 %v1676, %v1854
      %v1856 = vpop.f32.mrb[0].mxu0
      %1857 = vmatprep.mubr.bf16.mxu0 0
      %1858 = vmatmul.mubr.bf16.gmra.mrb[0].mxu0 %v1748
      %v1859 = vpop.f32.mrb[0].mxu0
      %v1860 = vadd.f32 %v1677, %v1859
      %v1861 = vpop.f32.mrb[0].mxu0
      %v1862 = vpop.f32.mrb[0].mxu0
      %v1863 = vadd.f32 %v1678, %v1862
      %v1864 = vpop.f32.mrb[0].mxu0
      %1865 = vmatprep.mubr.bf16.mxu0 0
      %1866 = vmatmul.mubr.bf16.gmra.mrb[0].mxu0 %v1751
      %v1867 = vpop.f32.mrb[0].mxu0
      %v1868 = vadd.f32 %v1679, %v1867
      %v1869 = vpop.f32.mrb[0].mxu0
      %v1870 = vpop.f32.mrb[0].mxu0
      %v1871 = vadd.f32 %v1680, %v1870
      %v1872 = vpop.f32.mrb[0].mxu0
      %1873 = vdwg.mxu0
      %1874 = vmax.xlane.f32.xlu0 %v1812
      %v1875 = vpop.xlane.xlu0 %1874
      %1876 = vmax.xlane.f32.xlu0 %v1815
      %v1877 = vpop.xlane.xlu0 %1876
      %1878 = vmax.xlane.f32.xlu0 %v1820
      %v1879 = vpop.xlane.xlu0 %1878
      %1880 = vmax.xlane.f32.xlu0 %v1823
      %v1881 = vpop.xlane.xlu0 %1880
      %1882 = vmax.xlane.f32.xlu0 %v1828
      %v1883 = vpop.xlane.xlu0 %1882
      %1884 = vmax.xlane.f32.xlu0 %v1831
      %v1885 = vpop.xlane.xlu0 %1884
      %1886 = vmax.xlane.f32.xlu0 %v1836
      %v1887 = vpop.xlane.xlu0 %1886
      %1888 = vmax.xlane.f32.xlu0 %v1839
      %v1889 = vpop.xlane.xlu0 %1888
      %1890 = vmax.xlane.f32.xlu0 %v1844
      %v1891 = vpop.xlane.xlu0 %1890
      %1892 = vmax.xlane.f32.xlu0 %v1847
      %v1893 = vpop.xlane.xlu0 %1892
      %1894 = vmax.xlane.f32.xlu0 %v1852
      %v1895 = vpop.xlane.xlu0 %1894
      %1896 = vmax.xlane.f32.xlu0 %v1855
      %v1897 = vpop.xlane.xlu0 %1896
      %1898 = vmax.xlane.f32.xlu0 %v1860
      %v1899 = vpop.xlane.xlu0 %1898
      %1900 = vmax.xlane.f32.xlu0 %v1863
      %v1901 = vpop.xlane.xlu0 %1900
      %1902 = vmax.xlane.f32.xlu0 %v1868
      %v1903 = vpop.xlane.xlu0 %1902
      %1904 = vmax.xlane.f32.xlu0 %v1871
      %v1905 = vpop.xlane.xlu0 %1904
      %v1906 = vsub.f32 %v1812, %v1875
      %v1907 = vsub.f32 %v1815, %v1877
      %v1908 = vsub.f32 %v1820, %v1879
      %v1909 = vsub.f32 %v1823, %v1881
      %v1910 = vsub.f32 %v1828, %v1883
      %v1911 = vsub.f32 %v1831, %v1885
      %v1912 = vsub.f32 %v1836, %v1887
      %v1913 = vsub.f32 %v1839, %v1889
      %v1914 = vsub.f32 %v1844, %v1891
      %v1915 = vsub.f32 %v1847, %v1893
      %v1916 = vsub.f32 %v1852, %v1895
      %v1917 = vsub.f32 %v1855, %v1897
      %v1918 = vsub.f32 %v1860, %v1899
      %v1919 = vsub.f32 %v1863, %v1901
      %v1920 = vsub.f32 %v1868, %v1903
      %v1921 = vsub.f32 %v1871, %v1905
      %v1922 = vmul.f32 %v1906, 1.442695
      %v1923 = vpow.pop %v1922
      %v1924 = vmul.f32 %v1907, 1.442695
      %v1925 = vpow.pop %v1924
      %v1926 = vmul.f32 %v1908, 1.442695
      %v1927 = vpow.pop %v1926
      %v1928 = vmul.f32 %v1909, 1.442695
      %v1929 = vpow.pop %v1928
      %v1930 = vmul.f32 %v1910, 1.442695
      %v1931 = vpow.pop %v1930
      %v1932 = vmul.f32 %v1911, 1.442695
      %v1933 = vpow.pop %v1932
      %v1934 = vmul.f32 %v1912, 1.442695
      %v1935 = vpow.pop %v1934
      %v1936 = vmul.f32 %v1913, 1.442695
      %v1937 = vpow.pop %v1936
      %v1938 = vmul.f32 %v1914, 1.442695
      %v1939 = vpow.pop %v1938
      %v1940 = vmul.f32 %v1915, 1.442695
      %v1941 = vpow.pop %v1940
      %v1942 = vmul.f32 %v1916, 1.442695
      %v1943 = vpow.pop %v1942
      %v1944 = vmul.f32 %v1917, 1.442695
      %v1945 = vpow.pop %v1944
      %v1946 = vmul.f32 %v1918, 1.442695
      %v1947 = vpow.pop %v1946
      %v1948 = vmul.f32 %v1919, 1.442695
      %v1949 = vpow.pop %v1948
      %v1950 = vmul.f32 %v1920, 1.442695
      %v1951 = vpow.pop %v1950
      %v1952 = vmul.f32 %v1921, 1.442695
      %v1953 = vpow.pop %v1952
      %v1954 = vmul.f32 %v1923, %v1446
      %v1955 = vmul.f32 %v1925, %v1446
      %v1956 = vmul.f32 %v1927, %v1446
      %v1957 = vmul.f32 %v1929, %v1446
      %v1958 = vmul.f32 %v1931, %v1446
      %v1959 = vmul.f32 %v1933, %v1446
      %v1960 = vmul.f32 %v1935, %v1446
      %v1961 = vmul.f32 %v1937, %v1446
      %v1962 = vmul.f32 %v1939, %v1446
      %v1963 = vmul.f32 %v1941, %v1446
      %v1964 = vmul.f32 %v1943, %v1446
      %v1965 = vmul.f32 %v1945, %v1446
      %v1966 = vmul.f32 %v1947, %v1446
      %v1967 = vmul.f32 %v1949, %v1446
      %v1968 = vmul.f32 %v1951, %v1446
      %v1969 = vmul.f32 %v1953, %v1446
      %1970 = vadd.xlane.f32.xlu0 %v1954
      %v1971 = vpop.xlane.xlu0 %1970
      %1972 = vadd.xlane.f32.xlu0 %v1955
      %v1973 = vpop.xlane.xlu0 %1972
      %1974 = vadd.xlane.f32.xlu0 %v1956
      %v1975 = vpop.xlane.xlu0 %1974
      %1976 = vadd.xlane.f32.xlu0 %v1957
      %v1977 = vpop.xlane.xlu0 %1976
      %1978 = vadd.xlane.f32.xlu0 %v1958
      %v1979 = vpop.xlane.xlu0 %1978
      %1980 = vadd.xlane.f32.xlu0 %v1959
      %v1981 = vpop.xlane.xlu0 %1980
      %1982 = vadd.xlane.f32.xlu0 %v1960
      %v1983 = vpop.xlane.xlu0 %1982
      %1984 = vadd.xlane.f32.xlu0 %v1961
      %v1985 = vpop.xlane.xlu0 %1984
      %1986 = vadd.xlane.f32.xlu0 %v1962
      %v1987 = vpop.xlane.xlu0 %1986
      %1988 = vadd.xlane.f32.xlu0 %v1963
      %v1989 = vpop.xlane.xlu0 %1988
      %1990 = vadd.xlane.f32.xlu0 %v1964
      %v1991 = vpop.xlane.xlu0 %1990
      %1992 = vadd.xlane.f32.xlu0 %v1965
      %v1993 = vpop.xlane.xlu0 %1992
      %1994 = vadd.xlane.f32.xlu0 %v1966
      %v1995 = vpop.xlane.xlu0 %1994
      %1996 = vadd.xlane.f32.xlu0 %v1967
      %v1997 = vpop.xlane.xlu0 %1996
      %1998 = vadd.xlane.f32.xlu0 %v1968
      %v1999 = vpop.xlane.xlu0 %1998
      %2000 = vadd.xlane.f32.xlu0 %v1969
      %v2001 = vpop.xlane.xlu0 %2000
      %v2002 = vrcp.pop %v1971
      %v2003 = vrcp.pop %v1973
      %v2004 = vrcp.pop %v1975
      %v2005 = vrcp.pop %v1977
      %v2006 = vrcp.pop %v1979
      %v2007 = vrcp.pop %v1981
      %v2008 = vrcp.pop %v1983
      %v2009 = vrcp.pop %v1985
      %v2010 = vrcp.pop %v1987
      %v2011 = vrcp.pop %v1989
      %v2012 = vrcp.pop %v1991
      %v2013 = vrcp.pop %v1993
      %v2014 = vrcp.pop %v1995
      %v2015 = vrcp.pop %v1997
      %v2016 = vrcp.pop %v1999
      %v2017 = vrcp.pop %v2001
      %v2018 = vmul.f32 %v1954, %v2002
      %v2019 = vmul.f32 %v1955, %v2003
      %v2020 = vmul.f32 %v1956, %v2004
      %v2021 = vmul.f32 %v1957, %v2005
      %v2022 = vmul.f32 %v1958, %v2006
      %v2023 = vmul.f32 %v1959, %v2007
      %v2024 = vmul.f32 %v1960, %v2008
      %v2025 = vmul.f32 %v1961, %v2009
      %v2026 = vmul.f32 %v1962, %v2010
      %v2027 = vmul.f32 %v1963, %v2011
      %v2028 = vmul.f32 %v1964, %v2012
      %v2029 = vmul.f32 %v1965, %v2013
      %v2030 = vmul.f32 %v1966, %v2014
      %v2031 = vmul.f32 %v1967, %v2015
      %v2032 = vmul.f32 %v1968, %v2016
      %v2033 = vmul.f32 %v1969, %v2017
      %v2034 = vpack.c.bf16 %v2019, %v2018
      %v2035 = vpack.c.bf16 %v2021, %v2020
      %v2036 = vpack.c.bf16 %v2023, %v2022
      %v2037 = vpack.c.bf16 %v2025, %v2024
      %v2038 = vpack.c.bf16 %v2027, %v2026
      %v2039 = vpack.c.bf16 %v2029, %v2028
      %v2040 = vpack.c.bf16 %v2031, %v2030
      %v2041 = vpack.c.bf16 %v2033, %v2032
      %2050 = vrot.lane.b32.xlu0 %v1657, 120
      %v2051 = vpop.permute.xlu0 %2050
      %2052 = vrot.lane.b32.xlu0 %v1658, 120
      %v2053 = vpop.permute.xlu0 %2052
      %2054 = vrot.lane.b32.xlu0 %v1659, 120
      %v2055 = vpop.permute.xlu0 %2054
      %2056 = vrot.lane.b32.xlu0 %v1660, 120
      %v2057 = vpop.permute.xlu0 %2056
      %2058 = vrot.lane.b32.xlu0 %v1661, 120
      %v2059 = vpop.permute.xlu0 %2058
      %2060 = vrot.lane.b32.xlu0 %v1662, 120
      %v2061 = vpop.permute.xlu0 %2060
      %2062 = vrot.lane.b32.xlu0 %v1663, 120
      %v2063 = vpop.permute.xlu0 %2062
      %2064 = vrot.lane.b32.xlu0 %v1664, 120
      %v2065 = vpop.permute.xlu0 %2064
      %2074 = vmatprep.subr.bf16.mxu0 0
      %2075 = vmatpush1.bf16.msra.mxu0 %v2051
      %2076 = vmatprep.subr.bf16.mxu0 0
      %2077 = vmatpush1.bf16.msra.mxu0 %v2053
      %2078 = vmatprep.subr.bf16.mxu0 0
      %2079 = vmatpush1.bf16.msra.mxu0 %v2055
      %2080 = vmatprep.subr.bf16.mxu0 0
      %2081 = vmatpush1.bf16.msra.mxu0 %v2057
      %2082 = vmatprep.subr.bf16.mxu0 0
      %2083 = vmatpush1.bf16.msra.mxu0 %v2059
      %2084 = vmatprep.subr.bf16.mxu0 0
      %2085 = vmatpush1.bf16.msra.mxu0 %v2061
      %2086 = vmatprep.subr.bf16.mxu0 0
      %2087 = vmatpush1.bf16.msra.mxu0 %v2063
      %2088 = vmatprep.subr.bf16.mxu0 0
      %2089 = vmatpush1.bf16.msra.mxu0 %v2065
      %2090 = vmatprep.subr.bf16.mxu0 0
      %2091 = vmatpush1.bf16.msra.mxu0 0
      %2092 = vmatprep.subr.bf16.mxu0 0
      %2093 = vmatpush1.bf16.msra.mxu0 0
      %2094 = vmatprep.subr.bf16.mxu0 0
      %2095 = vmatpush1.bf16.msra.mxu0 0
      %2096 = vmatprep.subr.bf16.mxu0 0
      %2097 = vmatpush1.bf16.msra.mxu0 0
      %2098 = vmatprep.subr.bf16.mxu0 0
      %2099 = vmatpush1.bf16.msra.mxu0 0
      %2100 = vmatprep.subr.bf16.mxu0 0
      %2101 = vmatpush1.bf16.msra.mxu0 0
      %2102 = vmatprep.subr.bf16.mxu0 0
      %2103 = vmatpush1.bf16.msra.mxu0 0
      %2104 = vmatprep.subr.bf16.mxu0 0
      %2105 = vmatpush1.bf16.msra.mxu0 0
      %2106 = vmatprep.mubr.bf16.mxu0 0
      %2107 = vmatmul.mubr.bf16.gmra.mrb[0].mxu0 %v2034
      %v2108 = vpop.f32.mrb[0].mxu0
      %v2109 = vadd.f32 0.0, %v2108
      %v2110 = vpop.f32.mrb[0].mxu0
      %v2111 = vpop.f32.mrb[0].mxu0
      %v2112 = vadd.f32 0.0, %v2111
      %v2113 = vpop.f32.mrb[0].mxu0
      %2114 = vmatprep.mubr.bf16.mxu0 0
      %2115 = vmatmul.mubr.bf16.gmra.mrb[0].mxu0 %v2035
      %v2116 = vpop.f32.mrb[0].mxu0
      %v2117 = vadd.f32 0.0, %v2116
      %v2118 = vpop.f32.mrb[0].mxu0
      %v2119 = vpop.f32.mrb[0].mxu0
      %v2120 = vadd.f32 0.0, %v2119
      %v2121 = vpop.f32.mrb[0].mxu0
      %2122 = vmatprep.mubr.bf16.mxu0 0
      %2123 = vmatmul.mubr.bf16.gmra.mrb[0].mxu0 %v2036
      %v2124 = vpop.f32.mrb[0].mxu0
      %v2125 = vadd.f32 0.0, %v2124
      %v2126 = vpop.f32.mrb[0].mxu0
      %v2127 = vpop.f32.mrb[0].mxu0
      %v2128 = vadd.f32 0.0, %v2127
      %v2129 = vpop.f32.mrb[0].mxu0
      %2130 = vmatprep.mubr.bf16.mxu0 0
      %2131 = vmatmul.mubr.bf16.gmra.mrb[0].mxu0 %v2037
      %v2132 = vpop.f32.mrb[0].mxu0
      %v2133 = vadd.f32 0.0, %v2132
      %v2134 = vpop.f32.mrb[0].mxu0
      %v2135 = vpop.f32.mrb[0].mxu0
      %v2136 = vadd.f32 0.0, %v2135
      %v2137 = vpop.f32.mrb[0].mxu0
      %2138 = vmatprep.mubr.bf16.mxu0 0
      %2139 = vmatmul.mubr.bf16.gmra.mrb[0].mxu0 %v2038
      %v2140 = vpop.f32.mrb[0].mxu0
      %v2141 = vadd.f32 0.0, %v2140
      %v2142 = vpop.f32.mrb[0].mxu0
      %v2143 = vpop.f32.mrb[0].mxu0
      %v2144 = vadd.f32 0.0, %v2143
      %v2145 = vpop.f32.mrb[0].mxu0
      %2146 = vmatprep.mubr.bf16.mxu0 0
      %2147 = vmatmul.mubr.bf16.gmra.mrb[0].mxu0 %v2039
      %v2148 = vpop.f32.mrb[0].mxu0
      %v2149 = vadd.f32 0.0, %v2148
      %v2150 = vpop.f32.mrb[0].mxu0
      %v2151 = vpop.f32.mrb[0].mxu0
      %v2152 = vadd.f32 0.0, %v2151
      %v2153 = vpop.f32.mrb[0].mxu0
      %2154 = vmatprep.mubr.bf16.mxu0 0
      %2155 = vmatmul.mubr.bf16.gmra.mrb[0].mxu0 %v2040
      %v2156 = vpop.f32.mrb[0].mxu0
      %v2157 = vadd.f32 0.0, %v2156
      %v2158 = vpop.f32.mrb[0].mxu0
      %v2159 = vpop.f32.mrb[0].mxu0
      %v2160 = vadd.f32 0.0, %v2159
      %v2161 = vpop.f32.mrb[0].mxu0
      %2162 = vmatprep.mubr.bf16.mxu0 0
      %2163 = vmatmul.mubr.bf16.gmra.mrb[0].mxu0 %v2041
      %v2164 = vpop.f32.mrb[0].mxu0
      %v2165 = vadd.f32 0.0, %v2164
      %v2166 = vpop.f32.mrb[0].mxu0
      %v2167 = vpop.f32.mrb[0].mxu0
      %v2168 = vadd.f32 0.0, %v2167
      %v2169 = vpop.f32.mrb[0].mxu0
      %2170 = vdwg.mxu0
      %2187 = vrot.lane.b32.xlu0 %v2109, 8
      %v2188 = vpop.permute.xlu0 %2187
      %2189 = vrot.lane.b32.xlu0 %v2112, 8
      %v2190 = vpop.permute.xlu0 %2189
      %2191 = vrot.lane.b32.xlu0 %v2117, 8
      %v2192 = vpop.permute.xlu0 %2191
      %2193 = vrot.lane.b32.xlu0 %v2120, 8
      %v2194 = vpop.permute.xlu0 %2193
      %2195 = vrot.lane.b32.xlu0 %v2125, 8
      %v2196 = vpop.permute.xlu0 %2195
      %2197 = vrot.lane.b32.xlu0 %v2128, 8
      %v2198 = vpop.permute.xlu0 %2197
      %2199 = vrot.lane.b32.xlu0 %v2133, 8
      %v2200 = vpop.permute.xlu0 %2199
      %2201 = vrot.lane.b32.xlu0 %v2136, 8
      %v2202 = vpop.permute.xlu0 %2201
      %2203 = vrot.lane.b32.xlu0 %v2141, 8
      %v2204 = vpop.permute.xlu0 %2203
      %2205 = vrot.lane.b32.xlu0 %v2144, 8
      %v2206 = vpop.permute.xlu0 %2205
      %2207 = vrot.lane.b32.xlu0 %v2149, 8
      %v2208 = vpop.permute.xlu0 %2207
      %2209 = vrot.lane.b32.xlu0 %v2152, 8
      %v2210 = vpop.permute.xlu0 %2209
      %2211 = vrot.lane.b32.xlu0 %v2157, 8
      %v2212 = vpop.permute.xlu0 %2211
      %2213 = vrot.lane.b32.xlu0 %v2160, 8
      %v2214 = vpop.permute.xlu0 %2213
      %2215 = vrot.lane.b32.xlu0 %v2165, 8
      %v2216 = vpop.permute.xlu0 %2215
      %2217 = vrot.lane.b32.xlu0 %v2168, 8
      %v2218 = vpop.permute.xlu0 %2217
      %vm2235 = vcmask 130112
      %2236 = vst.msk [vmem:[#allocation4] sm:$0xff] %vm2235, %v2188
      %2237 = vst.msk [vmem:[#allocation4 + $0x8] sm:$0xff] %vm2235, %v2190
      %2238 = vst.msk [vmem:[#allocation4 + $0x10] sm:$0xff] %vm2235, %v2192
      %2239 = vst.msk [vmem:[#allocation4 + $0x18] sm:$0xff] %vm2235, %v2194
      %2240 = vst.msk [vmem:[#allocation4 + $0x20] sm:$0xff] %vm2235, %v2196
      %2241 = vst.msk [vmem:[#allocation4 + $0x28] sm:$0xff] %vm2235, %v2198
      %2242 = vst.msk [vmem:[#allocation4 + $0x30] sm:$0xff] %vm2235, %v2200
      %2243 = vst.msk [vmem:[#allocation4 + $0x38] sm:$0xff] %vm2235, %v2202
      %2244 = vst.msk [vmem:[#allocation4 + $0x40] sm:$0xff] %vm2235, %v2204
      %2245 = vst.msk [vmem:[#allocation4 + $0x48] sm:$0xff] %vm2235, %v2206
      %2246 = vst.msk [vmem:[#allocation4 + $0x50] sm:$0xff] %vm2235, %v2208
      %2247 = vst.msk [vmem:[#allocation4 + $0x58] sm:$0xff] %vm2235, %v2210
      %2248 = vst.msk [vmem:[#allocation4 + $0x60] sm:$0xff] %vm2235, %v2212
      %2249 = vst.msk [vmem:[#allocation4 + $0x68] sm:$0xff] %vm2235, %v2214
      %2250 = vst.msk [vmem:[#allocation4 + $0x70] sm:$0xff] %vm2235, %v2216
      %2251 = vst.msk [vmem:[#allocation4 + $0x78] sm:$0xff] %vm2235, %v2218
      %v2252 = vld [vmem:[#allocation2] sm:$0xff]
      %v2253 = vld [vmem:[#allocation2 + $0x8] sm:$0xff]
      %v2254 = vld [vmem:[#allocation2 + $0x10] sm:$0xff]
      %v2255 = vld [vmem:[#allocation2 + $0x18] sm:$0xff]
      %v2256 = vld [vmem:[#allocation2 + $0x20] sm:$0xff]
      %v2257 = vld [vmem:[#allocation2 + $0x28] sm:$0xff]
      %v2258 = vld [vmem:[#allocation2 + $0x30] sm:$0xff]
      %v2259 = vld [vmem:[#allocation2 + $0x38] sm:$0xff]
      %v2260 = vld [vmem:[#allocation3] sm:$0xff]
      %v2261 = vld [vmem:[#allocation3 + $0x8] sm:$0xff]
      %v2262 = vld [vmem:[#allocation3 + $0x10] sm:$0xff]
      %v2263 = vld [vmem:[#allocation3 + $0x18] sm:$0xff]
      %v2264 = vld [vmem:[#allocation3 + $0x20] sm:$0xff]
      %v2265 = vld [vmem:[#allocation3 + $0x28] sm:$0xff]
      %v2266 = vld [vmem:[#allocation3 + $0x30] sm:$0xff]
      %v2267 = vld [vmem:[#allocation3 + $0x38] sm:$0xff]
      %v2268 = vmul.f32 %v1160, 0.015625
      %v2269 = vmul.f32 %v1161, 0.015625
      %v2270 = vmul.f32 %v1162, 0.015625
      %v2271 = vmul.f32 %v1163, 0.015625
      %v2272 = vmul.f32 %v1164, 0.015625
      %v2273 = vmul.f32 %v1165, 0.015625
      %v2274 = vmul.f32 %v1166, 0.015625
      %v2275 = vmul.f32 %v1167, 0.015625
      %v2276 = vmul.f32 %v1168, 0.015625
      %v2277 = vmul.f32 %v1169, 0.015625
      %v2278 = vmul.f32 %v1170, 0.015625
      %v2279 = vmul.f32 %v1171, 0.015625
      %v2280 = vmul.f32 %v1172, 0.015625
      %v2281 = vmul.f32 %v1173, 0.015625
      %v2282 = vmul.f32 %v1174, 0.015625
      %v2283 = vmul.f32 %v1175, 0.015625
      %2284 = vrot.lane.b32.xlu0 %v1176, 112
      %v2285 = vpop.permute.xlu0 %2284
      %2286 = vrot.lane.b32.xlu0 %v1177, 112
      %v2287 = vpop.permute.xlu0 %2286
      %2288 = vrot.lane.b32.xlu0 %v1178, 112
      %v2289 = vpop.permute.xlu0 %2288
      %2290 = vrot.lane.b32.xlu0 %v1179, 112
      %v2291 = vpop.permute.xlu0 %2290
      %2292 = vrot.lane.b32.xlu0 %v1180, 112
      %v2293 = vpop.permute.xlu0 %2292
      %2294 = vrot.lane.b32.xlu0 %v1181, 112
      %v2295 = vpop.permute.xlu0 %2294
      %2296 = vrot.lane.b32.xlu0 %v1182, 112
      %v2297 = vpop.permute.xlu0 %2296
      %2298 = vrot.lane.b32.xlu0 %v1183, 112
      %v2299 = vpop.permute.xlu0 %2298
      %2308 = vrot.lane.b32.xlu0 %v2252, 112
      %v2309 = vpop.permute.xlu0 %2308
      %2310 = vrot.lane.b32.xlu0 %v2253, 112
      %v2311 = vpop.permute.xlu0 %2310
      %2312 = vrot.lane.b32.xlu0 %v2254, 112
      %v2313 = vpop.permute.xlu0 %2312
      %2314 = vrot.lane.b32.xlu0 %v2255, 112
      %v2315 = vpop.permute.xlu0 %2314
      %2316 = vrot.lane.b32.xlu0 %v2256, 112
      %v2317 = vpop.permute.xlu0 %2316
      %2318 = vrot.lane.b32.xlu0 %v2257, 112
      %v2319 = vpop.permute.xlu0 %2318
      %2320 = vrot.lane.b32.xlu0 %v2258, 112
      %v2321 = vpop.permute.xlu0 %2320
      %2322 = vrot.lane.b32.xlu0 %v2259, 112
      %v2323 = vpop.permute.xlu0 %2322
      %v2325 = vsel %vm1216, %v2285, 0
      %v2328 = vsel %vm1216, %v2287, 0
      %v2331 = vsel %vm1216, %v2289, 0
      %v2334 = vsel %vm1216, %v2291, 0
      %v2337 = vsel %vm1216, %v2293, 0
      %v2340 = vsel %vm1216, %v2295, 0
      %v2343 = vsel %vm1216, %v2297, 0
      %v2346 = vsel %vm1216, %v2299, 0
      %v2349 = vsel %vm1216, %v2309, 0
      %v2352 = vsel %vm1216, %v2311, 0
      %v2355 = vsel %vm1216, %v2313, 0
      %v2358 = vsel %vm1216, %v2315, 0
      %v2361 = vsel %vm1216, %v2317, 0
      %v2364 = vsel %vm1216, %v2319, 0
      %v2367 = vsel %vm1216, %v2321, 0
      %v2370 = vsel %vm1216, %v2323, 0
      %2372 = vmatprep.subr.bf16.mxu0 0
      %2373 = vmatpush1.bf16.xpose.msra.mxu0 %v2349
      %2374 = vmatprep.subr.bf16.mxu0 0
      %2375 = vmatpush1.bf16.xpose.msra.mxu0 %v2352
      %2376 = vmatprep.subr.bf16.mxu0 0
      %2377 = vmatpush1.bf16.xpose.msra.mxu0 %v2355
      %2378 = vmatprep.subr.bf16.mxu0 0
      %2379 = vmatpush1.bf16.xpose.msra.mxu0 %v2358
      %2380 = vmatprep.subr.bf16.mxu0 0
      %2381 = vmatpush1.bf16.xpose.msra.mxu0 %v2361
      %2382 = vmatprep.subr.bf16.mxu0 0
      %2383 = vmatpush1.bf16.xpose.msra.mxu0 %v2364
      %2384 = vmatprep.subr.bf16.mxu0 0
      %2385 = vmatpush1.bf16.xpose.msra.mxu0 %v2367
      %2386 = vmatprep.subr.bf16.mxu0 0
      %2387 = vmatpush1.bf16.xpose.msra.mxu0 %v2370
      %2388 = vmatprep.subr.bf16.mxu0 0
      %2389 = vmatpush1.bf16.xpose.msra.mxu0 0
      %2390 = vmatprep.subr.bf16.mxu0 0
      %2391 = vmatpush1.bf16.xpose.msra.mxu0 0
      %2392 = vmatprep.subr.bf16.mxu0 0
      %2393 = vmatpush1.bf16.xpose.msra.mxu0 0
      %2394 = vmatprep.subr.bf16.mxu0 0
      %2395 = vmatpush1.bf16.xpose.msra.mxu0 0
      %2396 = vmatprep.subr.bf16.mxu0 0
      %2397 = vmatpush1.bf16.xpose.msra.mxu0 0
      %2398 = vmatprep.subr.bf16.mxu0 0
      %2399 = vmatpush1.bf16.xpose.msra.mxu0 0
      %2400 = vmatprep.subr.bf16.mxu0 0
      %2401 = vmatpush1.bf16.xpose.msra.mxu0 0
      %2402 = vmatprep.subr.bf16.mxu0 0
      %2403 = vmatpush1.bf16.xpose.msra.mxu0 0
      %2404 = vmatprep.mubr.bf16.mxu0 0
      %2405 = vmatmul.mubr.bf16.gmra.mrb[0].mxu0 %v2325
      %v2406 = vpop.f32.mrb[0].mxu0
      %v2407 = vadd.f32 %v2268, %v2406
      %v2408 = vpop.f32.mrb[0].mxu0
      %v2409 = vpop.f32.mrb[0].mxu0
      %v2410 = vadd.f32 %v2269, %v2409
      %v2411 = vpop.f32.mrb[0].mxu0
      %2412 = vmatprep.mubr.bf16.mxu0 0
      %2413 = vmatmul.mubr.bf16.gmra.mrb[0].mxu0 %v2328
      %v2414 = vpop.f32.mrb[0].mxu0
      %v2415 = vadd.f32 %v2270, %v2414
      %v2416 = vpop.f32.mrb[0].mxu0
      %v2417 = vpop.f32.mrb[0].mxu0
      %v2418 = vadd.f32 %v2271, %v2417
      %v2419 = vpop.f32.mrb[0].mxu0
      %2420 = vmatprep.mubr.bf16.mxu0 0
      %2421 = vmatmul.mubr.bf16.gmra.mrb[0].mxu0 %v2331
      %v2422 = vpop.f32.mrb[0].mxu0
      %v2423 = vadd.f32 %v2272, %v2422
      %v2424 = vpop.f32.mrb[0].mxu0
      %v2425 = vpop.f32.mrb[0].mxu0
      %v2426 = vadd.f32 %v2273, %v2425
      %v2427 = vpop.f32.mrb[0].mxu0
      %2428 = vmatprep.mubr.bf16.mxu0 0
      %2429 = vmatmul.mubr.bf16.gmra.mrb[0].mxu0 %v2334
      %v2430 = vpop.f32.mrb[0].mxu0
      %v2431 = vadd.f32 %v2274, %v2430
      %v2432 = vpop.f32.mrb[0].mxu0
      %v2433 = vpop.f32.mrb[0].mxu0
      %v2434 = vadd.f32 %v2275, %v2433
      %v2435 = vpop.f32.mrb[0].mxu0
      %2436 = vmatprep.mubr.bf16.mxu0 0
      %2437 = vmatmul.mubr.bf16.gmra.mrb[0].mxu0 %v2337
      %v2438 = vpop.f32.mrb[0].mxu0
      %v2439 = vadd.f32 %v2276, %v2438
      %v2440 = vpop.f32.mrb[0].mxu0
      %v2441 = vpop.f32.mrb[0].mxu0
      %v2442 = vadd.f32 %v2277, %v2441
      %v2443 = vpop.f32.mrb[0].mxu0
      %2444 = vmatprep.mubr.bf16.mxu0 0
      %2445 = vmatmul.mubr.bf16.gmra.mrb[0].mxu0 %v2340
      %v2446 = vpop.f32.mrb[0].mxu0
      %v2447 = vadd.f32 %v2278, %v2446
      %v2448 = vpop.f32.mrb[0].mxu0
      %v2449 = vpop.f32.mrb[0].mxu0
      %v2450 = vadd.f32 %v2279, %v2449
      %v2451 = vpop.f32.mrb[0].mxu0
      %2452 = vmatprep.mubr.bf16.mxu0 0
      %2453 = vmatmul.mubr.bf16.gmra.mrb[0].mxu0 %v2343
      %v2454 = vpop.f32.mrb[0].mxu0
      %v2455 = vadd.f32 %v2280, %v2454
      %v2456 = vpop.f32.mrb[0].mxu0
      %v2457 = vpop.f32.mrb[0].mxu0
      %v2458 = vadd.f32 %v2281, %v2457
      %v2459 = vpop.f32.mrb[0].mxu0
      %2460 = vmatprep.mubr.bf16.mxu0 0
      %2461 = vmatmul.mubr.bf16.gmra.mrb[0].mxu0 %v2346
      %v2462 = vpop.f32.mrb[0].mxu0
      %v2463 = vadd.f32 %v2282, %v2462
      %v2464 = vpop.f32.mrb[0].mxu0
      %v2465 = vpop.f32.mrb[0].mxu0
      %v2466 = vadd.f32 %v2283, %v2465
      %v2467 = vpop.f32.mrb[0].mxu0
      %2468 = vdwg.mxu0
      %2469 = vmax.xlane.f32.xlu0 %v2407
      %v2470 = vpop.xlane.xlu0 %2469
      %2471 = vmax.xlane.f32.xlu0 %v2410
      %v2472 = vpop.xlane.xlu0 %2471
      %2473 = vmax.xlane.f32.xlu0 %v2415
      %v2474 = vpop.xlane.xlu0 %2473
      %2475 = vmax.xlane.f32.xlu0 %v2418
      %v2476 = vpop.xlane.xlu0 %2475
      %2477 = vmax.xlane.f32.xlu0 %v2423
      %v2478 = vpop.xlane.xlu0 %2477
      %2479 = vmax.xlane.f32.xlu0 %v2426
      %v2480 = vpop.xlane.xlu0 %2479
      %2481 = vmax.xlane.f32.xlu0 %v2431
      %v2482 = vpop.xlane.xlu0 %2481
      %2483 = vmax.xlane.f32.xlu0 %v2434
      %v2484 = vpop.xlane.xlu0 %2483
      %2485 = vmax.xlane.f32.xlu0 %v2439
      %v2486 = vpop.xlane.xlu0 %2485
      %2487 = vmax.xlane.f32.xlu0 %v2442
      %v2488 = vpop.xlane.xlu0 %2487
      %2489 = vmax.xlane.f32.xlu0 %v2447
      %v2490 = vpop.xlane.xlu0 %2489
      %2491 = vmax.xlane.f32.xlu0 %v2450
      %v2492 = vpop.xlane.xlu0 %2491
      %2493 = vmax.xlane.f32.xlu0 %v2455
      %v2494 = vpop.xlane.xlu0 %2493
      %2495 = vmax.xlane.f32.xlu0 %v2458
      %v2496 = vpop.xlane.xlu0 %2495
      %2497 = vmax.xlane.f32.xlu0 %v2463
      %v2498 = vpop.xlane.xlu0 %2497
      %2499 = vmax.xlane.f32.xlu0 %v2466
      %v2500 = vpop.xlane.xlu0 %2499
      %v2501 = vsub.f32 %v2407, %v2470
      %v2502 = vsub.f32 %v2410, %v2472
      %v2503 = vsub.f32 %v2415, %v2474
      %v2504 = vsub.f32 %v2418, %v2476
      %v2505 = vsub.f32 %v2423, %v2478
      %v2506 = vsub.f32 %v2426, %v2480
      %v2507 = vsub.f32 %v2431, %v2482
      %v2508 = vsub.f32 %v2434, %v2484
      %v2509 = vsub.f32 %v2439, %v2486
      %v2510 = vsub.f32 %v2442, %v2488
      %v2511 = vsub.f32 %v2447, %v2490
      %v2512 = vsub.f32 %v2450, %v2492
      %v2513 = vsub.f32 %v2455, %v2494
      %v2514 = vsub.f32 %v2458, %v2496
      %v2515 = vsub.f32 %v2463, %v2498
      %v2516 = vsub.f32 %v2466, %v2500
      %v2517 = vmul.f32 %v2501, 1.442695
      %v2518 = vpow.pop %v2517
      %v2519 = vmul.f32 %v2502, 1.442695
      %v2520 = vpow.pop %v2519
      %v2521 = vmul.f32 %v2503, 1.442695
      %v2522 = vpow.pop %v2521
      %v2523 = vmul.f32 %v2504, 1.442695
      %v2524 = vpow.pop %v2523
      %v2525 = vmul.f32 %v2505, 1.442695
      %v2526 = vpow.pop %v2525
      %v2527 = vmul.f32 %v2506, 1.442695
      %v2528 = vpow.pop %v2527
      %v2529 = vmul.f32 %v2507, 1.442695
      %v2530 = vpow.pop %v2529
      %v2531 = vmul.f32 %v2508, 1.442695
      %v2532 = vpow.pop %v2531
      %v2533 = vmul.f32 %v2509, 1.442695
      %v2534 = vpow.pop %v2533
      %v2535 = vmul.f32 %v2510, 1.442695
      %v2536 = vpow.pop %v2535
      %v2537 = vmul.f32 %v2511, 1.442695
      %v2538 = vpow.pop %v2537
      %v2539 = vmul.f32 %v2512, 1.442695
      %v2540 = vpow.pop %v2539
      %v2541 = vmul.f32 %v2513, 1.442695
      %v2542 = vpow.pop %v2541
      %v2543 = vmul.f32 %v2514, 1.442695
      %v2544 = vpow.pop %v2543
      %v2545 = vmul.f32 %v2515, 1.442695
      %v2546 = vpow.pop %v2545
      %v2547 = vmul.f32 %v2516, 1.442695
      %v2548 = vpow.pop %v2547
      %v2549 = vmul.f32 %v2518, %v1446
      %v2550 = vmul.f32 %v2520, %v1446
      %v2551 = vmul.f32 %v2522, %v1446
      %v2552 = vmul.f32 %v2524, %v1446
      %v2553 = vmul.f32 %v2526, %v1446
      %v2554 = vmul.f32 %v2528, %v1446
      %v2555 = vmul.f32 %v2530, %v1446
      %v2556 = vmul.f32 %v2532, %v1446
      %v2557 = vmul.f32 %v2534, %v1446
      %v2558 = vmul.f32 %v2536, %v1446
      %v2559 = vmul.f32 %v2538, %v1446
      %v2560 = vmul.f32 %v2540, %v1446
      %v2561 = vmul.f32 %v2542, %v1446
      %v2562 = vmul.f32 %v2544, %v1446
      %v2563 = vmul.f32 %v2546, %v1446
      %v2564 = vmul.f32 %v2548, %v1446
      %2565 = vadd.xlane.f32.xlu0 %v2549
      %v2566 = vpop.xlane.xlu0 %2565
      %2567 = vadd.xlane.f32.xlu0 %v2550
      %v2568 = vpop.xlane.xlu0 %2567
      %2569 = vadd.xlane.f32.xlu0 %v2551
      %v2570 = vpop.xlane.xlu0 %2569
      %2571 = vadd.xlane.f32.xlu0 %v2552
      %v2572 = vpop.xlane.xlu0 %2571
      %2573 = vadd.xlane.f32.xlu0 %v2553
      %v2574 = vpop.xlane.xlu0 %2573
      %2575 = vadd.xlane.f32.xlu0 %v2554
      %v2576 = vpop.xlane.xlu0 %2575
      %2577 = vadd.xlane.f32.xlu0 %v2555
      %v2578 = vpop.xlane.xlu0 %2577
      %2579 = vadd.xlane.f32.xlu0 %v2556
      %v2580 = vpop.xlane.xlu0 %2579
      %2581 = vadd.xlane.f32.xlu0 %v2557
      %v2582 = vpop.xlane.xlu0 %2581
      %2583 = vadd.xlane.f32.xlu0 %v2558
      %v2584 = vpop.xlane.xlu0 %2583
      %2585 = vadd.xlane.f32.xlu0 %v2559
      %v2586 = vpop.xlane.xlu0 %2585
      %2587 = vadd.xlane.f32.xlu0 %v2560
      %v2588 = vpop.xlane.xlu0 %2587
      %2589 = vadd.xlane.f32.xlu0 %v2561
      %v2590 = vpop.xlane.xlu0 %2589
      %2591 = vadd.xlane.f32.xlu0 %v2562
      %v2592 = vpop.xlane.xlu0 %2591
      %2593 = vadd.xlane.f32.xlu0 %v2563
      %v2594 = vpop.xlane.xlu0 %2593
      %2595 = vadd.xlane.f32.xlu0 %v2564
      %v2596 = vpop.xlane.xlu0 %2595
      %v2597 = vrcp.pop %v2566
      %v2598 = vrcp.pop %v2568
      %v2599 = vrcp.pop %v2570
      %v2600 = vrcp.pop %v2572
      %v2601 = vrcp.pop %v2574
      %v2602 = vrcp.pop %v2576
      %v2603 = vrcp.pop %v2578
      %v2604 = vrcp.pop %v2580
      %v2605 = vrcp.pop %v2582
      %v2606 = vrcp.pop %v2584
      %v2607 = vrcp.pop %v2586
      %v2608 = vrcp.pop %v2588
      %v2609 = vrcp.pop %v2590
      %v2610 = vrcp.pop %v2592
      %v2611 = vrcp.pop %v2594
      %v2612 = vrcp.pop %v2596
      %v2613 = vmul.f32 %v2549, %v2597
      %v2614 = vmul.f32 %v2550, %v2598
      %v2615 = vmul.f32 %v2551, %v2599
      %v2616 = vmul.f32 %v2552, %v2600
      %v2617 = vmul.f32 %v2553, %v2601
      %v2618 = vmul.f32 %v2554, %v2602
      %v2619 = vmul.f32 %v2555, %v2603
      %v2620 = vmul.f32 %v2556, %v2604
      %v2621 = vmul.f32 %v2557, %v2605
      %v2622 = vmul.f32 %v2558, %v2606
      %v2623 = vmul.f32 %v2559, %v2607
      %v2624 = vmul.f32 %v2560, %v2608
      %v2625 = vmul.f32 %v2561, %v2609
      %v2626 = vmul.f32 %v2562, %v2610
      %v2627 = vmul.f32 %v2563, %v2611
      %v2628 = vmul.f32 %v2564, %v2612
      %v2629 = vpack.c.bf16 %v2614, %v2613
      %v2630 = vpack.c.bf16 %v2616, %v2615
      %v2631 = vpack.c.bf16 %v2618, %v2617
      %v2632 = vpack.c.bf16 %v2620, %v2619
      %v2633 = vpack.c.bf16 %v2622, %v2621
      %v2634 = vpack.c.bf16 %v2624, %v2623
      %v2635 = vpack.c.bf16 %v2626, %v2625
      %v2636 = vpack.c.bf16 %v2628, %v2627
      %2645 = vrot.lane.b32.xlu0 %v2260, 112
      %v2646 = vpop.permute.xlu0 %2645
      %2647 = vrot.lane.b32.xlu0 %v2261, 112
      %v2648 = vpop.permute.xlu0 %2647
      %2649 = vrot.lane.b32.xlu0 %v2262, 112
      %v2650 = vpop.permute.xlu0 %2649
      %2651 = vrot.lane.b32.xlu0 %v2263, 112
      %v2652 = vpop.permute.xlu0 %2651
      %2653 = vrot.lane.b32.xlu0 %v2264, 112
      %v2654 = vpop.permute.xlu0 %2653
      %2655 = vrot.lane.b32.xlu0 %v2265, 112
      %v2656 = vpop.permute.xlu0 %2655
      %2657 = vrot.lane.b32.xlu0 %v2266, 112
      %v2658 = vpop.permute.xlu0 %2657
      %2659 = vrot.lane.b32.xlu0 %v2267, 112
      %v2660 = vpop.permute.xlu0 %2659
      %2669 = vmatprep.subr.bf16.mxu0 0
      %2670 = vmatpush1.bf16.msra.mxu0 %v2646
      %2671 = vmatprep.subr.bf16.mxu0 0
      %2672 = vmatpush1.bf16.msra.mxu0 %v2648
      %2673 = vmatprep.subr.bf16.mxu0 0
      %2674 = vmatpush1.bf16.msra.mxu0 %v2650
      %2675 = vmatprep.subr.bf16.mxu0 0
      %2676 = vmatpush1.bf16.msra.mxu0 %v2652
      %2677 = vmatprep.subr.bf16.mxu0 0
      %2678 = vmatpush1.bf16.msra.mxu0 %v2654
      %2679 = vmatprep.subr.bf16.mxu0 0
      %2680 = vmatpush1.bf16.msra.mxu0 %v2656
      %2681 = vmatprep.subr.bf16.mxu0 0
      %2682 = vmatpush1.bf16.msra.mxu0 %v2658
      %2683 = vmatprep.subr.bf16.mxu0 0
      %2684 = vmatpush1.bf16.msra.mxu0 %v2660
      %2685 = vmatprep.subr.bf16.mxu0 0
      %2686 = vmatpush1.bf16.msra.mxu0 0
      %2687 = vmatprep.subr.bf16.mxu0 0
      %2688 = vmatpush1.bf16.msra.mxu0 0
      %2689 = vmatprep.subr.bf16.mxu0 0
      %2690 = vmatpush1.bf16.msra.mxu0 0
      %2691 = vmatprep.subr.bf16.mxu0 0
      %2692 = vmatpush1.bf16.msra.mxu0 0
      %2693 = vmatprep.subr.bf16.mxu0 0
      %2694 = vmatpush1.bf16.msra.mxu0 0
      %2695 = vmatprep.subr.bf16.mxu0 0
      %2696 = vmatpush1.bf16.msra.mxu0 0
      %2697 = vmatprep.subr.bf16.mxu0 0
      %2698 = vmatpush1.bf16.msra.mxu0 0
      %2699 = vmatprep.subr.bf16.mxu0 0
      %2700 = vmatpush1.bf16.msra.mxu0 0
      %2701 = vmatprep.mubr.bf16.mxu0 0
      %2702 = vmatmul.mubr.bf16.gmra.mrb[0].mxu0 %v2629
      %v2703 = vpop.f32.mrb[0].mxu0
      %v2704 = vadd.f32 0.0, %v2703
      %v2705 = vpop.f32.mrb[0].mxu0
      %v2706 = vpop.f32.mrb[0].mxu0
      %v2707 = vadd.f32 0.0, %v2706
      %v2708 = vpop.f32.mrb[0].mxu0
      %2709 = vmatprep.mubr.bf16.mxu0 0
      %2710 = vmatmul.mubr.bf16.gmra.mrb[0].mxu0 %v2630
      %v2711 = vpop.f32.mrb[0].mxu0
      %v2712 = vadd.f32 0.0, %v2711
      %v2713 = vpop.f32.mrb[0].mxu0
      %v2714 = vpop.f32.mrb[0].mxu0
      %v2715 = vadd.f32 0.0, %v2714
      %v2716 = vpop.f32.mrb[0].mxu0
      %2717 = vmatprep.mubr.bf16.mxu0 0
      %2718 = vmatmul.mubr.bf16.gmra.mrb[0].mxu0 %v2631
      %v2719 = vpop.f32.mrb[0].mxu0
      %v2720 = vadd.f32 0.0, %v2719
      %v2721 = vpop.f32.mrb[0].mxu0
      %v2722 = vpop.f32.mrb[0].mxu0
      %v2723 = vadd.f32 0.0, %v2722
      %v2724 = vpop.f32.mrb[0].mxu0
      %2725 = vmatprep.mubr.bf16.mxu0 0
      %2726 = vmatmul.mubr.bf16.gmra.mrb[0].mxu0 %v2632
      %v2727 = vpop.f32.mrb[0].mxu0
      %v2728 = vadd.f32 0.0, %v2727
      %v2729 = vpop.f32.mrb[0].mxu0
      %v2730 = vpop.f32.mrb[0].mxu0
      %v2731 = vadd.f32 0.0, %v2730
      %v2732 = vpop.f32.mrb[0].mxu0
      %2733 = vmatprep.mubr.bf16.mxu0 0
      %2734 = vmatmul.mubr.bf16.gmra.mrb[0].mxu0 %v2633
      %v2735 = vpop.f32.mrb[0].mxu0
      %v2736 = vadd.f32 0.0, %v2735
      %v2737 = vpop.f32.mrb[0].mxu0
      %v2738 = vpop.f32.mrb[0].mxu0
      %v2739 = vadd.f32 0.0, %v2738
      %v2740 = vpop.f32.mrb[0].mxu0
      %2741 = vmatprep.mubr.bf16.mxu0 0
      %2742 = vmatmul.mubr.bf16.gmra.mrb[0].mxu0 %v2634
      %v2743 = vpop.f32.mrb[0].mxu0
      %v2744 = vadd.f32 0.0, %v2743
      %v2745 = vpop.f32.mrb[0].mxu0
      %v2746 = vpop.f32.mrb[0].mxu0
      %v2747 = vadd.f32 0.0, %v2746
      %v2748 = vpop.f32.mrb[0].mxu0
      %2749 = vmatprep.mubr.bf16.mxu0 0
      %2750 = vmatmul.mubr.bf16.gmra.mrb[0].mxu0 %v2635
      %v2751 = vpop.f32.mrb[0].mxu0
      %v2752 = vadd.f32 0.0, %v2751
      %v2753 = vpop.f32.mrb[0].mxu0
      %v2754 = vpop.f32.mrb[0].mxu0
      %v2755 = vadd.f32 0.0, %v2754
      %v2756 = vpop.f32.mrb[0].mxu0
      %2757 = vmatprep.mubr.bf16.mxu0 0
      %2758 = vmatmul.mubr.bf16.gmra.mrb[0].mxu0 %v2636
      %v2759 = vpop.f32.mrb[0].mxu0
      %v2760 = vadd.f32 0.0, %v2759
      %v2761 = vpop.f32.mrb[0].mxu0
      %v2762 = vpop.f32.mrb[0].mxu0
      %v2763 = vadd.f32 0.0, %v2762
      %v2764 = vpop.f32.mrb[0].mxu0
      %2765 = vdwg.mxu0
      %2782 = vrot.lane.b32.xlu0 %v2704, 16
      %v2783 = vpop.permute.xlu0 %2782
      %2784 = vrot.lane.b32.xlu0 %v2707, 16
      %v2785 = vpop.permute.xlu0 %2784
      %2786 = vrot.lane.b32.xlu0 %v2712, 16
      %v2787 = vpop.permute.xlu0 %2786
      %2788 = vrot.lane.b32.xlu0 %v2715, 16
      %v2789 = vpop.permute.xlu0 %2788
      %2790 = vrot.lane.b32.xlu0 %v2720, 16
      %v2791 = vpop.permute.xlu0 %2790
      %2792 = vrot.lane.b32.xlu0 %v2723, 16
      %v2793 = vpop.permute.xlu0 %2792
      %2794 = vrot.lane.b32.xlu0 %v2728, 16
      %v2795 = vpop.permute.xlu0 %2794
      %2796 = vrot.lane.b32.xlu0 %v2731, 16
      %v2797 = vpop.permute.xlu0 %2796
      %2798 = vrot.lane.b32.xlu0 %v2736, 16
      %v2799 = vpop.permute.xlu0 %2798
      %2800 = vrot.lane.b32.xlu0 %v2739, 16
      %v2801 = vpop.permute.xlu0 %2800
      %2802 = vrot.lane.b32.xlu0 %v2744, 16
      %v2803 = vpop.permute.xlu0 %2802
      %2804 = vrot.lane.b32.xlu0 %v2747, 16
      %v2805 = vpop.permute.xlu0 %2804
      %2806 = vrot.lane.b32.xlu0 %v2752, 16
      %v2807 = vpop.permute.xlu0 %2806
      %2808 = vrot.lane.b32.xlu0 %v2755, 16
      %v2809 = vpop.permute.xlu0 %2808
      %2810 = vrot.lane.b32.xlu0 %v2760, 16
      %v2811 = vpop.permute.xlu0 %2810
      %2812 = vrot.lane.b32.xlu0 %v2763, 16
      %v2813 = vpop.permute.xlu0 %2812
      %vm2830 = vcmask 195712
      %2831 = vst.msk [vmem:[#allocation4] sm:$0xff] %vm2830, %v2783
      %2832 = vst.msk [vmem:[#allocation4 + $0x8] sm:$0xff] %vm2830, %v2785
      %2833 = vst.msk [vmem:[#allocation4 + $0x10] sm:$0xff] %vm2830, %v2787
      %2834 = vst.msk [vmem:[#allocation4 + $0x18] sm:$0xff] %vm2830, %v2789
      %2835 = vst.msk [vmem:[#allocation4 + $0x20] sm:$0xff] %vm2830, %v2791
      %2836 = vst.msk [vmem:[#allocation4 + $0x28] sm:$0xff] %vm2830, %v2793
      %2837 = vst.msk [vmem:[#allocation4 + $0x30] sm:$0xff] %vm2830, %v2795
      %2838 = vst.msk [vmem:[#allocation4 + $0x38] sm:$0xff] %vm2830, %v2797
      %2839 = vst.msk [vmem:[#allocation4 + $0x40] sm:$0xff] %vm2830, %v2799
      %2840 = vst.msk [vmem:[#allocation4 + $0x48] sm:$0xff] %vm2830, %v2801
      %2841 = vst.msk [vmem:[#allocation4 + $0x50] sm:$0xff] %vm2830, %v2803
      %2842 = vst.msk [vmem:[#allocation4 + $0x58] sm:$0xff] %vm2830, %v2805
      %2843 = vst.msk [vmem:[#allocation4 + $0x60] sm:$0xff] %vm2830, %v2807
      %2844 = vst.msk [vmem:[#allocation4 + $0x68] sm:$0xff] %vm2830, %v2809
      %2845 = vst.msk [vmem:[#allocation4 + $0x70] sm:$0xff] %vm2830, %v2811
      %2846 = vst.msk [vmem:[#allocation4 + $0x78] sm:$0xff] %vm2830, %v2813
      %v2847 = vld [vmem:[#allocation2] sm:$0xff]
      %v2848 = vld [vmem:[#allocation2 + $0x8] sm:$0xff]
      %v2849 = vld [vmem:[#allocation2 + $0x10] sm:$0xff]
      %v2850 = vld [vmem:[#allocation2 + $0x18] sm:$0xff]
      %v2851 = vld [vmem:[#allocation2 + $0x20] sm:$0xff]
      %v2852 = vld [vmem:[#allocation2 + $0x28] sm:$0xff]
      %v2853 = vld [vmem:[#allocation2 + $0x30] sm:$0xff]
      %v2854 = vld [vmem:[#allocation2 + $0x38] sm:$0xff]
      %v2855 = vld [vmem:[#allocation3] sm:$0xff]
      %v2856 = vld [vmem:[#allocation3 + $0x8] sm:$0xff]
      %v2857 = vld [vmem:[#allocation3 + $0x10] sm:$0xff]
      %v2858 = vld [vmem:[#allocation3 + $0x18] sm:$0xff]
      %v2859 = vld [vmem:[#allocation3 + $0x20] sm:$0xff]
      %v2860 = vld [vmem:[#allocation3 + $0x28] sm:$0xff]
      %v2861 = vld [vmem:[#allocation3 + $0x30] sm:$0xff]
      %v2862 = vld [vmem:[#allocation3 + $0x38] sm:$0xff]
      %v2863 = vmul.f32 %v1160, 0.00390625
      %v2864 = vmul.f32 %v1161, 0.00390625
      %v2865 = vmul.f32 %v1162, 0.00390625
      %v2866 = vmul.f32 %v1163, 0.00390625
      %v2867 = vmul.f32 %v1164, 0.00390625
      %v2868 = vmul.f32 %v1165, 0.00390625
      %v2869 = vmul.f32 %v1166, 0.00390625
      %v2870 = vmul.f32 %v1167, 0.00390625
      %v2871 = vmul.f32 %v1168, 0.00390625
      %v2872 = vmul.f32 %v1169, 0.00390625
      %v2873 = vmul.f32 %v1170, 0.00390625
      %v2874 = vmul.f32 %v1171, 0.00390625
      %v2875 = vmul.f32 %v1172, 0.00390625
      %v2876 = vmul.f32 %v1173, 0.00390625
      %v2877 = vmul.f32 %v1174, 0.00390625
      %v2878 = vmul.f32 %v1175, 0.00390625
      %2879 = vrot.lane.b32.xlu0 %v1176, 104
      %v2880 = vpop.permute.xlu0 %2879
      %2881 = vrot.lane.b32.xlu0 %v1177, 104
      %v2882 = vpop.permute.xlu0 %2881
      %2883 = vrot.lane.b32.xlu0 %v1178, 104
      %v2884 = vpop.permute.xlu0 %2883
      %2885 = vrot.lane.b32.xlu0 %v1179, 104
      %v2886 = vpop.permute.xlu0 %2885
      %2887 = vrot.lane.b32.xlu0 %v1180, 104
      %v2888 = vpop.permute.xlu0 %2887
      %2889 = vrot.lane.b32.xlu0 %v1181, 104
      %v2890 = vpop.permute.xlu0 %2889
      %2891 = vrot.lane.b32.xlu0 %v1182, 104
      %v2892 = vpop.permute.xlu0 %2891
      %2893 = vrot.lane.b32.xlu0 %v1183, 104
      %v2894 = vpop.permute.xlu0 %2893
      %2903 = vrot.lane.b32.xlu0 %v2847, 104
      %v2904 = vpop.permute.xlu0 %2903
      %2905 = vrot.lane.b32.xlu0 %v2848, 104
      %v2906 = vpop.permute.xlu0 %2905
      %2907 = vrot.lane.b32.xlu0 %v2849, 104
      %v2908 = vpop.permute.xlu0 %2907
      %2909 = vrot.lane.b32.xlu0 %v2850, 104
      %v2910 = vpop.permute.xlu0 %2909
      %2911 = vrot.lane.b32.xlu0 %v2851, 104
      %v2912 = vpop.permute.xlu0 %2911
      %2913 = vrot.lane.b32.xlu0 %v2852, 104
      %v2914 = vpop.permute.xlu0 %2913
      %2915 = vrot.lane.b32.xlu0 %v2853, 104
      %v2916 = vpop.permute.xlu0 %2915
      %2917 = vrot.lane.b32.xlu0 %v2854, 104
      %v2918 = vpop.permute.xlu0 %2917
      %v2920 = vsel %vm1216, %v2880, 0
      %v2923 = vsel %vm1216, %v2882, 0
      %v2926 = vsel %vm1216, %v2884, 0
      %v2929 = vsel %vm1216, %v2886, 0
      %v2932 = vsel %vm1216, %v2888, 0
      %v2935 = vsel %vm1216, %v2890, 0
      %v2938 = vsel %vm1216, %v2892, 0
      %v2941 = vsel %vm1216, %v2894, 0
      %v2944 = vsel %vm1216, %v2904, 0
      %v2947 = vsel %vm1216, %v2906, 0
      %v2950 = vsel %vm1216, %v2908, 0
      %v2953 = vsel %vm1216, %v2910, 0
      %v2956 = vsel %vm1216, %v2912, 0
      %v2959 = vsel %vm1216, %v2914, 0
      %v2962 = vsel %vm1216, %v2916, 0
      %v2965 = vsel %vm1216, %v2918, 0
      %2967 = vmatprep.subr.bf16.mxu0 0
      %2968 = vmatpush1.bf16.xpose.msra.mxu0 %v2944
      %2969 = vmatprep.subr.bf16.mxu0 0
      %2970 = vmatpush1.bf16.xpose.msra.mxu0 %v2947
      %2971 = vmatprep.subr.bf16.mxu0 0
      %2972 = vmatpush1.bf16.xpose.msra.mxu0 %v2950
      %2973 = vmatprep.subr.bf16.mxu0 0
      %2974 = vmatpush1.bf16.xpose.msra.mxu0 %v2953
      %2975 = vmatprep.subr.bf16.mxu0 0
      %2976 = vmatpush1.bf16.xpose.msra.mxu0 %v2956
      %2977 = vmatprep.subr.bf16.mxu0 0
      %2978 = vmatpush1.bf16.xpose.msra.mxu0 %v2959
      %2979 = vmatprep.subr.bf16.mxu0 0
      %2980 = vmatpush1.bf16.xpose.msra.mxu0 %v2962
      %2981 = vmatprep.subr.bf16.mxu0 0
      %2982 = vmatpush1.bf16.xpose.msra.mxu0 %v2965
      %2983 = vmatprep.subr.bf16.mxu0 0
      %2984 = vmatpush1.bf16.xpose.msra.mxu0 0
      %2985 = vmatprep.subr.bf16.mxu0 0
      %2986 = vmatpush1.bf16.xpose.msra.mxu0 0
      %2987 = vmatprep.subr.bf16.mxu0 0
      %2988 = vmatpush1.bf16.xpose.msra.mxu0 0
      %2989 = vmatprep.subr.bf16.mxu0 0
      %2990 = vmatpush1.bf16.xpose.msra.mxu0 0
      %2991 = vmatprep.subr.bf16.mxu0 0
      %2992 = vmatpush1.bf16.xpose.msra.mxu0 0
      %2993 = vmatprep.subr.bf16.mxu0 0
      %2994 = vmatpush1.bf16.xpose.msra.mxu0 0
      %2995 = vmatprep.subr.bf16.mxu0 0
      %2996 = vmatpush1.bf16.xpose.msra.mxu0 0
      %2997 = vmatprep.subr.bf16.mxu0 0
      %2998 = vmatpush1.bf16.xpose.msra.mxu0 0
      %2999 = vmatprep.mubr.bf16.mxu0 0
      %3000 = vmatmul.mubr.bf16.gmra.mrb[0].mxu0 %v2920
      %v3001 = vpop.f32.mrb[0].mxu0
      %v3002 = vadd.f32 %v2863, %v3001
      %v3003 = vpop.f32.mrb[0].mxu0
      %v3004 = vpop.f32.mrb[0].mxu0
      %v3005 = vadd.f32 %v2864, %v3004
      %v3006 = vpop.f32.mrb[0].mxu0
      %3007 = vmatprep.mubr.bf16.mxu0 0
      %3008 = vmatmul.mubr.bf16.gmra.mrb[0].mxu0 %v2923
      %v3009 = vpop.f32.mrb[0].mxu0
      %v3010 = vadd.f32 %v2865, %v3009
      %v3011 = vpop.f32.mrb[0].mxu0
      %v3012 = vpop.f32.mrb[0].mxu0
      %v3013 = vadd.f32 %v2866, %v3012
      %v3014 = vpop.f32.mrb[0].mxu0
      %3015 = vmatprep.mubr.bf16.mxu0 0
      %3016 = vmatmul.mubr.bf16.gmra.mrb[0].mxu0 %v2926
      %v3017 = vpop.f32.mrb[0].mxu0
      %v3018 = vadd.f32 %v2867, %v3017
      %v3019 = vpop.f32.mrb[0].mxu0
      %v3020 = vpop.f32.mrb[0].mxu0
      %v3021 = vadd.f32 %v2868, %v3020
      %v3022 = vpop.f32.mrb[0].mxu0
      %3023 = vmatprep.mubr.bf16.mxu0 0
      %3024 = vmatmul.mubr.bf16.gmra.mrb[0].mxu0 %v2929
      %v3025 = vpop.f32.mrb[0].mxu0
      %v3026 = vadd.f32 %v2869, %v3025
      %v3027 = vpop.f32.mrb[0].mxu0
      %v3028 = vpop.f32.mrb[0].mxu0
      %v3029 = vadd.f32 %v2870, %v3028
      %v3030 = vpop.f32.mrb[0].mxu0
      %3031 = vmatprep.mubr.bf16.mxu0 0
      %3032 = vmatmul.mubr.bf16.gmra.mrb[0].mxu0 %v2932
      %v3033 = vpop.f32.mrb[0].mxu0
      %v3034 = vadd.f32 %v2871, %v3033
      %v3035 = vpop.f32.mrb[0].mxu0
      %v3036 = vpop.f32.mrb[0].mxu0
      %v3037 = vadd.f32 %v2872, %v3036
      %v3038 = vpop.f32.mrb[0].mxu0
      %3039 = vmatprep.mubr.bf16.mxu0 0
      %3040 = vmatmul.mubr.bf16.gmra.mrb[0].mxu0 %v2935
      %v3041 = vpop.f32.mrb[0].mxu0
      %v3042 = vadd.f32 %v2873, %v3041
      %v3043 = vpop.f32.mrb[0].mxu0
      %v3044 = vpop.f32.mrb[0].mxu0
      %v3045 = vadd.f32 %v2874, %v3044
      %v3046 = vpop.f32.mrb[0].mxu0
      %3047 = vmatprep.mubr.bf16.mxu0 0
      %3048 = vmatmul.mubr.bf16.gmra.mrb[0].mxu0 %v2938
      %v3049 = vpop.f32.mrb[0].mxu0
      %v3050 = vadd.f32 %v2875, %v3049
      %v3051 = vpop.f32.mrb[0].mxu0
      %v3052 = vpop.f32.mrb[0].mxu0
      %v3053 = vadd.f32 %v2876, %v3052
      %v3054 = vpop.f32.mrb[0].mxu0
      %3055 = vmatprep.mubr.bf16.mxu0 0
      %3056 = vmatmul.mubr.bf16.gmra.mrb[0].mxu0 %v2941
      %v3057 = vpop.f32.mrb[0].mxu0
      %v3058 = vadd.f32 %v2877, %v3057
      %v3059 = vpop.f32.mrb[0].mxu0
      %v3060 = vpop.f32.mrb[0].mxu0
      %v3061 = vadd.f32 %v2878, %v3060
      %v3062 = vpop.f32.mrb[0].mxu0
      %3063 = vdwg.mxu0
      %3064 = vmax.xlane.f32.xlu0 %v3002
      %v3065 = vpop.xlane.xlu0 %3064
      %3066 = vmax.xlane.f32.xlu0 %v3005
      %v3067 = vpop.xlane.xlu0 %3066
      %3068 = vmax.xlane.f32.xlu0 %v3010
      %v3069 = vpop.xlane.xlu0 %3068
      %3070 = vmax.xlane.f32.xlu0 %v3013
      %v3071 = vpop.xlane.xlu0 %3070
      %3072 = vmax.xlane.f32.xlu0 %v3018
      %v3073 = vpop.xlane.xlu0 %3072
      %3074 = vmax.xlane.f32.xlu0 %v3021
      %v3075 = vpop.xlane.xlu0 %3074
      %3076 = vmax.xlane.f32.xlu0 %v3026
      %v3077 = vpop.xlane.xlu0 %3076
      %3078 = vmax.xlane.f32.xlu0 %v3029
      %v3079 = vpop.xlane.xlu0 %3078
      %3080 = vmax.xlane.f32.xlu0 %v3034
      %v3081 = vpop.xlane.xlu0 %3080
      %3082 = vmax.xlane.f32.xlu0 %v3037
      %v3083 = vpop.xlane.xlu0 %3082
      %3084 = vmax.xlane.f32.xlu0 %v3042
      %v3085 = vpop.xlane.xlu0 %3084
      %3086 = vmax.xlane.f32.xlu0 %v3045
      %v3087 = vpop.xlane.xlu0 %3086
      %3088 = vmax.xlane.f32.xlu0 %v3050
      %v3089 = vpop.xlane.xlu0 %3088
      %3090 = vmax.xlane.f32.xlu0 %v3053
      %v3091 = vpop.xlane.xlu0 %3090
      %3092 = vmax.xlane.f32.xlu0 %v3058
      %v3093 = vpop.xlane.xlu0 %3092
      %3094 = vmax.xlane.f32.xlu0 %v3061
      %v3095 = vpop.xlane.xlu0 %3094
      %v3096 = vsub.f32 %v3002, %v3065
      %v3097 = vsub.f32 %v3005, %v3067
      %v3098 = vsub.f32 %v3010, %v3069
      %v3099 = vsub.f32 %v3013, %v3071
      %v3100 = vsub.f32 %v3018, %v3073
      %v3101 = vsub.f32 %v3021, %v3075
      %v3102 = vsub.f32 %v3026, %v3077
      %v3103 = vsub.f32 %v3029, %v3079
      %v3104 = vsub.f32 %v3034, %v3081
      %v3105 = vsub.f32 %v3037, %v3083
      %v3106 = vsub.f32 %v3042, %v3085
      %v3107 = vsub.f32 %v3045, %v3087
      %v3108 = vsub.f32 %v3050, %v3089
      %v3109 = vsub.f32 %v3053, %v3091
      %v3110 = vsub.f32 %v3058, %v3093
      %v3111 = vsub.f32 %v3061, %v3095
      %v3112 = vmul.f32 %v3096, 1.442695
      %v3113 = vpow.pop %v3112
      %v3114 = vmul.f32 %v3097, 1.442695
      %v3115 = vpow.pop %v3114
      %v3116 = vmul.f32 %v3098, 1.442695
      %v3117 = vpow.pop %v3116
      %v3118 = vmul.f32 %v3099, 1.442695
      %v3119 = vpow.pop %v3118
      %v3120 = vmul.f32 %v3100, 1.442695
      %v3121 = vpow.pop %v3120
      %v3122 = vmul.f32 %v3101, 1.442695
      %v3123 = vpow.pop %v3122
      %v3124 = vmul.f32 %v3102, 1.442695
      %v3125 = vpow.pop %v3124
      %v3126 = vmul.f32 %v3103, 1.442695
      %v3127 = vpow.pop %v3126
      %v3128 = vmul.f32 %v3104, 1.442695
      %v3129 = vpow.pop %v3128
      %v3130 = vmul.f32 %v3105, 1.442695
      %v3131 = vpow.pop %v3130
      %v3132 = vmul.f32 %v3106, 1.442695
      %v3133 = vpow.pop %v3132
      %v3134 = vmul.f32 %v3107, 1.442695
      %v3135 = vpow.pop %v3134
      %v3136 = vmul.f32 %v3108, 1.442695
      %v3137 = vpow.pop %v3136
      %v3138 = vmul.f32 %v3109, 1.442695
      %v3139 = vpow.pop %v3138
      %v3140 = vmul.f32 %v3110, 1.442695
      %v3141 = vpow.pop %v3140
      %v3142 = vmul.f32 %v3111, 1.442695
      %v3143 = vpow.pop %v3142
      %v3144 = vmul.f32 %v3113, %v1446
      %v3145 = vmul.f32 %v3115, %v1446
      %v3146 = vmul.f32 %v3117, %v1446
      %v3147 = vmul.f32 %v3119, %v1446
      %v3148 = vmul.f32 %v3121, %v1446
      %v3149 = vmul.f32 %v3123, %v1446
      %v3150 = vmul.f32 %v3125, %v1446
      %v3151 = vmul.f32 %v3127, %v1446
      %v3152 = vmul.f32 %v3129, %v1446
      %v3153 = vmul.f32 %v3131, %v1446
      %v3154 = vmul.f32 %v3133, %v1446
      %v3155 = vmul.f32 %v3135, %v1446
      %v3156 = vmul.f32 %v3137, %v1446
      %v3157 = vmul.f32 %v3139, %v1446
      %v3158 = vmul.f32 %v3141, %v1446
      %v3159 = vmul.f32 %v3143, %v1446
      %3160 = vadd.xlane.f32.xlu0 %v3144
      %v3161 = vpop.xlane.xlu0 %3160
      %3162 = vadd.xlane.f32.xlu0 %v3145
      %v3163 = vpop.xlane.xlu0 %3162
      %3164 = vadd.xlane.f32.xlu0 %v3146
      %v3165 = vpop.xlane.xlu0 %3164
      %3166 = vadd.xlane.f32.xlu0 %v3147
      %v3167 = vpop.xlane.xlu0 %3166
      %3168 = vadd.xlane.f32.xlu0 %v3148
      %v3169 = vpop.xlane.xlu0 %3168
      %3170 = vadd.xlane.f32.xlu0 %v3149
      %v3171 = vpop.xlane.xlu0 %3170
      %3172 = vadd.xlane.f32.xlu0 %v3150
      %v3173 = vpop.xlane.xlu0 %3172
      %3174 = vadd.xlane.f32.xlu0 %v3151
      %v3175 = vpop.xlane.xlu0 %3174
      %3176 = vadd.xlane.f32.xlu0 %v3152
      %v3177 = vpop.xlane.xlu0 %3176
      %3178 = vadd.xlane.f32.xlu0 %v3153
      %v3179 = vpop.xlane.xlu0 %3178
      %3180 = vadd.xlane.f32.xlu0 %v3154
      %v3181 = vpop.xlane.xlu0 %3180
      %3182 = vadd.xlane.f32.xlu0 %v3155
      %v3183 = vpop.xlane.xlu0 %3182
      %3184 = vadd.xlane.f32.xlu0 %v3156
      %v3185 = vpop.xlane.xlu0 %3184
      %3186 = vadd.xlane.f32.xlu0 %v3157
      %v3187 = vpop.xlane.xlu0 %3186
      %3188 = vadd.xlane.f32.xlu0 %v3158
      %v3189 = vpop.xlane.xlu0 %3188
      %3190 = vadd.xlane.f32.xlu0 %v3159
      %v3191 = vpop.xlane.xlu0 %3190
      %v3192 = vrcp.pop %v3161
      %v3193 = vrcp.pop %v3163
      %v3194 = vrcp.pop %v3165
      %v3195 = vrcp.pop %v3167
      %v3196 = vrcp.pop %v3169
      %v3197 = vrcp.pop %v3171
      %v3198 = vrcp.pop %v3173
      %v3199 = vrcp.pop %v3175
      %v3200 = vrcp.pop %v3177
      %v3201 = vrcp.pop %v3179
      %v3202 = vrcp.pop %v3181
      %v3203 = vrcp.pop %v3183
      %v3204 = vrcp.pop %v3185
      %v3205 = vrcp.pop %v3187
      %v3206 = vrcp.pop %v3189
      %v3207 = vrcp.pop %v3191
      %v3208 = vmul.f32 %v3144, %v3192
      %v3209 = vmul.f32 %v3145, %v3193
      %v3210 = vmul.f32 %v3146, %v3194
      %v3211 = vmul.f32 %v3147, %v3195
      %v3212 = vmul.f32 %v3148, %v3196
      %v3213 = vmul.f32 %v3149, %v3197
      %v3214 = vmul.f32 %v3150, %v3198
      %v3215 = vmul.f32 %v3151, %v3199
      %v3216 = vmul.f32 %v3152, %v3200
      %v3217 = vmul.f32 %v3153, %v3201
      %v3218 = vmul.f32 %v3154, %v3202
      %v3219 = vmul.f32 %v3155, %v3203
      %v3220 = vmul.f32 %v3156, %v3204
      %v3221 = vmul.f32 %v3157, %v3205
      %v3222 = vmul.f32 %v3158, %v3206
      %v3223 = vmul.f32 %v3159, %v3207
      %v3224 = vpack.c.bf16 %v3209, %v3208
      %v3225 = vpack.c.bf16 %v3211, %v3210
      %v3226 = vpack.c.bf16 %v3213, %v3212
      %v3227 = vpack.c.bf16 %v3215, %v3214
      %v3228 = vpack.c.bf16 %v3217, %v3216
      %v3229 = vpack.c.bf16 %v3219, %v3218
      %v3230 = vpack.c.bf16 %v3221, %v3220
      %v3231 = vpack.c.bf16 %v3223, %v3222
      %3240 = vrot.lane.b32.xlu0 %v2855, 104
      %v3241 = vpop.permute.xlu0 %3240
      %3242 = vrot.lane.b32.xlu0 %v2856, 104
      %v3243 = vpop.permute.xlu0 %3242
      %3244 = vrot.lane.b32.xlu0 %v2857, 104
      %v3245 = vpop.permute.xlu0 %3244
      %3246 = vrot.lane.b32.xlu0 %v2858, 104
      %v3247 = vpop.permute.xlu0 %3246
      %3248 = vrot.lane.b32.xlu0 %v2859, 104
      %v3249 = vpop.permute.xlu0 %3248
      %3250 = vrot.lane.b32.xlu0 %v2860, 104
      %v3251 = vpop.permute.xlu0 %3250
      %3252 = vrot.lane.b32.xlu0 %v2861, 104
      %v3253 = vpop.permute.xlu0 %3252
      %3254 = vrot.lane.b32.xlu0 %v2862, 104
      %v3255 = vpop.permute.xlu0 %3254
      %3264 = vmatprep.subr.bf16.mxu0 0
      %3265 = vmatpush1.bf16.msra.mxu0 %v3241
      %3266 = vmatprep.subr.bf16.mxu0 0
      %3267 = vmatpush1.bf16.msra.mxu0 %v3243
      %3268 = vmatprep.subr.bf16.mxu0 0
      %3269 = vmatpush1.bf16.msra.mxu0 %v3245
      %3270 = vmatprep.subr.bf16.mxu0 0
      %3271 = vmatpush1.bf16.msra.mxu0 %v3247
      %3272 = vmatprep.subr.bf16.mxu0 0
      %3273 = vmatpush1.bf16.msra.mxu0 %v3249
      %3274 = vmatprep.subr.bf16.mxu0 0
      %3275 = vmatpush1.bf16.msra.mxu0 %v3251
      %3276 = vmatprep.subr.bf16.mxu0 0
      %3277 = vmatpush1.bf16.msra.mxu0 %v3253
      %3278 = vmatprep.subr.bf16.mxu0 0
      %3279 = vmatpush1.bf16.msra.mxu0 %v3255
      %3280 = vmatprep.subr.bf16.mxu0 0
      %3281 = vmatpush1.bf16.msra.mxu0 0
      %3282 = vmatprep.subr.bf16.mxu0 0
      %3283 = vmatpush1.bf16.msra.mxu0 0
      %3284 = vmatprep.subr.bf16.mxu0 0
      %3285 = vmatpush1.bf16.msra.mxu0 0
      %3286 = vmatprep.subr.bf16.mxu0 0
      %3287 = vmatpush1.bf16.msra.mxu0 0
      %3288 = vmatprep.subr.bf16.mxu0 0
      %3289 = vmatpush1.bf16.msra.mxu0 0
      %3290 = vmatprep.subr.bf16.mxu0 0
      %3291 = vmatpush1.bf16.msra.mxu0 0
      %3292 = vmatprep.subr.bf16.mxu0 0
      %3293 = vmatpush1.bf16.msra.mxu0 0
      %3294 = vmatprep.subr.bf16.mxu0 0
      %3295 = vmatpush1.bf16.msra.mxu0 0
      %3296 = vmatprep.mubr.bf16.mxu0 0
      %3297 = vmatmul.mubr.bf16.gmra.mrb[0].mxu0 %v3224
      %v3298 = vpop.f32.mrb[0].mxu0
      %v3299 = vadd.f32 0.0, %v3298
      %v3300 = vpop.f32.mrb[0].mxu0
      %v3301 = vpop.f32.mrb[0].mxu0
      %v3302 = vadd.f32 0.0, %v3301
      %v3303 = vpop.f32.mrb[0].mxu0
      %3304 = vmatprep.mubr.bf16.mxu0 0
      %3305 = vmatmul.mubr.bf16.gmra.mrb[0].mxu0 %v3225
      %v3306 = vpop.f32.mrb[0].mxu0
      %v3307 = vadd.f32 0.0, %v3306
      %v3308 = vpop.f32.mrb[0].mxu0
      %v3309 = vpop.f32.mrb[0].mxu0
      %v3310 = vadd.f32 0.0, %v3309
      %v3311 = vpop.f32.mrb[0].mxu0
      %3312 = vmatprep.mubr.bf16.mxu0 0
      %3313 = vmatmul.mubr.bf16.gmra.mrb[0].mxu0 %v3226
      %v3314 = vpop.f32.mrb[0].mxu0
      %v3315 = vadd.f32 0.0, %v3314
      %v3316 = vpop.f32.mrb[0].mxu0
      %v3317 = vpop.f32.mrb[0].mxu0
      %v3318 = vadd.f32 0.0, %v3317
      %v3319 = vpop.f32.mrb[0].mxu0
      %3320 = vmatprep.mubr.bf16.mxu0 0
      %3321 = vmatmul.mubr.bf16.gmra.mrb[0].mxu0 %v3227
      %v3322 = vpop.f32.mrb[0].mxu0
      %v3323 = vadd.f32 0.0, %v3322
      %v3324 = vpop.f32.mrb[0].mxu0
      %v3325 = vpop.f32.mrb[0].mxu0
      %v3326 = vadd.f32 0.0, %v3325
      %v3327 = vpop.f32.mrb[0].mxu0
      %3328 = vmatprep.mubr.bf16.mxu0 0
      %3329 = vmatmul.mubr.bf16.gmra.mrb[0].mxu0 %v3228
      %v3330 = vpop.f32.mrb[0].mxu0
      %v3331 = vadd.f32 0.0, %v3330
      %v3332 = vpop.f32.mrb[0].mxu0
      %v3333 = vpop.f32.mrb[0].mxu0
      %v3334 = vadd.f32 0.0, %v3333
      %v3335 = vpop.f32.mrb[0].mxu0
      %3336 = vmatprep.mubr.bf16.mxu0 0
      %3337 = vmatmul.mubr.bf16.gmra.mrb[0].mxu0 %v3229
      %v3338 = vpop.f32.mrb[0].mxu0
      %v3339 = vadd.f32 0.0, %v3338
      %v3340 = vpop.f32.mrb[0].mxu0
      %v3341 = vpop.f32.mrb[0].mxu0
      %v3342 = vadd.f32 0.0, %v3341
      %v3343 = vpop.f32.mrb[0].mxu0
      %3344 = vmatprep.mubr.bf16.mxu0 0
      %3345 = vmatmul.mubr.bf16.gmra.mrb[0].mxu0 %v3230
      %v3346 = vpop.f32.mrb[0].mxu0
      %v3347 = vadd.f32 0.0, %v3346
      %v3348 = vpop.f32.mrb[0].mxu0
      %v3349 = vpop.f32.mrb[0].mxu0
      %v3350 = vadd.f32 0.0, %v3349
      %v3351 = vpop.f32.mrb[0].mxu0
      %3352 = vmatprep.mubr.bf16.mxu0 0
      %3353 = vmatmul.mubr.bf16.gmra.mrb[0].mxu0 %v3231
      %v3354 = vpop.f32.mrb[0].mxu0
      %v3355 = vadd.f32 0.0, %v3354
      %v3356 = vpop.f32.mrb[0].mxu0
      %v3357 = vpop.f32.mrb[0].mxu0
      %v3358 = vadd.f32 0.0, %v3357
      %v3359 = vpop.f32.mrb[0].mxu0
      %3360 = vdwg.mxu0
      %3377 = vrot.lane.b32.xlu0 %v3299, 24
      %v3378 = vpop.permute.xlu0 %3377
      %3379 = vrot.lane.b32.xlu0 %v3302, 24
      %v3380 = vpop.permute.xlu0 %3379
      %3381 = vrot.lane.b32.xlu0 %v3307, 24
      %v3382 = vpop.permute.xlu0 %3381
      %3383 = vrot.lane.b32.xlu0 %v3310, 24
      %v3384 = vpop.permute.xlu0 %3383
      %3385 = vrot.lane.b32.xlu0 %v3315, 24
      %v3386 = vpop.permute.xlu0 %3385
      %3387 = vrot.lane.b32.xlu0 %v3318, 24
      %v3388 = vpop.permute.xlu0 %3387
      %3389 = vrot.lane.b32.xlu0 %v3323, 24
      %v3390 = vpop.permute.xlu0 %3389
      %3391 = vrot.lane.b32.xlu0 %v3326, 24
      %v3392 = vpop.permute.xlu0 %3391
      %3393 = vrot.lane.b32.xlu0 %v3331, 24
      %v3394 = vpop.permute.xlu0 %3393
      %3395 = vrot.lane.b32.xlu0 %v3334, 24
      %v3396 = vpop.permute.xlu0 %3395
      %3397 = vrot.lane.b32.xlu0 %v3339, 24
      %v3398 = vpop.permute.xlu0 %3397
      %3399 = vrot.lane.b32.xlu0 %v3342, 24
      %v3400 = vpop.permute.xlu0 %3399
      %3401 = vrot.lane.b32.xlu0 %v3347, 24
      %v3402 = vpop.permute.xlu0 %3401
      %3403 = vrot.lane.b32.xlu0 %v3350, 24
      %v3404 = vpop.permute.xlu0 %3403
      %3405 = vrot.lane.b32.xlu0 %v3355, 24
      %v3406 = vpop.permute.xlu0 %3405
      %3407 = vrot.lane.b32.xlu0 %v3358, 24
      %v3408 = vpop.permute.xlu0 %3407
      %vm3425 = vcmask 261312
      %3426 = vst.msk [vmem:[#allocation4] sm:$0xff] %vm3425, %v3378
      %3427 = vst.msk [vmem:[#allocation4 + $0x8] sm:$0xff] %vm3425, %v3380
      %3428 = vst.msk [vmem:[#allocation4 + $0x10] sm:$0xff] %vm3425, %v3382
      %3429 = vst.msk [vmem:[#allocation4 + $0x18] sm:$0xff] %vm3425, %v3384
      %3430 = vst.msk [vmem:[#allocation4 + $0x20] sm:$0xff] %vm3425, %v3386
      %3431 = vst.msk [vmem:[#allocation4 + $0x28] sm:$0xff] %vm3425, %v3388
      %3432 = vst.msk [vmem:[#allocation4 + $0x30] sm:$0xff] %vm3425, %v3390
      %3433 = vst.msk [vmem:[#allocation4 + $0x38] sm:$0xff] %vm3425, %v3392
      %3434 = vst.msk [vmem:[#allocation4 + $0x40] sm:$0xff] %vm3425, %v3394
      %3435 = vst.msk [vmem:[#allocation4 + $0x48] sm:$0xff] %vm3425, %v3396
      %3436 = vst.msk [vmem:[#allocation4 + $0x50] sm:$0xff] %vm3425, %v3398
      %3437 = vst.msk [vmem:[#allocation4 + $0x58] sm:$0xff] %vm3425, %v3400
      %3438 = vst.msk [vmem:[#allocation4 + $0x60] sm:$0xff] %vm3425, %v3402
      %3439 = vst.msk [vmem:[#allocation4 + $0x68] sm:$0xff] %vm3425, %v3404
      %3440 = vst.msk [vmem:[#allocation4 + $0x70] sm:$0xff] %vm3425, %v3406
      %3441 = vst.msk [vmem:[#allocation4 + $0x78] sm:$0xff] %vm3425, %v3408
      %v3442 = vld [vmem:[#allocation4] sm:$0xff]
      %v3443 = vld [vmem:[#allocation4 + $0x8] sm:$0xff]
      %v3444 = vld [vmem:[#allocation4 + $0x10] sm:$0xff]
      %v3445 = vld [vmem:[#allocation4 + $0x18] sm:$0xff]
      %v3446 = vld [vmem:[#allocation4 + $0x20] sm:$0xff]
      %v3447 = vld [vmem:[#allocation4 + $0x28] sm:$0xff]
      %v3448 = vld [vmem:[#allocation4 + $0x30] sm:$0xff]
      %v3449 = vld [vmem:[#allocation4 + $0x38] sm:$0xff]
      %v3450 = vld [vmem:[#allocation4 + $0x40] sm:$0xff]
      %v3451 = vld [vmem:[#allocation4 + $0x48] sm:$0xff]
      %v3452 = vld [vmem:[#allocation4 + $0x50] sm:$0xff]
      %v3453 = vld [vmem:[#allocation4 + $0x58] sm:$0xff]
      %v3454 = vld [vmem:[#allocation4 + $0x60] sm:$0xff]
      %v3455 = vld [vmem:[#allocation4 + $0x68] sm:$0xff]
      %v3456 = vld [vmem:[#allocation4 + $0x70] sm:$0xff]
      %v3457 = vld [vmem:[#allocation4 + $0x78] sm:$0xff]
      %v3458 = vpack.c.bf16 %v3443, %v3442
      %v3459 = vpack.c.bf16 %v3445, %v3444
      %v3460 = vpack.c.bf16 %v3447, %v3446
      %v3461 = vpack.c.bf16 %v3449, %v3448
      %v3462 = vpack.c.bf16 %v3451, %v3450
      %v3463 = vpack.c.bf16 %v3453, %v3452
      %v3464 = vpack.c.bf16 %v3455, %v3454
      %v3465 = vpack.c.bf16 %v3457, %v3456
      %v3466 = vld [vmem:[%s6] sm:$0xf]
      %v3467 = vld [vmem:[%s6 + $0x4] sm:$0xf]
      %v3468 = vld [vmem:[%s6 + $0x8] sm:$0xf]
      %v3469 = vld [vmem:[%s6 + $0xc] sm:$0xf]
      %v3470 = vld [vmem:[%s7] sm:$0x1]
      %v3472 = vlaneseq
      %v3473 = vshrl.u32 %v3472, 7
      %v3474 = vsub.s32 0, %v3473
      %v3475 = vrot.slane %v3470, %v3474
      %v3481 = vunpack.c.l.b16 %v3466
      %v3482 = vunpack.c.l.b16 %v3467
      %v3483 = vunpack.c.l.b16 %v3468
      %v3484 = vunpack.c.l.b16 %v3469
      %v3485 = vpack.c.b16 %v3482, %v3481
      %v3486 = vpack.c.b16 %v3484, %v3483
      %v3490 = vsel %vm921, %v3458, 0
      %v3493 = vsel %vm921, %v3459, 0
      %v3496 = vsel %vm921, %v3460, 0
      %v3499 = vsel %vm921, %v3461, 0
      %v3502 = vsel %vm921, %v3462, 0
      %v3505 = vsel %vm921, %v3463, 0
      %v3508 = vsel %vm921, %v3464, 0
      %v3511 = vsel %vm921, %v3465, 0
      %3513 = vmatprep.subr.bf16.mxu0 0
      %3514 = vmatpush1.bf16.msra.mxu0 %v3485
      %3515 = vmatprep.subr.bf16.mxu0 0
      %3516 = vmatpush1.bf16.msra.mxu0 %v3486
      %3517 = vmatprep.subr.bf16.mxu0 0
      %3518 = vmatpush1.bf16.msra.mxu0 0
      %3519 = vmatprep.subr.bf16.mxu0 0
      %3520 = vmatpush1.bf16.msra.mxu0 0
      %3521 = vmatprep.subr.bf16.mxu0 0
      %3522 = vmatpush1.bf16.msra.mxu0 0
      %3523 = vmatprep.subr.bf16.mxu0 0
      %3524 = vmatpush1.bf16.msra.mxu0 0
      %3525 = vmatprep.subr.bf16.mxu0 0
      %3526 = vmatpush1.bf16.msra.mxu0 0
      %3527 = vmatprep.subr.bf16.mxu0 0
      %3528 = vmatpush1.bf16.msra.mxu0 0
      %3529 = vmatprep.subr.bf16.mxu0 0
      %3530 = vmatpush1.bf16.msra.mxu0 0
      %3531 = vmatprep.subr.bf16.mxu0 0
      %3532 = vmatpush1.bf16.msra.mxu0 0
      %3533 = vmatprep.subr.bf16.mxu0 0
      %3534 = vmatpush1.bf16.msra.mxu0 0
      %3535 = vmatprep.subr.bf16.mxu0 0
      %3536 = vmatpush1.bf16.msra.mxu0 0
      %3537 = vmatprep.subr.bf16.mxu0 0
      %3538 = vmatpush1.bf16.msra.mxu0 0
      %3539 = vmatprep.subr.bf16.mxu0 0
      %3540 = vmatpush1.bf16.msra.mxu0 0
      %3541 = vmatprep.subr.bf16.mxu0 0
      %3542 = vmatpush1.bf16.msra.mxu0 0
      %3543 = vmatprep.subr.bf16.mxu0 0
      %3544 = vmatpush1.bf16.msra.mxu0 0
      %3545 = vmatprep.mubr.bf16.mxu0 0
      %3546 = vmatmul.mubr.bf16.gmra.mrb[0].mxu0 %v3490
      %v3547 = vpop.f32.mrb[0].mxu0
      %v3548 = vadd.f32 %v3475, %v3547
      %v3549 = vpop.f32.mrb[0].mxu0
      %v3550 = vpop.f32.mrb[0].mxu0
      %v3551 = vadd.f32 %v3475, %v3550
      %v3552 = vpop.f32.mrb[0].mxu0
      %3553 = vmatprep.mubr.bf16.mxu0 0
      %3554 = vmatmul.mubr.bf16.gmra.mrb[0].mxu0 %v3493
      %v3555 = vpop.f32.mrb[0].mxu0
      %v3556 = vadd.f32 %v3475, %v3555
      %v3557 = vpop.f32.mrb[0].mxu0
      %v3558 = vpop.f32.mrb[0].mxu0
      %v3559 = vadd.f32 %v3475, %v3558
      %v3560 = vpop.f32.mrb[0].mxu0
      %3561 = vmatprep.mubr.bf16.mxu0 0
      %3562 = vmatmul.mubr.bf16.gmra.mrb[0].mxu0 %v3496
      %v3563 = vpop.f32.mrb[0].mxu0
      %v3564 = vadd.f32 %v3475, %v3563
      %v3565 = vpop.f32.mrb[0].mxu0
      %v3566 = vpop.f32.mrb[0].mxu0
      %v3567 = vadd.f32 %v3475, %v3566
      %v3568 = vpop.f32.mrb[0].mxu0
      %3569 = vmatprep.mubr.bf16.mxu0 0
      %3570 = vmatmul.mubr.bf16.gmra.mrb[0].mxu0 %v3499
      %v3571 = vpop.f32.mrb[0].mxu0
      %v3572 = vadd.f32 %v3475, %v3571
      %v3573 = vpop.f32.mrb[0].mxu0
      %v3574 = vpop.f32.mrb[0].mxu0
      %v3575 = vadd.f32 %v3475, %v3574
      %v3576 = vpop.f32.mrb[0].mxu0
      %3577 = vmatprep.mubr.bf16.mxu0 0
      %3578 = vmatmul.mubr.bf16.gmra.mrb[0].mxu0 %v3502
      %v3579 = vpop.f32.mrb[0].mxu0
      %v3580 = vadd.f32 %v3475, %v3579
      %v3581 = vpop.f32.mrb[0].mxu0
      %v3582 = vpop.f32.mrb[0].mxu0
      %v3583 = vadd.f32 %v3475, %v3582
      %v3584 = vpop.f32.mrb[0].mxu0
      %3585 = vmatprep.mubr.bf16.mxu0 0
      %3586 = vmatmul.mubr.bf16.gmra.mrb[0].mxu0 %v3505
      %v3587 = vpop.f32.mrb[0].mxu0
      %v3588 = vadd.f32 %v3475, %v3587
      %v3589 = vpop.f32.mrb[0].mxu0
      %v3590 = vpop.f32.mrb[0].mxu0
      %v3591 = vadd.f32 %v3475, %v3590
      %v3592 = vpop.f32.mrb[0].mxu0
      %3593 = vmatprep.mubr.bf16.mxu0 0
      %3594 = vmatmul.mubr.bf16.gmra.mrb[0].mxu0 %v3508
      %v3595 = vpop.f32.mrb[0].mxu0
      %v3596 = vadd.f32 %v3475, %v3595
      %v3597 = vpop.f32.mrb[0].mxu0
      %v3598 = vpop.f32.mrb[0].mxu0
      %v3599 = vadd.f32 %v3475, %v3598
      %v3600 = vpop.f32.mrb[0].mxu0
      %3601 = vmatprep.mubr.bf16.mxu0 0
      %3602 = vmatmul.mubr.bf16.gmra.mrb[0].mxu0 %v3511
      %v3603 = vpop.f32.mrb[0].mxu0
      %v3604 = vadd.f32 %v3475, %v3603
      %v3605 = vpop.f32.mrb[0].mxu0
      %v3606 = vpop.f32.mrb[0].mxu0
      %v3607 = vadd.f32 %v3475, %v3606
      %v3608 = vpop.f32.mrb[0].mxu0
      %3609 = vdwg.mxu0
      %v3610 = vadd.f32 %v842, %v3548
      %v3611 = vadd.f32 %v843, %v3551
      %v3612 = vadd.f32 %v844, %v3556
      %v3613 = vadd.f32 %v845, %v3559
      %v3614 = vadd.f32 %v846, %v3564
      %v3615 = vadd.f32 %v847, %v3567
      %v3616 = vadd.f32 %v848, %v3572
      %v3617 = vadd.f32 %v849, %v3575
      %v3618 = vadd.f32 %v850, %v3580
      %v3619 = vadd.f32 %v851, %v3583
      %v3620 = vadd.f32 %v852, %v3588
      %v3621 = vadd.f32 %v853, %v3591
      %v3622 = vadd.f32 %v854, %v3596
      %v3623 = vadd.f32 %v855, %v3599
      %v3624 = vadd.f32 %v856, %v3604
      %v3625 = vadd.f32 %v857, %v3607
      %v3626 = vld [vmem:[%s8] sm:$0x1]
      %v3627 = vld [vmem:[%s9] sm:$0x1]
      %v3628 = vsel %vm921, %v3610, 0.0
      %3629 = vadd.xlane.f32.xlu0 %v3628
      %v3630 = vpop.xlane.xlu0 %3629
      %v3631 = vsel %vm921, %v3611, 0.0
      %3632 = vadd.xlane.f32.xlu0 %v3631
      %v3633 = vpop.xlane.xlu0 %3632
      %v3634 = vsel %vm921, %v3612, 0.0
      %3635 = vadd.xlane.f32.xlu0 %v3634
      %v3636 = vpop.xlane.xlu0 %3635
      %v3637 = vsel %vm921, %v3613, 0.0
      %3638 = vadd.xlane.f32.xlu0 %v3637
      %v3639 = vpop.xlane.xlu0 %3638
      %v3640 = vsel %vm921, %v3614, 0.0
      %3641 = vadd.xlane.f32.xlu0 %v3640
      %v3642 = vpop.xlane.xlu0 %3641
      %v3643 = vsel %vm921, %v3615, 0.0
      %3644 = vadd.xlane.f32.xlu0 %v3643
      %v3645 = vpop.xlane.xlu0 %3644
      %v3646 = vsel %vm921, %v3616, 0.0
      %3647 = vadd.xlane.f32.xlu0 %v3646
      %v3648 = vpop.xlane.xlu0 %3647
      %v3649 = vsel %vm921, %v3617, 0.0
      %3650 = vadd.xlane.f32.xlu0 %v3649
      %v3651 = vpop.xlane.xlu0 %3650
      %v3652 = vsel %vm921, %v3618, 0.0
      %3653 = vadd.xlane.f32.xlu0 %v3652
      %v3654 = vpop.xlane.xlu0 %3653
      %v3655 = vsel %vm921, %v3619, 0.0
      %3656 = vadd.xlane.f32.xlu0 %v3655
      %v3657 = vpop.xlane.xlu0 %3656
      %v3658 = vsel %vm921, %v3620, 0.0
      %3659 = vadd.xlane.f32.xlu0 %v3658
      %v3660 = vpop.xlane.xlu0 %3659
      %v3661 = vsel %vm921, %v3621, 0.0
      %3662 = vadd.xlane.f32.xlu0 %v3661
      %v3663 = vpop.xlane.xlu0 %3662
      %v3664 = vsel %vm921, %v3622, 0.0
      %3665 = vadd.xlane.f32.xlu0 %v3664
      %v3666 = vpop.xlane.xlu0 %3665
      %v3667 = vsel %vm921, %v3623, 0.0
      %3668 = vadd.xlane.f32.xlu0 %v3667
      %v3669 = vpop.xlane.xlu0 %3668
      %v3670 = vsel %vm921, %v3624, 0.0
      %3671 = vadd.xlane.f32.xlu0 %v3670
      %v3672 = vpop.xlane.xlu0 %3671
      %v3673 = vsel %vm921, %v3625, 0.0
      %3674 = vadd.xlane.f32.xlu0 %v3673
      %v3675 = vpop.xlane.xlu0 %3674
      %v3676 = vrcp.pop 32.0
      %v3677 = vmul.f32 %v3630, %v3676
      %v3678 = vmul.f32 %v3633, %v3676
      %v3679 = vmul.f32 %v3636, %v3676
      %v3680 = vmul.f32 %v3639, %v3676
      %v3681 = vmul.f32 %v3642, %v3676
      %v3682 = vmul.f32 %v3645, %v3676
      %v3683 = vmul.f32 %v3648, %v3676
      %v3684 = vmul.f32 %v3651, %v3676
      %v3685 = vmul.f32 %v3654, %v3676
      %v3686 = vmul.f32 %v3657, %v3676
      %v3687 = vmul.f32 %v3660, %v3676
      %v3688 = vmul.f32 %v3663, %v3676
      %v3689 = vmul.f32 %v3666, %v3676
      %v3690 = vmul.f32 %v3669, %v3676
      %v3691 = vmul.f32 %v3672, %v3676
      %v3692 = vmul.f32 %v3675, %v3676
      %v3693 = vsub.f32 %v3610, %v3677
      %v3694 = vsub.f32 %v3611, %v3678
      %v3695 = vsub.f32 %v3612, %v3679
      %v3696 = vsub.f32 %v3613, %v3680
      %v3697 = vsub.f32 %v3614, %v3681
      %v3698 = vsub.f32 %v3615, %v3682
      %v3699 = vsub.f32 %v3616, %v3683
      %v3700 = vsub.f32 %v3617, %v3684
      %v3701 = vsub.f32 %v3618, %v3685
      %v3702 = vsub.f32 %v3619, %v3686
      %v3703 = vsub.f32 %v3620, %v3687
      %v3704 = vsub.f32 %v3621, %v3688
      %v3705 = vsub.f32 %v3622, %v3689
      %v3706 = vsub.f32 %v3623, %v3690
      %v3707 = vsub.f32 %v3624, %v3691
      %v3708 = vsub.f32 %v3625, %v3692
      %v3709 = vmul.f32 %v3693, %v3693
      %v3710 = vmul.f32 %v3694, %v3694
      %v3711 = vmul.f32 %v3695, %v3695
      %v3712 = vmul.f32 %v3696, %v3696
      %v3713 = vmul.f32 %v3697, %v3697
      %v3714 = vmul.f32 %v3698, %v3698
      %v3715 = vmul.f32 %v3699, %v3699
      %v3716 = vmul.f32 %v3700, %v3700
      %v3717 = vmul.f32 %v3701, %v3701
      %v3718 = vmul.f32 %v3702, %v3702
      %v3719 = vmul.f32 %v3703, %v3703
      %v3720 = vmul.f32 %v3704, %v3704
      %v3721 = vmul.f32 %v3705, %v3705
      %v3722 = vmul.f32 %v3706, %v3706
      %v3723 = vmul.f32 %v3707, %v3707
      %v3724 = vmul.f32 %v3708, %v3708
      %v3725 = vsel %vm921, %v3709, 0.0
      %3726 = vadd.xlane.f32.xlu0 %v3725
      %v3727 = vpop.xlane.xlu0 %3726
      %v3728 = vsel %vm921, %v3710, 0.0
      %3729 = vadd.xlane.f32.xlu0 %v3728
      %v3730 = vpop.xlane.xlu0 %3729
      %v3731 = vsel %vm921, %v3711, 0.0
      %3732 = vadd.xlane.f32.xlu0 %v3731
      %v3733 = vpop.xlane.xlu0 %3732
      %v3734 = vsel %vm921, %v3712, 0.0
      %3735 = vadd.xlane.f32.xlu0 %v3734
      %v3736 = vpop.xlane.xlu0 %3735
      %v3737 = vsel %vm921, %v3713, 0.0
      %3738 = vadd.xlane.f32.xlu0 %v3737
      %v3739 = vpop.xlane.xlu0 %3738
      %v3740 = vsel %vm921, %v3714, 0.0
      %3741 = vadd.xlane.f32.xlu0 %v3740
      %v3742 = vpop.xlane.xlu0 %3741
      %v3743 = vsel %vm921, %v3715, 0.0
      %3744 = vadd.xlane.f32.xlu0 %v3743
      %v3745 = vpop.xlane.xlu0 %3744
      %v3746 = vsel %vm921, %v3716, 0.0
      %3747 = vadd.xlane.f32.xlu0 %v3746
      %v3748 = vpop.xlane.xlu0 %3747
      %v3749 = vsel %vm921, %v3717, 0.0
      %3750 = vadd.xlane.f32.xlu0 %v3749
      %v3751 = vpop.xlane.xlu0 %3750
      %v3752 = vsel %vm921, %v3718, 0.0
      %3753 = vadd.xlane.f32.xlu0 %v3752
      %v3754 = vpop.xlane.xlu0 %3753
      %v3755 = vsel %vm921, %v3719, 0.0
      %3756 = vadd.xlane.f32.xlu0 %v3755
      %v3757 = vpop.xlane.xlu0 %3756
      %v3758 = vsel %vm921, %v3720, 0.0
      %3759 = vadd.xlane.f32.xlu0 %v3758
      %v3760 = vpop.xlane.xlu0 %3759
      %v3761 = vsel %vm921, %v3721, 0.0
      %3762 = vadd.xlane.f32.xlu0 %v3761
      %v3763 = vpop.xlane.xlu0 %3762
      %v3764 = vsel %vm921, %v3722, 0.0
      %3765 = vadd.xlane.f32.xlu0 %v3764
      %v3766 = vpop.xlane.xlu0 %3765
      %v3767 = vsel %vm921, %v3723, 0.0
      %3768 = vadd.xlane.f32.xlu0 %v3767
      %v3769 = vpop.xlane.xlu0 %3768
      %v3770 = vsel %vm921, %v3724, 0.0
      %3771 = vadd.xlane.f32.xlu0 %v3770
      %v3772 = vpop.xlane.xlu0 %3771
      %v3773 = vmul.f32 %v3727, %v3676
      %v3774 = vmul.f32 %v3730, %v3676
      %v3775 = vmul.f32 %v3733, %v3676
      %v3776 = vmul.f32 %v3736, %v3676
      %v3777 = vmul.f32 %v3739, %v3676
      %v3778 = vmul.f32 %v3742, %v3676
      %v3779 = vmul.f32 %v3745, %v3676
      %v3780 = vmul.f32 %v3748, %v3676
      %v3781 = vmul.f32 %v3751, %v3676
      %v3782 = vmul.f32 %v3754, %v3676
      %v3783 = vmul.f32 %v3757, %v3676
      %v3784 = vmul.f32 %v3760, %v3676
      %v3785 = vmul.f32 %v3763, %v3676
      %v3786 = vmul.f32 %v3766, %v3676
      %v3787 = vmul.f32 %v3769, %v3676
      %v3788 = vmul.f32 %v3772, %v3676
      %v3789 = vadd.f32 %v3773, 1e-12
      %v3790 = vadd.f32 %v3774, 1e-12
      %v3791 = vadd.f32 %v3775, 1e-12
      %v3792 = vadd.f32 %v3776, 1e-12
      %v3793 = vadd.f32 %v3777, 1e-12
      %v3794 = vadd.f32 %v3778, 1e-12
      %v3795 = vadd.f32 %v3779, 1e-12
      %v3796 = vadd.f32 %v3780, 1e-12
      %v3797 = vadd.f32 %v3781, 1e-12
      %v3798 = vadd.f32 %v3782, 1e-12
      %v3799 = vadd.f32 %v3783, 1e-12
      %v3800 = vadd.f32 %v3784, 1e-12
      %v3801 = vadd.f32 %v3785, 1e-12
      %v3802 = vadd.f32 %v3786, 1e-12
      %v3803 = vadd.f32 %v3787, 1e-12
      %v3804 = vadd.f32 %v3788, 1e-12
      %v3805 = vrsqrt.pop %v3789
      %v3806 = vrsqrt.pop %v3790
      %v3807 = vrsqrt.pop %v3791
      %v3808 = vrsqrt.pop %v3792
      %v3809 = vrsqrt.pop %v3793
      %v3810 = vrsqrt.pop %v3794
      %v3811 = vrsqrt.pop %v3795
      %v3812 = vrsqrt.pop %v3796
      %v3813 = vrsqrt.pop %v3797
      %v3814 = vrsqrt.pop %v3798
      %v3815 = vrsqrt.pop %v3799
      %v3816 = vrsqrt.pop %v3800
      %v3817 = vrsqrt.pop %v3801
      %v3818 = vrsqrt.pop %v3802
      %v3819 = vrsqrt.pop %v3803
      %v3820 = vrsqrt.pop %v3804
      %v3821 = vmul.f32 %v3693, %v3805
      %v3822 = vmul.f32 %v3694, %v3806
      %v3823 = vmul.f32 %v3695, %v3807
      %v3824 = vmul.f32 %v3696, %v3808
      %v3825 = vmul.f32 %v3697, %v3809
      %v3826 = vmul.f32 %v3698, %v3810
      %v3827 = vmul.f32 %v3699, %v3811
      %v3828 = vmul.f32 %v3700, %v3812
      %v3829 = vmul.f32 %v3701, %v3813
      %v3830 = vmul.f32 %v3702, %v3814
      %v3831 = vmul.f32 %v3703, %v3815
      %v3832 = vmul.f32 %v3704, %v3816
      %v3833 = vmul.f32 %v3705, %v3817
      %v3834 = vmul.f32 %v3706, %v3818
      %v3835 = vmul.f32 %v3707, %v3819
      %v3836 = vmul.f32 %v3708, %v3820
      %v3838 = vlaneseq
      %v3839 = vshrl.u32 %v3838, 7
      %v3840 = vsub.s32 0, %v3839
      %v3841 = vrot.slane %v3626, %v3840
      %v3843 = vmul.f32 %v3821, %v3841
      %v3844 = vmul.f32 %v3822, %v3841
      %v3845 = vmul.f32 %v3823, %v3841
      %v3846 = vmul.f32 %v3824, %v3841
      %v3847 = vmul.f32 %v3825, %v3841
      %v3848 = vmul.f32 %v3826, %v3841
      %v3849 = vmul.f32 %v3827, %v3841
      %v3850 = vmul.f32 %v3828, %v3841
      %v3851 = vmul.f32 %v3829, %v3841
      %v3852 = vmul.f32 %v3830, %v3841
      %v3853 = vmul.f32 %v3831, %v3841
      %v3854 = vmul.f32 %v3832, %v3841
      %v3855 = vmul.f32 %v3833, %v3841
      %v3856 = vmul.f32 %v3834, %v3841
      %v3857 = vmul.f32 %v3835, %v3841
      %v3858 = vmul.f32 %v3836, %v3841
      %v3860 = vlaneseq
      %v3861 = vshrl.u32 %v3860, 7
      %v3862 = vsub.s32 0, %v3861
      %v3863 = vrot.slane %v3627, %v3862
      %v3865 = vadd.f32 %v3843, %v3863
      %v3866 = vadd.f32 %v3844, %v3863
      %v3867 = vadd.f32 %v3845, %v3863
      %v3868 = vadd.f32 %v3846, %v3863
      %v3869 = vadd.f32 %v3847, %v3863
      %v3870 = vadd.f32 %v3848, %v3863
      %v3871 = vadd.f32 %v3849, %v3863
      %v3872 = vadd.f32 %v3850, %v3863
      %v3873 = vadd.f32 %v3851, %v3863
      %v3874 = vadd.f32 %v3852, %v3863
      %v3875 = vadd.f32 %v3853, %v3863
      %v3876 = vadd.f32 %v3854, %v3863
      %v3877 = vadd.f32 %v3855, %v3863
      %v3878 = vadd.f32 %v3856, %v3863
      %v3879 = vadd.f32 %v3857, %v3863
      %v3880 = vadd.f32 %v3858, %v3863
      %v3881 = vpack.c.bf16 %v3866, %v3865
      %v3882 = vpack.c.bf16 %v3868, %v3867
      %v3883 = vpack.c.bf16 %v3870, %v3869
      %v3884 = vpack.c.bf16 %v3872, %v3871
      %v3885 = vpack.c.bf16 %v3874, %v3873
      %v3886 = vpack.c.bf16 %v3876, %v3875
      %v3887 = vpack.c.bf16 %v3878, %v3877
      %v3888 = vpack.c.bf16 %v3880, %v3879
      %v3889 = vld [vmem:[%s10] sm:$0xf]
      %v3890 = vld [vmem:[%s10 + $0x4] sm:$0xf]
      %v3891 = vld [vmem:[%s10 + $0x8] sm:$0xf]
      %v3892 = vld [vmem:[%s10 + $0xc] sm:$0xf]
      %v3893 = vld [vmem:[%s11] sm:$0x1]
      %v3895 = vlaneseq
      %v3896 = vshrl.u32 %v3895, 7
      %v3897 = vsub.s32 0, %v3896
      %v3898 = vrot.slane %v3893, %v3897
      %v3904 = vunpack.c.l.b16 %v3889
      %v3905 = vunpack.c.l.b16 %v3890
      %v3906 = vunpack.c.l.b16 %v3891
      %v3907 = vunpack.c.l.b16 %v3892
      %v3908 = vpack.c.b16 %v3905, %v3904
      %v3909 = vpack.c.b16 %v3907, %v3906
      %v3913 = vsel %vm921, %v3881, 0
      %v3916 = vsel %vm921, %v3882, 0
      %v3919 = vsel %vm921, %v3883, 0
      %v3922 = vsel %vm921, %v3884, 0
      %v3925 = vsel %vm921, %v3885, 0
      %v3928 = vsel %vm921, %v3886, 0
      %v3931 = vsel %vm921, %v3887, 0
      %v3934 = vsel %vm921, %v3888, 0
      %3936 = vmatprep.subr.bf16.mxu0 0
      %3937 = vmatpush1.bf16.msra.mxu0 %v3908
      %3938 = vmatprep.subr.bf16.mxu0 0
      %3939 = vmatpush1.bf16.msra.mxu0 %v3909
      %3940 = vmatprep.subr.bf16.mxu0 0
      %3941 = vmatpush1.bf16.msra.mxu0 0
      %3942 = vmatprep.subr.bf16.mxu0 0
      %3943 = vmatpush1.bf16.msra.mxu0 0
      %3944 = vmatprep.subr.bf16.mxu0 0
      %3945 = vmatpush1.bf16.msra.mxu0 0
      %3946 = vmatprep.subr.bf16.mxu0 0
      %3947 = vmatpush1.bf16.msra.mxu0 0
      %3948 = vmatprep.subr.bf16.mxu0 0
      %3949 = vmatpush1.bf16.msra.mxu0 0
      %3950 = vmatprep.subr.bf16.mxu0 0
      %3951 = vmatpush1.bf16.msra.mxu0 0
      %3952 = vmatprep.subr.bf16.mxu0 0
      %3953 = vmatpush1.bf16.msra.mxu0 0
      %3954 = vmatprep.subr.bf16.mxu0 0
      %3955 = vmatpush1.bf16.msra.mxu0 0
      %3956 = vmatprep.subr.bf16.mxu0 0
      %3957 = vmatpush1.bf16.msra.mxu0 0
      %3958 = vmatprep.subr.bf16.mxu0 0
      %3959 = vmatpush1.bf16.msra.mxu0 0
      %3960 = vmatprep.subr.bf16.mxu0 0
      %3961 = vmatpush1.bf16.msra.mxu0 0
      %3962 = vmatprep.subr.bf16.mxu0 0
      %3963 = vmatpush1.bf16.msra.mxu0 0
      %3964 = vmatprep.subr.bf16.mxu0 0
      %3965 = vmatpush1.bf16.msra.mxu0 0
      %3966 = vmatprep.subr.bf16.mxu0 0
      %3967 = vmatpush1.bf16.msra.mxu0 0
      %3968 = vmatprep.mubr.bf16.mxu0 0
      %3969 = vmatmul.mubr.bf16.gmra.mrb[0].mxu0 %v3913
      %v3970 = vpop.f32.mrb[0].mxu0
      %v3971 = vadd.f32 %v3898, %v3970
      %v3972 = vpop.f32.mrb[0].mxu0
      %v3973 = vpop.f32.mrb[0].mxu0
      %v3974 = vadd.f32 %v3898, %v3973
      %v3975 = vpop.f32.mrb[0].mxu0
      %3976 = vmatprep.mubr.bf16.mxu0 0
      %3977 = vmatmul.mubr.bf16.gmra.mrb[0].mxu0 %v3916
      %v3978 = vpop.f32.mrb[0].mxu0
      %v3979 = vadd.f32 %v3898, %v3978
      %v3980 = vpop.f32.mrb[0].mxu0
      %v3981 = vpop.f32.mrb[0].mxu0
      %v3982 = vadd.f32 %v3898, %v3981
      %v3983 = vpop.f32.mrb[0].mxu0
      %3984 = vmatprep.mubr.bf16.mxu0 0
      %3985 = vmatmul.mubr.bf16.gmra.mrb[0].mxu0 %v3919
      %v3986 = vpop.f32.mrb[0].mxu0
      %v3987 = vadd.f32 %v3898, %v3986
      %v3988 = vpop.f32.mrb[0].mxu0
      %v3989 = vpop.f32.mrb[0].mxu0
      %v3990 = vadd.f32 %v3898, %v3989
      %v3991 = vpop.f32.mrb[0].mxu0
      %3992 = vmatprep.mubr.bf16.mxu0 0
      %3993 = vmatmul.mubr.bf16.gmra.mrb[0].mxu0 %v3922
      %v3994 = vpop.f32.mrb[0].mxu0
      %v3995 = vadd.f32 %v3898, %v3994
      %v3996 = vpop.f32.mrb[0].mxu0
      %v3997 = vpop.f32.mrb[0].mxu0
      %v3998 = vadd.f32 %v3898, %v3997
      %v3999 = vpop.f32.mrb[0].mxu0
      %4000 = vmatprep.mubr.bf16.mxu0 0
      %4001 = vmatmul.mubr.bf16.gmra.mrb[0].mxu0 %v3925
      %v4002 = vpop.f32.mrb[0].mxu0
      %v4003 = vadd.f32 %v3898, %v4002
      %v4004 = vpop.f32.mrb[0].mxu0
      %v4005 = vpop.f32.mrb[0].mxu0
      %v4006 = vadd.f32 %v3898, %v4005
      %v4007 = vpop.f32.mrb[0].mxu0
      %4008 = vmatprep.mubr.bf16.mxu0 0
      %4009 = vmatmul.mubr.bf16.gmra.mrb[0].mxu0 %v3928
      %v4010 = vpop.f32.mrb[0].mxu0
      %v4011 = vadd.f32 %v3898, %v4010
      %v4012 = vpop.f32.mrb[0].mxu0
      %v4013 = vpop.f32.mrb[0].mxu0
      %v4014 = vadd.f32 %v3898, %v4013
      %v4015 = vpop.f32.mrb[0].mxu0
      %4016 = vmatprep.mubr.bf16.mxu0 0
      %4017 = vmatmul.mubr.bf16.gmra.mrb[0].mxu0 %v3931
      %v4018 = vpop.f32.mrb[0].mxu0
      %v4019 = vadd.f32 %v3898, %v4018
      %v4020 = vpop.f32.mrb[0].mxu0
      %v4021 = vpop.f32.mrb[0].mxu0
      %v4022 = vadd.f32 %v3898, %v4021
      %v4023 = vpop.f32.mrb[0].mxu0
      %4024 = vmatprep.mubr.bf16.mxu0 0
      %4025 = vmatmul.mubr.bf16.gmra.mrb[0].mxu0 %v3934
      %v4026 = vpop.f32.mrb[0].mxu0
      %v4027 = vadd.f32 %v3898, %v4026
      %v4028 = vpop.f32.mrb[0].mxu0
      %v4029 = vpop.f32.mrb[0].mxu0
      %v4030 = vadd.f32 %v3898, %v4029
      %v4031 = vpop.f32.mrb[0].mxu0
      %4032 = vdwg.mxu0
      %v4033 = vmul.f32 %v3971, %v3971
      %v4034 = vmul.f32 %v3974, %v3974
      %v4035 = vmul.f32 %v3979, %v3979
      %v4036 = vmul.f32 %v3982, %v3982
      %v4037 = vmul.f32 %v3987, %v3987
      %v4038 = vmul.f32 %v3990, %v3990
      %v4039 = vmul.f32 %v3995, %v3995
      %v4040 = vmul.f32 %v3998, %v3998
      %v4041 = vmul.f32 %v4003, %v4003
      %v4042 = vmul.f32 %v4006, %v4006
      %v4043 = vmul.f32 %v4011, %v4011
      %v4044 = vmul.f32 %v4014, %v4014
      %v4045 = vmul.f32 %v4019, %v4019
      %v4046 = vmul.f32 %v4022, %v4022
      %v4047 = vmul.f32 %v4027, %v4027
      %v4048 = vmul.f32 %v4030, %v4030
      %v4049 = vmul.f32 %v3971, %v4033
      %v4050 = vmul.f32 %v3974, %v4034
      %v4051 = vmul.f32 %v3979, %v4035
      %v4052 = vmul.f32 %v3982, %v4036
      %v4053 = vmul.f32 %v3987, %v4037
      %v4054 = vmul.f32 %v3990, %v4038
      %v4055 = vmul.f32 %v3995, %v4039
      %v4056 = vmul.f32 %v3998, %v4040
      %v4057 = vmul.f32 %v4003, %v4041
      %v4058 = vmul.f32 %v4006, %v4042
      %v4059 = vmul.f32 %v4011, %v4043
      %v4060 = vmul.f32 %v4014, %v4044
      %v4061 = vmul.f32 %v4019, %v4045
      %v4062 = vmul.f32 %v4022, %v4046
      %v4063 = vmul.f32 %v4027, %v4047
      %v4064 = vmul.f32 %v4030, %v4048
      %v4065 = vmul.f32 %v4049, 0.044715
      %v4066 = vmul.f32 %v4050, 0.044715
      %v4067 = vmul.f32 %v4051, 0.044715
      %v4068 = vmul.f32 %v4052, 0.044715
      %v4069 = vmul.f32 %v4053, 0.044715
      %v4070 = vmul.f32 %v4054, 0.044715
      %v4071 = vmul.f32 %v4055, 0.044715
      %v4072 = vmul.f32 %v4056, 0.044715
      %v4073 = vmul.f32 %v4057, 0.044715
      %v4074 = vmul.f32 %v4058, 0.044715
      %v4075 = vmul.f32 %v4059, 0.044715
      %v4076 = vmul.f32 %v4060, 0.044715
      %v4077 = vmul.f32 %v4061, 0.044715
      %v4078 = vmul.f32 %v4062, 0.044715
      %v4079 = vmul.f32 %v4063, 0.044715
      %v4080 = vmul.f32 %v4064, 0.044715
      %v4081 = vadd.f32 %v3971, %v4065
      %v4082 = vadd.f32 %v3974, %v4066
      %v4083 = vadd.f32 %v3979, %v4067
      %v4084 = vadd.f32 %v3982, %v4068
      %v4085 = vadd.f32 %v3987, %v4069
      %v4086 = vadd.f32 %v3990, %v4070
      %v4087 = vadd.f32 %v3995, %v4071
      %v4088 = vadd.f32 %v3998, %v4072
      %v4089 = vadd.f32 %v4003, %v4073
      %v4090 = vadd.f32 %v4006, %v4074
      %v4091 = vadd.f32 %v4011, %v4075
      %v4092 = vadd.f32 %v4014, %v4076
      %v4093 = vadd.f32 %v4019, %v4077
      %v4094 = vadd.f32 %v4022, %v4078
      %v4095 = vadd.f32 %v4027, %v4079
      %v4096 = vadd.f32 %v4030, %v4080
      %v4097 = vmul.f32 %v4081, 0.7978846
      %v4098 = vmul.f32 %v4082, 0.7978846
      %v4099 = vmul.f32 %v4083, 0.7978846
      %v4100 = vmul.f32 %v4084, 0.7978846
      %v4101 = vmul.f32 %v4085, 0.7978846
      %v4102 = vmul.f32 %v4086, 0.7978846
      %v4103 = vmul.f32 %v4087, 0.7978846
      %v4104 = vmul.f32 %v4088, 0.7978846
      %v4105 = vmul.f32 %v4089, 0.7978846
      %v4106 = vmul.f32 %v4090, 0.7978846
      %v4107 = vmul.f32 %v4091, 0.7978846
      %v4108 = vmul.f32 %v4092, 0.7978846
      %v4109 = vmul.f32 %v4093, 0.7978846
      %v4110 = vmul.f32 %v4094, 0.7978846
      %v4111 = vmul.f32 %v4095, 0.7978846
      %v4112 = vmul.f32 %v4096, 0.7978846
      %v4113 = vtanh.pop %v4097
      %v4114 = vtanh.pop %v4098
      %v4115 = vtanh.pop %v4099
      %v4116 = vtanh.pop %v4100
      %v4117 = vtanh.pop %v4101
      %v4118 = vtanh.pop %v4102
      %v4119 = vtanh.pop %v4103
      %v4120 = vtanh.pop %v4104
      %v4121 = vtanh.pop %v4105
      %v4122 = vtanh.pop %v4106
      %v4123 = vtanh.pop %v4107
      %v4124 = vtanh.pop %v4108
      %v4125 = vtanh.pop %v4109
      %v4126 = vtanh.pop %v4110
      %v4127 = vtanh.pop %v4111
      %v4128 = vtanh.pop %v4112
      %v4129 = vadd.f32 %v4113, 1.0
      %v4130 = vadd.f32 %v4114, 1.0
      %v4131 = vadd.f32 %v4115, 1.0
      %v4132 = vadd.f32 %v4116, 1.0
      %v4133 = vadd.f32 %v4117, 1.0
      %v4134 = vadd.f32 %v4118, 1.0
      %v4135 = vadd.f32 %v4119, 1.0
      %v4136 = vadd.f32 %v4120, 1.0
      %v4137 = vadd.f32 %v4121, 1.0
      %v4138 = vadd.f32 %v4122, 1.0
      %v4139 = vadd.f32 %v4123, 1.0
      %v4140 = vadd.f32 %v4124, 1.0
      %v4141 = vadd.f32 %v4125, 1.0
      %v4142 = vadd.f32 %v4126, 1.0
      %v4143 = vadd.f32 %v4127, 1.0
      %v4144 = vadd.f32 %v4128, 1.0
      %v4145 = vmul.f32 %v4129, 0.5
      %v4146 = vmul.f32 %v4130, 0.5
      %v4147 = vmul.f32 %v4131, 0.5
      %v4148 = vmul.f32 %v4132, 0.5
      %v4149 = vmul.f32 %v4133, 0.5
      %v4150 = vmul.f32 %v4134, 0.5
      %v4151 = vmul.f32 %v4135, 0.5
      %v4152 = vmul.f32 %v4136, 0.5
      %v4153 = vmul.f32 %v4137, 0.5
      %v4154 = vmul.f32 %v4138, 0.5
      %v4155 = vmul.f32 %v4139, 0.5
      %v4156 = vmul.f32 %v4140, 0.5
      %v4157 = vmul.f32 %v4141, 0.5
      %v4158 = vmul.f32 %v4142, 0.5
      %v4159 = vmul.f32 %v4143, 0.5
      %v4160 = vmul.f32 %v4144, 0.5
      %v4161 = vmul.f32 %v3971, %v4145
      %v4162 = vmul.f32 %v3974, %v4146
      %v4163 = vmul.f32 %v3979, %v4147
      %v4164 = vmul.f32 %v3982, %v4148
      %v4165 = vmul.f32 %v3987, %v4149
      %v4166 = vmul.f32 %v3990, %v4150
      %v4167 = vmul.f32 %v3995, %v4151
      %v4168 = vmul.f32 %v3998, %v4152
      %v4169 = vmul.f32 %v4003, %v4153
      %v4170 = vmul.f32 %v4006, %v4154
      %v4171 = vmul.f32 %v4011, %v4155
      %v4172 = vmul.f32 %v4014, %v4156
      %v4173 = vmul.f32 %v4019, %v4157
      %v4174 = vmul.f32 %v4022, %v4158
      %v4175 = vmul.f32 %v4027, %v4159
      %v4176 = vmul.f32 %v4030, %v4160
      %v4177 = vpack.c.bf16 %v4162, %v4161
      %v4178 = vpack.c.bf16 %v4164, %v4163
      %v4179 = vpack.c.bf16 %v4166, %v4165
      %v4180 = vpack.c.bf16 %v4168, %v4167
      %v4181 = vpack.c.bf16 %v4170, %v4169
      %v4182 = vpack.c.bf16 %v4172, %v4171
      %v4183 = vpack.c.bf16 %v4174, %v4173
      %v4184 = vpack.c.bf16 %v4176, %v4175
      %v4185 = vld [vmem:[%s12] sm:$0xf]
      %v4186 = vld [vmem:[%s12 + $0x4] sm:$0xf]
      %v4187 = vld [vmem:[%s12 + $0x8] sm:$0xf]
      %v4188 = vld [vmem:[%s12 + $0xc] sm:$0xf]
      %v4189 = vld [vmem:[%s12 + $0x10] sm:$0xf]
      %v4190 = vld [vmem:[%s12 + $0x14] sm:$0xf]
      %v4191 = vld [vmem:[%s12 + $0x18] sm:$0xf]
      %v4192 = vld [vmem:[%s12 + $0x1c] sm:$0xf]
      %v4193 = vld [vmem:[%s12 + $0x20] sm:$0xf]
      %v4194 = vld [vmem:[%s12 + $0x24] sm:$0xf]
      %v4195 = vld [vmem:[%s12 + $0x28] sm:$0xf]
      %v4196 = vld [vmem:[%s12 + $0x2c] sm:$0xf]
      %v4197 = vld [vmem:[%s12 + $0x30] sm:$0xf]
      %v4198 = vld [vmem:[%s12 + $0x34] sm:$0xf]
      %v4199 = vld [vmem:[%s12 + $0x38] sm:$0xf]
      %v4200 = vld [vmem:[%s12 + $0x3c] sm:$0xf]
      %v4201 = vld [vmem:[%s13] sm:$0x1]
      %v4203 = vlaneseq
      %v4204 = vshrl.u32 %v4203, 7
      %v4205 = vsub.s32 0, %v4204
      %v4206 = vrot.slane %v4201, %v4205
      %v4224 = vunpack.c.l.b16 %v4185
      %v4225 = vunpack.c.l.b16 %v4186
      %v4226 = vunpack.c.l.b16 %v4187
      %v4227 = vunpack.c.l.b16 %v4188
      %v4228 = vunpack.c.l.b16 %v4189
      %v4229 = vunpack.c.l.b16 %v4190
      %v4230 = vunpack.c.l.b16 %v4191
      %v4231 = vunpack.c.l.b16 %v4192
      %v4232 = vunpack.c.l.b16 %v4193
      %v4233 = vunpack.c.l.b16 %v4194
      %v4234 = vunpack.c.l.b16 %v4195
      %v4235 = vunpack.c.l.b16 %v4196
      %v4236 = vunpack.c.l.b16 %v4197
      %v4237 = vunpack.c.l.b16 %v4198
      %v4238 = vunpack.c.l.b16 %v4199
      %v4239 = vunpack.c.l.b16 %v4200
      %v4240 = vpack.c.b16 %v4225, %v4224
      %v4241 = vpack.c.b16 %v4227, %v4226
      %v4242 = vpack.c.b16 %v4229, %v4228
      %v4243 = vpack.c.b16 %v4231, %v4230
      %v4244 = vpack.c.b16 %v4233, %v4232
      %v4245 = vpack.c.b16 %v4235, %v4234
      %v4246 = vpack.c.b16 %v4237, %v4236
      %v4247 = vpack.c.b16 %v4239, %v4238
      %4256 = vmatprep.subr.bf16.mxu0 0
      %4257 = vmatpush1.bf16.msra.mxu0 %v4240
      %4258 = vmatprep.subr.bf16.mxu0 0
      %4259 = vmatpush1.bf16.msra.mxu0 %v4241
      %4260 = vmatprep.subr.bf16.mxu0 0
      %4261 = vmatpush1.bf16.msra.mxu0 %v4242
      %4262 = vmatprep.subr.bf16.mxu0 0
      %4263 = vmatpush1.bf16.msra.mxu0 %v4243
      %4264 = vmatprep.subr.bf16.mxu0 0
      %4265 = vmatpush1.bf16.msra.mxu0 %v4244
      %4266 = vmatprep.subr.bf16.mxu0 0
      %4267 = vmatpush1.bf16.msra.mxu0 %v4245
      %4268 = vmatprep.subr.bf16.mxu0 0
      %4269 = vmatpush1.bf16.msra.mxu0 %v4246
      %4270 = vmatprep.subr.bf16.mxu0 0
      %4271 = vmatpush1.bf16.msra.mxu0 %v4247
      %4272 = vmatprep.subr.bf16.mxu0 0
      %4273 = vmatpush1.bf16.msra.mxu0 0
      %4274 = vmatprep.subr.bf16.mxu0 0
      %4275 = vmatpush1.bf16.msra.mxu0 0
      %4276 = vmatprep.subr.bf16.mxu0 0
      %4277 = vmatpush1.bf16.msra.mxu0 0
      %4278 = vmatprep.subr.bf16.mxu0 0
      %4279 = vmatpush1.bf16.msra.mxu0 0
      %4280 = vmatprep.subr.bf16.mxu0 0
      %4281 = vmatpush1.bf16.msra.mxu0 0
      %4282 = vmatprep.subr.bf16.mxu0 0
      %4283 = vmatpush1.bf16.msra.mxu0 0
      %4284 = vmatprep.subr.bf16.mxu0 0
      %4285 = vmatpush1.bf16.msra.mxu0 0
      %4286 = vmatprep.subr.bf16.mxu0 0
      %4287 = vmatpush1.bf16.msra.mxu0 0
      %4288 = vmatprep.mubr.bf16.mxu0 0
      %4289 = vmatmul.mubr.bf16.gmra.mrb[0].mxu0 %v4177
      %v4290 = vpop.f32.mrb[0].mxu0
      %v4291 = vadd.f32 %v4206, %v4290
      %v4292 = vpop.f32.mrb[0].mxu0
      %v4293 = vpop.f32.mrb[0].mxu0
      %v4294 = vadd.f32 %v4206, %v4293
      %v4295 = vpop.f32.mrb[0].mxu0
      %4296 = vmatprep.mubr.bf16.mxu0 0
      %4297 = vmatmul.mubr.bf16.gmra.mrb[0].mxu0 %v4178
      %v4298 = vpop.f32.mrb[0].mxu0
      %v4299 = vadd.f32 %v4206, %v4298
      %v4300 = vpop.f32.mrb[0].mxu0
      %v4301 = vpop.f32.mrb[0].mxu0
      %v4302 = vadd.f32 %v4206, %v4301
      %v4303 = vpop.f32.mrb[0].mxu0
      %4304 = vmatprep.mubr.bf16.mxu0 0
      %4305 = vmatmul.mubr.bf16.gmra.mrb[0].mxu0 %v4179
      %v4306 = vpop.f32.mrb[0].mxu0
      %v4307 = vadd.f32 %v4206, %v4306
      %v4308 = vpop.f32.mrb[0].mxu0
      %v4309 = vpop.f32.mrb[0].mxu0
      %v4310 = vadd.f32 %v4206, %v4309
      %v4311 = vpop.f32.mrb[0].mxu0
      %4312 = vmatprep.mubr.bf16.mxu0 0
      %4313 = vmatmul.mubr.bf16.gmra.mrb[0].mxu0 %v4180
      %v4314 = vpop.f32.mrb[0].mxu0
      %v4315 = vadd.f32 %v4206, %v4314
      %v4316 = vpop.f32.mrb[0].mxu0
      %v4317 = vpop.f32.mrb[0].mxu0
      %v4318 = vadd.f32 %v4206, %v4317
      %v4319 = vpop.f32.mrb[0].mxu0
      %4320 = vmatprep.mubr.bf16.mxu0 0
      %4321 = vmatmul.mubr.bf16.gmra.mrb[0].mxu0 %v4181
      %v4322 = vpop.f32.mrb[0].mxu0
      %v4323 = vadd.f32 %v4206, %v4322
      %v4324 = vpop.f32.mrb[0].mxu0
      %v4325 = vpop.f32.mrb[0].mxu0
      %v4326 = vadd.f32 %v4206, %v4325
      %v4327 = vpop.f32.mrb[0].mxu0
      %4328 = vmatprep.mubr.bf16.mxu0 0
      %4329 = vmatmul.mubr.bf16.gmra.mrb[0].mxu0 %v4182
      %v4330 = vpop.f32.mrb[0].mxu0
      %v4331 = vadd.f32 %v4206, %v4330
      %v4332 = vpop.f32.mrb[0].mxu0
      %v4333 = vpop.f32.mrb[0].mxu0
      %v4334 = vadd.f32 %v4206, %v4333
      %v4335 = vpop.f32.mrb[0].mxu0
      %4336 = vmatprep.mubr.bf16.mxu0 0
      %4337 = vmatmul.mubr.bf16.gmra.mrb[0].mxu0 %v4183
      %v4338 = vpop.f32.mrb[0].mxu0
      %v4339 = vadd.f32 %v4206, %v4338
      %v4340 = vpop.f32.mrb[0].mxu0
      %v4341 = vpop.f32.mrb[0].mxu0
      %v4342 = vadd.f32 %v4206, %v4341
      %v4343 = vpop.f32.mrb[0].mxu0
      %4344 = vmatprep.mubr.bf16.mxu0 0
      %4345 = vmatmul.mubr.bf16.gmra.mrb[0].mxu0 %v4184
      %v4346 = vpop.f32.mrb[0].mxu0
      %v4347 = vadd.f32 %v4206, %v4346
      %v4348 = vpop.f32.mrb[0].mxu0
      %v4349 = vpop.f32.mrb[0].mxu0
      %v4350 = vadd.f32 %v4206, %v4349
      %v4351 = vpop.f32.mrb[0].mxu0
      %4352 = vdwg.mxu0
      %v4353 = vadd.f32 %v3865, %v4291
      %v4354 = vadd.f32 %v3866, %v4294
      %v4355 = vadd.f32 %v3867, %v4299
      %v4356 = vadd.f32 %v3868, %v4302
      %v4357 = vadd.f32 %v3869, %v4307
      %v4358 = vadd.f32 %v3870, %v4310
      %v4359 = vadd.f32 %v3871, %v4315
      %v4360 = vadd.f32 %v3872, %v4318
      %v4361 = vadd.f32 %v3873, %v4323
      %v4362 = vadd.f32 %v3874, %v4326
      %v4363 = vadd.f32 %v3875, %v4331
      %v4364 = vadd.f32 %v3876, %v4334
      %v4365 = vadd.f32 %v3877, %v4339
      %v4366 = vadd.f32 %v3878, %v4342
      %v4367 = vadd.f32 %v3879, %v4347
      %v4368 = vadd.f32 %v3880, %v4350
      %v4369 = vld [vmem:[%s14] sm:$0x1]
      %v4370 = vld [vmem:[%s15] sm:$0x1]
      %v4371 = vsel %vm921, %v4353, 0.0
      %4372 = vadd.xlane.f32.xlu0 %v4371
      %v4373 = vpop.xlane.xlu0 %4372
      %v4374 = vsel %vm921, %v4354, 0.0
      %4375 = vadd.xlane.f32.xlu0 %v4374
      %v4376 = vpop.xlane.xlu0 %4375
      %v4377 = vsel %vm921, %v4355, 0.0
      %4378 = vadd.xlane.f32.xlu0 %v4377
      %v4379 = vpop.xlane.xlu0 %4378
      %v4380 = vsel %vm921, %v4356, 0.0
      %4381 = vadd.xlane.f32.xlu0 %v4380
      %v4382 = vpop.xlane.xlu0 %4381
      %v4383 = vsel %vm921, %v4357, 0.0
      %4384 = vadd.xlane.f32.xlu0 %v4383
      %v4385 = vpop.xlane.xlu0 %4384
      %v4386 = vsel %vm921, %v4358, 0.0
      %4387 = vadd.xlane.f32.xlu0 %v4386
      %v4388 = vpop.xlane.xlu0 %4387
      %v4389 = vsel %vm921, %v4359, 0.0
      %4390 = vadd.xlane.f32.xlu0 %v4389
      %v4391 = vpop.xlane.xlu0 %4390
      %v4392 = vsel %vm921, %v4360, 0.0
      %4393 = vadd.xlane.f32.xlu0 %v4392
      %v4394 = vpop.xlane.xlu0 %4393
      %v4395 = vsel %vm921, %v4361, 0.0
      %4396 = vadd.xlane.f32.xlu0 %v4395
      %v4397 = vpop.xlane.xlu0 %4396
      %v4398 = vsel %vm921, %v4362, 0.0
      %4399 = vadd.xlane.f32.xlu0 %v4398
      %v4400 = vpop.xlane.xlu0 %4399
      %v4401 = vsel %vm921, %v4363, 0.0
      %4402 = vadd.xlane.f32.xlu0 %v4401
      %v4403 = vpop.xlane.xlu0 %4402
      %v4404 = vsel %vm921, %v4364, 0.0
      %4405 = vadd.xlane.f32.xlu0 %v4404
      %v4406 = vpop.xlane.xlu0 %4405
      %v4407 = vsel %vm921, %v4365, 0.0
      %4408 = vadd.xlane.f32.xlu0 %v4407
      %v4409 = vpop.xlane.xlu0 %4408
      %v4410 = vsel %vm921, %v4366, 0.0
      %4411 = vadd.xlane.f32.xlu0 %v4410
      %v4412 = vpop.xlane.xlu0 %4411
      %v4413 = vsel %vm921, %v4367, 0.0
      %4414 = vadd.xlane.f32.xlu0 %v4413
      %v4415 = vpop.xlane.xlu0 %4414
      %v4416 = vsel %vm921, %v4368, 0.0
      %4417 = vadd.xlane.f32.xlu0 %v4416
      %v4418 = vpop.xlane.xlu0 %4417
      %v4419 = vmul.f32 %v4373, %v3676
      %v4420 = vmul.f32 %v4376, %v3676
      %v4421 = vmul.f32 %v4379, %v3676
      %v4422 = vmul.f32 %v4382, %v3676
      %v4423 = vmul.f32 %v4385, %v3676
      %v4424 = vmul.f32 %v4388, %v3676
      %v4425 = vmul.f32 %v4391, %v3676
      %v4426 = vmul.f32 %v4394, %v3676
      %v4427 = vmul.f32 %v4397, %v3676
      %v4428 = vmul.f32 %v4400, %v3676
      %v4429 = vmul.f32 %v4403, %v3676
      %v4430 = vmul.f32 %v4406, %v3676
      %v4431 = vmul.f32 %v4409, %v3676
      %v4432 = vmul.f32 %v4412, %v3676
      %v4433 = vmul.f32 %v4415, %v3676
      %v4434 = vmul.f32 %v4418, %v3676
      %v4435 = vsub.f32 %v4353, %v4419
      %v4436 = vsub.f32 %v4354, %v4420
      %v4437 = vsub.f32 %v4355, %v4421
      %v4438 = vsub.f32 %v4356, %v4422
      %v4439 = vsub.f32 %v4357, %v4423
      %v4440 = vsub.f32 %v4358, %v4424
      %v4441 = vsub.f32 %v4359, %v4425
      %v4442 = vsub.f32 %v4360, %v4426
      %v4443 = vsub.f32 %v4361, %v4427
      %v4444 = vsub.f32 %v4362, %v4428
      %v4445 = vsub.f32 %v4363, %v4429
      %v4446 = vsub.f32 %v4364, %v4430
      %v4447 = vsub.f32 %v4365, %v4431
      %v4448 = vsub.f32 %v4366, %v4432
      %v4449 = vsub.f32 %v4367, %v4433
      %v4450 = vsub.f32 %v4368, %v4434
      %v4451 = vmul.f32 %v4435, %v4435
      %v4452 = vmul.f32 %v4436, %v4436
      %v4453 = vmul.f32 %v4437, %v4437
      %v4454 = vmul.f32 %v4438, %v4438
      %v4455 = vmul.f32 %v4439, %v4439
      %v4456 = vmul.f32 %v4440, %v4440
      %v4457 = vmul.f32 %v4441, %v4441
      %v4458 = vmul.f32 %v4442, %v4442
      %v4459 = vmul.f32 %v4443, %v4443
      %v4460 = vmul.f32 %v4444, %v4444
      %v4461 = vmul.f32 %v4445, %v4445
      %v4462 = vmul.f32 %v4446, %v4446
      %v4463 = vmul.f32 %v4447, %v4447
      %v4464 = vmul.f32 %v4448, %v4448
      %v4465 = vmul.f32 %v4449, %v4449
      %v4466 = vmul.f32 %v4450, %v4450
      %v4467 = vsel %vm921, %v4451, 0.0
      %4468 = vadd.xlane.f32.xlu0 %v4467
      %v4469 = vpop.xlane.xlu0 %4468
      %v4470 = vsel %vm921, %v4452, 0.0
      %4471 = vadd.xlane.f32.xlu0 %v4470
      %v4472 = vpop.xlane.xlu0 %4471
      %v4473 = vsel %vm921, %v4453, 0.0
      %4474 = vadd.xlane.f32.xlu0 %v4473
      %v4475 = vpop.xlane.xlu0 %4474
      %v4476 = vsel %vm921, %v4454, 0.0
      %4477 = vadd.xlane.f32.xlu0 %v4476
      %v4478 = vpop.xlane.xlu0 %4477
      %v4479 = vsel %vm921, %v4455, 0.0
      %4480 = vadd.xlane.f32.xlu0 %v4479
      %v4481 = vpop.xlane.xlu0 %4480
      %v4482 = vsel %vm921, %v4456, 0.0
      %4483 = vadd.xlane.f32.xlu0 %v4482
      %v4484 = vpop.xlane.xlu0 %4483
      %v4485 = vsel %vm921, %v4457, 0.0
      %4486 = vadd.xlane.f32.xlu0 %v4485
      %v4487 = vpop.xlane.xlu0 %4486
      %v4488 = vsel %vm921, %v4458, 0.0
      %4489 = vadd.xlane.f32.xlu0 %v4488
      %v4490 = vpop.xlane.xlu0 %4489
      %v4491 = vsel %vm921, %v4459, 0.0
      %4492 = vadd.xlane.f32.xlu0 %v4491
      %v4493 = vpop.xlane.xlu0 %4492
      %v4494 = vsel %vm921, %v4460, 0.0
      %4495 = vadd.xlane.f32.xlu0 %v4494
      %v4496 = vpop.xlane.xlu0 %4495
      %v4497 = vsel %vm921, %v4461, 0.0
      %4498 = vadd.xlane.f32.xlu0 %v4497
      %v4499 = vpop.xlane.xlu0 %4498
      %v4500 = vsel %vm921, %v4462, 0.0
      %4501 = vadd.xlane.f32.xlu0 %v4500
      %v4502 = vpop.xlane.xlu0 %4501
      %v4503 = vsel %vm921, %v4463, 0.0
      %4504 = vadd.xlane.f32.xlu0 %v4503
      %v4505 = vpop.xlane.xlu0 %4504
      %v4506 = vsel %vm921, %v4464, 0.0
      %4507 = vadd.xlane.f32.xlu0 %v4506
      %v4508 = vpop.xlane.xlu0 %4507
      %v4509 = vsel %vm921, %v4465, 0.0
      %4510 = vadd.xlane.f32.xlu0 %v4509
      %v4511 = vpop.xlane.xlu0 %4510
      %v4512 = vsel %vm921, %v4466, 0.0
      %4513 = vadd.xlane.f32.xlu0 %v4512
      %v4514 = vpop.xlane.xlu0 %4513
      %v4515 = vmul.f32 %v4469, %v3676
      %v4516 = vmul.f32 %v4472, %v3676
      %v4517 = vmul.f32 %v4475, %v3676
      %v4518 = vmul.f32 %v4478, %v3676
      %v4519 = vmul.f32 %v4481, %v3676
      %v4520 = vmul.f32 %v4484, %v3676
      %v4521 = vmul.f32 %v4487, %v3676
      %v4522 = vmul.f32 %v4490, %v3676
      %v4523 = vmul.f32 %v4493, %v3676
      %v4524 = vmul.f32 %v4496, %v3676
      %v4525 = vmul.f32 %v4499, %v3676
      %v4526 = vmul.f32 %v4502, %v3676
      %v4527 = vmul.f32 %v4505, %v3676
      %v4528 = vmul.f32 %v4508, %v3676
      %v4529 = vmul.f32 %v4511, %v3676
      %v4530 = vmul.f32 %v4514, %v3676
      %v4531 = vadd.f32 %v4515, 1e-12
      %v4532 = vadd.f32 %v4516, 1e-12
      %v4533 = vadd.f32 %v4517, 1e-12
      %v4534 = vadd.f32 %v4518, 1e-12
      %v4535 = vadd.f32 %v4519, 1e-12
      %v4536 = vadd.f32 %v4520, 1e-12
      %v4537 = vadd.f32 %v4521, 1e-12
      %v4538 = vadd.f32 %v4522, 1e-12
      %v4539 = vadd.f32 %v4523, 1e-12
      %v4540 = vadd.f32 %v4524, 1e-12
      %v4541 = vadd.f32 %v4525, 1e-12
      %v4542 = vadd.f32 %v4526, 1e-12
      %v4543 = vadd.f32 %v4527, 1e-12
      %v4544 = vadd.f32 %v4528, 1e-12
      %v4545 = vadd.f32 %v4529, 1e-12
      %v4546 = vadd.f32 %v4530, 1e-12
      %v4547 = vrsqrt.pop %v4531
      %v4548 = vrsqrt.pop %v4532
      %v4549 = vrsqrt.pop %v4533
      %v4550 = vrsqrt.pop %v4534
      %v4551 = vrsqrt.pop %v4535
      %v4552 = vrsqrt.pop %v4536
      %v4553 = vrsqrt.pop %v4537
      %v4554 = vrsqrt.pop %v4538
      %v4555 = vrsqrt.pop %v4539
      %v4556 = vrsqrt.pop %v4540
      %v4557 = vrsqrt.pop %v4541
      %v4558 = vrsqrt.pop %v4542
      %v4559 = vrsqrt.pop %v4543
      %v4560 = vrsqrt.pop %v4544
      %v4561 = vrsqrt.pop %v4545
      %v4562 = vrsqrt.pop %v4546
      %v4563 = vmul.f32 %v4435, %v4547
      %v4564 = vmul.f32 %v4436, %v4548
      %v4565 = vmul.f32 %v4437, %v4549
      %v4566 = vmul.f32 %v4438, %v4550
      %v4567 = vmul.f32 %v4439, %v4551
      %v4568 = vmul.f32 %v4440, %v4552
      %v4569 = vmul.f32 %v4441, %v4553
      %v4570 = vmul.f32 %v4442, %v4554
      %v4571 = vmul.f32 %v4443, %v4555
      %v4572 = vmul.f32 %v4444, %v4556
      %v4573 = vmul.f32 %v4445, %v4557
      %v4574 = vmul.f32 %v4446, %v4558
      %v4575 = vmul.f32 %v4447, %v4559
      %v4576 = vmul.f32 %v4448, %v4560
      %v4577 = vmul.f32 %v4449, %v4561
      %v4578 = vmul.f32 %v4450, %v4562
      %v4580 = vlaneseq
      %v4581 = vshrl.u32 %v4580, 7
      %v4582 = vsub.s32 0, %v4581
      %v4583 = vrot.slane %v4369, %v4582
      %v4585 = vmul.f32 %v4563, %v4583
      %v4586 = vmul.f32 %v4564, %v4583
      %v4587 = vmul.f32 %v4565, %v4583
      %v4588 = vmul.f32 %v4566, %v4583
      %v4589 = vmul.f32 %v4567, %v4583
      %v4590 = vmul.f32 %v4568, %v4583
      %v4591 = vmul.f32 %v4569, %v4583
      %v4592 = vmul.f32 %v4570, %v4583
      %v4593 = vmul.f32 %v4571, %v4583
      %v4594 = vmul.f32 %v4572, %v4583
      %v4595 = vmul.f32 %v4573, %v4583
      %v4596 = vmul.f32 %v4574, %v4583
      %v4597 = vmul.f32 %v4575, %v4583
      %v4598 = vmul.f32 %v4576, %v4583
      %v4599 = vmul.f32 %v4577, %v4583
      %v4600 = vmul.f32 %v4578, %v4583
      %v4602 = vlaneseq
      %v4603 = vshrl.u32 %v4602, 7
      %v4604 = vsub.s32 0, %v4603
      %v4605 = vrot.slane %v4370, %v4604
      %v4607 = vadd.f32 %v4585, %v4605
      %v4608 = vadd.f32 %v4586, %v4605
      %v4609 = vadd.f32 %v4587, %v4605
      %v4610 = vadd.f32 %v4588, %v4605
      %v4611 = vadd.f32 %v4589, %v4605
      %v4612 = vadd.f32 %v4590, %v4605
      %v4613 = vadd.f32 %v4591, %v4605
      %v4614 = vadd.f32 %v4592, %v4605
      %v4615 = vadd.f32 %v4593, %v4605
      %v4616 = vadd.f32 %v4594, %v4605
      %v4617 = vadd.f32 %v4595, %v4605
      %v4618 = vadd.f32 %v4596, %v4605
      %v4619 = vadd.f32 %v4597, %v4605
      %v4620 = vadd.f32 %v4598, %v4605
      %v4621 = vadd.f32 %v4599, %v4605
      %v4622 = vadd.f32 %v4600, %v4605
      %4623 = vst.msk [vmem:[%s557] sm:$0xff] %vm921, %v4607
      %4624 = vst.msk [vmem:[%s557 + $0x8] sm:$0xff] %vm921, %v4608
      %4625 = vst.msk [vmem:[%s557 + $0x10] sm:$0xff] %vm921, %v4609
      %4626 = vst.msk [vmem:[%s557 + $0x18] sm:$0xff] %vm921, %v4610
      %4627 = vst.msk [vmem:[%s557 + $0x20] sm:$0xff] %vm921, %v4611
      %4628 = vst.msk [vmem:[%s557 + $0x28] sm:$0xff] %vm921, %v4612
      %4629 = vst.msk [vmem:[%s557 + $0x30] sm:$0xff] %vm921, %v4613
      %4630 = vst.msk [vmem:[%s557 + $0x38] sm:$0xff] %vm921, %v4614
      %4631 = vst.msk [vmem:[%s557 + $0x40] sm:$0xff] %vm921, %v4615
      %4632 = vst.msk [vmem:[%s557 + $0x48] sm:$0xff] %vm921, %v4616
      %4633 = vst.msk [vmem:[%s557 + $0x50] sm:$0xff] %vm921, %v4617
      %4634 = vst.msk [vmem:[%s557 + $0x58] sm:$0xff] %vm921, %v4618
      %4635 = vst.msk [vmem:[%s557 + $0x60] sm:$0xff] %vm921, %v4619
      %4636 = vst.msk [vmem:[%s557 + $0x68] sm:$0xff] %vm921, %v4620
      %4637 = vst.msk [vmem:[%s557 + $0x70] sm:$0xff] %vm921, %v4621
      %4638 = vst.msk [vmem:[%s557 + $0x78] sm:$0xff] %vm921, %v4622
      %s4639 = smul.u32 16, %s32
      %p4640 = scmp.lt.s32.totalorder %s31, 1
      %s4641 = scalar_select %p4640, %s31, 1
      %p4642 = scmp.lt.s32.totalorder %s4639, 15
      %s4643 = scalar_select %p4642, %s4639, 15
      %s4644 = smul.addr %s4641, 16
      %s4645 = sadd.s32 %s4643, %s4644
      %s4646 = smul.addr %s4645, 8
      %s4647 = scalar_lea.vmem %s16, %s4646
      // Predicated region
      $region89: #{tpu_custom_call.1} parent=83 // pred_check
        %p4648 = pneg %p405
      $region90: #{tpu_custom_call.1} parent=83 // pred_check_branch
        %4650 = sbr.rel (%p4648) target = $region92
      $region91: #{tpu_custom_call.1} parent=83 // pred_region
        %s4651 = smul.u32 16, %s32
      $region92: #{tpu_custom_call.1} parent=83 // pred_fallthru
        _
    $region84: #{tpu_custom_call.1} parent=5 // pred_fallthru
      _
    %p4652 = scmp.le.s32.totalorder 2, %s22
    // Predicated region
    $region93: #{tpu_custom_call.1} parent=5 // pred_check
      %p4653 = pneg %p4652
    $region94: #{tpu_custom_call.1} parent=5 // pred_check_branch
      %4655 = sbr.rel (%p4653) target = $region96
    $region95: #{tpu_custom_call.1} parent=5 // pred_region
      %s4656 = ssub.s32 %s22, 2
      // Predicated region
      $region97: #{tpu_custom_call.1} parent=95 // pred_check
        %p4657 = pneg %p411
      $region98: #{tpu_custom_call.1} parent=95 // pred_check_branch
        %4659 = sbr.rel (%p4657) target = $region100
      $region99: #{tpu_custom_call.1} parent=95 // pred_region
        %s4660 = smul.u32 16, %s34
        %p4661 = scmp.lt.s32.totalorder %s33, 1
        %s4662 = scalar_select %p4661, %s33, 1
        %p4663 = scmp.lt.s32.totalorder %s4660, 15
        %s4664 = scalar_select %p4663, %s4660, 15
        %s4665 = smul.addr %s4662, 16
        %s4666 = sadd.s32 %s4664, %s4665
        %s4667 = smul.addr %s4666, 8
        %s4668 = scalar_lea.vmem %s16, %s4667
      $region100: #{tpu_custom_call.1} parent=95 // pred_fallthru
        _
    $region96: #{tpu_custom_call.1} parent=5 // pred_fallthru
      _
  $region6: #{tpu_custom_call.1} parent=0 // loop_footer
    %s26 = sadd.s32 1, %s22
  $region7: #{tpu_custom_call.1} parent=0 // loop_footer_branch
    %21 = sbr.rel target = $region3
  $region8: #{tpu_custom_call.1} parent=0 // loop_exit
    _

</llo_original>
